<compile_context>
chip_gen: v5e
topology: v5e:2x2
jax: 0.10.0
libtpu: 0.0.40
codegen_flags: <defaults>
</compile_context>

<pallas_src>
import functools

import jax
import jax.numpy as jnp
import numpy as np
from jax.experimental import pallas as pl
from jax.experimental.pallas import tpu as pltpu

BN_EPS = 1e-5
EXPANSION = 4


# ----------------------------------------------------------------------------
# Fused Bottleneck kernel: one batch element per grid step.
# ----------------------------------------------------------------------------
def _bottleneck_kernel(x_ref, mask_ref, w1_ref, w2_ref, w3_ref, *rest,
                       H, W, planes, has_down):
    """x_ref    : (1, Hp*Wp, Cin) bf16  spatially zero-padded input (pad=1), flattened
       mask_ref : (Hp*Wp, 1)      f32   1.0 on interior pixels, 0.0 on the halo
       w1_ref   : (Cin, P)        bf16  conv1 (1x1)
       w2_ref   : (9, P, P)       bf16  conv2 (3x3) taps, (kh,kw) flattened, (in,out)
       w3_ref   : (P, 4P)         bf16  conv3 (1x1)
       [wd_ref  : (Cin, 4P)       bf16  downsample 1x1]           (only if has_down)
       s*/b*    : (1, C)          f32   folded BatchNorm scale / bias
       o_ref    : (1, H*W, 4P)    f32
    """
    if has_down:
        (wd_ref, s1_ref, b1_ref, s2_ref, b2_ref, s3_ref, b3_ref,
         sd_ref, bd_ref, o_ref) = rest
    else:
        (s1_ref, b1_ref, s2_ref, b2_ref, s3_ref, b3_ref, o_ref) = rest

    P = planes
    cout = EXPANSION * planes
    Hp, Wp = H + 2, W + 2
    HW = H * W

    x = x_ref[0]                                            # (Hp*Wp, Cin) bf16

    # ---- conv1 (1x1) + bn1 + relu on the padded grid; halo forced to zero so it
    # ---- acts as conv2's zero padding (all in VMEM).
    t1 = jnp.dot(x, w1_ref[...], preferred_element_type=jnp.float32)
    t1 = jnp.maximum(t1 * s1_ref[...] + b1_ref[...], 0.0) * mask_ref[...]
    t1 = t1.reshape(Hp, Wp, P)                              # (Hp, Wp, P) f32, zero halo

    # ---- conv2 (3x3, stride 1, pad 1) + bn2 + relu: 9 unrolled tap matmuls, f32 acc.
    acc = jnp.zeros((HW, P), jnp.float32)
    for kh in range(3):
        for kw in range(3):
            tap = t1[kh:kh + H, kw:kw + W, :].reshape(HW, P).astype(w2_ref.dtype)
            acc = acc + jnp.dot(tap, w2_ref[kh * 3 + kw],
                                preferred_element_type=jnp.float32)
    t2 = jnp.maximum(acc * s2_ref[...] + b2_ref[...], 0.0)  # (HW, P) f32

    # ---- conv3 (1x1) + bn3.
    t3 = jnp.dot(t2.astype(w3_ref.dtype), w3_ref[...],
                 preferred_element_type=jnp.float32)
    t3 = t3 * s3_ref[...] + b3_ref[...]                     # (HW, 4P) f32

    # ---- residual branch, VMEM-resident (never touches HBM).
    if has_down:
        r = jnp.dot(x, wd_ref[...], preferred_element_type=jnp.float32)
        r = r * sd_ref[...] + bd_ref[...]                   # (Hp*Wp, 4P) f32
        r = r.reshape(Hp, Wp, cout)[1:H + 1, 1:W + 1, :].reshape(HW, cout)
    else:
        xi = x.astype(jnp.float32).reshape(Hp, Wp, cout)    # identity: Cin == 4P
        r = xi[1:H + 1, 1:W + 1, :].reshape(HW, cout)

    out = jnp.maximum(t3 + r, 0.0)
    o_ref[...] = out.reshape(1, HW, cout).astype(o_ref.dtype)


# ----------------------------------------------------------------------------
# Parameter helpers + module forward (wrapper glue in plain JAX)
# ----------------------------------------------------------------------------
def fold_bn(gamma, beta, mean, var, eps=BN_EPS):
    scale = gamma / jnp.sqrt(var + eps)
    return scale, beta - mean * scale


def soft_mask(weight, mask_weight, ticket):
    # TODO(synk): SoftMaskedConv2d source not provided; standard continuous
    # sparsification assumed (no temperature / scaling factor).
    if ticket:
        m = (mask_weight > 0).astype(weight.dtype)
    else:
        m = jax.nn.sigmoid(mask_weight)
    return weight * m


def bottleneck_sparse_forward(x_nchw, params, ticket):
    """Fused Bottleneck_sparse.forward(x, ticket); inference-mode BatchNorm."""
    # TODO(synk): stride > 1 not implemented (this instantiation uses stride=1).
    N, Cin, H, W = x_nchw.shape
    planes = params["conv2_w"].shape[0]
    cout = EXPANSION * planes
    Hp, Wp = H + 2, W + 2
    has_down = "down_w" in params

    # NCHW -> NHWC, pad spatially by 1 (conv1 is 1x1: evaluating it on the padded
    # grid + zeroing the halo in-kernel builds conv2's padded input in VMEM),
    # flatten spatial, cast to bf16.
    x = jnp.transpose(x_nchw, (0, 2, 3, 1))
    xp = jnp.pad(x, ((0, 0), (1, 1), (1, 1), (0, 0)))
    xp = xp.reshape(N, Hp * Wp, Cin).astype(jnp.bfloat16)

    # Interior mask: 1 on real pixels, 0 on the 1-pixel halo.
    m = np.zeros((Hp, Wp), np.float32)
    m[1:H + 1, 1:W + 1] = 1.0
    mask = jnp.asarray(m.reshape(Hp * Wp, 1))

    # Soft-masked conv weights, pre-reshaped to their matmul layouts, bf16.
    w1 = soft_mask(params["conv1_w"], params["conv1_mw"], ticket)
    w1 = w1.reshape(planes, Cin).T.astype(jnp.bfloat16)                 # (Cin, P)
    w2 = soft_mask(params["conv2_w"], params["conv2_mw"], ticket)
    w2 = jnp.transpose(w2, (2, 3, 1, 0)).reshape(9, planes, planes)     # (9, P, P)
    w2 = w2.astype(jnp.bfloat16)
    w3 = soft_mask(params["conv3_w"], params["conv3_mw"], ticket)
    w3 = w3.reshape(cout, planes).T.astype(jnp.bfloat16)                # (P, 4P)

    # Folded (inference) BatchNorm scale/bias, f32, shaped (1, C).
    s1, b1 = fold_bn(params["bn1_gamma"], params["bn1_beta"],
                     params["bn1_mean"], params["bn1_var"])
    s2, b2 = fold_bn(params["bn2_gamma"], params["bn2_beta"],
                     params["bn2_mean"], params["bn2_var"])
    s3, b3 = fold_bn(params["bn3_gamma"], params["bn3_beta"],
                     params["bn3_mean"], params["bn3_var"])
    sb = lambda a: a.reshape(1, -1).astype(jnp.float32)

    args = [xp, mask, w1, w2, w3]
    in_specs = [
        pl.BlockSpec((1, Hp * Wp, Cin), lambda n: (n, 0, 0)),
        pl.BlockSpec((Hp * Wp, 1), lambda n: (0, 0)),
        pl.BlockSpec((Cin, planes), lambda n: (0, 0)),
        pl.BlockSpec((9, planes, planes), lambda n: (0, 0, 0)),
        pl.BlockSpec((planes, cout), lambda n: (0, 0)),
    ]
    if has_down:
        wd = params["down_w"].reshape(cout, Cin).T.astype(jnp.bfloat16)  # (Cin, 4P)
        args.append(wd)
        in_specs.append(pl.BlockSpec((Cin, cout), lambda n: (0, 0)))

    args += [sb(s1), sb(b1), sb(s2), sb(b2), sb(s3), sb(b3)]
    in_specs += [pl.BlockSpec((1, planes), lambda n: (0, 0))] * 4
    in_specs += [pl.BlockSpec((1, cout), lambda n: (0, 0))] * 2
    if has_down:
        sd, bd = fold_bn(params["dbn_gamma"], params["dbn_beta"],
                         params["dbn_mean"], params["dbn_var"])
        args += [sb(sd), sb(bd)]
        in_specs += [pl.BlockSpec((1, cout), lambda n: (0, 0))] * 2

    kernel = functools.partial(_bottleneck_kernel, H=H, W=W, planes=planes,
                               has_down=has_down)
    out = pl.pallas_call(
        kernel,
        out_shape=jax.ShapeDtypeStruct((N, H * W, cout), jnp.float32),
        grid=(N,),
        in_specs=in_specs,
        out_specs=pl.BlockSpec((1, H * W, cout), lambda n: (n, 0, 0)),
        compiler_params=pltpu.CompilerParams(dimension_semantics=("parallel",)),
    )(*args)

    out = out.reshape(N, H, W, cout)
    return jnp.transpose(out, (0, 3, 1, 2))  # NHWC -> NCHW


# ----------------------------------------------------------------------------
# Deterministic parameter init
# ----------------------------------------------------------------------------
def init_params(key, in_planes, planes):
    cout = EXPANSION * planes
    ks = jax.random.split(key, 24)
    p = {}
    p["conv1_w"] = jax.random.normal(ks[0], (planes, in_planes, 1, 1), jnp.float32) * 0.2
    p["conv1_mw"] = jax.random.normal(ks[1], (planes, in_planes, 1, 1), jnp.float32)
    p["bn1_gamma"] = jax.random.uniform(ks[2], (planes,), jnp.float32, 0.5, 1.5)
    p["bn1_beta"] = jax.random.normal(ks[3], (planes,), jnp.float32) * 0.1
    p["bn1_mean"] = jax.random.normal(ks[4], (planes,), jnp.float32) * 0.1
    p["bn1_var"] = jax.random.uniform(ks[5], (planes,), jnp.float32, 0.5, 1.5)

    p["conv2_w"] = jax.random.normal(ks[6], (planes, planes, 3, 3), jnp.float32) * 0.1
    p["conv2_mw"] = jax.random.normal(ks[7], (planes, planes, 3, 3), jnp.float32)
    p["bn2_gamma"] = jax.random.uniform(ks[8], (planes,), jnp.float32, 0.5, 1.5)
    p["bn2_beta"] = jax.random.normal(ks[9], (planes,), jnp.float32) * 0.1
    p["bn2_mean"] = jax.random.normal(ks[10], (planes,), jnp.float32) * 0.1
    p["bn2_var"] = jax.random.uniform(ks[11], (planes,), jnp.float32, 0.5, 1.5)

    p["conv3_w"] = jax.random.normal(ks[12], (cout, planes, 1, 1), jnp.float32) * 0.2
    p["conv3_mw"] = jax.random.normal(ks[13], (cout, planes, 1, 1), jnp.float32)
    p["bn3_gamma"] = jax.random.uniform(ks[14], (cout,), jnp.float32, 0.5, 1.5)
    p["bn3_beta"] = jax.random.normal(ks[15], (cout,), jnp.float32) * 0.1
    p["bn3_mean"] = jax.random.normal(ks[16], (cout,), jnp.float32) * 0.1
    p["bn3_var"] = jax.random.uniform(ks[17], (cout,), jnp.float32, 0.5, 1.5)

    if in_planes != cout:  # stride=1: downsample = 1x1 conv + BN
        p["down_w"] = jax.random.normal(ks[18], (cout, in_planes, 1, 1), jnp.float32) * 0.2
        p["dbn_gamma"] = jax.random.uniform(ks[19], (cout,), jnp.float32, 0.5, 1.5)
        p["dbn_beta"] = jax.random.normal(ks[20], (cout,), jnp.float32) * 0.1
        p["dbn_mean"] = jax.random.normal(ks[21], (cout,), jnp.float32) * 0.1
        p["dbn_var"] = jax.random.uniform(ks[22], (cout,), jnp.float32, 0.5, 1.5)
    return p


# ----------------------------------------------------------------------------
# Pure-JAX reference (mirrors the kernel's bf16-matmul / f32-epilogue dtypes)
# ----------------------------------------------------------------------------
def _ref_conv(x_nhwc, w_oihw, pad):
    w = jnp.transpose(w_oihw, (2, 3, 1, 0)).astype(x_nhwc.dtype)  # OIHW -> HWIO
    return jax.lax.conv_general_dilated(
        x_nhwc, w, (1, 1), [(pad, pad), (pad, pad)],
        dimension_numbers=("NHWC", "HWIO", "NHWC"),
        preferred_element_type=jnp.float32)


def _ref_bn(x, p, prefix):
    g, b = p[prefix + "_gamma"], p[prefix + "_beta"]
    mu, v = p[prefix + "_mean"], p[prefix + "_var"]
    return (x - mu) / jnp.sqrt(v + BN_EPS) * g + b


def reference_forward(x_nchw, params, ticket):
    x = jnp.transpose(x_nchw, (0, 2, 3, 1)).astype(jnp.bfloat16)
    w1 = soft_mask(params["conv1_w"], params["conv1_mw"], ticket)
    t = jax.nn.relu(_ref_bn(_ref_conv(x, w1, 0), params, "bn1"))
    w2 = soft_mask(params["conv2_w"], params["conv2_mw"], ticket)
    t = jax.nn.relu(_ref_bn(_ref_conv(t.astype(jnp.bfloat16), w2, 1), params, "bn2"))
    w3 = soft_mask(params["conv3_w"], params["conv3_mw"], ticket)
    t = _ref_bn(_ref_conv(t.astype(jnp.bfloat16), w3, 0), params, "bn3")
    if "down_w" in params:
        r = _ref_bn(_ref_conv(x, params["down_w"], 0), params, "dbn")
    else:
        r = x.astype(jnp.float32)
    out = jax.nn.relu(t + r)
    return jnp.transpose(out, (0, 3, 1, 2))


if __name__ == "__main__":
    N, H, W = 2, 16, 16
    key = jax.random.PRNGKey(0)

    # (in_planes, planes): first config exercises the 1x1-conv downsample path
    # (in_planes != expansion*planes), second the identity-residual path.
    for in_planes, planes in ((4, 8), (32, 8)):
        key, kx, kp = jax.random.split(key, 3)
        x = jax.random.normal(kx, (N, in_planes, H, W), jnp.float32)
        params = init_params(kp, in_planes, planes)
        for ticket in (False, True):
            out = jax.block_until_ready(bottleneck_sparse_forward(x, params, ticket))
            ref = jax.block_until_ready(reference_forward(x, params, ticket))
            assert out.shape == (N, EXPANSION * planes, H, W)
            err = float(jnp.max(jnp.abs(out - ref)))
            assert jnp.allclose(out, ref, atol=1e-2, rtol=1e-2), (
                f"mismatch in_planes={in_planes} ticket={ticket}: max err {err}")

    print("KERNEL_OK")
</pallas_src>

<mosaic_0001>
module attributes {stable_mosaic.version = 11 : i64} {
  func.func @_bottleneck_kernel(%arg0: i32, %arg1: memref<1x324x4xbf16, #tpu.memory_space<vmem>>, %arg2: memref<324x1xf32, #tpu.memory_space<vmem>>, %arg3: memref<4x8xbf16, #tpu.memory_space<vmem>>, %arg4: memref<9x8x8xbf16, #tpu.memory_space<vmem>>, %arg5: memref<8x32xbf16, #tpu.memory_space<vmem>>, %arg6: memref<4x32xbf16, #tpu.memory_space<vmem>>, %arg7: memref<1x8xf32, #tpu.memory_space<vmem>>, %arg8: memref<1x8xf32, #tpu.memory_space<vmem>>, %arg9: memref<1x8xf32, #tpu.memory_space<vmem>>, %arg10: memref<1x8xf32, #tpu.memory_space<vmem>>, %arg11: memref<1x32xf32, #tpu.memory_space<vmem>>, %arg12: memref<1x32xf32, #tpu.memory_space<vmem>>, %arg13: memref<1x32xf32, #tpu.memory_space<vmem>>, %arg14: memref<1x32xf32, #tpu.memory_space<vmem>>, %arg15: memref<1x256x32xf32, #tpu.memory_space<vmem>>) attributes {dimension_semantics = [#tpu.dimension_semantics<parallel>], iteration_bounds = array<i64: 2>, scalar_prefetch = 0 : i64, scratch_operands = 0 : i64, tpu.core_type = #tpu.core_type<tc>, window_params = [{transform_indices = @transform_0, window_bounds = array<i64: 1, 324, 4>}, {pipeline_mode = #tpu.pipeline_mode<synchronous>, transform_indices = @transform_1, window_bounds = array<i64: 324, 1>}, {pipeline_mode = #tpu.pipeline_mode<synchronous>, transform_indices = @transform_2, window_bounds = array<i64: 4, 8>}, {pipeline_mode = #tpu.pipeline_mode<synchronous>, transform_indices = @transform_3, window_bounds = array<i64: 9, 8, 8>}, {pipeline_mode = #tpu.pipeline_mode<synchronous>, transform_indices = @transform_4, window_bounds = array<i64: 8, 32>}, {pipeline_mode = #tpu.pipeline_mode<synchronous>, transform_indices = @transform_5, window_bounds = array<i64: 4, 32>}, {pipeline_mode = #tpu.pipeline_mode<synchronous>, transform_indices = @transform_6, window_bounds = array<i64: 1, 8>}, {pipeline_mode = #tpu.pipeline_mode<synchronous>, transform_indices = @transform_7, window_bounds = array<i64: 1, 8>}, {pipeline_mode = #tpu.pipeline_mode<synchronous>, transform_indices = @transform_8, window_bounds = array<i64: 1, 8>}, {pipeline_mode = #tpu.pipeline_mode<synchronous>, transform_indices = @transform_9, window_bounds = array<i64: 1, 8>}, {pipeline_mode = #tpu.pipeline_mode<synchronous>, transform_indices = @transform_10, window_bounds = array<i64: 1, 32>}, {pipeline_mode = #tpu.pipeline_mode<synchronous>, transform_indices = @transform_11, window_bounds = array<i64: 1, 32>}, {pipeline_mode = #tpu.pipeline_mode<synchronous>, transform_indices = @transform_12, window_bounds = array<i64: 1, 32>}, {pipeline_mode = #tpu.pipeline_mode<synchronous>, transform_indices = @transform_13, window_bounds = array<i64: 1, 32>}, {transform_indices = @transform_14, window_bounds = array<i64: 1, 256, 32>}]} {
    %c0 = arith.constant 0 : index
    %c0_0 = arith.constant 0 : index
    %c0_1 = arith.constant 0 : index
    %0 = vector.load %arg1[%c0, %c0_0, %c0_1] : memref<1x324x4xbf16, #tpu.memory_space<vmem>>, vector<1x324x4xbf16>
    %1 = vector.shape_cast %0 : vector<1x324x4xbf16> to vector<324x4xbf16>
    %c0_2 = arith.constant 0 : index
    %c0_3 = arith.constant 0 : index
    %2 = vector.load %arg3[%c0_2, %c0_3] : memref<4x8xbf16, #tpu.memory_space<vmem>>, vector<4x8xbf16>
    %cst = arith.constant dense<0.000000e+00> : vector<324x8xf32>
    %3 = tpu.matmul %1, %2, %cst {dimension_numbers = #tpu.dot_dimension_numbers<[1], [0], [0], [1], [0, 0, 1, 1], [], []>} : vector<324x4xbf16>, vector<4x8xbf16>, vector<324x8xf32> -> vector<324x8xf32>
    %c0_4 = arith.constant 0 : index
    %c0_5 = arith.constant 0 : index
    %4 = vector.load %arg7[%c0_4, %c0_5] : memref<1x8xf32, #tpu.memory_space<vmem>>, vector<1x8xf32>
    %5 = vector.broadcast %4 : vector<1x8xf32> to vector<324x8xf32>
    %6 = arith.mulf %3, %5 : vector<324x8xf32>
    %c0_6 = arith.constant 0 : index
    %c0_7 = arith.constant 0 : index
    %7 = vector.load %arg8[%c0_6, %c0_7] : memref<1x8xf32, #tpu.memory_space<vmem>>, vector<1x8xf32>
    %8 = vector.broadcast %7 : vector<1x8xf32> to vector<324x8xf32>
    %9 = arith.addf %6, %8 : vector<324x8xf32>
    %cst_8 = arith.constant 0.000000e+00 : f32
    %10 = vector.broadcast %cst_8 : f32 to vector<324x8xf32>
    %11 = arith.maximumf %9, %10 : vector<324x8xf32>
    %c0_9 = arith.constant 0 : index
    %c0_10 = arith.constant 0 : index
    %12 = vector.load %arg2[%c0_9, %c0_10] : memref<324x1xf32, #tpu.memory_space<vmem>>, vector<324x1xf32>
    %13 = vector.broadcast %12 : vector<324x1xf32> to vector<324x8xf32>
    %14 = arith.mulf %11, %13 : vector<324x8xf32>
    %15 = vector.shape_cast %14 : vector<324x8xf32> to vector<18x18x8xf32>
    %cst_11 = arith.constant 0.000000e+00 : f32
    %16 = vector.broadcast %cst_11 : f32 to vector<256x8xf32>
    %17 = vector.extract_strided_slice %15 {offsets = [0, 0, 0], sizes = [16, 16, 8], strides = [1, 1, 1]} : vector<18x18x8xf32> to vector<16x16x8xf32>
    %18 = vector.shape_cast %17 : vector<16x16x8xf32> to vector<256x8xf32>
    %19 = arith.truncf %18 : vector<256x8xf32> to vector<256x8xbf16>
    %c0_12 = arith.constant 0 : index
    %c0_13 = arith.constant 0 : index
    %c0_14 = arith.constant 0 : index
    %20 = vector.load %arg4[%c0_12, %c0_13, %c0_14] : memref<9x8x8xbf16, #tpu.memory_space<vmem>>, vector<1x8x8xbf16>
    %21 = vector.shape_cast %20 : vector<1x8x8xbf16> to vector<8x8xbf16>
    %cst_15 = arith.constant dense<0.000000e+00> : vector<256x8xf32>
    %22 = tpu.matmul %19, %21, %cst_15 {dimension_numbers = #tpu.dot_dimension_numbers<[1], [0], [0], [1], [0, 0, 1, 1], [], []>} : vector<256x8xbf16>, vector<8x8xbf16>, vector<256x8xf32> -> vector<256x8xf32>
    %23 = arith.addf %16, %22 : vector<256x8xf32>
    %24 = vector.extract_strided_slice %15 {offsets = [0, 1, 0], sizes = [16, 16, 8], strides = [1, 1, 1]} : vector<18x18x8xf32> to vector<16x16x8xf32>
    %25 = vector.shape_cast %24 : vector<16x16x8xf32> to vector<256x8xf32>
    %26 = arith.truncf %25 : vector<256x8xf32> to vector<256x8xbf16>
    %c1 = arith.constant 1 : index
    %c0_16 = arith.constant 0 : index
    %c0_17 = arith.constant 0 : index
    %27 = vector.load %arg4[%c1, %c0_16, %c0_17] : memref<9x8x8xbf16, #tpu.memory_space<vmem>>, vector<1x8x8xbf16>
    %28 = vector.shape_cast %27 : vector<1x8x8xbf16> to vector<8x8xbf16>
    %cst_18 = arith.constant dense<0.000000e+00> : vector<256x8xf32>
    %29 = tpu.matmul %26, %28, %cst_18 {dimension_numbers = #tpu.dot_dimension_numbers<[1], [0], [0], [1], [0, 0, 1, 1], [], []>} : vector<256x8xbf16>, vector<8x8xbf16>, vector<256x8xf32> -> vector<256x8xf32>
    %30 = arith.addf %23, %29 : vector<256x8xf32>
    %31 = vector.extract_strided_slice %15 {offsets = [0, 2, 0], sizes = [16, 16, 8], strides = [1, 1, 1]} : vector<18x18x8xf32> to vector<16x16x8xf32>
    %32 = vector.shape_cast %31 : vector<16x16x8xf32> to vector<256x8xf32>
    %33 = arith.truncf %32 : vector<256x8xf32> to vector<256x8xbf16>
    %c2 = arith.constant 2 : index
    %c0_19 = arith.constant 0 : index
    %c0_20 = arith.constant 0 : index
    %34 = vector.load %arg4[%c2, %c0_19, %c0_20] : memref<9x8x8xbf16, #tpu.memory_space<vmem>>, vector<1x8x8xbf16>
    %35 = vector.shape_cast %34 : vector<1x8x8xbf16> to vector<8x8xbf16>
    %cst_21 = arith.constant dense<0.000000e+00> : vector<256x8xf32>
    %36 = tpu.matmul %33, %35, %cst_21 {dimension_numbers = #tpu.dot_dimension_numbers<[1], [0], [0], [1], [0, 0, 1, 1], [], []>} : vector<256x8xbf16>, vector<8x8xbf16>, vector<256x8xf32> -> vector<256x8xf32>
    %37 = arith.addf %30, %36 : vector<256x8xf32>
    %38 = vector.extract_strided_slice %15 {offsets = [1, 0, 0], sizes = [16, 16, 8], strides = [1, 1, 1]} : vector<18x18x8xf32> to vector<16x16x8xf32>
    %39 = vector.shape_cast %38 : vector<16x16x8xf32> to vector<256x8xf32>
    %40 = arith.truncf %39 : vector<256x8xf32> to vector<256x8xbf16>
    %c3 = arith.constant 3 : index
    %c0_22 = arith.constant 0 : index
    %c0_23 = arith.constant 0 : index
    %41 = vector.load %arg4[%c3, %c0_22, %c0_23] : memref<9x8x8xbf16, #tpu.memory_space<vmem>>, vector<1x8x8xbf16>
    %42 = vector.shape_cast %41 : vector<1x8x8xbf16> to vector<8x8xbf16>
    %cst_24 = arith.constant dense<0.000000e+00> : vector<256x8xf32>
    %43 = tpu.matmul %40, %42, %cst_24 {dimension_numbers = #tpu.dot_dimension_numbers<[1], [0], [0], [1], [0, 0, 1, 1], [], []>} : vector<256x8xbf16>, vector<8x8xbf16>, vector<256x8xf32> -> vector<256x8xf32>
    %44 = arith.addf %37, %43 : vector<256x8xf32>
    %45 = vector.extract_strided_slice %15 {offsets = [1, 1, 0], sizes = [16, 16, 8], strides = [1, 1, 1]} : vector<18x18x8xf32> to vector<16x16x8xf32>
    %46 = vector.shape_cast %45 : vector<16x16x8xf32> to vector<256x8xf32>
    %47 = arith.truncf %46 : vector<256x8xf32> to vector<256x8xbf16>
    %c4 = arith.constant 4 : index
    %c0_25 = arith.constant 0 : index
    %c0_26 = arith.constant 0 : index
    %48 = vector.load %arg4[%c4, %c0_25, %c0_26] : memref<9x8x8xbf16, #tpu.memory_space<vmem>>, vector<1x8x8xbf16>
    %49 = vector.shape_cast %48 : vector<1x8x8xbf16> to vector<8x8xbf16>
    %cst_27 = arith.constant dense<0.000000e+00> : vector<256x8xf32>
    %50 = tpu.matmul %47, %49, %cst_27 {dimension_numbers = #tpu.dot_dimension_numbers<[1], [0], [0], [1], [0, 0, 1, 1], [], []>} : vector<256x8xbf16>, vector<8x8xbf16>, vector<256x8xf32> -> vector<256x8xf32>
    %51 = arith.addf %44, %50 : vector<256x8xf32>
    %52 = vector.extract_strided_slice %15 {offsets = [1, 2, 0], sizes = [16, 16, 8], strides = [1, 1, 1]} : vector<18x18x8xf32> to vector<16x16x8xf32>
    %53 = vector.shape_cast %52 : vector<16x16x8xf32> to vector<256x8xf32>
    %54 = arith.truncf %53 : vector<256x8xf32> to vector<256x8xbf16>
    %c5 = arith.constant 5 : index
    %c0_28 = arith.constant 0 : index
    %c0_29 = arith.constant 0 : index
    %55 = vector.load %arg4[%c5, %c0_28, %c0_29] : memref<9x8x8xbf16, #tpu.memory_space<vmem>>, vector<1x8x8xbf16>
    %56 = vector.shape_cast %55 : vector<1x8x8xbf16> to vector<8x8xbf16>
    %cst_30 = arith.constant dense<0.000000e+00> : vector<256x8xf32>
    %57 = tpu.matmul %54, %56, %cst_30 {dimension_numbers = #tpu.dot_dimension_numbers<[1], [0], [0], [1], [0, 0, 1, 1], [], []>} : vector<256x8xbf16>, vector<8x8xbf16>, vector<256x8xf32> -> vector<256x8xf32>
    %58 = arith.addf %51, %57 : vector<256x8xf32>
    %59 = vector.extract_strided_slice %15 {offsets = [2, 0, 0], sizes = [16, 16, 8], strides = [1, 1, 1]} : vector<18x18x8xf32> to vector<16x16x8xf32>
    %60 = vector.shape_cast %59 : vector<16x16x8xf32> to vector<256x8xf32>
    %61 = arith.truncf %60 : vector<256x8xf32> to vector<256x8xbf16>
    %c6 = arith.constant 6 : index
    %c0_31 = arith.constant 0 : index
    %c0_32 = arith.constant 0 : index
    %62 = vector.load %arg4[%c6, %c0_31, %c0_32] : memref<9x8x8xbf16, #tpu.memory_space<vmem>>, vector<1x8x8xbf16>
    %63 = vector.shape_cast %62 : vector<1x8x8xbf16> to vector<8x8xbf16>
    %cst_33 = arith.constant dense<0.000000e+00> : vector<256x8xf32>
    %64 = tpu.matmul %61, %63, %cst_33 {dimension_numbers = #tpu.dot_dimension_numbers<[1], [0], [0], [1], [0, 0, 1, 1], [], []>} : vector<256x8xbf16>, vector<8x8xbf16>, vector<256x8xf32> -> vector<256x8xf32>
    %65 = arith.addf %58, %64 : vector<256x8xf32>
    %66 = vector.extract_strided_slice %15 {offsets = [2, 1, 0], sizes = [16, 16, 8], strides = [1, 1, 1]} : vector<18x18x8xf32> to vector<16x16x8xf32>
    %67 = vector.shape_cast %66 : vector<16x16x8xf32> to vector<256x8xf32>
    %68 = arith.truncf %67 : vector<256x8xf32> to vector<256x8xbf16>
    %c7 = arith.constant 7 : index
    %c0_34 = arith.constant 0 : index
    %c0_35 = arith.constant 0 : index
    %69 = vector.load %arg4[%c7, %c0_34, %c0_35] : memref<9x8x8xbf16, #tpu.memory_space<vmem>>, vector<1x8x8xbf16>
    %70 = vector.shape_cast %69 : vector<1x8x8xbf16> to vector<8x8xbf16>
    %cst_36 = arith.constant dense<0.000000e+00> : vector<256x8xf32>
    %71 = tpu.matmul %68, %70, %cst_36 {dimension_numbers = #tpu.dot_dimension_numbers<[1], [0], [0], [1], [0, 0, 1, 1], [], []>} : vector<256x8xbf16>, vector<8x8xbf16>, vector<256x8xf32> -> vector<256x8xf32>
    %72 = arith.addf %65, %71 : vector<256x8xf32>
    %73 = vector.extract_strided_slice %15 {offsets = [2, 2, 0], sizes = [16, 16, 8], strides = [1, 1, 1]} : vector<18x18x8xf32> to vector<16x16x8xf32>
    %74 = vector.shape_cast %73 : vector<16x16x8xf32> to vector<256x8xf32>
    %75 = arith.truncf %74 : vector<256x8xf32> to vector<256x8xbf16>
    %c8 = arith.constant 8 : index
    %c0_37 = arith.constant 0 : index
    %c0_38 = arith.constant 0 : index
    %76 = vector.load %arg4[%c8, %c0_37, %c0_38] : memref<9x8x8xbf16, #tpu.memory_space<vmem>>, vector<1x8x8xbf16>
    %77 = vector.shape_cast %76 : vector<1x8x8xbf16> to vector<8x8xbf16>
    %cst_39 = arith.constant dense<0.000000e+00> : vector<256x8xf32>
    %78 = tpu.matmul %75, %77, %cst_39 {dimension_numbers = #tpu.dot_dimension_numbers<[1], [0], [0], [1], [0, 0, 1, 1], [], []>} : vector<256x8xbf16>, vector<8x8xbf16>, vector<256x8xf32> -> vector<256x8xf32>
    %79 = arith.addf %72, %78 : vector<256x8xf32>
    %c0_40 = arith.constant 0 : index
    %c0_41 = arith.constant 0 : index
    %80 = vector.load %arg9[%c0_40, %c0_41] : memref<1x8xf32, #tpu.memory_space<vmem>>, vector<1x8xf32>
    %81 = vector.broadcast %80 : vector<1x8xf32> to vector<256x8xf32>
    %82 = arith.mulf %79, %81 : vector<256x8xf32>
    %c0_42 = arith.constant 0 : index
    %c0_43 = arith.constant 0 : index
    %83 = vector.load %arg10[%c0_42, %c0_43] : memref<1x8xf32, #tpu.memory_space<vmem>>, vector<1x8xf32>
    %84 = vector.broadcast %83 : vector<1x8xf32> to vector<256x8xf32>
    %85 = arith.addf %82, %84 : vector<256x8xf32>
    %cst_44 = arith.constant 0.000000e+00 : f32
    %86 = vector.broadcast %cst_44 : f32 to vector<256x8xf32>
    %87 = arith.maximumf %85, %86 : vector<256x8xf32>
    %88 = arith.truncf %87 : vector<256x8xf32> to vector<256x8xbf16>
    %c0_45 = arith.constant 0 : index
    %c0_46 = arith.constant 0 : index
    %89 = vector.load %arg5[%c0_45, %c0_46] : memref<8x32xbf16, #tpu.memory_space<vmem>>, vector<8x32xbf16>
    %cst_47 = arith.constant dense<0.000000e+00> : vector<256x32xf32>
    %90 = tpu.matmul %88, %89, %cst_47 {dimension_numbers = #tpu.dot_dimension_numbers<[1], [0], [0], [1], [0, 0, 1, 1], [], []>} : vector<256x8xbf16>, vector<8x32xbf16>, vector<256x32xf32> -> vector<256x32xf32>
    %c0_48 = arith.constant 0 : index
    %c0_49 = arith.constant 0 : index
    %91 = vector.load %arg11[%c0_48, %c0_49] : memref<1x32xf32, #tpu.memory_space<vmem>>, vector<1x32xf32>
    %92 = vector.broadcast %91 : vector<1x32xf32> to vector<256x32xf32>
    %93 = arith.mulf %90, %92 : vector<256x32xf32>
    %c0_50 = arith.constant 0 : index
    %c0_51 = arith.constant 0 : index
    %94 = vector.load %arg12[%c0_50, %c0_51] : memref<1x32xf32, #tpu.memory_space<vmem>>, vector<1x32xf32>
    %95 = vector.broadcast %94 : vector<1x32xf32> to vector<256x32xf32>
    %96 = arith.addf %93, %95 : vector<256x32xf32>
    %c0_52 = arith.constant 0 : index
    %c0_53 = arith.constant 0 : index
    %97 = vector.load %arg6[%c0_52, %c0_53] : memref<4x32xbf16, #tpu.memory_space<vmem>>, vector<4x32xbf16>
    %cst_54 = arith.constant dense<0.000000e+00> : vector<324x32xf32>
    %98 = tpu.matmul %1, %97, %cst_54 {dimension_numbers = #tpu.dot_dimension_numbers<[1], [0], [0], [1], [0, 0, 1, 1], [], []>} : vector<324x4xbf16>, vector<4x32xbf16>, vector<324x32xf32> -> vector<324x32xf32>
    %c0_55 = arith.constant 0 : index
    %c0_56 = arith.constant 0 : index
    %99 = vector.load %arg13[%c0_55, %c0_56] : memref<1x32xf32, #tpu.memory_space<vmem>>, vector<1x32xf32>
    %100 = vector.broadcast %99 : vector<1x32xf32> to vector<324x32xf32>
    %101 = arith.mulf %98, %100 : vector<324x32xf32>
    %c0_57 = arith.constant 0 : index
    %c0_58 = arith.constant 0 : index
    %102 = vector.load %arg14[%c0_57, %c0_58] : memref<1x32xf32, #tpu.memory_space<vmem>>, vector<1x32xf32>
    %103 = vector.broadcast %102 : vector<1x32xf32> to vector<324x32xf32>
    %104 = arith.addf %101, %103 : vector<324x32xf32>
    %105 = vector.shape_cast %104 : vector<324x32xf32> to vector<18x18x32xf32>
    %106 = vector.extract_strided_slice %105 {offsets = [1, 1, 0], sizes = [16, 16, 32], strides = [1, 1, 1]} : vector<18x18x32xf32> to vector<16x16x32xf32>
    %107 = vector.shape_cast %106 : vector<16x16x32xf32> to vector<256x32xf32>
    %108 = arith.addf %96, %107 : vector<256x32xf32>
    %cst_59 = arith.constant 0.000000e+00 : f32
    %109 = vector.broadcast %cst_59 : f32 to vector<256x32xf32>
    %110 = arith.maximumf %108, %109 : vector<256x32xf32>
    %111 = vector.shape_cast %110 : vector<256x32xf32> to vector<1x256x32xf32>
    %c0_60 = arith.constant 0 : index
    %c0_61 = arith.constant 0 : index
    %c0_62 = arith.constant 0 : index
    %112 = vector.load %arg15[%c0_60, %c0_61, %c0_62] : memref<1x256x32xf32, #tpu.memory_space<vmem>>, vector<1x256x32xf32>
    tpu.vector_store %arg15[%c0_60, %c0_61, %c0_62], %111 {strides = array<i32>} : memref<1x256x32xf32, #tpu.memory_space<vmem>>, vector<1x256x32xf32>,
    return
  }
  func.func @transform_0(%arg0: i32) -> (i32, i32, i32) {
    %c0_i32 = arith.constant 0 : i32
    %c0_i32_0 = arith.constant 0 : i32
    %c0_i32_1 = arith.constant 0 : i32
    return %arg0, %c0_i32, %c0_i32_0 : i32, i32, i32
  }
  func.func @transform_1(%arg0: i32) -> (i32, i32) {
    %c0_i32 = arith.constant 0 : i32
    %c0_i32_0 = arith.constant 0 : i32
    %c0_i32_1 = arith.constant 0 : i32
    return %c0_i32, %c0_i32_0 : i32, i32
  }
  func.func @transform_2(%arg0: i32) -> (i32, i32) {
    %c0_i32 = arith.constant 0 : i32
    %c0_i32_0 = arith.constant 0 : i32
    %c0_i32_1 = arith.constant 0 : i32
    return %c0_i32, %c0_i32_0 : i32, i32
  }
  func.func @transform_3(%arg0: i32) -> (i32, i32, i32) {
    %c0_i32 = arith.constant 0 : i32
    %c0_i32_0 = arith.constant 0 : i32
    %c0_i32_1 = arith.constant 0 : i32
    %c0_i32_2 = arith.constant 0 : i32
    return %c0_i32, %c0_i32_0, %c0_i32_1 : i32, i32, i32
  }
  func.func @transform_4(%arg0: i32) -> (i32, i32) {
    %c0_i32 = arith.constant 0 : i32
    %c0_i32_0 = arith.constant 0 : i32
    %c0_i32_1 = arith.constant 0 : i32
    return %c0_i32, %c0_i32_0 : i32, i32
  }
  func.func @transform_5(%arg0: i32) -> (i32, i32) {
    %c0_i32 = arith.constant 0 : i32
    %c0_i32_0 = arith.constant 0 : i32
    %c0_i32_1 = arith.constant 0 : i32
    return %c0_i32, %c0_i32_0 : i32, i32
  }
  func.func @transform_6(%arg0: i32) -> (i32, i32) {
    %c0_i32 = arith.constant 0 : i32
    %c0_i32_0 = arith.constant 0 : i32
    %c0_i32_1 = arith.constant 0 : i32
    return %c0_i32, %c0_i32_0 : i32, i32
  }
  func.func @transform_7(%arg0: i32) -> (i32, i32) {
    %c0_i32 = arith.constant 0 : i32
    %c0_i32_0 = arith.constant 0 : i32
    %c0_i32_1 = arith.constant 0 : i32
    return %c0_i32, %c0_i32_0 : i32, i32
  }
  func.func @transform_8(%arg0: i32) -> (i32, i32) {
    %c0_i32 = arith.constant 0 : i32
    %c0_i32_0 = arith.constant 0 : i32
    %c0_i32_1 = arith.constant 0 : i32
    return %c0_i32, %c0_i32_0 : i32, i32
  }
  func.func @transform_9(%arg0: i32) -> (i32, i32) {
    %c0_i32 = arith.constant 0 : i32
    %c0_i32_0 = arith.constant 0 : i32
    %c0_i32_1 = arith.constant 0 : i32
    return %c0_i32, %c0_i32_0 : i32, i32
  }
  func.func @transform_10(%arg0: i32) -> (i32, i32) {
    %c0_i32 = arith.constant 0 : i32
    %c0_i32_0 = arith.constant 0 : i32
    %c0_i32_1 = arith.constant 0 : i32
    return %c0_i32, %c0_i32_0 : i32, i32
  }
  func.func @transform_11(%arg0: i32) -> (i32, i32) {
    %c0_i32 = arith.constant 0 : i32
    %c0_i32_0 = arith.constant 0 : i32
    %c0_i32_1 = arith.constant 0 : i32
    return %c0_i32, %c0_i32_0 : i32, i32
  }
  func.func @transform_12(%arg0: i32) -> (i32, i32) {
    %c0_i32 = arith.constant 0 : i32
    %c0_i32_0 = arith.constant 0 : i32
    %c0_i32_1 = arith.constant 0 : i32
    return %c0_i32, %c0_i32_0 : i32, i32
  }
  func.func @transform_13(%arg0: i32) -> (i32, i32) {
    %c0_i32 = arith.constant 0 : i32
    %c0_i32_0 = arith.constant 0 : i32
    %c0_i32_1 = arith.constant 0 : i32
    return %c0_i32, %c0_i32_0 : i32, i32
  }
  func.func @transform_14(%arg0: i32) -> (i32, i32, i32) {
    %c0_i32 = arith.constant 0 : i32
    %c0_i32_0 = arith.constant 0 : i32
    %c0_i32_1 = arith.constant 0 : i32
    return %arg0, %c0_i32, %c0_i32_0 : i32, i32, i32
  }
}

</mosaic_0001>

<llo_original>
// kernel: tpu_custom_call.1
$region0: #{tpu_custom_call.1}
  #allocation0 [shape = 'u32[]', space=smem, size = 0x4, offset = 0x4, fixed_abs, tag = 'smem constant byte address 0x4 - core index']
  #allocation1 [shape = 'u32[72,128]{1,0:T(1,128)}', space=vmem, size = 0x9000, scoped, tag = 'internal scratch']
  %s0 = inlined_call_operand.vmem [shape: bf16[2,324,4], index: 0, kind: input, shape index: {}]
  %s1 = inlined_call_operand.vmem [shape: f32[324,1], index: 1, kind: input, shape index: {}]
  %s2 = inlined_call_operand.vmem [shape: bf16[4,8], index: 2, kind: input, shape index: {}]
  %s3 = inlined_call_operand.vmem [shape: bf16[9,8,8], index: 3, kind: input, shape index: {}]
  %s4 = inlined_call_operand.vmem [shape: bf16[8,32], index: 4, kind: input, shape index: {}]
  %s5 = inlined_call_operand.vmem [shape: bf16[4,32], index: 5, kind: input, shape index: {}]
  %s6 = inlined_call_operand.vmem [shape: f32[1,8], index: 6, kind: input, shape index: {}]
  %s7 = inlined_call_operand.vmem [shape: f32[1,8], index: 7, kind: input, shape index: {}]
  %s8 = inlined_call_operand.vmem [shape: f32[1,8], index: 8, kind: input, shape index: {}]
  %s9 = inlined_call_operand.vmem [shape: f32[1,8], index: 9, kind: input, shape index: {}]
  %s10 = inlined_call_operand.vmem [shape: f32[1,32], index: 10, kind: input, shape index: {}]
  %s11 = inlined_call_operand.vmem [shape: f32[1,32], index: 11, kind: input, shape index: {}]
  %s12 = inlined_call_operand.vmem [shape: f32[1,32], index: 12, kind: input, shape index: {}]
  %s13 = inlined_call_operand.vmem [shape: f32[1,32], index: 13, kind: input, shape index: {}]
  %s14 = inlined_call_operand.vmem [shape: f32[2,256,32], index: 14, kind: output, shape index: {}]
  %s15 = sld [smem:[#allocation0]]
  $region89: #{tpu_custom_call.1} parent=0
    _
  %s17 = ssub.s32 1, %s15
  %s18 = scalar_select 0, %s17, %s15
  loop: start=0, step=1, limit=4
  $region2: #{tpu_custom_call.1} parent=0 // loop_pre_header
    _
  $region3: #{tpu_custom_call.1} parent=0 // loop_header
    %s20 = sphi 0, %s24
    %p21 = scmp.ge.s32.totalorder %s20, 4
    %s30 = sphi 0, %s32
    %s33 = sphi 0, %s30
    %s34 = sphi 0, %s33
    %s50 = sphi 0, %s34
    %s54 = sphi 0, %s54
    %s56 = sphi 0, %s54
    %s57 = sphi 0, %s56
    %s71 = sphi 0, %s57
    %s75 = sphi 0, %s75
    %s77 = sphi 0, %s75
    %s78 = sphi 0, %s77
    %s92 = sphi 0, %s78
    %s96 = sphi 0, %s96
    %s98 = sphi 0, %s96
    %s99 = sphi 0, %s98
    %s113 = sphi 0, %s99
    %s117 = sphi 0, %s117
    %s119 = sphi 0, %s117
    %s120 = sphi 0, %s119
    %s134 = sphi 0, %s120
    %s138 = sphi 0, %s138
    %s140 = sphi 0, %s138
    %s141 = sphi 0, %s140
    %s155 = sphi 0, %s141
    %s159 = sphi 0, %s159
    %s161 = sphi 0, %s159
    %s162 = sphi 0, %s161
    %s176 = sphi 0, %s162
    %s180 = sphi 0, %s180
    %s182 = sphi 0, %s180
    %s183 = sphi 0, %s182
    %s197 = sphi 0, %s183
    %s201 = sphi 0, %s201
    %s203 = sphi 0, %s201
    %s204 = sphi 0, %s203
    %s218 = sphi 0, %s204
    %s222 = sphi 0, %s222
    %s224 = sphi 0, %s222
    %s225 = sphi 0, %s224
    %s239 = sphi 0, %s225
    %s243 = sphi 0, %s243
    %s245 = sphi 0, %s243
    %s246 = sphi 0, %s245
    %s260 = sphi 0, %s246
    %s264 = sphi 0, %s264
    %s266 = sphi 0, %s264
    %s267 = sphi 0, %s266
    %s281 = sphi 0, %s267
    %s285 = sphi 0, %s285
    %s287 = sphi 0, %s285
    %s288 = sphi 0, %s287
    %s302 = sphi 0, %s288
    %s306 = sphi 0, %s306
    %s308 = sphi 0, %s306
    %s309 = sphi 0, %s308
    %s323 = sphi 0, %s309
    %s329 = sphi 0, %s331
    %s332 = sphi 0, %s329
    %s333 = sphi 0, %s332
    %s349 = sphi 0, %s333
  $region4: #{tpu_custom_call.1} parent=0 // loop_header_branch
    %23 = sbr.rel (%p21) target = $region8
  $region5: #{tpu_custom_call.1} parent=0 // loop_body
    %s25 = ssub.s32 %s20, 1
    %s26 = ssub.s32 %s20, 2
    %s27 = sadd.s32 %s20, 1
    %s28 = ssub.s32 %s20, %s27
    %p29 = scmp.eq.s32.totalorder %s28, 0
    %s31 = sadd.s32 %s30, 1
    %s32 = scalar_select %p29, %s30, %s31
    %p35 = pneg %p29
    %p36 = scmp.eq.s32.totalorder %s20, 1
    %p37 = por %p35, %p36
    %p38 = scmp.ne.s32.totalorder %s30, %s33
    %p39 = scmp.eq.s32.totalorder %s20, 0
    %p40 = por %p38, %p39
    %p41 = scmp.ne.s32.totalorder %s30, %s33
    %p42 = scmp.eq.s32.totalorder %s25, 1
    %p43 = por %p41, %p42
    %p44 = scmp.ne.s32.totalorder %s33, %s34
    %p45 = scmp.eq.s32.totalorder %s25, 0
    %p46 = por %p44, %p45
    %p47 = scmp.ne.s32.totalorder %s33, %s34
    %p48 = scmp.eq.s32.totalorder %s26, 1
    %p49 = por %p47, %p48
    %p51 = scmp.ne.s32.totalorder %s34, %s50
    %p52 = scmp.eq.s32.totalorder %s26, 0
    %p53 = por %p51, %p52
    %s55 = sadd.s32 %s54, 1
    %p58 = scmp.eq.s32.totalorder %s20, 1
    %p59 = scmp.ne.s32.totalorder %s54, %s56
    %p60 = scmp.eq.s32.totalorder %s20, 0
    %p61 = por %p59, %p60
    %p62 = scmp.ne.s32.totalorder %s54, %s56
    %p63 = scmp.eq.s32.totalorder %s25, 1
    %p64 = por %p62, %p63
    %p65 = scmp.ne.s32.totalorder %s56, %s57
    %p66 = scmp.eq.s32.totalorder %s25, 0
    %p67 = por %p65, %p66
    %p68 = scmp.ne.s32.totalorder %s56, %s57
    %p69 = scmp.eq.s32.totalorder %s26, 1
    %p70 = por %p68, %p69
    %p72 = scmp.ne.s32.totalorder %s57, %s71
    %p73 = scmp.eq.s32.totalorder %s26, 0
    %p74 = por %p72, %p73
    %s76 = sadd.s32 %s75, 1
    %p79 = scmp.eq.s32.totalorder %s20, 1
    %p80 = scmp.ne.s32.totalorder %s75, %s77
    %p81 = scmp.eq.s32.totalorder %s20, 0
    %p82 = por %p80, %p81
    %p83 = scmp.ne.s32.totalorder %s75, %s77
    %p84 = scmp.eq.s32.totalorder %s25, 1
    %p85 = por %p83, %p84
    %p86 = scmp.ne.s32.totalorder %s77, %s78
    %p87 = scmp.eq.s32.totalorder %s25, 0
    %p88 = por %p86, %p87
    %p89 = scmp.ne.s32.totalorder %s77, %s78
    %p90 = scmp.eq.s32.totalorder %s26, 1
    %p91 = por %p89, %p90
    %p93 = scmp.ne.s32.totalorder %s78, %s92
    %p94 = scmp.eq.s32.totalorder %s26, 0
    %p95 = por %p93, %p94
    %s97 = sadd.s32 %s96, 1
    %p100 = scmp.eq.s32.totalorder %s20, 1
    %p101 = scmp.ne.s32.totalorder %s96, %s98
    %p102 = scmp.eq.s32.totalorder %s20, 0
    %p103 = por %p101, %p102
    %p104 = scmp.ne.s32.totalorder %s96, %s98
    %p105 = scmp.eq.s32.totalorder %s25, 1
    %p106 = por %p104, %p105
    %p107 = scmp.ne.s32.totalorder %s98, %s99
    %p108 = scmp.eq.s32.totalorder %s25, 0
    %p109 = por %p107, %p108
    %p110 = scmp.ne.s32.totalorder %s98, %s99
    %p111 = scmp.eq.s32.totalorder %s26, 1
    %p112 = por %p110, %p111
    %p114 = scmp.ne.s32.totalorder %s99, %s113
    %p115 = scmp.eq.s32.totalorder %s26, 0
    %p116 = por %p114, %p115
    %s118 = sadd.s32 %s117, 1
    %p121 = scmp.eq.s32.totalorder %s20, 1
    %p122 = scmp.ne.s32.totalorder %s117, %s119
    %p123 = scmp.eq.s32.totalorder %s20, 0
    %p124 = por %p122, %p123
    %p125 = scmp.ne.s32.totalorder %s117, %s119
    %p126 = scmp.eq.s32.totalorder %s25, 1
    %p127 = por %p125, %p126
    %p128 = scmp.ne.s32.totalorder %s119, %s120
    %p129 = scmp.eq.s32.totalorder %s25, 0
    %p130 = por %p128, %p129
    %p131 = scmp.ne.s32.totalorder %s119, %s120
    %p132 = scmp.eq.s32.totalorder %s26, 1
    %p133 = por %p131, %p132
    %p135 = scmp.ne.s32.totalorder %s120, %s134
    %p136 = scmp.eq.s32.totalorder %s26, 0
    %p137 = por %p135, %p136
    %s139 = sadd.s32 %s138, 1
    %p142 = scmp.eq.s32.totalorder %s20, 1
    %p143 = scmp.ne.s32.totalorder %s138, %s140
    %p144 = scmp.eq.s32.totalorder %s20, 0
    %p145 = por %p143, %p144
    %p146 = scmp.ne.s32.totalorder %s138, %s140
    %p147 = scmp.eq.s32.totalorder %s25, 1
    %p148 = por %p146, %p147
    %p149 = scmp.ne.s32.totalorder %s140, %s141
    %p150 = scmp.eq.s32.totalorder %s25, 0
    %p151 = por %p149, %p150
    %p152 = scmp.ne.s32.totalorder %s140, %s141
    %p153 = scmp.eq.s32.totalorder %s26, 1
    %p154 = por %p152, %p153
    %p156 = scmp.ne.s32.totalorder %s141, %s155
    %p157 = scmp.eq.s32.totalorder %s26, 0
    %p158 = por %p156, %p157
    %s160 = sadd.s32 %s159, 1
    %p163 = scmp.eq.s32.totalorder %s20, 1
    %p164 = scmp.ne.s32.totalorder %s159, %s161
    %p165 = scmp.eq.s32.totalorder %s20, 0
    %p166 = por %p164, %p165
    %p167 = scmp.ne.s32.totalorder %s159, %s161
    %p168 = scmp.eq.s32.totalorder %s25, 1
    %p169 = por %p167, %p168
    %p170 = scmp.ne.s32.totalorder %s161, %s162
    %p171 = scmp.eq.s32.totalorder %s25, 0
    %p172 = por %p170, %p171
    %p173 = scmp.ne.s32.totalorder %s161, %s162
    %p174 = scmp.eq.s32.totalorder %s26, 1
    %p175 = por %p173, %p174
    %p177 = scmp.ne.s32.totalorder %s162, %s176
    %p178 = scmp.eq.s32.totalorder %s26, 0
    %p179 = por %p177, %p178
    %s181 = sadd.s32 %s180, 1
    %p184 = scmp.eq.s32.totalorder %s20, 1
    %p185 = scmp.ne.s32.totalorder %s180, %s182
    %p186 = scmp.eq.s32.totalorder %s20, 0
    %p187 = por %p185, %p186
    %p188 = scmp.ne.s32.totalorder %s180, %s182
    %p189 = scmp.eq.s32.totalorder %s25, 1
    %p190 = por %p188, %p189
    %p191 = scmp.ne.s32.totalorder %s182, %s183
    %p192 = scmp.eq.s32.totalorder %s25, 0
    %p193 = por %p191, %p192
    %p194 = scmp.ne.s32.totalorder %s182, %s183
    %p195 = scmp.eq.s32.totalorder %s26, 1
    %p196 = por %p194, %p195
    %p198 = scmp.ne.s32.totalorder %s183, %s197
    %p199 = scmp.eq.s32.totalorder %s26, 0
    %p200 = por %p198, %p199
    %s202 = sadd.s32 %s201, 1
    %p205 = scmp.eq.s32.totalorder %s20, 1
    %p206 = scmp.ne.s32.totalorder %s201, %s203
    %p207 = scmp.eq.s32.totalorder %s20, 0
    %p208 = por %p206, %p207
    %p209 = scmp.ne.s32.totalorder %s201, %s203
    %p210 = scmp.eq.s32.totalorder %s25, 1
    %p211 = por %p209, %p210
    %p212 = scmp.ne.s32.totalorder %s203, %s204
    %p213 = scmp.eq.s32.totalorder %s25, 0
    %p214 = por %p212, %p213
    %p215 = scmp.ne.s32.totalorder %s203, %s204
    %p216 = scmp.eq.s32.totalorder %s26, 1
    %p217 = por %p215, %p216
    %p219 = scmp.ne.s32.totalorder %s204, %s218
    %p220 = scmp.eq.s32.totalorder %s26, 0
    %p221 = por %p219, %p220
    %s223 = sadd.s32 %s222, 1
    %p226 = scmp.eq.s32.totalorder %s20, 1
    %p227 = scmp.ne.s32.totalorder %s222, %s224
    %p228 = scmp.eq.s32.totalorder %s20, 0
    %p229 = por %p227, %p228
    %p230 = scmp.ne.s32.totalorder %s222, %s224
    %p231 = scmp.eq.s32.totalorder %s25, 1
    %p232 = por %p230, %p231
    %p233 = scmp.ne.s32.totalorder %s224, %s225
    %p234 = scmp.eq.s32.totalorder %s25, 0
    %p235 = por %p233, %p234
    %p236 = scmp.ne.s32.totalorder %s224, %s225
    %p237 = scmp.eq.s32.totalorder %s26, 1
    %p238 = por %p236, %p237
    %p240 = scmp.ne.s32.totalorder %s225, %s239
    %p241 = scmp.eq.s32.totalorder %s26, 0
    %p242 = por %p240, %p241
    %s244 = sadd.s32 %s243, 1
    %p247 = scmp.eq.s32.totalorder %s20, 1
    %p248 = scmp.ne.s32.totalorder %s243, %s245
    %p249 = scmp.eq.s32.totalorder %s20, 0
    %p250 = por %p248, %p249
    %p251 = scmp.ne.s32.totalorder %s243, %s245
    %p252 = scmp.eq.s32.totalorder %s25, 1
    %p253 = por %p251, %p252
    %p254 = scmp.ne.s32.totalorder %s245, %s246
    %p255 = scmp.eq.s32.totalorder %s25, 0
    %p256 = por %p254, %p255
    %p257 = scmp.ne.s32.totalorder %s245, %s246
    %p258 = scmp.eq.s32.totalorder %s26, 1
    %p259 = por %p257, %p258
    %p261 = scmp.ne.s32.totalorder %s246, %s260
    %p262 = scmp.eq.s32.totalorder %s26, 0
    %p263 = por %p261, %p262
    %s265 = sadd.s32 %s264, 1
    %p268 = scmp.eq.s32.totalorder %s20, 1
    %p269 = scmp.ne.s32.totalorder %s264, %s266
    %p270 = scmp.eq.s32.totalorder %s20, 0
    %p271 = por %p269, %p270
    %p272 = scmp.ne.s32.totalorder %s264, %s266
    %p273 = scmp.eq.s32.totalorder %s25, 1
    %p274 = por %p272, %p273
    %p275 = scmp.ne.s32.totalorder %s266, %s267
    %p276 = scmp.eq.s32.totalorder %s25, 0
    %p277 = por %p275, %p276
    %p278 = scmp.ne.s32.totalorder %s266, %s267
    %p279 = scmp.eq.s32.totalorder %s26, 1
    %p280 = por %p278, %p279
    %p282 = scmp.ne.s32.totalorder %s267, %s281
    %p283 = scmp.eq.s32.totalorder %s26, 0
    %p284 = por %p282, %p283
    %s286 = sadd.s32 %s285, 1
    %p289 = scmp.eq.s32.totalorder %s20, 1
    %p290 = scmp.ne.s32.totalorder %s285, %s287
    %p291 = scmp.eq.s32.totalorder %s20, 0
    %p292 = por %p290, %p291
    %p293 = scmp.ne.s32.totalorder %s285, %s287
    %p294 = scmp.eq.s32.totalorder %s25, 1
    %p295 = por %p293, %p294
    %p296 = scmp.ne.s32.totalorder %s287, %s288
    %p297 = scmp.eq.s32.totalorder %s25, 0
    %p298 = por %p296, %p297
    %p299 = scmp.ne.s32.totalorder %s287, %s288
    %p300 = scmp.eq.s32.totalorder %s26, 1
    %p301 = por %p299, %p300
    %p303 = scmp.ne.s32.totalorder %s288, %s302
    %p304 = scmp.eq.s32.totalorder %s26, 0
    %p305 = por %p303, %p304
    %s307 = sadd.s32 %s306, 1
    %p310 = scmp.eq.s32.totalorder %s20, 1
    %p311 = scmp.ne.s32.totalorder %s306, %s308
    %p312 = scmp.eq.s32.totalorder %s20, 0
    %p313 = por %p311, %p312
    %p314 = scmp.ne.s32.totalorder %s306, %s308
    %p315 = scmp.eq.s32.totalorder %s25, 1
    %p316 = por %p314, %p315
    %p317 = scmp.ne.s32.totalorder %s308, %s309
    %p318 = scmp.eq.s32.totalorder %s25, 0
    %p319 = por %p317, %p318
    %p320 = scmp.ne.s32.totalorder %s308, %s309
    %p321 = scmp.eq.s32.totalorder %s26, 1
    %p322 = por %p320, %p321
    %p324 = scmp.ne.s32.totalorder %s309, %s323
    %p325 = scmp.eq.s32.totalorder %s26, 0
    %p326 = por %p324, %p325
    %s327 = ssub.s32 %s20, %s27
    %p328 = scmp.eq.s32.totalorder %s327, 0
    %s330 = sadd.s32 %s329, 1
    %s331 = scalar_select %p328, %s329, %s330
    %p334 = pneg %p328
    %p335 = scmp.eq.s32.totalorder %s20, 1
    %p336 = por %p334, %p335
    %p337 = scmp.ne.s32.totalorder %s329, %s332
    %p338 = scmp.eq.s32.totalorder %s20, 0
    %p339 = por %p337, %p338
    %p340 = scmp.ne.s32.totalorder %s329, %s332
    %p341 = scmp.eq.s32.totalorder %s25, 1
    %p342 = por %p340, %p341
    %p343 = scmp.ne.s32.totalorder %s332, %s333
    %p344 = scmp.eq.s32.totalorder %s25, 0
    %p345 = por %p343, %p344
    %p346 = scmp.ne.s32.totalorder %s332, %s333
    %p347 = scmp.eq.s32.totalorder %s26, 1
    %p348 = por %p346, %p347
    %p350 = scmp.ne.s32.totalorder %s333, %s349
    %p351 = scmp.eq.s32.totalorder %s26, 0
    %p352 = por %p350, %p351
    %p353 = scmp.le.s32.totalorder 1, %s20
    %p354 = scmp.lt.s32.totalorder %s20, 3
    %p355 = pnand %p353, %p354
    %p356 = pneg %p355
    // Predicated region
    $region9: #{tpu_custom_call.1} parent=5 // pred_check
      _
    $region10: #{tpu_custom_call.1} parent=5 // pred_check_branch
      %358 = sbr.rel (%p355) target = $region12
    $region11: #{tpu_custom_call.1} parent=5 // pred_region
      %s359 = ssub.s32 %s20, 1
      // Predicated region
      $region13: #{tpu_custom_call.1} parent=11 // pred_check
        %p360 = pneg %p67
      $region14: #{tpu_custom_call.1} parent=11 // pred_check_branch
        %362 = sbr.rel (%p360) target = $region16
      $region15: #{tpu_custom_call.1} parent=11 // pred_region
        _
      $region16: #{tpu_custom_call.1} parent=11 // pred_fallthru
        _
      // Predicated region
      $region17: #{tpu_custom_call.1} parent=11 // pred_check
        %p363 = pneg %p88
      $region18: #{tpu_custom_call.1} parent=11 // pred_check_branch
        %365 = sbr.rel (%p363) target = $region20
      $region19: #{tpu_custom_call.1} parent=11 // pred_region
        _
      $region20: #{tpu_custom_call.1} parent=11 // pred_fallthru
        _
      // Predicated region
      $region21: #{tpu_custom_call.1} parent=11 // pred_check
        %p366 = pneg %p109
      $region22: #{tpu_custom_call.1} parent=11 // pred_check_branch
        %368 = sbr.rel (%p366) target = $region24
      $region23: #{tpu_custom_call.1} parent=11 // pred_region
        _
      $region24: #{tpu_custom_call.1} parent=11 // pred_fallthru
        _
      // Predicated region
      $region25: #{tpu_custom_call.1} parent=11 // pred_check
        %p369 = pneg %p130
      $region26: #{tpu_custom_call.1} parent=11 // pred_check_branch
        %371 = sbr.rel (%p369) target = $region28
      $region27: #{tpu_custom_call.1} parent=11 // pred_region
        _
      $region28: #{tpu_custom_call.1} parent=11 // pred_fallthru
        _
      // Predicated region
      $region29: #{tpu_custom_call.1} parent=11 // pred_check
        %p372 = pneg %p151
      $region30: #{tpu_custom_call.1} parent=11 // pred_check_branch
        %374 = sbr.rel (%p372) target = $region32
      $region31: #{tpu_custom_call.1} parent=11 // pred_region
        _
      $region32: #{tpu_custom_call.1} parent=11 // pred_fallthru
        _
      // Predicated region
      $region33: #{tpu_custom_call.1} parent=11 // pred_check
        %p375 = pneg %p172
      $region34: #{tpu_custom_call.1} parent=11 // pred_check_branch
        %377 = sbr.rel (%p375) target = $region36
      $region35: #{tpu_custom_call.1} parent=11 // pred_region
        _
      $region36: #{tpu_custom_call.1} parent=11 // pred_fallthru
        _
      // Predicated region
      $region37: #{tpu_custom_call.1} parent=11 // pred_check
        %p378 = pneg %p193
      $region38: #{tpu_custom_call.1} parent=11 // pred_check_branch
        %380 = sbr.rel (%p378) target = $region40
      $region39: #{tpu_custom_call.1} parent=11 // pred_region
        _
      $region40: #{tpu_custom_call.1} parent=11 // pred_fallthru
        _
      // Predicated region
      $region41: #{tpu_custom_call.1} parent=11 // pred_check
        %p381 = pneg %p214
      $region42: #{tpu_custom_call.1} parent=11 // pred_check_branch
        %383 = sbr.rel (%p381) target = $region44
      $region43: #{tpu_custom_call.1} parent=11 // pred_region
        _
      $region44: #{tpu_custom_call.1} parent=11 // pred_fallthru
        _
      // Predicated region
      $region45: #{tpu_custom_call.1} parent=11 // pred_check
        %p384 = pneg %p235
      $region46: #{tpu_custom_call.1} parent=11 // pred_check_branch
        %386 = sbr.rel (%p384) target = $region48
      $region47: #{tpu_custom_call.1} parent=11 // pred_region
        _
      $region48: #{tpu_custom_call.1} parent=11 // pred_fallthru
        _
      // Predicated region
      $region49: #{tpu_custom_call.1} parent=11 // pred_check
        %p387 = pneg %p256
      $region50: #{tpu_custom_call.1} parent=11 // pred_check_branch
        %389 = sbr.rel (%p387) target = $region52
      $region51: #{tpu_custom_call.1} parent=11 // pred_region
        _
      $region52: #{tpu_custom_call.1} parent=11 // pred_fallthru
        _
      // Predicated region
      $region53: #{tpu_custom_call.1} parent=11 // pred_check
        %p390 = pneg %p277
      $region54: #{tpu_custom_call.1} parent=11 // pred_check_branch
        %392 = sbr.rel (%p390) target = $region56
      $region55: #{tpu_custom_call.1} parent=11 // pred_region
        _
      $region56: #{tpu_custom_call.1} parent=11 // pred_fallthru
        _
      // Predicated region
      $region57: #{tpu_custom_call.1} parent=11 // pred_check
        %p393 = pneg %p298
      $region58: #{tpu_custom_call.1} parent=11 // pred_check_branch
        %395 = sbr.rel (%p393) target = $region60
      $region59: #{tpu_custom_call.1} parent=11 // pred_region
        _
      $region60: #{tpu_custom_call.1} parent=11 // pred_fallthru
        _
      // Predicated region
      $region61: #{tpu_custom_call.1} parent=11 // pred_check
        %p396 = pneg %p319
      $region62: #{tpu_custom_call.1} parent=11 // pred_check_branch
        %398 = sbr.rel (%p396) target = $region64
      $region63: #{tpu_custom_call.1} parent=11 // pred_region
        _
      $region64: #{tpu_custom_call.1} parent=11 // pred_fallthru
        _
    $region12: #{tpu_custom_call.1} parent=5 // pred_fallthru
      _
    %p399 = scmp.lt.s32.totalorder %s20, 2
    // Predicated region
    $region65: #{tpu_custom_call.1} parent=5 // pred_check
      %p400 = pneg %p399
    $region66: #{tpu_custom_call.1} parent=5 // pred_check_branch
      %402 = sbr.rel (%p400) target = $region68
    $region67: #{tpu_custom_call.1} parent=5 // pred_region
      // Predicated region
      $region69: #{tpu_custom_call.1} parent=67 // pred_check
        %p403 = pneg %p40
      $region70: #{tpu_custom_call.1} parent=67 // pred_check_branch
        %405 = sbr.rel (%p403) target = $region72
      $region71: #{tpu_custom_call.1} parent=67 // pred_region
        %p406 = scmp.lt.s32.totalorder %s20, 1
        %s407 = scalar_select %p406, %s20, 1
        %s408 = smul.addr %s407, 41
        %s409 = smul.addr %s408, 4
        %s410 = scalar_lea.vmem %s0, %s409
      $region72: #{tpu_custom_call.1} parent=67 // pred_fallthru
        _
    $region68: #{tpu_custom_call.1} parent=5 // pred_fallthru
      _
    %p411 = scmp.le.s32.totalorder 1, %s20
    %p412 = scmp.lt.s32.totalorder %s20, 3
    %p413 = pnand %p411, %p412
    %p414 = pneg %p413
    // Predicated region
    $region73: #{tpu_custom_call.1} parent=5 // pred_check
      _
    $region74: #{tpu_custom_call.1} parent=5 // pred_check_branch
      %416 = sbr.rel (%p413) target = $region76
    $region75: #{tpu_custom_call.1} parent=5 // pred_region
      %s417 = ssub.s32 %s20, 1
      %p418 = scmp.lt.s32.totalorder %s25, 1
      %s419 = scalar_select %p418, %s25, 1
      %s420 = smul.addr %s419, 41
      %s421 = smul.addr %s420, 4
      %s422 = scalar_lea.vmem %s0, %s421
      %p423 = pneg %p46
      %p424 = pneg %p43
      %p425 = pneg %p67
      %p426 = pneg %p64
      %p427 = pneg %p88
      %p428 = pneg %p85
      %p429 = pneg %p109
      %p430 = pneg %p106
      %p431 = pneg %p130
      %p432 = pneg %p127
      %p433 = pneg %p151
      %p434 = pneg %p148
      %p435 = pneg %p172
      %p436 = pneg %p169
      %p437 = pneg %p193
      %p438 = pneg %p190
      %p439 = pneg %p214
      %p440 = pneg %p211
      %p441 = pneg %p235
      %p442 = pneg %p232
      %p443 = pneg %p256
      %p444 = pneg %p253
      %p445 = pneg %p277
      %p446 = pneg %p274
      %p447 = pneg %p298
      %p448 = pneg %p295
      %p449 = pneg %p319
      %p450 = pneg %p316
      %p451 = pneg %p345
      %p452 = pneg %p342
      %p453 = scmp.lt.s32.totalorder %s25, 1
      %s454 = scalar_select %p453, %s25, 1
      %s455 = smul.addr %s454, 32
      %s456 = smul.addr %s455, 8
      %s457 = scalar_lea.vmem %s14, %s456
      %p458 = scmp.lt.s32.totalorder %s25, 1
      %s459 = scalar_select %p458, %s25, 1
      %s460 = smul.addr %s459, 41
      %s461 = smul.addr %s460, 4
      %s462 = scalar_lea.vmem %s0, %s461
      %p463 = scmp.lt.s32.totalorder %s25, 1
      %s464 = scalar_select %p463, %s25, 1
      %s465 = smul.addr %s464, 32
      %s466 = smul.addr %s465, 8
      %s467 = scalar_lea.vmem %s14, %s466
      %v469 = vld [vmem:[%s462] sm:$0xf]
      %v470 = vld [vmem:[%s462 + $0x4] sm:$0xf]
      %v471 = vld [vmem:[%s462 + $0x8] sm:$0xf]
      %v472 = vld [vmem:[%s462 + $0xc] sm:$0xf]
      %v473 = vld [vmem:[%s462 + $0x10] sm:$0xf]
      %v474 = vld [vmem:[%s462 + $0x14] sm:$0xf]
      %v475 = vld [vmem:[%s462 + $0x18] sm:$0xf]
      %v476 = vld [vmem:[%s462 + $0x1c] sm:$0xf]
      %v477 = vld [vmem:[%s462 + $0x20] sm:$0xf]
      %v478 = vld [vmem:[%s462 + $0x24] sm:$0xf]
      %v479 = vld [vmem:[%s462 + $0x28] sm:$0xf]
      %v480 = vld [vmem:[%s462 + $0x2c] sm:$0xf]
      %v481 = vld [vmem:[%s462 + $0x30] sm:$0xf]
      %v482 = vld [vmem:[%s462 + $0x34] sm:$0xf]
      %v483 = vld [vmem:[%s462 + $0x38] sm:$0xf]
      %v484 = vld [vmem:[%s462 + $0x3c] sm:$0xf]
      %v485 = vld [vmem:[%s462 + $0x40] sm:$0xf]
      %v486 = vld [vmem:[%s462 + $0x44] sm:$0xf]
      %v487 = vld [vmem:[%s462 + $0x48] sm:$0xf]
      %v488 = vld [vmem:[%s462 + $0x4c] sm:$0xf]
      %v489 = vld [vmem:[%s462 + $0x50] sm:$0xf]
      %v490 = vld [vmem:[%s462 + $0x54] sm:$0xf]
      %v491 = vld [vmem:[%s462 + $0x58] sm:$0xf]
      %v492 = vld [vmem:[%s462 + $0x5c] sm:$0xf]
      %v493 = vld [vmem:[%s462 + $0x60] sm:$0xf]
      %v494 = vld [vmem:[%s462 + $0x64] sm:$0xf]
      %v495 = vld [vmem:[%s462 + $0x68] sm:$0xf]
      %v496 = vld [vmem:[%s462 + $0x6c] sm:$0xf]
      %v497 = vld [vmem:[%s462 + $0x70] sm:$0xf]
      %v498 = vld [vmem:[%s462 + $0x74] sm:$0xf]
      %v499 = vld [vmem:[%s462 + $0x78] sm:$0xf]
      %v500 = vld [vmem:[%s462 + $0x7c] sm:$0xf]
      %v501 = vld [vmem:[%s462 + $0x80] sm:$0xf]
      %v502 = vld [vmem:[%s462 + $0x84] sm:$0xf]
      %v503 = vld [vmem:[%s462 + $0x88] sm:$0xf]
      %v504 = vld [vmem:[%s462 + $0x8c] sm:$0xf]
      %v505 = vld [vmem:[%s462 + $0x90] sm:$0xf]
      %v506 = vld [vmem:[%s462 + $0x94] sm:$0xf]
      %v507 = vld [vmem:[%s462 + $0x98] sm:$0xf]
      %v508 = vld [vmem:[%s462 + $0x9c] sm:$0xf]
      %v509 = vld [vmem:[%s462 + $0xa0] sm:$0x3]
      %v510 = vld [vmem:[%s2] sm:$0x3]
      %v552 = vunpack.c.l.b16 %v469
      %v553 = vunpack.c.l.b16 %v470
      %v554 = vunpack.c.l.b16 %v471
      %v555 = vunpack.c.l.b16 %v472
      %v556 = vunpack.c.l.b16 %v473
      %v557 = vunpack.c.l.b16 %v474
      %v558 = vunpack.c.l.b16 %v475
      %v559 = vunpack.c.l.b16 %v476
      %v560 = vunpack.c.l.b16 %v477
      %v561 = vunpack.c.l.b16 %v478
      %v562 = vunpack.c.l.b16 %v479
      %v563 = vunpack.c.l.b16 %v480
      %v564 = vunpack.c.l.b16 %v481
      %v565 = vunpack.c.l.b16 %v482
      %v566 = vunpack.c.l.b16 %v483
      %v567 = vunpack.c.l.b16 %v484
      %v568 = vunpack.c.l.b16 %v485
      %v569 = vunpack.c.l.b16 %v486
      %v570 = vunpack.c.l.b16 %v487
      %v571 = vunpack.c.l.b16 %v488
      %v572 = vunpack.c.l.b16 %v489
      %v573 = vunpack.c.l.b16 %v490
      %v574 = vunpack.c.l.b16 %v491
      %v575 = vunpack.c.l.b16 %v492
      %v576 = vunpack.c.l.b16 %v493
      %v577 = vunpack.c.l.b16 %v494
      %v578 = vunpack.c.l.b16 %v495
      %v579 = vunpack.c.l.b16 %v496
      %v580 = vunpack.c.l.b16 %v497
      %v581 = vunpack.c.l.b16 %v498
      %v582 = vunpack.c.l.b16 %v499
      %v583 = vunpack.c.l.b16 %v500
      %v584 = vunpack.c.l.b16 %v501
      %v585 = vunpack.c.l.b16 %v502
      %v586 = vunpack.c.l.b16 %v503
      %v587 = vunpack.c.l.b16 %v504
      %v588 = vunpack.c.l.b16 %v505
      %v589 = vunpack.c.l.b16 %v506
      %v590 = vunpack.c.l.b16 %v507
      %v591 = vunpack.c.l.b16 %v508
      %v592 = vunpack.c.l.b16 %v509
      %v593 = vpack.c.b16 %v553, %v552
      %v594 = vpack.c.b16 %v555, %v554
      %v595 = vpack.c.b16 %v557, %v556
      %v596 = vpack.c.b16 %v559, %v558
      %v597 = vpack.c.b16 %v561, %v560
      %v598 = vpack.c.b16 %v563, %v562
      %v599 = vpack.c.b16 %v565, %v564
      %v600 = vpack.c.b16 %v567, %v566
      %v601 = vpack.c.b16 %v569, %v568
      %v602 = vpack.c.b16 %v571, %v570
      %v603 = vpack.c.b16 %v573, %v572
      %v604 = vpack.c.b16 %v575, %v574
      %v605 = vpack.c.b16 %v577, %v576
      %v606 = vpack.c.b16 %v579, %v578
      %v607 = vpack.c.b16 %v581, %v580
      %v608 = vpack.c.b16 %v583, %v582
      %v609 = vpack.c.b16 %v585, %v584
      %v610 = vpack.c.b16 %v587, %v586
      %v611 = vpack.c.b16 %v589, %v588
      %v612 = vpack.c.b16 %v591, %v590
      %v613 = vpack.c.b16 %v592, %v592
      %vm614 = vcmask 31744
      %v616 = vsel %vm614, %v593, 0
      %v619 = vsel %vm614, %v594, 0
      %v622 = vsel %vm614, %v595, 0
      %v625 = vsel %vm614, %v596, 0
      %v628 = vsel %vm614, %v597, 0
      %v631 = vsel %vm614, %v598, 0
      %v634 = vsel %vm614, %v599, 0
      %v637 = vsel %vm614, %v600, 0
      %v640 = vsel %vm614, %v601, 0
      %v643 = vsel %vm614, %v602, 0
      %v646 = vsel %vm614, %v603, 0
      %v649 = vsel %vm614, %v604, 0
      %v652 = vsel %vm614, %v605, 0
      %v655 = vsel %vm614, %v606, 0
      %v658 = vsel %vm614, %v607, 0
      %v661 = vsel %vm614, %v608, 0
      %v664 = vsel %vm614, %v609, 0
      %v667 = vsel %vm614, %v610, 0
      %v670 = vsel %vm614, %v611, 0
      %v673 = vsel %vm614, %v612, 0
      %v676 = vsel %vm614, %v613, 0
      %vm678 = vcmask 1041408
      %v680 = vsel %vm678, %v510, 0
      %682 = vmatpush.bf16.msra.mxu0 0
      %683 = vmatpush.bf16.msra.mxu0 0
      %684 = vmatpush.bf16.msra.mxu0 0
      %685 = vmatpush.bf16.msra.mxu0 0
      %686 = vmatpush.bf16.msra.mxu0 0
      %687 = vmatpush.bf16.msra.mxu0 0
      %688 = vmatpush.bf16.msra.mxu0 0
      %689 = vmatpush.bf16.msra.mxu0 %v680
      %690 = vmatmul.bf16.gmra.mxu0 %v616
      %v691 = vpop.f32.mrf.mxu0
      %v692 = vadd.f32 0.0, %v691
      %v693 = vpop.f32.mrf.mxu0
      %v694 = vadd.f32 0.0, %v693
      %695 = vmatmul.bf16.gmra.mxu0 %v619
      %v696 = vpop.f32.mrf.mxu0
      %v697 = vadd.f32 0.0, %v696
      %v698 = vpop.f32.mrf.mxu0
      %v699 = vadd.f32 0.0, %v698
      %700 = vmatmul.bf16.gmra.mxu0 %v622
      %v701 = vpop.f32.mrf.mxu0
      %v702 = vadd.f32 0.0, %v701
      %v703 = vpop.f32.mrf.mxu0
      %v704 = vadd.f32 0.0, %v703
      %705 = vmatmul.bf16.gmra.mxu0 %v625
      %v706 = vpop.f32.mrf.mxu0
      %v707 = vadd.f32 0.0, %v706
      %v708 = vpop.f32.mrf.mxu0
      %v709 = vadd.f32 0.0, %v708
      %710 = vmatmul.bf16.gmra.mxu0 %v628
      %v711 = vpop.f32.mrf.mxu0
      %v712 = vadd.f32 0.0, %v711
      %v713 = vpop.f32.mrf.mxu0
      %v714 = vadd.f32 0.0, %v713
      %715 = vmatmul.bf16.gmra.mxu0 %v631
      %v716 = vpop.f32.mrf.mxu0
      %v717 = vadd.f32 0.0, %v716
      %v718 = vpop.f32.mrf.mxu0
      %v719 = vadd.f32 0.0, %v718
      %720 = vmatmul.bf16.gmra.mxu0 %v634
      %v721 = vpop.f32.mrf.mxu0
      %v722 = vadd.f32 0.0, %v721
      %v723 = vpop.f32.mrf.mxu0
      %v724 = vadd.f32 0.0, %v723
      %725 = vmatmul.bf16.gmra.mxu0 %v637
      %v726 = vpop.f32.mrf.mxu0
      %v727 = vadd.f32 0.0, %v726
      %v728 = vpop.f32.mrf.mxu0
      %v729 = vadd.f32 0.0, %v728
      %730 = vmatmul.bf16.gmra.mxu0 %v640
      %v731 = vpop.f32.mrf.mxu0
      %v732 = vadd.f32 0.0, %v731
      %v733 = vpop.f32.mrf.mxu0
      %v734 = vadd.f32 0.0, %v733
      %735 = vmatmul.bf16.gmra.mxu0 %v643
      %v736 = vpop.f32.mrf.mxu0
      %v737 = vadd.f32 0.0, %v736
      %v738 = vpop.f32.mrf.mxu0
      %v739 = vadd.f32 0.0, %v738
      %740 = vmatmul.bf16.gmra.mxu0 %v646
      %v741 = vpop.f32.mrf.mxu0
      %v742 = vadd.f32 0.0, %v741
      %v743 = vpop.f32.mrf.mxu0
      %v744 = vadd.f32 0.0, %v743
      %745 = vmatmul.bf16.gmra.mxu0 %v649
      %v746 = vpop.f32.mrf.mxu0
      %v747 = vadd.f32 0.0, %v746
      %v748 = vpop.f32.mrf.mxu0
      %v749 = vadd.f32 0.0, %v748
      %750 = vmatmul.bf16.gmra.mxu0 %v652
      %v751 = vpop.f32.mrf.mxu0
      %v752 = vadd.f32 0.0, %v751
      %v753 = vpop.f32.mrf.mxu0
      %v754 = vadd.f32 0.0, %v753
      %755 = vmatmul.bf16.gmra.mxu0 %v655
      %v756 = vpop.f32.mrf.mxu0
      %v757 = vadd.f32 0.0, %v756
      %v758 = vpop.f32.mrf.mxu0
      %v759 = vadd.f32 0.0, %v758
      %760 = vmatmul.bf16.gmra.mxu0 %v658
      %v761 = vpop.f32.mrf.mxu0
      %v762 = vadd.f32 0.0, %v761
      %v763 = vpop.f32.mrf.mxu0
      %v764 = vadd.f32 0.0, %v763
      %765 = vmatmul.bf16.gmra.mxu0 %v661
      %v766 = vpop.f32.mrf.mxu0
      %v767 = vadd.f32 0.0, %v766
      %v768 = vpop.f32.mrf.mxu0
      %v769 = vadd.f32 0.0, %v768
      %770 = vmatmul.bf16.gmra.mxu0 %v664
      %v771 = vpop.f32.mrf.mxu0
      %v772 = vadd.f32 0.0, %v771
      %v773 = vpop.f32.mrf.mxu0
      %v774 = vadd.f32 0.0, %v773
      %775 = vmatmul.bf16.gmra.mxu0 %v667
      %v776 = vpop.f32.mrf.mxu0
      %v777 = vadd.f32 0.0, %v776
      %v778 = vpop.f32.mrf.mxu0
      %v779 = vadd.f32 0.0, %v778
      %780 = vmatmul.bf16.gmra.mxu0 %v670
      %v781 = vpop.f32.mrf.mxu0
      %v782 = vadd.f32 0.0, %v781
      %v783 = vpop.f32.mrf.mxu0
      %v784 = vadd.f32 0.0, %v783
      %785 = vmatmul.bf16.gmra.mxu0 %v673
      %v786 = vpop.f32.mrf.mxu0
      %v787 = vadd.f32 0.0, %v786
      %v788 = vpop.f32.mrf.mxu0
      %v789 = vadd.f32 0.0, %v788
      %790 = vmatmul.bf16.gmra.mxu0 %v676
      %v791 = vpop.f32.mrf.mxu0
      %v792 = vadd.f32 0.0, %v791
      %v793 = vpop.f32.mrf.mxu0
      %794 = vdwg.mxu0
      %v795 = vld [vmem:[%s6] sm:$0x1]
      %v797 = vperm.slane %v795, 0
      %v799 = vmul.f32 %v692, %v797
      %v800 = vmul.f32 %v694, %v797
      %v801 = vmul.f32 %v697, %v797
      %v802 = vmul.f32 %v699, %v797
      %v803 = vmul.f32 %v702, %v797
      %v804 = vmul.f32 %v704, %v797
      %v805 = vmul.f32 %v707, %v797
      %v806 = vmul.f32 %v709, %v797
      %v807 = vmul.f32 %v712, %v797
      %v808 = vmul.f32 %v714, %v797
      %v809 = vmul.f32 %v717, %v797
      %v810 = vmul.f32 %v719, %v797
      %v811 = vmul.f32 %v722, %v797
      %v812 = vmul.f32 %v724, %v797
      %v813 = vmul.f32 %v727, %v797
      %v814 = vmul.f32 %v729, %v797
      %v815 = vmul.f32 %v732, %v797
      %v816 = vmul.f32 %v734, %v797
      %v817 = vmul.f32 %v737, %v797
      %v818 = vmul.f32 %v739, %v797
      %v819 = vmul.f32 %v742, %v797
      %v820 = vmul.f32 %v744, %v797
      %v821 = vmul.f32 %v747, %v797
      %v822 = vmul.f32 %v749, %v797
      %v823 = vmul.f32 %v752, %v797
      %v824 = vmul.f32 %v754, %v797
      %v825 = vmul.f32 %v757, %v797
      %v826 = vmul.f32 %v759, %v797
      %v827 = vmul.f32 %v762, %v797
      %v828 = vmul.f32 %v764, %v797
      %v829 = vmul.f32 %v767, %v797
      %v830 = vmul.f32 %v769, %v797
      %v831 = vmul.f32 %v772, %v797
      %v832 = vmul.f32 %v774, %v797
      %v833 = vmul.f32 %v777, %v797
      %v834 = vmul.f32 %v779, %v797
      %v835 = vmul.f32 %v782, %v797
      %v836 = vmul.f32 %v784, %v797
      %v837 = vmul.f32 %v787, %v797
      %v838 = vmul.f32 %v789, %v797
      %v839 = vmul.f32 %v792, %v797
      %v840 = vld [vmem:[%s7] sm:$0x1]
      %v842 = vperm.slane %v840, 0
      %v844 = vadd.f32 %v799, %v842
      %v845 = vadd.f32 %v800, %v842
      %v846 = vadd.f32 %v801, %v842
      %v847 = vadd.f32 %v802, %v842
      %v848 = vadd.f32 %v803, %v842
      %v849 = vadd.f32 %v804, %v842
      %v850 = vadd.f32 %v805, %v842
      %v851 = vadd.f32 %v806, %v842
      %v852 = vadd.f32 %v807, %v842
      %v853 = vadd.f32 %v808, %v842
      %v854 = vadd.f32 %v809, %v842
      %v855 = vadd.f32 %v810, %v842
      %v856 = vadd.f32 %v811, %v842
      %v857 = vadd.f32 %v812, %v842
      %v858 = vadd.f32 %v813, %v842
      %v859 = vadd.f32 %v814, %v842
      %v860 = vadd.f32 %v815, %v842
      %v861 = vadd.f32 %v816, %v842
      %v862 = vadd.f32 %v817, %v842
      %v863 = vadd.f32 %v818, %v842
      %v864 = vadd.f32 %v819, %v842
      %v865 = vadd.f32 %v820, %v842
      %v866 = vadd.f32 %v821, %v842
      %v867 = vadd.f32 %v822, %v842
      %v868 = vadd.f32 %v823, %v842
      %v869 = vadd.f32 %v824, %v842
      %v870 = vadd.f32 %v825, %v842
      %v871 = vadd.f32 %v826, %v842
      %v872 = vadd.f32 %v827, %v842
      %v873 = vadd.f32 %v828, %v842
      %v874 = vadd.f32 %v829, %v842
      %v875 = vadd.f32 %v830, %v842
      %v876 = vadd.f32 %v831, %v842
      %v877 = vadd.f32 %v832, %v842
      %v878 = vadd.f32 %v833, %v842
      %v879 = vadd.f32 %v834, %v842
      %v880 = vadd.f32 %v835, %v842
      %v881 = vadd.f32 %v836, %v842
      %v882 = vadd.f32 %v837, %v842
      %v883 = vadd.f32 %v838, %v842
      %v884 = vadd.f32 %v839, %v842
      %v885 = vmax.f32 %v844, 0.0
      %v886 = vmax.f32 %v845, 0.0
      %v887 = vmax.f32 %v846, 0.0
      %v888 = vmax.f32 %v847, 0.0
      %v889 = vmax.f32 %v848, 0.0
      %v890 = vmax.f32 %v849, 0.0
      %v891 = vmax.f32 %v850, 0.0
      %v892 = vmax.f32 %v851, 0.0
      %v893 = vmax.f32 %v852, 0.0
      %v894 = vmax.f32 %v853, 0.0
      %v895 = vmax.f32 %v854, 0.0
      %v896 = vmax.f32 %v855, 0.0
      %v897 = vmax.f32 %v856, 0.0
      %v898 = vmax.f32 %v857, 0.0
      %v899 = vmax.f32 %v858, 0.0
      %v900 = vmax.f32 %v859, 0.0
      %v901 = vmax.f32 %v860, 0.0
      %v902 = vmax.f32 %v861, 0.0
      %v903 = vmax.f32 %v862, 0.0
      %v904 = vmax.f32 %v863, 0.0
      %v905 = vmax.f32 %v864, 0.0
      %v906 = vmax.f32 %v865, 0.0
      %v907 = vmax.f32 %v866, 0.0
      %v908 = vmax.f32 %v867, 0.0
      %v909 = vmax.f32 %v868, 0.0
      %v910 = vmax.f32 %v869, 0.0
      %v911 = vmax.f32 %v870, 0.0
      %v912 = vmax.f32 %v871, 0.0
      %v913 = vmax.f32 %v872, 0.0
      %v914 = vmax.f32 %v873, 0.0
      %v915 = vmax.f32 %v874, 0.0
      %v916 = vmax.f32 %v875, 0.0
      %v917 = vmax.f32 %v876, 0.0
      %v918 = vmax.f32 %v877, 0.0
      %v919 = vmax.f32 %v878, 0.0
      %v920 = vmax.f32 %v879, 0.0
      %v921 = vmax.f32 %v880, 0.0
      %v922 = vmax.f32 %v881, 0.0
      %v923 = vmax.f32 %v882, 0.0
      %v924 = vmax.f32 %v883, 0.0
      %v925 = vmax.f32 %v884, 0.0
      %v926 = vld [vmem:[%s1] sm:$0xff]
      %v927 = vld [vmem:[%s1 + $0x8] sm:$0xff]
      %v928 = vld [vmem:[%s1 + $0x10] sm:$0xff]
      %v929 = vld [vmem:[%s1 + $0x18] sm:$0xff]
      %v930 = vld [vmem:[%s1 + $0x20] sm:$0xff]
      %v931 = vld [vmem:[%s1 + $0x28] sm:$0xff]
      %v932 = vld [vmem:[%s1 + $0x30] sm:$0xff]
      %v933 = vld [vmem:[%s1 + $0x38] sm:$0xff]
      %v934 = vld [vmem:[%s1 + $0x40] sm:$0xff]
      %v935 = vld [vmem:[%s1 + $0x48] sm:$0xff]
      %v936 = vld [vmem:[%s1 + $0x50] sm:$0xff]
      %v937 = vld [vmem:[%s1 + $0x58] sm:$0xff]
      %v938 = vld [vmem:[%s1 + $0x60] sm:$0xff]
      %v939 = vld [vmem:[%s1 + $0x68] sm:$0xff]
      %v940 = vld [vmem:[%s1 + $0x70] sm:$0xff]
      %v941 = vld [vmem:[%s1 + $0x78] sm:$0xff]
      %v942 = vld [vmem:[%s1 + $0x80] sm:$0xff]
      %v943 = vld [vmem:[%s1 + $0x88] sm:$0xff]
      %v944 = vld [vmem:[%s1 + $0x90] sm:$0xff]
      %v945 = vld [vmem:[%s1 + $0x98] sm:$0xff]
      %v946 = vld [vmem:[%s1 + $0xa0] sm:$0xff]
      %v947 = vld [vmem:[%s1 + $0xa8] sm:$0xff]
      %v948 = vld [vmem:[%s1 + $0xb0] sm:$0xff]
      %v949 = vld [vmem:[%s1 + $0xb8] sm:$0xff]
      %v950 = vld [vmem:[%s1 + $0xc0] sm:$0xff]
      %v951 = vld [vmem:[%s1 + $0xc8] sm:$0xff]
      %v952 = vld [vmem:[%s1 + $0xd0] sm:$0xff]
      %v953 = vld [vmem:[%s1 + $0xd8] sm:$0xff]
      %v954 = vld [vmem:[%s1 + $0xe0] sm:$0xff]
      %v955 = vld [vmem:[%s1 + $0xe8] sm:$0xff]
      %v956 = vld [vmem:[%s1 + $0xf0] sm:$0xff]
      %v957 = vld [vmem:[%s1 + $0xf8] sm:$0xff]
      %v958 = vld [vmem:[%s1 + $0x100] sm:$0xff]
      %v959 = vld [vmem:[%s1 + $0x108] sm:$0xff]
      %v960 = vld [vmem:[%s1 + $0x110] sm:$0xff]
      %v961 = vld [vmem:[%s1 + $0x118] sm:$0xff]
      %v962 = vld [vmem:[%s1 + $0x120] sm:$0xff]
      %v963 = vld [vmem:[%s1 + $0x128] sm:$0xff]
      %v964 = vld [vmem:[%s1 + $0x130] sm:$0xff]
      %v965 = vld [vmem:[%s1 + $0x138] sm:$0xff]
      %v966 = vld [vmem:[%s1 + $0x140] sm:$0xf]
      %968 = vset.pattern.permute.xlu0 0
      %969 = vperm.xlu0 %968, %v926
      %v970 = vpop.permute.xlu0 %969
      %973 = vset.pattern.permute.xlu0 0
      %974 = vperm.xlu0 %973, %v927
      %v975 = vpop.permute.xlu0 %974
      %978 = vset.pattern.permute.xlu0 0
      %979 = vperm.xlu0 %978, %v928
      %v980 = vpop.permute.xlu0 %979
      %983 = vset.pattern.permute.xlu0 0
      %984 = vperm.xlu0 %983, %v929
      %v985 = vpop.permute.xlu0 %984
      %988 = vset.pattern.permute.xlu0 0
      %989 = vperm.xlu0 %988, %v930
      %v990 = vpop.permute.xlu0 %989
      %993 = vset.pattern.permute.xlu0 0
      %994 = vperm.xlu0 %993, %v931
      %v995 = vpop.permute.xlu0 %994
      %998 = vset.pattern.permute.xlu0 0
      %999 = vperm.xlu0 %998, %v932
      %v1000 = vpop.permute.xlu0 %999
      %1003 = vset.pattern.permute.xlu0 0
      %1004 = vperm.xlu0 %1003, %v933
      %v1005 = vpop.permute.xlu0 %1004
      %1008 = vset.pattern.permute.xlu0 0
      %1009 = vperm.xlu0 %1008, %v934
      %v1010 = vpop.permute.xlu0 %1009
      %1013 = vset.pattern.permute.xlu0 0
      %1014 = vperm.xlu0 %1013, %v935
      %v1015 = vpop.permute.xlu0 %1014
      %1018 = vset.pattern.permute.xlu0 0
      %1019 = vperm.xlu0 %1018, %v936
      %v1020 = vpop.permute.xlu0 %1019
      %1023 = vset.pattern.permute.xlu0 0
      %1024 = vperm.xlu0 %1023, %v937
      %v1025 = vpop.permute.xlu0 %1024
      %1028 = vset.pattern.permute.xlu0 0
      %1029 = vperm.xlu0 %1028, %v938
      %v1030 = vpop.permute.xlu0 %1029
      %1033 = vset.pattern.permute.xlu0 0
      %1034 = vperm.xlu0 %1033, %v939
      %v1035 = vpop.permute.xlu0 %1034
      %1038 = vset.pattern.permute.xlu0 0
      %1039 = vperm.xlu0 %1038, %v940
      %v1040 = vpop.permute.xlu0 %1039
      %1043 = vset.pattern.permute.xlu0 0
      %1044 = vperm.xlu0 %1043, %v941
      %v1045 = vpop.permute.xlu0 %1044
      %1048 = vset.pattern.permute.xlu0 0
      %1049 = vperm.xlu0 %1048, %v942
      %v1050 = vpop.permute.xlu0 %1049
      %1053 = vset.pattern.permute.xlu0 0
      %1054 = vperm.xlu0 %1053, %v943
      %v1055 = vpop.permute.xlu0 %1054
      %1058 = vset.pattern.permute.xlu0 0
      %1059 = vperm.xlu0 %1058, %v944
      %v1060 = vpop.permute.xlu0 %1059
      %1063 = vset.pattern.permute.xlu0 0
      %1064 = vperm.xlu0 %1063, %v945
      %v1065 = vpop.permute.xlu0 %1064
      %1068 = vset.pattern.permute.xlu0 0
      %1069 = vperm.xlu0 %1068, %v946
      %v1070 = vpop.permute.xlu0 %1069
      %1073 = vset.pattern.permute.xlu0 0
      %1074 = vperm.xlu0 %1073, %v947
      %v1075 = vpop.permute.xlu0 %1074
      %1078 = vset.pattern.permute.xlu0 0
      %1079 = vperm.xlu0 %1078, %v948
      %v1080 = vpop.permute.xlu0 %1079
      %1083 = vset.pattern.permute.xlu0 0
      %1084 = vperm.xlu0 %1083, %v949
      %v1085 = vpop.permute.xlu0 %1084
      %1088 = vset.pattern.permute.xlu0 0
      %1089 = vperm.xlu0 %1088, %v950
      %v1090 = vpop.permute.xlu0 %1089
      %1093 = vset.pattern.permute.xlu0 0
      %1094 = vperm.xlu0 %1093, %v951
      %v1095 = vpop.permute.xlu0 %1094
      %1098 = vset.pattern.permute.xlu0 0
      %1099 = vperm.xlu0 %1098, %v952
      %v1100 = vpop.permute.xlu0 %1099
      %1103 = vset.pattern.permute.xlu0 0
      %1104 = vperm.xlu0 %1103, %v953
      %v1105 = vpop.permute.xlu0 %1104
      %1108 = vset.pattern.permute.xlu0 0
      %1109 = vperm.xlu0 %1108, %v954
      %v1110 = vpop.permute.xlu0 %1109
      %1113 = vset.pattern.permute.xlu0 0
      %1114 = vperm.xlu0 %1113, %v955
      %v1115 = vpop.permute.xlu0 %1114
      %1118 = vset.pattern.permute.xlu0 0
      %1119 = vperm.xlu0 %1118, %v956
      %v1120 = vpop.permute.xlu0 %1119
      %1123 = vset.pattern.permute.xlu0 0
      %1124 = vperm.xlu0 %1123, %v957
      %v1125 = vpop.permute.xlu0 %1124
      %1128 = vset.pattern.permute.xlu0 0
      %1129 = vperm.xlu0 %1128, %v958
      %v1130 = vpop.permute.xlu0 %1129
      %1133 = vset.pattern.permute.xlu0 0
      %1134 = vperm.xlu0 %1133, %v959
      %v1135 = vpop.permute.xlu0 %1134
      %1138 = vset.pattern.permute.xlu0 0
      %1139 = vperm.xlu0 %1138, %v960
      %v1140 = vpop.permute.xlu0 %1139
      %1143 = vset.pattern.permute.xlu0 0
      %1144 = vperm.xlu0 %1143, %v961
      %v1145 = vpop.permute.xlu0 %1144
      %1148 = vset.pattern.permute.xlu0 0
      %1149 = vperm.xlu0 %1148, %v962
      %v1150 = vpop.permute.xlu0 %1149
      %1153 = vset.pattern.permute.xlu0 0
      %1154 = vperm.xlu0 %1153, %v963
      %v1155 = vpop.permute.xlu0 %1154
      %1158 = vset.pattern.permute.xlu0 0
      %1159 = vperm.xlu0 %1158, %v964
      %v1160 = vpop.permute.xlu0 %1159
      %1163 = vset.pattern.permute.xlu0 0
      %1164 = vperm.xlu0 %1163, %v965
      %v1165 = vpop.permute.xlu0 %1164
      %1168 = vset.pattern.permute.xlu0 0
      %1169 = vperm.xlu0 %1168, %v966
      %v1170 = vpop.permute.xlu0 %1169
      %v1172 = vmul.f32 %v885, %v970
      %v1173 = vmul.f32 %v886, %v975
      %v1174 = vmul.f32 %v887, %v980
      %v1175 = vmul.f32 %v888, %v985
      %v1176 = vmul.f32 %v889, %v990
      %v1177 = vmul.f32 %v890, %v995
      %v1178 = vmul.f32 %v891, %v1000
      %v1179 = vmul.f32 %v892, %v1005
      %v1180 = vmul.f32 %v893, %v1010
      %v1181 = vmul.f32 %v894, %v1015
      %v1182 = vmul.f32 %v895, %v1020
      %v1183 = vmul.f32 %v896, %v1025
      %v1184 = vmul.f32 %v897, %v1030
      %v1185 = vmul.f32 %v898, %v1035
      %v1186 = vmul.f32 %v899, %v1040
      %v1187 = vmul.f32 %v900, %v1045
      %v1188 = vmul.f32 %v901, %v1050
      %v1189 = vmul.f32 %v902, %v1055
      %v1190 = vmul.f32 %v903, %v1060
      %v1191 = vmul.f32 %v904, %v1065
      %v1192 = vmul.f32 %v905, %v1070
      %v1193 = vmul.f32 %v906, %v1075
      %v1194 = vmul.f32 %v907, %v1080
      %v1195 = vmul.f32 %v908, %v1085
      %v1196 = vmul.f32 %v909, %v1090
      %v1197 = vmul.f32 %v910, %v1095
      %v1198 = vmul.f32 %v911, %v1100
      %v1199 = vmul.f32 %v912, %v1105
      %v1200 = vmul.f32 %v913, %v1110
      %v1201 = vmul.f32 %v914, %v1115
      %v1202 = vmul.f32 %v915, %v1120
      %v1203 = vmul.f32 %v916, %v1125
      %v1204 = vmul.f32 %v917, %v1130
      %v1205 = vmul.f32 %v918, %v1135
      %v1206 = vmul.f32 %v919, %v1140
      %v1207 = vmul.f32 %v920, %v1145
      %v1208 = vmul.f32 %v921, %v1150
      %v1209 = vmul.f32 %v922, %v1155
      %v1210 = vmul.f32 %v923, %v1160
      %v1211 = vmul.f32 %v924, %v1165
      %v1212 = vmul.f32 %v925, %v1170
      %v1254 = vrot.slane %v1172, 2
      %v1255 = vrot.slane %v1172, 4
      %v1256 = vrot.slane %v1172, 6
      %v1257 = vrot.slane %v1173, 2
      %v1258 = vrot.slane %v1173, 4
      %v1259 = vrot.slane %v1173, 6
      %v1260 = vrot.slane %v1174, 2
      %v1261 = vrot.slane %v1174, 4
      %v1262 = vrot.slane %v1174, 6
      %v1263 = vrot.slane %v1175, 2
      %v1264 = vrot.slane %v1175, 4
      %v1265 = vrot.slane %v1175, 6
      %v1266 = vrot.slane %v1176, 2
      %v1267 = vrot.slane %v1176, 4
      %v1268 = vrot.slane %v1176, 6
      %v1269 = vrot.slane %v1177, 2
      %v1270 = vrot.slane %v1177, 4
      %v1271 = vrot.slane %v1177, 6
      %v1272 = vrot.slane %v1178, 2
      %v1273 = vrot.slane %v1178, 4
      %v1274 = vrot.slane %v1178, 6
      %v1275 = vrot.slane %v1179, 2
      %v1276 = vrot.slane %v1179, 4
      %v1277 = vrot.slane %v1179, 6
      %v1278 = vrot.slane %v1180, 2
      %v1279 = vrot.slane %v1180, 4
      %v1280 = vrot.slane %v1180, 6
      %v1281 = vrot.slane %v1181, 2
      %v1282 = vrot.slane %v1181, 4
      %v1283 = vrot.slane %v1181, 6
      %v1284 = vrot.slane %v1182, 2
      %v1285 = vrot.slane %v1182, 4
      %v1286 = vrot.slane %v1182, 6
      %v1287 = vrot.slane %v1183, 2
      %v1288 = vrot.slane %v1183, 4
      %v1289 = vrot.slane %v1183, 6
      %v1290 = vrot.slane %v1184, 2
      %v1291 = vrot.slane %v1184, 4
      %v1292 = vrot.slane %v1184, 6
      %v1293 = vrot.slane %v1185, 2
      %v1294 = vrot.slane %v1185, 4
      %v1295 = vrot.slane %v1185, 6
      %v1296 = vrot.slane %v1186, 2
      %v1297 = vrot.slane %v1186, 4
      %v1298 = vrot.slane %v1186, 6
      %v1299 = vrot.slane %v1187, 2
      %v1300 = vrot.slane %v1187, 4
      %v1301 = vrot.slane %v1187, 6
      %v1302 = vrot.slane %v1188, 2
      %v1303 = vrot.slane %v1188, 4
      %v1304 = vrot.slane %v1188, 6
      %v1305 = vrot.slane %v1189, 2
      %v1306 = vrot.slane %v1189, 4
      %v1307 = vrot.slane %v1189, 6
      %v1308 = vrot.slane %v1190, 2
      %v1309 = vrot.slane %v1190, 4
      %v1310 = vrot.slane %v1190, 6
      %v1311 = vrot.slane %v1191, 2
      %v1312 = vrot.slane %v1191, 4
      %v1313 = vrot.slane %v1191, 6
      %v1314 = vrot.slane %v1192, 2
      %v1315 = vrot.slane %v1192, 4
      %v1316 = vrot.slane %v1192, 6
      %v1317 = vrot.slane %v1193, 2
      %v1318 = vrot.slane %v1193, 4
      %v1319 = vrot.slane %v1193, 6
      %v1320 = vrot.slane %v1194, 2
      %v1321 = vrot.slane %v1194, 4
      %v1322 = vrot.slane %v1194, 6
      %v1323 = vrot.slane %v1195, 2
      %v1324 = vrot.slane %v1195, 4
      %v1325 = vrot.slane %v1195, 6
      %v1326 = vrot.slane %v1196, 2
      %v1327 = vrot.slane %v1196, 4
      %v1328 = vrot.slane %v1196, 6
      %v1329 = vrot.slane %v1197, 2
      %v1330 = vrot.slane %v1197, 4
      %v1331 = vrot.slane %v1197, 6
      %v1332 = vrot.slane %v1198, 2
      %v1333 = vrot.slane %v1198, 4
      %v1334 = vrot.slane %v1198, 6
      %v1335 = vrot.slane %v1199, 2
      %v1336 = vrot.slane %v1199, 4
      %v1337 = vrot.slane %v1199, 6
      %v1338 = vrot.slane %v1200, 2
      %v1339 = vrot.slane %v1200, 4
      %v1340 = vrot.slane %v1200, 6
      %v1341 = vrot.slane %v1201, 2
      %v1342 = vrot.slane %v1201, 4
      %v1343 = vrot.slane %v1201, 6
      %v1344 = vrot.slane %v1202, 2
      %v1345 = vrot.slane %v1202, 4
      %v1346 = vrot.slane %v1202, 6
      %v1347 = vrot.slane %v1203, 2
      %v1348 = vrot.slane %v1203, 4
      %v1349 = vrot.slane %v1203, 6
      %v1350 = vrot.slane %v1204, 2
      %v1351 = vrot.slane %v1204, 4
      %v1352 = vrot.slane %v1204, 6
      %v1353 = vrot.slane %v1205, 2
      %v1354 = vrot.slane %v1205, 4
      %v1355 = vrot.slane %v1205, 6
      %v1356 = vrot.slane %v1206, 2
      %v1357 = vrot.slane %v1206, 4
      %v1358 = vrot.slane %v1206, 6
      %v1359 = vrot.slane %v1207, 2
      %v1360 = vrot.slane %v1207, 4
      %v1361 = vrot.slane %v1207, 6
      %v1362 = vrot.slane %v1208, 2
      %v1363 = vrot.slane %v1208, 4
      %v1364 = vrot.slane %v1208, 6
      %v1365 = vrot.slane %v1209, 2
      %v1366 = vrot.slane %v1209, 4
      %v1367 = vrot.slane %v1209, 6
      %v1368 = vrot.slane %v1210, 2
      %v1369 = vrot.slane %v1210, 4
      %v1370 = vrot.slane %v1210, 6
      %v1371 = vrot.slane %v1211, 2
      %v1372 = vrot.slane %v1211, 4
      %v1373 = vrot.slane %v1211, 6
      %v1374 = vrot.slane %v1212, 2
      %1375 = vst [vmem:[#allocation1] ss:$4 sm:$0xff] %v1172
      %s1376 = scalar_lea.vmem [#allocation1], 1
      %1377 = vst [vmem:[%s1376] ss:$4 sm:$0xff] %v1254
      %s1378 = scalar_lea.vmem [#allocation1], 2
      %1379 = vst [vmem:[%s1378] ss:$4 sm:$0xff] %v1255
      %s1380 = scalar_lea.vmem [#allocation1], 3
      %1381 = vst [vmem:[%s1380] ss:$4 sm:$0xff] %v1256
      %s1382 = scalar_lea.vmem [#allocation1], 32
      %1383 = vst [vmem:[%s1382] ss:$4 sm:$0xff] %v1173
      %s1384 = scalar_lea.vmem [#allocation1], 33
      %1385 = vst [vmem:[%s1384] ss:$4 sm:$0xff] %v1257
      %s1386 = scalar_lea.vmem [#allocation1], 34
      %1387 = vst [vmem:[%s1386] ss:$4 sm:$0xff] %v1258
      %s1388 = scalar_lea.vmem [#allocation1], 35
      %1389 = vst [vmem:[%s1388] ss:$4 sm:$0xff] %v1259
      %v1390 = vld.sshfl [vmem:[#allocation1] sm:$0xff pattern:$0x73625140]
      %v1391 = vld.sshfl [vmem:[#allocation1 + $0x20] sm:$0xff pattern:$0x73625140]
      %1392 = vst [vmem:[#allocation1] ss:$4 sm:$0xff] %v1260
      %1393 = vst [vmem:[%s1376] ss:$4 sm:$0xff] %v1261
      %1394 = vst [vmem:[%s1378] ss:$4 sm:$0xff] %v1262
      %1395 = vst [vmem:[%s1380] ss:$4 sm:$0xff] %v1175
      %1396 = vst [vmem:[%s1382] ss:$4 sm:$0xff] %v1263
      %1397 = vst [vmem:[%s1384] ss:$4 sm:$0xff] %v1264
      %1398 = vst [vmem:[%s1386] ss:$4 sm:$0xff] %v1265
      %1399 = vst [vmem:[%s1388] ss:$4 sm:$0xff] %v1176
      %v1400 = vld.sshfl [vmem:[#allocation1] sm:$0xff pattern:$0x73625140]
      %v1401 = vld.sshfl [vmem:[#allocation1 + $0x20] sm:$0xff pattern:$0x73625140]
      %1402 = vst [vmem:[#allocation1] ss:$4 sm:$0xff] %v1267
      %1403 = vst [vmem:[%s1376] ss:$4 sm:$0xff] %v1268
      %1404 = vst [vmem:[%s1378] ss:$4 sm:$0xff] %v1177
      %1405 = vst [vmem:[%s1380] ss:$4 sm:$0xff] %v1269
      %1406 = vst [vmem:[%s1382] ss:$4 sm:$0xff] %v1270
      %1407 = vst [vmem:[%s1384] ss:$4 sm:$0xff] %v1271
      %1408 = vst [vmem:[%s1386] ss:$4 sm:$0xff] %v1178
      %1409 = vst [vmem:[%s1388] ss:$4 sm:$0xff] %v1272
      %v1410 = vld.sshfl [vmem:[#allocation1] sm:$0xff pattern:$0x73625140]
      %v1411 = vld.sshfl [vmem:[#allocation1 + $0x20] sm:$0xff pattern:$0x73625140]
      %1412 = vst [vmem:[#allocation1] ss:$4 sm:$0xff] %v1274
      %1413 = vst [vmem:[%s1376] ss:$4 sm:$0xff] %v1179
      %1414 = vst [vmem:[%s1378] ss:$4 sm:$0xff] %v1275
      %1415 = vst [vmem:[%s1380] ss:$4 sm:$0xff] %v1276
      %1416 = vst [vmem:[%s1382] ss:$4 sm:$0xff] %v1277
      %1417 = vst [vmem:[%s1384] ss:$4 sm:$0xff] %v1180
      %1418 = vst [vmem:[%s1386] ss:$4 sm:$0xff] %v1278
      %1419 = vst [vmem:[%s1388] ss:$4 sm:$0xff] %v1279
      %v1420 = vld.sshfl [vmem:[#allocation1] sm:$0xff pattern:$0x73625140]
      %v1421 = vld.sshfl [vmem:[#allocation1 + $0x20] sm:$0xff pattern:$0x73625140]
      %1422 = vst [vmem:[#allocation1] ss:$4 sm:$0xff] %v1181
      %1423 = vst [vmem:[%s1376] ss:$4 sm:$0xff] %v1281
      %1424 = vst [vmem:[%s1378] ss:$4 sm:$0xff] %v1282
      %1425 = vst [vmem:[%s1380] ss:$4 sm:$0xff] %v1283
      %1426 = vst [vmem:[%s1382] ss:$4 sm:$0xff] %v1182
      %1427 = vst [vmem:[%s1384] ss:$4 sm:$0xff] %v1284
      %1428 = vst [vmem:[%s1386] ss:$4 sm:$0xff] %v1285
      %1429 = vst [vmem:[%s1388] ss:$4 sm:$0xff] %v1286
      %v1430 = vld.sshfl [vmem:[#allocation1] sm:$0xff pattern:$0x73625140]
      %v1431 = vld.sshfl [vmem:[#allocation1 + $0x20] sm:$0xff pattern:$0x73625140]
      %1432 = vst [vmem:[#allocation1] ss:$4 sm:$0xff] %v1287
      %1433 = vst [vmem:[%s1376] ss:$4 sm:$0xff] %v1288
      %1434 = vst [vmem:[%s1378] ss:$4 sm:$0xff] %v1289
      %1435 = vst [vmem:[%s1380] ss:$4 sm:$0xff] %v1184
      %1436 = vst [vmem:[%s1382] ss:$4 sm:$0xff] %v1290
      %1437 = vst [vmem:[%s1384] ss:$4 sm:$0xff] %v1291
      %1438 = vst [vmem:[%s1386] ss:$4 sm:$0xff] %v1292
      %1439 = vst [vmem:[%s1388] ss:$4 sm:$0xff] %v1185
      %v1440 = vld.sshfl [vmem:[#allocation1] sm:$0xff pattern:$0x73625140]
      %v1441 = vld.sshfl [vmem:[#allocation1 + $0x20] sm:$0xff pattern:$0x73625140]
      %1442 = vst [vmem:[#allocation1] ss:$4 sm:$0xff] %v1294
      %1443 = vst [vmem:[%s1376] ss:$4 sm:$0xff] %v1295
      %1444 = vst [vmem:[%s1378] ss:$4 sm:$0xff] %v1186
      %1445 = vst [vmem:[%s1380] ss:$4 sm:$0xff] %v1296
      %1446 = vst [vmem:[%s1382] ss:$4 sm:$0xff] %v1297
      %1447 = vst [vmem:[%s1384] ss:$4 sm:$0xff] %v1298
      %1448 = vst [vmem:[%s1386] ss:$4 sm:$0xff] %v1187
      %1449 = vst [vmem:[%s1388] ss:$4 sm:$0xff] %v1299
      %v1450 = vld.sshfl [vmem:[#allocation1] sm:$0xff pattern:$0x73625140]
      %v1451 = vld.sshfl [vmem:[#allocation1 + $0x20] sm:$0xff pattern:$0x73625140]
      %1452 = vst [vmem:[#allocation1] ss:$4 sm:$0xff] %v1301
      %1453 = vst [vmem:[%s1376] ss:$4 sm:$0xff] %v1188
      %1454 = vst [vmem:[%s1378] ss:$4 sm:$0xff] %v1302
      %1455 = vst [vmem:[%s1380] ss:$4 sm:$0xff] %v1303
      %1456 = vst [vmem:[%s1382] ss:$4 sm:$0xff] %v1304
      %1457 = vst [vmem:[%s1384] ss:$4 sm:$0xff] %v1189
      %1458 = vst [vmem:[%s1386] ss:$4 sm:$0xff] %v1305
      %1459 = vst [vmem:[%s1388] ss:$4 sm:$0xff] %v1306
      %v1460 = vld.sshfl [vmem:[#allocation1] sm:$0xff pattern:$0x73625140]
      %v1461 = vld.sshfl [vmem:[#allocation1 + $0x20] sm:$0xff pattern:$0x73625140]
      %1462 = vst [vmem:[#allocation1] ss:$4 sm:$0xff] %v1190
      %1463 = vst [vmem:[%s1376] ss:$4 sm:$0xff] %v1308
      %1464 = vst [vmem:[%s1378] ss:$4 sm:$0xff] %v1309
      %1465 = vst [vmem:[%s1380] ss:$4 sm:$0xff] %v1310
      %1466 = vst [vmem:[%s1382] ss:$4 sm:$0xff] %v1191
      %1467 = vst [vmem:[%s1384] ss:$4 sm:$0xff] %v1311
      %1468 = vst [vmem:[%s1386] ss:$4 sm:$0xff] %v1312
      %1469 = vst [vmem:[%s1388] ss:$4 sm:$0xff] %v1313
      %v1470 = vld.sshfl [vmem:[#allocation1] sm:$0xff pattern:$0x73625140]
      %v1471 = vld.sshfl [vmem:[#allocation1 + $0x20] sm:$0xff pattern:$0x73625140]
      %1472 = vst [vmem:[#allocation1] ss:$4 sm:$0xff] %v1314
      %1473 = vst [vmem:[%s1376] ss:$4 sm:$0xff] %v1315
      %1474 = vst [vmem:[%s1378] ss:$4 sm:$0xff] %v1316
      %1475 = vst [vmem:[%s1380] ss:$4 sm:$0xff] %v1193
      %1476 = vst [vmem:[%s1382] ss:$4 sm:$0xff] %v1317
      %1477 = vst [vmem:[%s1384] ss:$4 sm:$0xff] %v1318
      %1478 = vst [vmem:[%s1386] ss:$4 sm:$0xff] %v1319
      %1479 = vst [vmem:[%s1388] ss:$4 sm:$0xff] %v1194
      %v1480 = vld.sshfl [vmem:[#allocation1] sm:$0xff pattern:$0x73625140]
      %v1481 = vld.sshfl [vmem:[#allocation1 + $0x20] sm:$0xff pattern:$0x73625140]
      %1482 = vst [vmem:[#allocation1] ss:$4 sm:$0xff] %v1321
      %1483 = vst [vmem:[%s1376] ss:$4 sm:$0xff] %v1322
      %1484 = vst [vmem:[%s1378] ss:$4 sm:$0xff] %v1195
      %1485 = vst [vmem:[%s1380] ss:$4 sm:$0xff] %v1323
      %1486 = vst [vmem:[%s1382] ss:$4 sm:$0xff] %v1324
      %1487 = vst [vmem:[%s1384] ss:$4 sm:$0xff] %v1325
      %1488 = vst [vmem:[%s1386] ss:$4 sm:$0xff] %v1196
      %1489 = vst [vmem:[%s1388] ss:$4 sm:$0xff] %v1326
      %v1490 = vld.sshfl [vmem:[#allocation1] sm:$0xff pattern:$0x73625140]
      %v1491 = vld.sshfl [vmem:[#allocation1 + $0x20] sm:$0xff pattern:$0x73625140]
      %1492 = vst [vmem:[#allocation1] ss:$4 sm:$0xff] %v1328
      %1493 = vst [vmem:[%s1376] ss:$4 sm:$0xff] %v1197
      %1494 = vst [vmem:[%s1378] ss:$4 sm:$0xff] %v1329
      %1495 = vst [vmem:[%s1380] ss:$4 sm:$0xff] %v1330
      %1496 = vst [vmem:[%s1382] ss:$4 sm:$0xff] %v1331
      %1497 = vst [vmem:[%s1384] ss:$4 sm:$0xff] %v1198
      %1498 = vst [vmem:[%s1386] ss:$4 sm:$0xff] %v1332
      %1499 = vst [vmem:[%s1388] ss:$4 sm:$0xff] %v1333
      %v1500 = vld.sshfl [vmem:[#allocation1] sm:$0xff pattern:$0x73625140]
      %v1501 = vld.sshfl [vmem:[#allocation1 + $0x20] sm:$0xff pattern:$0x73625140]
      %1502 = vst [vmem:[#allocation1] ss:$4 sm:$0xff] %v1199
      %1503 = vst [vmem:[%s1376] ss:$4 sm:$0xff] %v1335
      %1504 = vst [vmem:[%s1378] ss:$4 sm:$0xff] %v1336
      %1505 = vst [vmem:[%s1380] ss:$4 sm:$0xff] %v1337
      %1506 = vst [vmem:[%s1382] ss:$4 sm:$0xff] %v1200
      %1507 = vst [vmem:[%s1384] ss:$4 sm:$0xff] %v1338
      %1508 = vst [vmem:[%s1386] ss:$4 sm:$0xff] %v1339
      %1509 = vst [vmem:[%s1388] ss:$4 sm:$0xff] %v1340
      %v1510 = vld.sshfl [vmem:[#allocation1] sm:$0xff pattern:$0x73625140]
      %v1511 = vld.sshfl [vmem:[#allocation1 + $0x20] sm:$0xff pattern:$0x73625140]
      %1512 = vst [vmem:[#allocation1] ss:$4 sm:$0xff] %v1341
      %1513 = vst [vmem:[%s1376] ss:$4 sm:$0xff] %v1342
      %1514 = vst [vmem:[%s1378] ss:$4 sm:$0xff] %v1343
      %1515 = vst [vmem:[%s1380] ss:$4 sm:$0xff] %v1202
      %1516 = vst [vmem:[%s1382] ss:$4 sm:$0xff] %v1344
      %1517 = vst [vmem:[%s1384] ss:$4 sm:$0xff] %v1345
      %1518 = vst [vmem:[%s1386] ss:$4 sm:$0xff] %v1346
      %1519 = vst [vmem:[%s1388] ss:$4 sm:$0xff] %v1203
      %v1520 = vld.sshfl [vmem:[#allocation1] sm:$0xff pattern:$0x73625140]
      %v1521 = vld.sshfl [vmem:[#allocation1 + $0x20] sm:$0xff pattern:$0x73625140]
      %1522 = vst [vmem:[#allocation1] ss:$4 sm:$0xff] %v1348
      %1523 = vst [vmem:[%s1376] ss:$4 sm:$0xff] %v1349
      %1524 = vst [vmem:[%s1378] ss:$4 sm:$0xff] %v1204
      %1525 = vst [vmem:[%s1380] ss:$4 sm:$0xff] %v1350
      %1526 = vst [vmem:[%s1382] ss:$4 sm:$0xff] %v1351
      %1527 = vst [vmem:[%s1384] ss:$4 sm:$0xff] %v1352
      %1528 = vst [vmem:[%s1386] ss:$4 sm:$0xff] %v1205
      %1529 = vst [vmem:[%s1388] ss:$4 sm:$0xff] %v1353
      %v1530 = vld.sshfl [vmem:[#allocation1] sm:$0xff pattern:$0x73625140]
      %v1531 = vld.sshfl [vmem:[#allocation1 + $0x20] sm:$0xff pattern:$0x73625140]
      %1532 = vst [vmem:[#allocation1] ss:$4 sm:$0xff] %v1355
      %1533 = vst [vmem:[%s1376] ss:$4 sm:$0xff] %v1206
      %1534 = vst [vmem:[%s1378] ss:$4 sm:$0xff] %v1356
      %1535 = vst [vmem:[%s1380] ss:$4 sm:$0xff] %v1357
      %1536 = vst [vmem:[%s1382] ss:$4 sm:$0xff] %v1358
      %1537 = vst [vmem:[%s1384] ss:$4 sm:$0xff] %v1207
      %1538 = vst [vmem:[%s1386] ss:$4 sm:$0xff] %v1359
      %1539 = vst [vmem:[%s1388] ss:$4 sm:$0xff] %v1360
      %v1540 = vld.sshfl [vmem:[#allocation1] sm:$0xff pattern:$0x73625140]
      %v1541 = vld.sshfl [vmem:[#allocation1 + $0x20] sm:$0xff pattern:$0x73625140]
      %v1574 = vpack.c.bf16 %v1391, %v1390
      %v1575 = vpack.c.bf16 %v1401, %v1400
      %v1576 = vpack.c.bf16 %v1411, %v1410
      %v1577 = vpack.c.bf16 %v1421, %v1420
      %v1578 = vpack.c.bf16 %v1431, %v1430
      %v1579 = vpack.c.bf16 %v1441, %v1440
      %v1580 = vpack.c.bf16 %v1451, %v1450
      %v1581 = vpack.c.bf16 %v1461, %v1460
      %v1582 = vpack.c.bf16 %v1471, %v1470
      %v1583 = vpack.c.bf16 %v1481, %v1480
      %v1584 = vpack.c.bf16 %v1491, %v1490
      %v1585 = vpack.c.bf16 %v1501, %v1500
      %v1586 = vpack.c.bf16 %v1511, %v1510
      %v1587 = vpack.c.bf16 %v1521, %v1520
      %v1588 = vpack.c.bf16 %v1531, %v1530
      %v1589 = vpack.c.bf16 %v1541, %v1540
      %v1590 = vld [vmem:[%s3] sm:$0xf]
      %vm1591 = vcmask 1040384
      %vm1592 = vcmask 1042434
      %vm1593 = vmor %vm1591, %vm1592
      %vm1594 = vcmask 1044484
      %vm1595 = vmor %vm1593, %vm1594
      %vm1596 = vcmask 1046534
      %vm1597 = vmor %vm1595, %vm1596
      %v1598 = vrot.slane %v1172, 7
      %v1599 = vrot.slane %v1598, 2
      %v1600 = vrot.slane %v1254, 7
      %v1601 = vsel %vm1597, %v1599, %v1600
      %v1602 = vrot.slane %v1600, 2
      %v1603 = vrot.slane %v1255, 7
      %v1604 = vsel %vm1597, %v1602, %v1603
      %v1605 = vrot.slane %v1603, 2
      %v1606 = vrot.slane %v1256, 7
      %v1607 = vsel %vm1597, %v1605, %v1606
      %v1608 = vrot.slane %v1606, 2
      %v1609 = vrot.slane %v1173, 7
      %v1610 = vsel %vm1597, %v1608, %v1609
      %v1611 = vrot.slane %v1609, 2
      %v1612 = vrot.slane %v1257, 7
      %v1613 = vsel %vm1597, %v1611, %v1612
      %v1614 = vrot.slane %v1612, 2
      %v1615 = vrot.slane %v1258, 7
      %v1616 = vsel %vm1597, %v1614, %v1615
      %v1617 = vrot.slane %v1615, 2
      %v1618 = vrot.slane %v1259, 7
      %v1619 = vsel %vm1597, %v1617, %v1618
      %v1620 = vrot.slane %v1618, 2
      %v1621 = vrot.slane %v1174, 7
      %v1622 = vsel %vm1597, %v1620, %v1621
      %v1623 = vrot.slane %v1260, 7
      %v1624 = vrot.slane %v1623, 2
      %v1625 = vrot.slane %v1261, 7
      %v1626 = vsel %vm1597, %v1624, %v1625
      %v1627 = vrot.slane %v1625, 2
      %v1628 = vrot.slane %v1262, 7
      %v1629 = vsel %vm1597, %v1627, %v1628
      %v1630 = vrot.slane %v1628, 2
      %v1631 = vrot.slane %v1175, 7
      %v1632 = vsel %vm1597, %v1630, %v1631
      %v1633 = vrot.slane %v1631, 2
      %v1634 = vrot.slane %v1263, 7
      %v1635 = vsel %vm1597, %v1633, %v1634
      %v1636 = vrot.slane %v1634, 2
      %v1637 = vrot.slane %v1264, 7
      %v1638 = vsel %vm1597, %v1636, %v1637
      %v1639 = vrot.slane %v1637, 2
      %v1640 = vrot.slane %v1265, 7
      %v1641 = vsel %vm1597, %v1639, %v1640
      %v1642 = vrot.slane %v1640, 2
      %v1643 = vrot.slane %v1176, 7
      %v1644 = vsel %vm1597, %v1642, %v1643
      %v1645 = vrot.slane %v1643, 2
      %v1646 = vrot.slane %v1266, 7
      %v1647 = vsel %vm1597, %v1645, %v1646
      %v1648 = vrot.slane %v1267, 7
      %v1649 = vrot.slane %v1648, 2
      %v1650 = vrot.slane %v1268, 7
      %v1651 = vsel %vm1597, %v1649, %v1650
      %v1652 = vrot.slane %v1650, 2
      %v1653 = vrot.slane %v1177, 7
      %v1654 = vsel %vm1597, %v1652, %v1653
      %v1655 = vrot.slane %v1653, 2
      %v1656 = vrot.slane %v1269, 7
      %v1657 = vsel %vm1597, %v1655, %v1656
      %v1658 = vrot.slane %v1656, 2
      %v1659 = vrot.slane %v1270, 7
      %v1660 = vsel %vm1597, %v1658, %v1659
      %v1661 = vrot.slane %v1659, 2
      %v1662 = vrot.slane %v1271, 7
      %v1663 = vsel %vm1597, %v1661, %v1662
      %v1664 = vrot.slane %v1662, 2
      %v1665 = vrot.slane %v1178, 7
      %v1666 = vsel %vm1597, %v1664, %v1665
      %v1667 = vrot.slane %v1665, 2
      %v1668 = vrot.slane %v1272, 7
      %v1669 = vsel %vm1597, %v1667, %v1668
      %v1670 = vrot.slane %v1668, 2
      %v1671 = vrot.slane %v1273, 7
      %v1672 = vsel %vm1597, %v1670, %v1671
      %v1673 = vrot.slane %v1274, 7
      %v1674 = vrot.slane %v1673, 2
      %v1675 = vrot.slane %v1179, 7
      %v1676 = vsel %vm1597, %v1674, %v1675
      %v1677 = vrot.slane %v1675, 2
      %v1678 = vrot.slane %v1275, 7
      %v1679 = vsel %vm1597, %v1677, %v1678
      %v1680 = vrot.slane %v1678, 2
      %v1681 = vrot.slane %v1276, 7
      %v1682 = vsel %vm1597, %v1680, %v1681
      %v1683 = vrot.slane %v1681, 2
      %v1684 = vrot.slane %v1277, 7
      %v1685 = vsel %vm1597, %v1683, %v1684
      %v1686 = vrot.slane %v1684, 2
      %v1687 = vrot.slane %v1180, 7
      %v1688 = vsel %vm1597, %v1686, %v1687
      %v1689 = vrot.slane %v1687, 2
      %v1690 = vrot.slane %v1278, 7
      %v1691 = vsel %vm1597, %v1689, %v1690
      %v1692 = vrot.slane %v1690, 2
      %v1693 = vrot.slane %v1279, 7
      %v1694 = vsel %vm1597, %v1692, %v1693
      %v1695 = vrot.slane %v1693, 2
      %v1696 = vrot.slane %v1280, 7
      %v1697 = vsel %vm1597, %v1695, %v1696
      %v1698 = vrot.slane %v1181, 7
      %v1699 = vrot.slane %v1698, 2
      %v1700 = vrot.slane %v1281, 7
      %v1701 = vsel %vm1597, %v1699, %v1700
      %v1702 = vrot.slane %v1700, 2
      %v1703 = vrot.slane %v1282, 7
      %v1704 = vsel %vm1597, %v1702, %v1703
      %v1705 = vrot.slane %v1703, 2
      %v1706 = vrot.slane %v1283, 7
      %v1707 = vsel %vm1597, %v1705, %v1706
      %v1708 = vrot.slane %v1706, 2
      %v1709 = vrot.slane %v1182, 7
      %v1710 = vsel %vm1597, %v1708, %v1709
      %v1711 = vrot.slane %v1709, 2
      %v1712 = vrot.slane %v1284, 7
      %v1713 = vsel %vm1597, %v1711, %v1712
      %v1714 = vrot.slane %v1712, 2
      %v1715 = vrot.slane %v1285, 7
      %v1716 = vsel %vm1597, %v1714, %v1715
      %v1717 = vrot.slane %v1715, 2
      %v1718 = vrot.slane %v1286, 7
      %v1719 = vsel %vm1597, %v1717, %v1718
      %v1720 = vrot.slane %v1718, 2
      %v1721 = vrot.slane %v1183, 7
      %v1722 = vsel %vm1597, %v1720, %v1721
      %v1723 = vrot.slane %v1287, 7
      %v1724 = vrot.slane %v1723, 2
      %v1725 = vrot.slane %v1288, 7
      %v1726 = vsel %vm1597, %v1724, %v1725
      %v1727 = vrot.slane %v1725, 2
      %v1728 = vrot.slane %v1289, 7
      %v1729 = vsel %vm1597, %v1727, %v1728
      %v1730 = vrot.slane %v1728, 2
      %v1731 = vrot.slane %v1184, 7
      %v1732 = vsel %vm1597, %v1730, %v1731
      %v1733 = vrot.slane %v1731, 2
      %v1734 = vrot.slane %v1290, 7
      %v1735 = vsel %vm1597, %v1733, %v1734
      %v1736 = vrot.slane %v1734, 2
      %v1737 = vrot.slane %v1291, 7
      %v1738 = vsel %vm1597, %v1736, %v1737
      %v1739 = vrot.slane %v1737, 2
      %v1740 = vrot.slane %v1292, 7
      %v1741 = vsel %vm1597, %v1739, %v1740
      %v1742 = vrot.slane %v1740, 2
      %v1743 = vrot.slane %v1185, 7
      %v1744 = vsel %vm1597, %v1742, %v1743
      %v1745 = vrot.slane %v1743, 2
      %v1746 = vrot.slane %v1293, 7
      %v1747 = vsel %vm1597, %v1745, %v1746
      %v1748 = vrot.slane %v1294, 7
      %v1749 = vrot.slane %v1748, 2
      %v1750 = vrot.slane %v1295, 7
      %v1751 = vsel %vm1597, %v1749, %v1750
      %v1752 = vrot.slane %v1750, 2
      %v1753 = vrot.slane %v1186, 7
      %v1754 = vsel %vm1597, %v1752, %v1753
      %v1755 = vrot.slane %v1753, 2
      %v1756 = vrot.slane %v1296, 7
      %v1757 = vsel %vm1597, %v1755, %v1756
      %v1758 = vrot.slane %v1756, 2
      %v1759 = vrot.slane %v1297, 7
      %v1760 = vsel %vm1597, %v1758, %v1759
      %v1761 = vrot.slane %v1759, 2
      %v1762 = vrot.slane %v1298, 7
      %v1763 = vsel %vm1597, %v1761, %v1762
      %v1764 = vrot.slane %v1762, 2
      %v1765 = vrot.slane %v1187, 7
      %v1766 = vsel %vm1597, %v1764, %v1765
      %v1767 = vrot.slane %v1765, 2
      %v1768 = vrot.slane %v1299, 7
      %v1769 = vsel %vm1597, %v1767, %v1768
      %v1770 = vrot.slane %v1768, 2
      %v1771 = vrot.slane %v1300, 7
      %v1772 = vsel %vm1597, %v1770, %v1771
      %v1773 = vrot.slane %v1301, 7
      %v1774 = vrot.slane %v1773, 2
      %v1775 = vrot.slane %v1188, 7
      %v1776 = vsel %vm1597, %v1774, %v1775
      %v1777 = vrot.slane %v1775, 2
      %v1778 = vrot.slane %v1302, 7
      %v1779 = vsel %vm1597, %v1777, %v1778
      %v1780 = vrot.slane %v1778, 2
      %v1781 = vrot.slane %v1303, 7
      %v1782 = vsel %vm1597, %v1780, %v1781
      %v1783 = vrot.slane %v1781, 2
      %v1784 = vrot.slane %v1304, 7
      %v1785 = vsel %vm1597, %v1783, %v1784
      %v1786 = vrot.slane %v1784, 2
      %v1787 = vrot.slane %v1189, 7
      %v1788 = vsel %vm1597, %v1786, %v1787
      %v1789 = vrot.slane %v1787, 2
      %v1790 = vrot.slane %v1305, 7
      %v1791 = vsel %vm1597, %v1789, %v1790
      %v1792 = vrot.slane %v1790, 2
      %v1793 = vrot.slane %v1306, 7
      %v1794 = vsel %vm1597, %v1792, %v1793
      %v1795 = vrot.slane %v1793, 2
      %v1796 = vrot.slane %v1307, 7
      %v1797 = vsel %vm1597, %v1795, %v1796
      %v1798 = vrot.slane %v1190, 7
      %v1799 = vrot.slane %v1798, 2
      %v1800 = vrot.slane %v1308, 7
      %v1801 = vsel %vm1597, %v1799, %v1800
      %v1802 = vrot.slane %v1800, 2
      %v1803 = vrot.slane %v1309, 7
      %v1804 = vsel %vm1597, %v1802, %v1803
      %v1805 = vrot.slane %v1803, 2
      %v1806 = vrot.slane %v1310, 7
      %v1807 = vsel %vm1597, %v1805, %v1806
      %v1808 = vrot.slane %v1806, 2
      %v1809 = vrot.slane %v1191, 7
      %v1810 = vsel %vm1597, %v1808, %v1809
      %v1811 = vrot.slane %v1809, 2
      %v1812 = vrot.slane %v1311, 7
      %v1813 = vsel %vm1597, %v1811, %v1812
      %v1814 = vrot.slane %v1812, 2
      %v1815 = vrot.slane %v1312, 7
      %v1816 = vsel %vm1597, %v1814, %v1815
      %v1817 = vrot.slane %v1815, 2
      %v1818 = vrot.slane %v1313, 7
      %v1819 = vsel %vm1597, %v1817, %v1818
      %v1820 = vrot.slane %v1818, 2
      %v1821 = vrot.slane %v1192, 7
      %v1822 = vsel %vm1597, %v1820, %v1821
      %v1823 = vrot.slane %v1314, 7
      %v1824 = vrot.slane %v1823, 2
      %v1825 = vrot.slane %v1315, 7
      %v1826 = vsel %vm1597, %v1824, %v1825
      %v1827 = vrot.slane %v1825, 2
      %v1828 = vrot.slane %v1316, 7
      %v1829 = vsel %vm1597, %v1827, %v1828
      %v1830 = vrot.slane %v1828, 2
      %v1831 = vrot.slane %v1193, 7
      %v1832 = vsel %vm1597, %v1830, %v1831
      %v1833 = vrot.slane %v1831, 2
      %v1834 = vrot.slane %v1317, 7
      %v1835 = vsel %vm1597, %v1833, %v1834
      %v1836 = vrot.slane %v1834, 2
      %v1837 = vrot.slane %v1318, 7
      %v1838 = vsel %vm1597, %v1836, %v1837
      %v1839 = vrot.slane %v1837, 2
      %v1840 = vrot.slane %v1319, 7
      %v1841 = vsel %vm1597, %v1839, %v1840
      %v1842 = vrot.slane %v1840, 2
      %v1843 = vrot.slane %v1194, 7
      %v1844 = vsel %vm1597, %v1842, %v1843
      %v1845 = vrot.slane %v1843, 2
      %v1846 = vrot.slane %v1320, 7
      %v1847 = vsel %vm1597, %v1845, %v1846
      %v1848 = vrot.slane %v1321, 7
      %v1849 = vrot.slane %v1848, 2
      %v1850 = vrot.slane %v1322, 7
      %v1851 = vsel %vm1597, %v1849, %v1850
      %v1852 = vrot.slane %v1850, 2
      %v1853 = vrot.slane %v1195, 7
      %v1854 = vsel %vm1597, %v1852, %v1853
      %v1855 = vrot.slane %v1853, 2
      %v1856 = vrot.slane %v1323, 7
      %v1857 = vsel %vm1597, %v1855, %v1856
      %v1858 = vrot.slane %v1856, 2
      %v1859 = vrot.slane %v1324, 7
      %v1860 = vsel %vm1597, %v1858, %v1859
      %v1861 = vrot.slane %v1859, 2
      %v1862 = vrot.slane %v1325, 7
      %v1863 = vsel %vm1597, %v1861, %v1862
      %v1864 = vrot.slane %v1862, 2
      %v1865 = vrot.slane %v1196, 7
      %v1866 = vsel %vm1597, %v1864, %v1865
      %v1867 = vrot.slane %v1865, 2
      %v1868 = vrot.slane %v1326, 7
      %v1869 = vsel %vm1597, %v1867, %v1868
      %v1870 = vrot.slane %v1868, 2
      %v1871 = vrot.slane %v1327, 7
      %v1872 = vsel %vm1597, %v1870, %v1871
      %v1873 = vrot.slane %v1328, 7
      %v1874 = vrot.slane %v1873, 2
      %v1875 = vrot.slane %v1197, 7
      %v1876 = vsel %vm1597, %v1874, %v1875
      %v1877 = vrot.slane %v1875, 2
      %v1878 = vrot.slane %v1329, 7
      %v1879 = vsel %vm1597, %v1877, %v1878
      %v1880 = vrot.slane %v1878, 2
      %v1881 = vrot.slane %v1330, 7
      %v1882 = vsel %vm1597, %v1880, %v1881
      %v1883 = vrot.slane %v1881, 2
      %v1884 = vrot.slane %v1331, 7
      %v1885 = vsel %vm1597, %v1883, %v1884
      %v1886 = vrot.slane %v1884, 2
      %v1887 = vrot.slane %v1198, 7
      %v1888 = vsel %vm1597, %v1886, %v1887
      %v1889 = vrot.slane %v1887, 2
      %v1890 = vrot.slane %v1332, 7
      %v1891 = vsel %vm1597, %v1889, %v1890
      %v1892 = vrot.slane %v1890, 2
      %v1893 = vrot.slane %v1333, 7
      %v1894 = vsel %vm1597, %v1892, %v1893
      %v1895 = vrot.slane %v1893, 2
      %v1896 = vrot.slane %v1334, 7
      %v1897 = vsel %vm1597, %v1895, %v1896
      %v1898 = vrot.slane %v1199, 7
      %v1899 = vrot.slane %v1898, 2
      %v1900 = vrot.slane %v1335, 7
      %v1901 = vsel %vm1597, %v1899, %v1900
      %v1902 = vrot.slane %v1900, 2
      %v1903 = vrot.slane %v1336, 7
      %v1904 = vsel %vm1597, %v1902, %v1903
      %v1905 = vrot.slane %v1903, 2
      %v1906 = vrot.slane %v1337, 7
      %v1907 = vsel %vm1597, %v1905, %v1906
      %v1908 = vrot.slane %v1906, 2
      %v1909 = vrot.slane %v1200, 7
      %v1910 = vsel %vm1597, %v1908, %v1909
      %v1911 = vrot.slane %v1909, 2
      %v1912 = vrot.slane %v1338, 7
      %v1913 = vsel %vm1597, %v1911, %v1912
      %v1914 = vrot.slane %v1912, 2
      %v1915 = vrot.slane %v1339, 7
      %v1916 = vsel %vm1597, %v1914, %v1915
      %v1917 = vrot.slane %v1915, 2
      %v1918 = vrot.slane %v1340, 7
      %v1919 = vsel %vm1597, %v1917, %v1918
      %v1920 = vrot.slane %v1918, 2
      %v1921 = vrot.slane %v1201, 7
      %v1922 = vsel %vm1597, %v1920, %v1921
      %v1923 = vrot.slane %v1341, 7
      %v1924 = vrot.slane %v1923, 2
      %v1925 = vrot.slane %v1342, 7
      %v1926 = vsel %vm1597, %v1924, %v1925
      %v1927 = vrot.slane %v1925, 2
      %v1928 = vrot.slane %v1343, 7
      %v1929 = vsel %vm1597, %v1927, %v1928
      %v1930 = vrot.slane %v1928, 2
      %v1931 = vrot.slane %v1202, 7
      %v1932 = vsel %vm1597, %v1930, %v1931
      %v1933 = vrot.slane %v1931, 2
      %v1934 = vrot.slane %v1344, 7
      %v1935 = vsel %vm1597, %v1933, %v1934
      %v1936 = vrot.slane %v1934, 2
      %v1937 = vrot.slane %v1345, 7
      %v1938 = vsel %vm1597, %v1936, %v1937
      %v1939 = vrot.slane %v1937, 2
      %v1940 = vrot.slane %v1346, 7
      %v1941 = vsel %vm1597, %v1939, %v1940
      %v1942 = vrot.slane %v1940, 2
      %v1943 = vrot.slane %v1203, 7
      %v1944 = vsel %vm1597, %v1942, %v1943
      %v1945 = vrot.slane %v1943, 2
      %v1946 = vrot.slane %v1347, 7
      %v1947 = vsel %vm1597, %v1945, %v1946
      %v1948 = vrot.slane %v1348, 7
      %v1949 = vrot.slane %v1948, 2
      %v1950 = vrot.slane %v1349, 7
      %v1951 = vsel %vm1597, %v1949, %v1950
      %v1952 = vrot.slane %v1950, 2
      %v1953 = vrot.slane %v1204, 7
      %v1954 = vsel %vm1597, %v1952, %v1953
      %v1955 = vrot.slane %v1953, 2
      %v1956 = vrot.slane %v1350, 7
      %v1957 = vsel %vm1597, %v1955, %v1956
      %v1958 = vrot.slane %v1956, 2
      %v1959 = vrot.slane %v1351, 7
      %v1960 = vsel %vm1597, %v1958, %v1959
      %v1961 = vrot.slane %v1959, 2
      %v1962 = vrot.slane %v1352, 7
      %v1963 = vsel %vm1597, %v1961, %v1962
      %v1964 = vrot.slane %v1962, 2
      %v1965 = vrot.slane %v1205, 7
      %v1966 = vsel %vm1597, %v1964, %v1965
      %v1967 = vrot.slane %v1965, 2
      %v1968 = vrot.slane %v1353, 7
      %v1969 = vsel %vm1597, %v1967, %v1968
      %v1970 = vrot.slane %v1968, 2
      %v1971 = vrot.slane %v1354, 7
      %v1972 = vsel %vm1597, %v1970, %v1971
      %v1973 = vrot.slane %v1355, 7
      %v1974 = vrot.slane %v1973, 2
      %v1975 = vrot.slane %v1206, 7
      %v1976 = vsel %vm1597, %v1974, %v1975
      %v1977 = vrot.slane %v1975, 2
      %v1978 = vrot.slane %v1356, 7
      %v1979 = vsel %vm1597, %v1977, %v1978
      %v1980 = vrot.slane %v1978, 2
      %v1981 = vrot.slane %v1357, 7
      %v1982 = vsel %vm1597, %v1980, %v1981
      %v1983 = vrot.slane %v1981, 2
      %v1984 = vrot.slane %v1358, 7
      %v1985 = vsel %vm1597, %v1983, %v1984
      %v1986 = vrot.slane %v1984, 2
      %v1987 = vrot.slane %v1207, 7
      %v1988 = vsel %vm1597, %v1986, %v1987
      %v1989 = vrot.slane %v1987, 2
      %v1990 = vrot.slane %v1359, 7
      %v1991 = vsel %vm1597, %v1989, %v1990
      %v1992 = vrot.slane %v1990, 2
      %v1993 = vrot.slane %v1360, 7
      %v1994 = vsel %vm1597, %v1992, %v1993
      %v1995 = vrot.slane %v1993, 2
      %v1996 = vrot.slane %v1361, 7
      %v1997 = vsel %vm1597, %v1995, %v1996
      %1998 = vst [vmem:[#allocation1] ss:$4 sm:$0xff] %v1601
      %s1999 = scalar_lea.vmem [#allocation1], 1
      %2000 = vst [vmem:[%s1999] ss:$4 sm:$0xff] %v1604
      %s2001 = scalar_lea.vmem [#allocation1], 2
      %2002 = vst [vmem:[%s2001] ss:$4 sm:$0xff] %v1607
      %s2003 = scalar_lea.vmem [#allocation1], 3
      %2004 = vst [vmem:[%s2003] ss:$4 sm:$0xff] %v1610
      %s2005 = scalar_lea.vmem [#allocation1], 32
      %2006 = vst [vmem:[%s2005] ss:$4 sm:$0xff] %v1613
      %s2007 = scalar_lea.vmem [#allocation1], 33
      %2008 = vst [vmem:[%s2007] ss:$4 sm:$0xff] %v1616
      %s2009 = scalar_lea.vmem [#allocation1], 34
      %2010 = vst [vmem:[%s2009] ss:$4 sm:$0xff] %v1619
      %s2011 = scalar_lea.vmem [#allocation1], 35
      %2012 = vst [vmem:[%s2011] ss:$4 sm:$0xff] %v1622
      %v2013 = vld.sshfl [vmem:[#allocation1] sm:$0xff pattern:$0x73625140]
      %v2014 = vld.sshfl [vmem:[#allocation1 + $0x20] sm:$0xff pattern:$0x73625140]
      %2015 = vst [vmem:[#allocation1] ss:$4 sm:$0xff] %v1626
      %2016 = vst [vmem:[%s1999] ss:$4 sm:$0xff] %v1629
      %2017 = vst [vmem:[%s2001] ss:$4 sm:$0xff] %v1632
      %2018 = vst [vmem:[%s2003] ss:$4 sm:$0xff] %v1635
      %2019 = vst [vmem:[%s2005] ss:$4 sm:$0xff] %v1638
      %2020 = vst [vmem:[%s2007] ss:$4 sm:$0xff] %v1641
      %2021 = vst [vmem:[%s2009] ss:$4 sm:$0xff] %v1644
      %2022 = vst [vmem:[%s2011] ss:$4 sm:$0xff] %v1647
      %v2023 = vld.sshfl [vmem:[#allocation1] sm:$0xff pattern:$0x73625140]
      %v2024 = vld.sshfl [vmem:[#allocation1 + $0x20] sm:$0xff pattern:$0x73625140]
      %2025 = vst [vmem:[#allocation1] ss:$4 sm:$0xff] %v1651
      %2026 = vst [vmem:[%s1999] ss:$4 sm:$0xff] %v1654
      %2027 = vst [vmem:[%s2001] ss:$4 sm:$0xff] %v1657
      %2028 = vst [vmem:[%s2003] ss:$4 sm:$0xff] %v1660
      %2029 = vst [vmem:[%s2005] ss:$4 sm:$0xff] %v1663
      %2030 = vst [vmem:[%s2007] ss:$4 sm:$0xff] %v1666
      %2031 = vst [vmem:[%s2009] ss:$4 sm:$0xff] %v1669
      %2032 = vst [vmem:[%s2011] ss:$4 sm:$0xff] %v1672
      %v2033 = vld.sshfl [vmem:[#allocation1] sm:$0xff pattern:$0x73625140]
      %v2034 = vld.sshfl [vmem:[#allocation1 + $0x20] sm:$0xff pattern:$0x73625140]
      %2035 = vst [vmem:[#allocation1] ss:$4 sm:$0xff] %v1676
      %2036 = vst [vmem:[%s1999] ss:$4 sm:$0xff] %v1679
      %2037 = vst [vmem:[%s2001] ss:$4 sm:$0xff] %v1682
      %2038 = vst [vmem:[%s2003] ss:$4 sm:$0xff] %v1685
      %2039 = vst [vmem:[%s2005] ss:$4 sm:$0xff] %v1688
      %2040 = vst [vmem:[%s2007] ss:$4 sm:$0xff] %v1691
      %2041 = vst [vmem:[%s2009] ss:$4 sm:$0xff] %v1694
      %2042 = vst [vmem:[%s2011] ss:$4 sm:$0xff] %v1697
      %v2043 = vld.sshfl [vmem:[#allocation1] sm:$0xff pattern:$0x73625140]
      %v2044 = vld.sshfl [vmem:[#allocation1 + $0x20] sm:$0xff pattern:$0x73625140]
      %2045 = vst [vmem:[#allocation1] ss:$4 sm:$0xff] %v1701
      %2046 = vst [vmem:[%s1999] ss:$4 sm:$0xff] %v1704
      %2047 = vst [vmem:[%s2001] ss:$4 sm:$0xff] %v1707
      %2048 = vst [vmem:[%s2003] ss:$4 sm:$0xff] %v1710
      %2049 = vst [vmem:[%s2005] ss:$4 sm:$0xff] %v1713
      %2050 = vst [vmem:[%s2007] ss:$4 sm:$0xff] %v1716
      %2051 = vst [vmem:[%s2009] ss:$4 sm:$0xff] %v1719
      %2052 = vst [vmem:[%s2011] ss:$4 sm:$0xff] %v1722
      %v2053 = vld.sshfl [vmem:[#allocation1] sm:$0xff pattern:$0x73625140]
      %v2054 = vld.sshfl [vmem:[#allocation1 + $0x20] sm:$0xff pattern:$0x73625140]
      %2055 = vst [vmem:[#allocation1] ss:$4 sm:$0xff] %v1726
      %2056 = vst [vmem:[%s1999] ss:$4 sm:$0xff] %v1729
      %2057 = vst [vmem:[%s2001] ss:$4 sm:$0xff] %v1732
      %2058 = vst [vmem:[%s2003] ss:$4 sm:$0xff] %v1735
      %2059 = vst [vmem:[%s2005] ss:$4 sm:$0xff] %v1738
      %2060 = vst [vmem:[%s2007] ss:$4 sm:$0xff] %v1741
      %2061 = vst [vmem:[%s2009] ss:$4 sm:$0xff] %v1744
      %2062 = vst [vmem:[%s2011] ss:$4 sm:$0xff] %v1747
      %v2063 = vld.sshfl [vmem:[#allocation1] sm:$0xff pattern:$0x73625140]
      %v2064 = vld.sshfl [vmem:[#allocation1 + $0x20] sm:$0xff pattern:$0x73625140]
      %2065 = vst [vmem:[#allocation1] ss:$4 sm:$0xff] %v1751
      %2066 = vst [vmem:[%s1999] ss:$4 sm:$0xff] %v1754
      %2067 = vst [vmem:[%s2001] ss:$4 sm:$0xff] %v1757
      %2068 = vst [vmem:[%s2003] ss:$4 sm:$0xff] %v1760
      %2069 = vst [vmem:[%s2005] ss:$4 sm:$0xff] %v1763
      %2070 = vst [vmem:[%s2007] ss:$4 sm:$0xff] %v1766
      %2071 = vst [vmem:[%s2009] ss:$4 sm:$0xff] %v1769
      %2072 = vst [vmem:[%s2011] ss:$4 sm:$0xff] %v1772
      %v2073 = vld.sshfl [vmem:[#allocation1] sm:$0xff pattern:$0x73625140]
      %v2074 = vld.sshfl [vmem:[#allocation1 + $0x20] sm:$0xff pattern:$0x73625140]
      %2075 = vst [vmem:[#allocation1] ss:$4 sm:$0xff] %v1776
      %2076 = vst [vmem:[%s1999] ss:$4 sm:$0xff] %v1779
      %2077 = vst [vmem:[%s2001] ss:$4 sm:$0xff] %v1782
      %2078 = vst [vmem:[%s2003] ss:$4 sm:$0xff] %v1785
      %2079 = vst [vmem:[%s2005] ss:$4 sm:$0xff] %v1788
      %2080 = vst [vmem:[%s2007] ss:$4 sm:$0xff] %v1791
      %2081 = vst [vmem:[%s2009] ss:$4 sm:$0xff] %v1794
      %2082 = vst [vmem:[%s2011] ss:$4 sm:$0xff] %v1797
      %v2083 = vld.sshfl [vmem:[#allocation1] sm:$0xff pattern:$0x73625140]
      %v2084 = vld.sshfl [vmem:[#allocation1 + $0x20] sm:$0xff pattern:$0x73625140]
      %2085 = vst [vmem:[#allocation1] ss:$4 sm:$0xff] %v1801
      %2086 = vst [vmem:[%s1999] ss:$4 sm:$0xff] %v1804
      %2087 = vst [vmem:[%s2001] ss:$4 sm:$0xff] %v1807
      %2088 = vst [vmem:[%s2003] ss:$4 sm:$0xff] %v1810
      %2089 = vst [vmem:[%s2005] ss:$4 sm:$0xff] %v1813
      %2090 = vst [vmem:[%s2007] ss:$4 sm:$0xff] %v1816
      %2091 = vst [vmem:[%s2009] ss:$4 sm:$0xff] %v1819
      %2092 = vst [vmem:[%s2011] ss:$4 sm:$0xff] %v1822
      %v2093 = vld.sshfl [vmem:[#allocation1] sm:$0xff pattern:$0x73625140]
      %v2094 = vld.sshfl [vmem:[#allocation1 + $0x20] sm:$0xff pattern:$0x73625140]
      %2095 = vst [vmem:[#allocation1] ss:$4 sm:$0xff] %v1826
      %2096 = vst [vmem:[%s1999] ss:$4 sm:$0xff] %v1829
      %2097 = vst [vmem:[%s2001] ss:$4 sm:$0xff] %v1832
      %2098 = vst [vmem:[%s2003] ss:$4 sm:$0xff] %v1835
      %2099 = vst [vmem:[%s2005] ss:$4 sm:$0xff] %v1838
      %2100 = vst [vmem:[%s2007] ss:$4 sm:$0xff] %v1841
      %2101 = vst [vmem:[%s2009] ss:$4 sm:$0xff] %v1844
      %2102 = vst [vmem:[%s2011] ss:$4 sm:$0xff] %v1847
      %v2103 = vld.sshfl [vmem:[#allocation1] sm:$0xff pattern:$0x73625140]
      %v2104 = vld.sshfl [vmem:[#allocation1 + $0x20] sm:$0xff pattern:$0x73625140]
      %2105 = vst [vmem:[#allocation1] ss:$4 sm:$0xff] %v1851
      %2106 = vst [vmem:[%s1999] ss:$4 sm:$0xff] %v1854
      %2107 = vst [vmem:[%s2001] ss:$4 sm:$0xff] %v1857
      %2108 = vst [vmem:[%s2003] ss:$4 sm:$0xff] %v1860
      %2109 = vst [vmem:[%s2005] ss:$4 sm:$0xff] %v1863
      %2110 = vst [vmem:[%s2007] ss:$4 sm:$0xff] %v1866
      %2111 = vst [vmem:[%s2009] ss:$4 sm:$0xff] %v1869
      %2112 = vst [vmem:[%s2011] ss:$4 sm:$0xff] %v1872
      %v2113 = vld.sshfl [vmem:[#allocation1] sm:$0xff pattern:$0x73625140]
      %v2114 = vld.sshfl [vmem:[#allocation1 + $0x20] sm:$0xff pattern:$0x73625140]
      %2115 = vst [vmem:[#allocation1] ss:$4 sm:$0xff] %v1876
      %2116 = vst [vmem:[%s1999] ss:$4 sm:$0xff] %v1879
      %2117 = vst [vmem:[%s2001] ss:$4 sm:$0xff] %v1882
      %2118 = vst [vmem:[%s2003] ss:$4 sm:$0xff] %v1885
      %2119 = vst [vmem:[%s2005] ss:$4 sm:$0xff] %v1888
      %2120 = vst [vmem:[%s2007] ss:$4 sm:$0xff] %v1891
      %2121 = vst [vmem:[%s2009] ss:$4 sm:$0xff] %v1894
      %2122 = vst [vmem:[%s2011] ss:$4 sm:$0xff] %v1897
      %v2123 = vld.sshfl [vmem:[#allocation1] sm:$0xff pattern:$0x73625140]
      %v2124 = vld.sshfl [vmem:[#allocation1 + $0x20] sm:$0xff pattern:$0x73625140]
      %2125 = vst [vmem:[#allocation1] ss:$4 sm:$0xff] %v1901
      %2126 = vst [vmem:[%s1999] ss:$4 sm:$0xff] %v1904
      %2127 = vst [vmem:[%s2001] ss:$4 sm:$0xff] %v1907
      %2128 = vst [vmem:[%s2003] ss:$4 sm:$0xff] %v1910
      %2129 = vst [vmem:[%s2005] ss:$4 sm:$0xff] %v1913
      %2130 = vst [vmem:[%s2007] ss:$4 sm:$0xff] %v1916
      %2131 = vst [vmem:[%s2009] ss:$4 sm:$0xff] %v1919
      %2132 = vst [vmem:[%s2011] ss:$4 sm:$0xff] %v1922
      %v2133 = vld.sshfl [vmem:[#allocation1] sm:$0xff pattern:$0x73625140]
      %v2134 = vld.sshfl [vmem:[#allocation1 + $0x20] sm:$0xff pattern:$0x73625140]
      %2135 = vst [vmem:[#allocation1] ss:$4 sm:$0xff] %v1926
      %2136 = vst [vmem:[%s1999] ss:$4 sm:$0xff] %v1929
      %2137 = vst [vmem:[%s2001] ss:$4 sm:$0xff] %v1932
      %2138 = vst [vmem:[%s2003] ss:$4 sm:$0xff] %v1935
      %2139 = vst [vmem:[%s2005] ss:$4 sm:$0xff] %v1938
      %2140 = vst [vmem:[%s2007] ss:$4 sm:$0xff] %v1941
      %2141 = vst [vmem:[%s2009] ss:$4 sm:$0xff] %v1944
      %2142 = vst [vmem:[%s2011] ss:$4 sm:$0xff] %v1947
      %v2143 = vld.sshfl [vmem:[#allocation1] sm:$0xff pattern:$0x73625140]
      %v2144 = vld.sshfl [vmem:[#allocation1 + $0x20] sm:$0xff pattern:$0x73625140]
      %2145 = vst [vmem:[#allocation1] ss:$4 sm:$0xff] %v1951
      %2146 = vst [vmem:[%s1999] ss:$4 sm:$0xff] %v1954
      %2147 = vst [vmem:[%s2001] ss:$4 sm:$0xff] %v1957
      %2148 = vst [vmem:[%s2003] ss:$4 sm:$0xff] %v1960
      %2149 = vst [vmem:[%s2005] ss:$4 sm:$0xff] %v1963
      %2150 = vst [vmem:[%s2007] ss:$4 sm:$0xff] %v1966
      %2151 = vst [vmem:[%s2009] ss:$4 sm:$0xff] %v1969
      %2152 = vst [vmem:[%s2011] ss:$4 sm:$0xff] %v1972
      %v2153 = vld.sshfl [vmem:[#allocation1] sm:$0xff pattern:$0x73625140]
      %v2154 = vld.sshfl [vmem:[#allocation1 + $0x20] sm:$0xff pattern:$0x73625140]
      %2155 = vst [vmem:[#allocation1] ss:$4 sm:$0xff] %v1976
      %2156 = vst [vmem:[%s1999] ss:$4 sm:$0xff] %v1979
      %2157 = vst [vmem:[%s2001] ss:$4 sm:$0xff] %v1982
      %2158 = vst [vmem:[%s2003] ss:$4 sm:$0xff] %v1985
      %2159 = vst [vmem:[%s2005] ss:$4 sm:$0xff] %v1988
      %2160 = vst [vmem:[%s2007] ss:$4 sm:$0xff] %v1991
      %2161 = vst [vmem:[%s2009] ss:$4 sm:$0xff] %v1994
      %2162 = vst [vmem:[%s2011] ss:$4 sm:$0xff] %v1997
      %v2163 = vld.sshfl [vmem:[#allocation1] sm:$0xff pattern:$0x73625140]
      %v2164 = vld.sshfl [vmem:[#allocation1 + $0x20] sm:$0xff pattern:$0x73625140]
      %v2197 = vpack.c.bf16 %v2014, %v2013
      %v2198 = vpack.c.bf16 %v2024, %v2023
      %v2199 = vpack.c.bf16 %v2034, %v2033
      %v2200 = vpack.c.bf16 %v2044, %v2043
      %v2201 = vpack.c.bf16 %v2054, %v2053
      %v2202 = vpack.c.bf16 %v2064, %v2063
      %v2203 = vpack.c.bf16 %v2074, %v2073
      %v2204 = vpack.c.bf16 %v2084, %v2083
      %v2205 = vpack.c.bf16 %v2094, %v2093
      %v2206 = vpack.c.bf16 %v2104, %v2103
      %v2207 = vpack.c.bf16 %v2114, %v2113
      %v2208 = vpack.c.bf16 %v2124, %v2123
      %v2209 = vpack.c.bf16 %v2134, %v2133
      %v2210 = vpack.c.bf16 %v2144, %v2143
      %v2211 = vpack.c.bf16 %v2154, %v2153
      %v2212 = vpack.c.bf16 %v2164, %v2163
      %s2213 = scalar_lea.vmem %s3, 4
      %v2214 = vld [vmem:[%s2213] sm:$0xf]
      %vm2215 = vcmask 64512
      %v2217 = vsel %vm2215, %v2197, 0
      %v2220 = vsel %vm2215, %v2198, 0
      %v2223 = vsel %vm2215, %v2199, 0
      %v2226 = vsel %vm2215, %v2200, 0
      %v2229 = vsel %vm2215, %v2201, 0
      %v2232 = vsel %vm2215, %v2202, 0
      %v2235 = vsel %vm2215, %v2203, 0
      %v2238 = vsel %vm2215, %v2204, 0
      %v2241 = vsel %vm2215, %v2205, 0
      %v2244 = vsel %vm2215, %v2206, 0
      %v2247 = vsel %vm2215, %v2207, 0
      %v2250 = vsel %vm2215, %v2208, 0
      %v2253 = vsel %vm2215, %v2209, 0
      %v2256 = vsel %vm2215, %v2210, 0
      %v2259 = vsel %vm2215, %v2211, 0
      %v2262 = vsel %vm2215, %v2212, 0
      %vm2264 = vcmask 1043456
      %v2266 = vsel %vm2264, %v2214, 0
      %2268 = vmatpush.bf16.msra.mxu0 0
      %2269 = vmatpush.bf16.msra.mxu0 0
      %2270 = vmatpush.bf16.msra.mxu0 0
      %2271 = vmatpush.bf16.msra.mxu0 0
      %2272 = vmatpush.bf16.msra.mxu0 0
      %2273 = vmatpush.bf16.msra.mxu0 0
      %2274 = vmatpush.bf16.msra.mxu0 0
      %2275 = vmatpush.bf16.msra.mxu0 %v2266
      %2276 = vmatmul.bf16.gmra.mxu0 %v2217
      %v2277 = vpop.f32.mrf.mxu0
      %v2278 = vadd.f32 0.0, %v2277
      %v2279 = vpop.f32.mrf.mxu0
      %v2280 = vadd.f32 0.0, %v2279
      %2281 = vmatmul.bf16.gmra.mxu0 %v2220
      %v2282 = vpop.f32.mrf.mxu0
      %v2283 = vadd.f32 0.0, %v2282
      %v2284 = vpop.f32.mrf.mxu0
      %v2285 = vadd.f32 0.0, %v2284
      %2286 = vmatmul.bf16.gmra.mxu0 %v2223
      %v2287 = vpop.f32.mrf.mxu0
      %v2288 = vadd.f32 0.0, %v2287
      %v2289 = vpop.f32.mrf.mxu0
      %v2290 = vadd.f32 0.0, %v2289
      %2291 = vmatmul.bf16.gmra.mxu0 %v2226
      %v2292 = vpop.f32.mrf.mxu0
      %v2293 = vadd.f32 0.0, %v2292
      %v2294 = vpop.f32.mrf.mxu0
      %v2295 = vadd.f32 0.0, %v2294
      %2296 = vmatmul.bf16.gmra.mxu0 %v2229
      %v2297 = vpop.f32.mrf.mxu0
      %v2298 = vadd.f32 0.0, %v2297
      %v2299 = vpop.f32.mrf.mxu0
      %v2300 = vadd.f32 0.0, %v2299
      %2301 = vmatmul.bf16.gmra.mxu0 %v2232
      %v2302 = vpop.f32.mrf.mxu0
      %v2303 = vadd.f32 0.0, %v2302
      %v2304 = vpop.f32.mrf.mxu0
      %v2305 = vadd.f32 0.0, %v2304
      %2306 = vmatmul.bf16.gmra.mxu0 %v2235
      %v2307 = vpop.f32.mrf.mxu0
      %v2308 = vadd.f32 0.0, %v2307
      %v2309 = vpop.f32.mrf.mxu0
      %v2310 = vadd.f32 0.0, %v2309
      %2311 = vmatmul.bf16.gmra.mxu0 %v2238
      %v2312 = vpop.f32.mrf.mxu0
      %v2313 = vadd.f32 0.0, %v2312
      %v2314 = vpop.f32.mrf.mxu0
      %v2315 = vadd.f32 0.0, %v2314
      %2316 = vmatmul.bf16.gmra.mxu0 %v2241
      %v2317 = vpop.f32.mrf.mxu0
      %v2318 = vadd.f32 0.0, %v2317
      %v2319 = vpop.f32.mrf.mxu0
      %v2320 = vadd.f32 0.0, %v2319
      %2321 = vmatmul.bf16.gmra.mxu0 %v2244
      %v2322 = vpop.f32.mrf.mxu0
      %v2323 = vadd.f32 0.0, %v2322
      %v2324 = vpop.f32.mrf.mxu0
      %v2325 = vadd.f32 0.0, %v2324
      %2326 = vmatmul.bf16.gmra.mxu0 %v2247
      %v2327 = vpop.f32.mrf.mxu0
      %v2328 = vadd.f32 0.0, %v2327
      %v2329 = vpop.f32.mrf.mxu0
      %v2330 = vadd.f32 0.0, %v2329
      %2331 = vmatmul.bf16.gmra.mxu0 %v2250
      %v2332 = vpop.f32.mrf.mxu0
      %v2333 = vadd.f32 0.0, %v2332
      %v2334 = vpop.f32.mrf.mxu0
      %v2335 = vadd.f32 0.0, %v2334
      %2336 = vmatmul.bf16.gmra.mxu0 %v2253
      %v2337 = vpop.f32.mrf.mxu0
      %v2338 = vadd.f32 0.0, %v2337
      %v2339 = vpop.f32.mrf.mxu0
      %v2340 = vadd.f32 0.0, %v2339
      %2341 = vmatmul.bf16.gmra.mxu0 %v2256
      %v2342 = vpop.f32.mrf.mxu0
      %v2343 = vadd.f32 0.0, %v2342
      %v2344 = vpop.f32.mrf.mxu0
      %v2345 = vadd.f32 0.0, %v2344
      %2346 = vmatmul.bf16.gmra.mxu0 %v2259
      %v2347 = vpop.f32.mrf.mxu0
      %v2348 = vadd.f32 0.0, %v2347
      %v2349 = vpop.f32.mrf.mxu0
      %v2350 = vadd.f32 0.0, %v2349
      %2351 = vmatmul.bf16.gmra.mxu0 %v2262
      %v2352 = vpop.f32.mrf.mxu0
      %v2353 = vadd.f32 0.0, %v2352
      %v2354 = vpop.f32.mrf.mxu0
      %v2355 = vadd.f32 0.0, %v2354
      %2356 = vdwg.mxu0
      %v2358 = vsel %vm2215, %v1574, 0
      %v2361 = vsel %vm2215, %v1575, 0
      %v2364 = vsel %vm2215, %v1576, 0
      %v2367 = vsel %vm2215, %v1577, 0
      %v2370 = vsel %vm2215, %v1578, 0
      %v2373 = vsel %vm2215, %v1579, 0
      %v2376 = vsel %vm2215, %v1580, 0
      %v2379 = vsel %vm2215, %v1581, 0
      %v2382 = vsel %vm2215, %v1582, 0
      %v2385 = vsel %vm2215, %v1583, 0
      %v2388 = vsel %vm2215, %v1584, 0
      %v2391 = vsel %vm2215, %v1585, 0
      %v2394 = vsel %vm2215, %v1586, 0
      %v2397 = vsel %vm2215, %v1587, 0
      %v2400 = vsel %vm2215, %v1588, 0
      %v2403 = vsel %vm2215, %v1589, 0
      %v2406 = vsel %vm2264, %v1590, 0
      %2408 = vmatpush.bf16.msra.mxu0 0
      %2409 = vmatpush.bf16.msra.mxu0 0
      %2410 = vmatpush.bf16.msra.mxu0 0
      %2411 = vmatpush.bf16.msra.mxu0 0
      %2412 = vmatpush.bf16.msra.mxu0 0
      %2413 = vmatpush.bf16.msra.mxu0 0
      %2414 = vmatpush.bf16.msra.mxu0 0
      %2415 = vmatpush.bf16.msra.mxu0 %v2406
      %2416 = vmatmul.bf16.gmra.mxu0 %v2358
      %v2417 = vpop.f32.mrf.mxu0
      %v2418 = vadd.f32 %v2278, %v2417
      %v2419 = vpop.f32.mrf.mxu0
      %v2420 = vadd.f32 %v2280, %v2419
      %2421 = vmatmul.bf16.gmra.mxu0 %v2361
      %v2422 = vpop.f32.mrf.mxu0
      %v2423 = vadd.f32 %v2283, %v2422
      %v2424 = vpop.f32.mrf.mxu0
      %v2425 = vadd.f32 %v2285, %v2424
      %2426 = vmatmul.bf16.gmra.mxu0 %v2364
      %v2427 = vpop.f32.mrf.mxu0
      %v2428 = vadd.f32 %v2288, %v2427
      %v2429 = vpop.f32.mrf.mxu0
      %v2430 = vadd.f32 %v2290, %v2429
      %2431 = vmatmul.bf16.gmra.mxu0 %v2367
      %v2432 = vpop.f32.mrf.mxu0
      %v2433 = vadd.f32 %v2293, %v2432
      %v2434 = vpop.f32.mrf.mxu0
      %v2435 = vadd.f32 %v2295, %v2434
      %2436 = vmatmul.bf16.gmra.mxu0 %v2370
      %v2437 = vpop.f32.mrf.mxu0
      %v2438 = vadd.f32 %v2298, %v2437
      %v2439 = vpop.f32.mrf.mxu0
      %v2440 = vadd.f32 %v2300, %v2439
      %2441 = vmatmul.bf16.gmra.mxu0 %v2373
      %v2442 = vpop.f32.mrf.mxu0
      %v2443 = vadd.f32 %v2303, %v2442
      %v2444 = vpop.f32.mrf.mxu0
      %v2445 = vadd.f32 %v2305, %v2444
      %2446 = vmatmul.bf16.gmra.mxu0 %v2376
      %v2447 = vpop.f32.mrf.mxu0
      %v2448 = vadd.f32 %v2308, %v2447
      %v2449 = vpop.f32.mrf.mxu0
      %v2450 = vadd.f32 %v2310, %v2449
      %2451 = vmatmul.bf16.gmra.mxu0 %v2379
      %v2452 = vpop.f32.mrf.mxu0
      %v2453 = vadd.f32 %v2313, %v2452
      %v2454 = vpop.f32.mrf.mxu0
      %v2455 = vadd.f32 %v2315, %v2454
      %2456 = vmatmul.bf16.gmra.mxu0 %v2382
      %v2457 = vpop.f32.mrf.mxu0
      %v2458 = vadd.f32 %v2318, %v2457
      %v2459 = vpop.f32.mrf.mxu0
      %v2460 = vadd.f32 %v2320, %v2459
      %2461 = vmatmul.bf16.gmra.mxu0 %v2385
      %v2462 = vpop.f32.mrf.mxu0
      %v2463 = vadd.f32 %v2323, %v2462
      %v2464 = vpop.f32.mrf.mxu0
      %v2465 = vadd.f32 %v2325, %v2464
      %2466 = vmatmul.bf16.gmra.mxu0 %v2388
      %v2467 = vpop.f32.mrf.mxu0
      %v2468 = vadd.f32 %v2328, %v2467
      %v2469 = vpop.f32.mrf.mxu0
      %v2470 = vadd.f32 %v2330, %v2469
      %2471 = vmatmul.bf16.gmra.mxu0 %v2391
      %v2472 = vpop.f32.mrf.mxu0
      %v2473 = vadd.f32 %v2333, %v2472
      %v2474 = vpop.f32.mrf.mxu0
      %v2475 = vadd.f32 %v2335, %v2474
      %2476 = vmatmul.bf16.gmra.mxu0 %v2394
      %v2477 = vpop.f32.mrf.mxu0
      %v2478 = vadd.f32 %v2338, %v2477
      %v2479 = vpop.f32.mrf.mxu0
      %v2480 = vadd.f32 %v2340, %v2479
      %2481 = vmatmul.bf16.gmra.mxu0 %v2397
      %v2482 = vpop.f32.mrf.mxu0
      %v2483 = vadd.f32 %v2343, %v2482
      %v2484 = vpop.f32.mrf.mxu0
      %v2485 = vadd.f32 %v2345, %v2484
      %2486 = vmatmul.bf16.gmra.mxu0 %v2400
      %v2487 = vpop.f32.mrf.mxu0
      %v2488 = vadd.f32 %v2348, %v2487
      %v2489 = vpop.f32.mrf.mxu0
      %v2490 = vadd.f32 %v2350, %v2489
      %2491 = vmatmul.bf16.gmra.mxu0 %v2403
      %v2492 = vpop.f32.mrf.mxu0
      %v2493 = vadd.f32 %v2353, %v2492
      %v2494 = vpop.f32.mrf.mxu0
      %v2495 = vadd.f32 %v2355, %v2494
      %2496 = vdwg.mxu0
      %2497 = vst [vmem:[#allocation1] ss:$4 sm:$0xff] %v1254
      %s2498 = scalar_lea.vmem [#allocation1], 1
      %2499 = vst [vmem:[%s2498] ss:$4 sm:$0xff] %v1255
      %s2500 = scalar_lea.vmem [#allocation1], 2
      %2501 = vst [vmem:[%s2500] ss:$4 sm:$0xff] %v1256
      %s2502 = scalar_lea.vmem [#allocation1], 3
      %2503 = vst [vmem:[%s2502] ss:$4 sm:$0xff] %v1173
      %s2504 = scalar_lea.vmem [#allocation1], 32
      %2505 = vst [vmem:[%s2504] ss:$4 sm:$0xff] %v1257
      %s2506 = scalar_lea.vmem [#allocation1], 33
      %2507 = vst [vmem:[%s2506] ss:$4 sm:$0xff] %v1258
      %s2508 = scalar_lea.vmem [#allocation1], 34
      %2509 = vst [vmem:[%s2508] ss:$4 sm:$0xff] %v1259
      %s2510 = scalar_lea.vmem [#allocation1], 35
      %2511 = vst [vmem:[%s2510] ss:$4 sm:$0xff] %v1174
      %v2512 = vld.sshfl [vmem:[#allocation1] sm:$0xff pattern:$0x73625140]
      %v2513 = vld.sshfl [vmem:[#allocation1 + $0x20] sm:$0xff pattern:$0x73625140]
      %2514 = vst [vmem:[#allocation1] ss:$4 sm:$0xff] %v1261
      %2515 = vst [vmem:[%s2498] ss:$4 sm:$0xff] %v1262
      %2516 = vst [vmem:[%s2500] ss:$4 sm:$0xff] %v1175
      %2517 = vst [vmem:[%s2502] ss:$4 sm:$0xff] %v1263
      %2518 = vst [vmem:[%s2504] ss:$4 sm:$0xff] %v1264
      %2519 = vst [vmem:[%s2506] ss:$4 sm:$0xff] %v1265
      %2520 = vst [vmem:[%s2508] ss:$4 sm:$0xff] %v1176
      %2521 = vst [vmem:[%s2510] ss:$4 sm:$0xff] %v1266
      %v2522 = vld.sshfl [vmem:[#allocation1] sm:$0xff pattern:$0x73625140]
      %v2523 = vld.sshfl [vmem:[#allocation1 + $0x20] sm:$0xff pattern:$0x73625140]
      %2524 = vst [vmem:[#allocation1] ss:$4 sm:$0xff] %v1268
      %2525 = vst [vmem:[%s2498] ss:$4 sm:$0xff] %v1177
      %2526 = vst [vmem:[%s2500] ss:$4 sm:$0xff] %v1269
      %2527 = vst [vmem:[%s2502] ss:$4 sm:$0xff] %v1270
      %2528 = vst [vmem:[%s2504] ss:$4 sm:$0xff] %v1271
      %2529 = vst [vmem:[%s2506] ss:$4 sm:$0xff] %v1178
      %2530 = vst [vmem:[%s2508] ss:$4 sm:$0xff] %v1272
      %2531 = vst [vmem:[%s2510] ss:$4 sm:$0xff] %v1273
      %v2532 = vld.sshfl [vmem:[#allocation1] sm:$0xff pattern:$0x73625140]
      %v2533 = vld.sshfl [vmem:[#allocation1 + $0x20] sm:$0xff pattern:$0x73625140]
      %2534 = vst [vmem:[#allocation1] ss:$4 sm:$0xff] %v1179
      %2535 = vst [vmem:[%s2498] ss:$4 sm:$0xff] %v1275
      %2536 = vst [vmem:[%s2500] ss:$4 sm:$0xff] %v1276
      %2537 = vst [vmem:[%s2502] ss:$4 sm:$0xff] %v1277
      %2538 = vst [vmem:[%s2504] ss:$4 sm:$0xff] %v1180
      %2539 = vst [vmem:[%s2506] ss:$4 sm:$0xff] %v1278
      %2540 = vst [vmem:[%s2508] ss:$4 sm:$0xff] %v1279
      %2541 = vst [vmem:[%s2510] ss:$4 sm:$0xff] %v1280
      %v2542 = vld.sshfl [vmem:[#allocation1] sm:$0xff pattern:$0x73625140]
      %v2543 = vld.sshfl [vmem:[#allocation1 + $0x20] sm:$0xff pattern:$0x73625140]
      %2544 = vst [vmem:[#allocation1] ss:$4 sm:$0xff] %v1281
      %2545 = vst [vmem:[%s2498] ss:$4 sm:$0xff] %v1282
      %2546 = vst [vmem:[%s2500] ss:$4 sm:$0xff] %v1283
      %2547 = vst [vmem:[%s2502] ss:$4 sm:$0xff] %v1182
      %2548 = vst [vmem:[%s2504] ss:$4 sm:$0xff] %v1284
      %2549 = vst [vmem:[%s2506] ss:$4 sm:$0xff] %v1285
      %2550 = vst [vmem:[%s2508] ss:$4 sm:$0xff] %v1286
      %2551 = vst [vmem:[%s2510] ss:$4 sm:$0xff] %v1183
      %v2552 = vld.sshfl [vmem:[#allocation1] sm:$0xff pattern:$0x73625140]
      %v2553 = vld.sshfl [vmem:[#allocation1 + $0x20] sm:$0xff pattern:$0x73625140]
      %2554 = vst [vmem:[#allocation1] ss:$4 sm:$0xff] %v1288
      %2555 = vst [vmem:[%s2498] ss:$4 sm:$0xff] %v1289
      %2556 = vst [vmem:[%s2500] ss:$4 sm:$0xff] %v1184
      %2557 = vst [vmem:[%s2502] ss:$4 sm:$0xff] %v1290
      %2558 = vst [vmem:[%s2504] ss:$4 sm:$0xff] %v1291
      %2559 = vst [vmem:[%s2506] ss:$4 sm:$0xff] %v1292
      %2560 = vst [vmem:[%s2508] ss:$4 sm:$0xff] %v1185
      %2561 = vst [vmem:[%s2510] ss:$4 sm:$0xff] %v1293
      %v2562 = vld.sshfl [vmem:[#allocation1] sm:$0xff pattern:$0x73625140]
      %v2563 = vld.sshfl [vmem:[#allocation1 + $0x20] sm:$0xff pattern:$0x73625140]
      %2564 = vst [vmem:[#allocation1] ss:$4 sm:$0xff] %v1295
      %2565 = vst [vmem:[%s2498] ss:$4 sm:$0xff] %v1186
      %2566 = vst [vmem:[%s2500] ss:$4 sm:$0xff] %v1296
      %2567 = vst [vmem:[%s2502] ss:$4 sm:$0xff] %v1297
      %2568 = vst [vmem:[%s2504] ss:$4 sm:$0xff] %v1298
      %2569 = vst [vmem:[%s2506] ss:$4 sm:$0xff] %v1187
      %2570 = vst [vmem:[%s2508] ss:$4 sm:$0xff] %v1299
      %2571 = vst [vmem:[%s2510] ss:$4 sm:$0xff] %v1300
      %v2572 = vld.sshfl [vmem:[#allocation1] sm:$0xff pattern:$0x73625140]
      %v2573 = vld.sshfl [vmem:[#allocation1 + $0x20] sm:$0xff pattern:$0x73625140]
      %2574 = vst [vmem:[#allocation1] ss:$4 sm:$0xff] %v1188
      %2575 = vst [vmem:[%s2498] ss:$4 sm:$0xff] %v1302
      %2576 = vst [vmem:[%s2500] ss:$4 sm:$0xff] %v1303
      %2577 = vst [vmem:[%s2502] ss:$4 sm:$0xff] %v1304
      %2578 = vst [vmem:[%s2504] ss:$4 sm:$0xff] %v1189
      %2579 = vst [vmem:[%s2506] ss:$4 sm:$0xff] %v1305
      %2580 = vst [vmem:[%s2508] ss:$4 sm:$0xff] %v1306
      %2581 = vst [vmem:[%s2510] ss:$4 sm:$0xff] %v1307
      %v2582 = vld.sshfl [vmem:[#allocation1] sm:$0xff pattern:$0x73625140]
      %v2583 = vld.sshfl [vmem:[#allocation1 + $0x20] sm:$0xff pattern:$0x73625140]
      %2584 = vst [vmem:[#allocation1] ss:$4 sm:$0xff] %v1308
      %2585 = vst [vmem:[%s2498] ss:$4 sm:$0xff] %v1309
      %2586 = vst [vmem:[%s2500] ss:$4 sm:$0xff] %v1310
      %2587 = vst [vmem:[%s2502] ss:$4 sm:$0xff] %v1191
      %2588 = vst [vmem:[%s2504] ss:$4 sm:$0xff] %v1311
      %2589 = vst [vmem:[%s2506] ss:$4 sm:$0xff] %v1312
      %2590 = vst [vmem:[%s2508] ss:$4 sm:$0xff] %v1313
      %2591 = vst [vmem:[%s2510] ss:$4 sm:$0xff] %v1192
      %v2592 = vld.sshfl [vmem:[#allocation1] sm:$0xff pattern:$0x73625140]
      %v2593 = vld.sshfl [vmem:[#allocation1 + $0x20] sm:$0xff pattern:$0x73625140]
      %2594 = vst [vmem:[#allocation1] ss:$4 sm:$0xff] %v1315
      %2595 = vst [vmem:[%s2498] ss:$4 sm:$0xff] %v1316
      %2596 = vst [vmem:[%s2500] ss:$4 sm:$0xff] %v1193
      %2597 = vst [vmem:[%s2502] ss:$4 sm:$0xff] %v1317
      %2598 = vst [vmem:[%s2504] ss:$4 sm:$0xff] %v1318
      %2599 = vst [vmem:[%s2506] ss:$4 sm:$0xff] %v1319
      %2600 = vst [vmem:[%s2508] ss:$4 sm:$0xff] %v1194
      %2601 = vst [vmem:[%s2510] ss:$4 sm:$0xff] %v1320
      %v2602 = vld.sshfl [vmem:[#allocation1] sm:$0xff pattern:$0x73625140]
      %v2603 = vld.sshfl [vmem:[#allocation1 + $0x20] sm:$0xff pattern:$0x73625140]
      %2604 = vst [vmem:[#allocation1] ss:$4 sm:$0xff] %v1322
      %2605 = vst [vmem:[%s2498] ss:$4 sm:$0xff] %v1195
      %2606 = vst [vmem:[%s2500] ss:$4 sm:$0xff] %v1323
      %2607 = vst [vmem:[%s2502] ss:$4 sm:$0xff] %v1324
      %2608 = vst [vmem:[%s2504] ss:$4 sm:$0xff] %v1325
      %2609 = vst [vmem:[%s2506] ss:$4 sm:$0xff] %v1196
      %2610 = vst [vmem:[%s2508] ss:$4 sm:$0xff] %v1326
      %2611 = vst [vmem:[%s2510] ss:$4 sm:$0xff] %v1327
      %v2612 = vld.sshfl [vmem:[#allocation1] sm:$0xff pattern:$0x73625140]
      %v2613 = vld.sshfl [vmem:[#allocation1 + $0x20] sm:$0xff pattern:$0x73625140]
      %2614 = vst [vmem:[#allocation1] ss:$4 sm:$0xff] %v1197
      %2615 = vst [vmem:[%s2498] ss:$4 sm:$0xff] %v1329
      %2616 = vst [vmem:[%s2500] ss:$4 sm:$0xff] %v1330
      %2617 = vst [vmem:[%s2502] ss:$4 sm:$0xff] %v1331
      %2618 = vst [vmem:[%s2504] ss:$4 sm:$0xff] %v1198
      %2619 = vst [vmem:[%s2506] ss:$4 sm:$0xff] %v1332
      %2620 = vst [vmem:[%s2508] ss:$4 sm:$0xff] %v1333
      %2621 = vst [vmem:[%s2510] ss:$4 sm:$0xff] %v1334
      %v2622 = vld.sshfl [vmem:[#allocation1] sm:$0xff pattern:$0x73625140]
      %v2623 = vld.sshfl [vmem:[#allocation1 + $0x20] sm:$0xff pattern:$0x73625140]
      %2624 = vst [vmem:[#allocation1] ss:$4 sm:$0xff] %v1335
      %2625 = vst [vmem:[%s2498] ss:$4 sm:$0xff] %v1336
      %2626 = vst [vmem:[%s2500] ss:$4 sm:$0xff] %v1337
      %2627 = vst [vmem:[%s2502] ss:$4 sm:$0xff] %v1200
      %2628 = vst [vmem:[%s2504] ss:$4 sm:$0xff] %v1338
      %2629 = vst [vmem:[%s2506] ss:$4 sm:$0xff] %v1339
      %2630 = vst [vmem:[%s2508] ss:$4 sm:$0xff] %v1340
      %2631 = vst [vmem:[%s2510] ss:$4 sm:$0xff] %v1201
      %v2632 = vld.sshfl [vmem:[#allocation1] sm:$0xff pattern:$0x73625140]
      %v2633 = vld.sshfl [vmem:[#allocation1 + $0x20] sm:$0xff pattern:$0x73625140]
      %2634 = vst [vmem:[#allocation1] ss:$4 sm:$0xff] %v1342
      %2635 = vst [vmem:[%s2498] ss:$4 sm:$0xff] %v1343
      %2636 = vst [vmem:[%s2500] ss:$4 sm:$0xff] %v1202
      %2637 = vst [vmem:[%s2502] ss:$4 sm:$0xff] %v1344
      %2638 = vst [vmem:[%s2504] ss:$4 sm:$0xff] %v1345
      %2639 = vst [vmem:[%s2506] ss:$4 sm:$0xff] %v1346
      %2640 = vst [vmem:[%s2508] ss:$4 sm:$0xff] %v1203
      %2641 = vst [vmem:[%s2510] ss:$4 sm:$0xff] %v1347
      %v2642 = vld.sshfl [vmem:[#allocation1] sm:$0xff pattern:$0x73625140]
      %v2643 = vld.sshfl [vmem:[#allocation1 + $0x20] sm:$0xff pattern:$0x73625140]
      %2644 = vst [vmem:[#allocation1] ss:$4 sm:$0xff] %v1349
      %2645 = vst [vmem:[%s2498] ss:$4 sm:$0xff] %v1204
      %2646 = vst [vmem:[%s2500] ss:$4 sm:$0xff] %v1350
      %2647 = vst [vmem:[%s2502] ss:$4 sm:$0xff] %v1351
      %2648 = vst [vmem:[%s2504] ss:$4 sm:$0xff] %v1352
      %2649 = vst [vmem:[%s2506] ss:$4 sm:$0xff] %v1205
      %2650 = vst [vmem:[%s2508] ss:$4 sm:$0xff] %v1353
      %2651 = vst [vmem:[%s2510] ss:$4 sm:$0xff] %v1354
      %v2652 = vld.sshfl [vmem:[#allocation1] sm:$0xff pattern:$0x73625140]
      %v2653 = vld.sshfl [vmem:[#allocation1 + $0x20] sm:$0xff pattern:$0x73625140]
      %2654 = vst [vmem:[#allocation1] ss:$4 sm:$0xff] %v1206
      %2655 = vst [vmem:[%s2498] ss:$4 sm:$0xff] %v1356
      %2656 = vst [vmem:[%s2500] ss:$4 sm:$0xff] %v1357
      %2657 = vst [vmem:[%s2502] ss:$4 sm:$0xff] %v1358
      %2658 = vst [vmem:[%s2504] ss:$4 sm:$0xff] %v1207
      %2659 = vst [vmem:[%s2506] ss:$4 sm:$0xff] %v1359
      %2660 = vst [vmem:[%s2508] ss:$4 sm:$0xff] %v1360
      %2661 = vst [vmem:[%s2510] ss:$4 sm:$0xff] %v1361
      %v2662 = vld.sshfl [vmem:[#allocation1] sm:$0xff pattern:$0x73625140]
      %v2663 = vld.sshfl [vmem:[#allocation1 + $0x20] sm:$0xff pattern:$0x73625140]
      %v2696 = vpack.c.bf16 %v2513, %v2512
      %v2697 = vpack.c.bf16 %v2523, %v2522
      %v2698 = vpack.c.bf16 %v2533, %v2532
      %v2699 = vpack.c.bf16 %v2543, %v2542
      %v2700 = vpack.c.bf16 %v2553, %v2552
      %v2701 = vpack.c.bf16 %v2563, %v2562
      %v2702 = vpack.c.bf16 %v2573, %v2572
      %v2703 = vpack.c.bf16 %v2583, %v2582
      %v2704 = vpack.c.bf16 %v2593, %v2592
      %v2705 = vpack.c.bf16 %v2603, %v2602
      %v2706 = vpack.c.bf16 %v2613, %v2612
      %v2707 = vpack.c.bf16 %v2623, %v2622
      %v2708 = vpack.c.bf16 %v2633, %v2632
      %v2709 = vpack.c.bf16 %v2643, %v2642
      %v2710 = vpack.c.bf16 %v2653, %v2652
      %v2711 = vpack.c.bf16 %v2663, %v2662
      %s2712 = scalar_lea.vmem %s3, 8
      %v2713 = vld [vmem:[%s2712] sm:$0xf]
      %v2715 = vsel %vm2215, %v2696, 0
      %v2718 = vsel %vm2215, %v2697, 0
      %v2721 = vsel %vm2215, %v2698, 0
      %v2724 = vsel %vm2215, %v2699, 0
      %v2727 = vsel %vm2215, %v2700, 0
      %v2730 = vsel %vm2215, %v2701, 0
      %v2733 = vsel %vm2215, %v2702, 0
      %v2736 = vsel %vm2215, %v2703, 0
      %v2739 = vsel %vm2215, %v2704, 0
      %v2742 = vsel %vm2215, %v2705, 0
      %v2745 = vsel %vm2215, %v2706, 0
      %v2748 = vsel %vm2215, %v2707, 0
      %v2751 = vsel %vm2215, %v2708, 0
      %v2754 = vsel %vm2215, %v2709, 0
      %v2757 = vsel %vm2215, %v2710, 0
      %v2760 = vsel %vm2215, %v2711, 0
      %v2763 = vsel %vm2264, %v2713, 0
      %2765 = vmatpush.bf16.msra.mxu0 0
      %2766 = vmatpush.bf16.msra.mxu0 0
      %2767 = vmatpush.bf16.msra.mxu0 0
      %2768 = vmatpush.bf16.msra.mxu0 0
      %2769 = vmatpush.bf16.msra.mxu0 0
      %2770 = vmatpush.bf16.msra.mxu0 0
      %2771 = vmatpush.bf16.msra.mxu0 0
      %2772 = vmatpush.bf16.msra.mxu0 %v2763
      %2773 = vmatmul.bf16.gmra.mxu0 %v2715
      %v2774 = vpop.f32.mrf.mxu0
      %v2775 = vadd.f32 0.0, %v2774
      %v2776 = vpop.f32.mrf.mxu0
      %v2777 = vadd.f32 0.0, %v2776
      %2778 = vmatmul.bf16.gmra.mxu0 %v2718
      %v2779 = vpop.f32.mrf.mxu0
      %v2780 = vadd.f32 0.0, %v2779
      %v2781 = vpop.f32.mrf.mxu0
      %v2782 = vadd.f32 0.0, %v2781
      %2783 = vmatmul.bf16.gmra.mxu0 %v2721
      %v2784 = vpop.f32.mrf.mxu0
      %v2785 = vadd.f32 0.0, %v2784
      %v2786 = vpop.f32.mrf.mxu0
      %v2787 = vadd.f32 0.0, %v2786
      %2788 = vmatmul.bf16.gmra.mxu0 %v2724
      %v2789 = vpop.f32.mrf.mxu0
      %v2790 = vadd.f32 0.0, %v2789
      %v2791 = vpop.f32.mrf.mxu0
      %v2792 = vadd.f32 0.0, %v2791
      %2793 = vmatmul.bf16.gmra.mxu0 %v2727
      %v2794 = vpop.f32.mrf.mxu0
      %v2795 = vadd.f32 0.0, %v2794
      %v2796 = vpop.f32.mrf.mxu0
      %v2797 = vadd.f32 0.0, %v2796
      %2798 = vmatmul.bf16.gmra.mxu0 %v2730
      %v2799 = vpop.f32.mrf.mxu0
      %v2800 = vadd.f32 0.0, %v2799
      %v2801 = vpop.f32.mrf.mxu0
      %v2802 = vadd.f32 0.0, %v2801
      %2803 = vmatmul.bf16.gmra.mxu0 %v2733
      %v2804 = vpop.f32.mrf.mxu0
      %v2805 = vadd.f32 0.0, %v2804
      %v2806 = vpop.f32.mrf.mxu0
      %v2807 = vadd.f32 0.0, %v2806
      %2808 = vmatmul.bf16.gmra.mxu0 %v2736
      %v2809 = vpop.f32.mrf.mxu0
      %v2810 = vadd.f32 0.0, %v2809
      %v2811 = vpop.f32.mrf.mxu0
      %v2812 = vadd.f32 0.0, %v2811
      %2813 = vmatmul.bf16.gmra.mxu0 %v2739
      %v2814 = vpop.f32.mrf.mxu0
      %v2815 = vadd.f32 0.0, %v2814
      %v2816 = vpop.f32.mrf.mxu0
      %v2817 = vadd.f32 0.0, %v2816
      %2818 = vmatmul.bf16.gmra.mxu0 %v2742
      %v2819 = vpop.f32.mrf.mxu0
      %v2820 = vadd.f32 0.0, %v2819
      %v2821 = vpop.f32.mrf.mxu0
      %v2822 = vadd.f32 0.0, %v2821
      %2823 = vmatmul.bf16.gmra.mxu0 %v2745
      %v2824 = vpop.f32.mrf.mxu0
      %v2825 = vadd.f32 0.0, %v2824
      %v2826 = vpop.f32.mrf.mxu0
      %v2827 = vadd.f32 0.0, %v2826
      %2828 = vmatmul.bf16.gmra.mxu0 %v2748
      %v2829 = vpop.f32.mrf.mxu0
      %v2830 = vadd.f32 0.0, %v2829
      %v2831 = vpop.f32.mrf.mxu0
      %v2832 = vadd.f32 0.0, %v2831
      %2833 = vmatmul.bf16.gmra.mxu0 %v2751
      %v2834 = vpop.f32.mrf.mxu0
      %v2835 = vadd.f32 0.0, %v2834
      %v2836 = vpop.f32.mrf.mxu0
      %v2837 = vadd.f32 0.0, %v2836
      %2838 = vmatmul.bf16.gmra.mxu0 %v2754
      %v2839 = vpop.f32.mrf.mxu0
      %v2840 = vadd.f32 0.0, %v2839
      %v2841 = vpop.f32.mrf.mxu0
      %v2842 = vadd.f32 0.0, %v2841
      %2843 = vmatmul.bf16.gmra.mxu0 %v2757
      %v2844 = vpop.f32.mrf.mxu0
      %v2845 = vadd.f32 0.0, %v2844
      %v2846 = vpop.f32.mrf.mxu0
      %v2847 = vadd.f32 0.0, %v2846
      %2848 = vmatmul.bf16.gmra.mxu0 %v2760
      %v2849 = vpop.f32.mrf.mxu0
      %v2850 = vadd.f32 0.0, %v2849
      %v2851 = vpop.f32.mrf.mxu0
      %v2852 = vadd.f32 0.0, %v2851
      %2853 = vdwg.mxu0
      %v2854 = vadd.f32 %v2418, %v2775
      %v2855 = vadd.f32 %v2420, %v2777
      %v2856 = vadd.f32 %v2423, %v2780
      %v2857 = vadd.f32 %v2425, %v2782
      %v2858 = vadd.f32 %v2428, %v2785
      %v2859 = vadd.f32 %v2430, %v2787
      %v2860 = vadd.f32 %v2433, %v2790
      %v2861 = vadd.f32 %v2435, %v2792
      %v2862 = vadd.f32 %v2438, %v2795
      %v2863 = vadd.f32 %v2440, %v2797
      %v2864 = vadd.f32 %v2443, %v2800
      %v2865 = vadd.f32 %v2445, %v2802
      %v2866 = vadd.f32 %v2448, %v2805
      %v2867 = vadd.f32 %v2450, %v2807
      %v2868 = vadd.f32 %v2453, %v2810
      %v2869 = vadd.f32 %v2455, %v2812
      %v2870 = vadd.f32 %v2458, %v2815
      %v2871 = vadd.f32 %v2460, %v2817
      %v2872 = vadd.f32 %v2463, %v2820
      %v2873 = vadd.f32 %v2465, %v2822
      %v2874 = vadd.f32 %v2468, %v2825
      %v2875 = vadd.f32 %v2470, %v2827
      %v2876 = vadd.f32 %v2473, %v2830
      %v2877 = vadd.f32 %v2475, %v2832
      %v2878 = vadd.f32 %v2478, %v2835
      %v2879 = vadd.f32 %v2480, %v2837
      %v2880 = vadd.f32 %v2483, %v2840
      %v2881 = vadd.f32 %v2485, %v2842
      %v2882 = vadd.f32 %v2488, %v2845
      %v2883 = vadd.f32 %v2490, %v2847
      %v2884 = vadd.f32 %v2493, %v2850
      %v2885 = vadd.f32 %v2495, %v2852
      %2886 = vst [vmem:[#allocation1] ss:$4 sm:$0xff] %v1260
      %s2887 = scalar_lea.vmem [#allocation1], 1
      %2888 = vst [vmem:[%s2887] ss:$4 sm:$0xff] %v1261
      %s2889 = scalar_lea.vmem [#allocation1], 2
      %2890 = vst [vmem:[%s2889] ss:$4 sm:$0xff] %v1262
      %s2891 = scalar_lea.vmem [#allocation1], 3
      %2892 = vst [vmem:[%s2891] ss:$4 sm:$0xff] %v1175
      %s2893 = scalar_lea.vmem [#allocation1], 32
      %2894 = vst [vmem:[%s2893] ss:$4 sm:$0xff] %v1263
      %s2895 = scalar_lea.vmem [#allocation1], 33
      %2896 = vst [vmem:[%s2895] ss:$4 sm:$0xff] %v1264
      %s2897 = scalar_lea.vmem [#allocation1], 34
      %2898 = vst [vmem:[%s2897] ss:$4 sm:$0xff] %v1265
      %s2899 = scalar_lea.vmem [#allocation1], 35
      %2900 = vst [vmem:[%s2899] ss:$4 sm:$0xff] %v1176
      %v2901 = vld.sshfl [vmem:[#allocation1] sm:$0xff pattern:$0x73625140]
      %v2902 = vld.sshfl [vmem:[#allocation1 + $0x20] sm:$0xff pattern:$0x73625140]
      %2903 = vst [vmem:[#allocation1] ss:$4 sm:$0xff] %v1267
      %2904 = vst [vmem:[%s2887] ss:$4 sm:$0xff] %v1268
      %2905 = vst [vmem:[%s2889] ss:$4 sm:$0xff] %v1177
      %2906 = vst [vmem:[%s2891] ss:$4 sm:$0xff] %v1269
      %2907 = vst [vmem:[%s2893] ss:$4 sm:$0xff] %v1270
      %2908 = vst [vmem:[%s2895] ss:$4 sm:$0xff] %v1271
      %2909 = vst [vmem:[%s2897] ss:$4 sm:$0xff] %v1178
      %2910 = vst [vmem:[%s2899] ss:$4 sm:$0xff] %v1272
      %v2911 = vld.sshfl [vmem:[#allocation1] sm:$0xff pattern:$0x73625140]
      %v2912 = vld.sshfl [vmem:[#allocation1 + $0x20] sm:$0xff pattern:$0x73625140]
      %2913 = vst [vmem:[#allocation1] ss:$4 sm:$0xff] %v1274
      %2914 = vst [vmem:[%s2887] ss:$4 sm:$0xff] %v1179
      %2915 = vst [vmem:[%s2889] ss:$4 sm:$0xff] %v1275
      %2916 = vst [vmem:[%s2891] ss:$4 sm:$0xff] %v1276
      %2917 = vst [vmem:[%s2893] ss:$4 sm:$0xff] %v1277
      %2918 = vst [vmem:[%s2895] ss:$4 sm:$0xff] %v1180
      %2919 = vst [vmem:[%s2897] ss:$4 sm:$0xff] %v1278
      %2920 = vst [vmem:[%s2899] ss:$4 sm:$0xff] %v1279
      %v2921 = vld.sshfl [vmem:[#allocation1] sm:$0xff pattern:$0x73625140]
      %v2922 = vld.sshfl [vmem:[#allocation1 + $0x20] sm:$0xff pattern:$0x73625140]
      %2923 = vst [vmem:[#allocation1] ss:$4 sm:$0xff] %v1181
      %2924 = vst [vmem:[%s2887] ss:$4 sm:$0xff] %v1281
      %2925 = vst [vmem:[%s2889] ss:$4 sm:$0xff] %v1282
      %2926 = vst [vmem:[%s2891] ss:$4 sm:$0xff] %v1283
      %2927 = vst [vmem:[%s2893] ss:$4 sm:$0xff] %v1182
      %2928 = vst [vmem:[%s2895] ss:$4 sm:$0xff] %v1284
      %2929 = vst [vmem:[%s2897] ss:$4 sm:$0xff] %v1285
      %2930 = vst [vmem:[%s2899] ss:$4 sm:$0xff] %v1286
      %v2931 = vld.sshfl [vmem:[#allocation1] sm:$0xff pattern:$0x73625140]
      %v2932 = vld.sshfl [vmem:[#allocation1 + $0x20] sm:$0xff pattern:$0x73625140]
      %2933 = vst [vmem:[#allocation1] ss:$4 sm:$0xff] %v1287
      %2934 = vst [vmem:[%s2887] ss:$4 sm:$0xff] %v1288
      %2935 = vst [vmem:[%s2889] ss:$4 sm:$0xff] %v1289
      %2936 = vst [vmem:[%s2891] ss:$4 sm:$0xff] %v1184
      %2937 = vst [vmem:[%s2893] ss:$4 sm:$0xff] %v1290
      %2938 = vst [vmem:[%s2895] ss:$4 sm:$0xff] %v1291
      %2939 = vst [vmem:[%s2897] ss:$4 sm:$0xff] %v1292
      %2940 = vst [vmem:[%s2899] ss:$4 sm:$0xff] %v1185
      %v2941 = vld.sshfl [vmem:[#allocation1] sm:$0xff pattern:$0x73625140]
      %v2942 = vld.sshfl [vmem:[#allocation1 + $0x20] sm:$0xff pattern:$0x73625140]
      %2943 = vst [vmem:[#allocation1] ss:$4 sm:$0xff] %v1294
      %2944 = vst [vmem:[%s2887] ss:$4 sm:$0xff] %v1295
      %2945 = vst [vmem:[%s2889] ss:$4 sm:$0xff] %v1186
      %2946 = vst [vmem:[%s2891] ss:$4 sm:$0xff] %v1296
      %2947 = vst [vmem:[%s2893] ss:$4 sm:$0xff] %v1297
      %2948 = vst [vmem:[%s2895] ss:$4 sm:$0xff] %v1298
      %2949 = vst [vmem:[%s2897] ss:$4 sm:$0xff] %v1187
      %2950 = vst [vmem:[%s2899] ss:$4 sm:$0xff] %v1299
      %v2951 = vld.sshfl [vmem:[#allocation1] sm:$0xff pattern:$0x73625140]
      %v2952 = vld.sshfl [vmem:[#allocation1 + $0x20] sm:$0xff pattern:$0x73625140]
      %2953 = vst [vmem:[#allocation1] ss:$4 sm:$0xff] %v1301
      %2954 = vst [vmem:[%s2887] ss:$4 sm:$0xff] %v1188
      %2955 = vst [vmem:[%s2889] ss:$4 sm:$0xff] %v1302
      %2956 = vst [vmem:[%s2891] ss:$4 sm:$0xff] %v1303
      %2957 = vst [vmem:[%s2893] ss:$4 sm:$0xff] %v1304
      %2958 = vst [vmem:[%s2895] ss:$4 sm:$0xff] %v1189
      %2959 = vst [vmem:[%s2897] ss:$4 sm:$0xff] %v1305
      %2960 = vst [vmem:[%s2899] ss:$4 sm:$0xff] %v1306
      %v2961 = vld.sshfl [vmem:[#allocation1] sm:$0xff pattern:$0x73625140]
      %v2962 = vld.sshfl [vmem:[#allocation1 + $0x20] sm:$0xff pattern:$0x73625140]
      %2963 = vst [vmem:[#allocation1] ss:$4 sm:$0xff] %v1190
      %2964 = vst [vmem:[%s2887] ss:$4 sm:$0xff] %v1308
      %2965 = vst [vmem:[%s2889] ss:$4 sm:$0xff] %v1309
      %2966 = vst [vmem:[%s2891] ss:$4 sm:$0xff] %v1310
      %2967 = vst [vmem:[%s2893] ss:$4 sm:$0xff] %v1191
      %2968 = vst [vmem:[%s2895] ss:$4 sm:$0xff] %v1311
      %2969 = vst [vmem:[%s2897] ss:$4 sm:$0xff] %v1312
      %2970 = vst [vmem:[%s2899] ss:$4 sm:$0xff] %v1313
      %v2971 = vld.sshfl [vmem:[#allocation1] sm:$0xff pattern:$0x73625140]
      %v2972 = vld.sshfl [vmem:[#allocation1 + $0x20] sm:$0xff pattern:$0x73625140]
      %2973 = vst [vmem:[#allocation1] ss:$4 sm:$0xff] %v1314
      %2974 = vst [vmem:[%s2887] ss:$4 sm:$0xff] %v1315
      %2975 = vst [vmem:[%s2889] ss:$4 sm:$0xff] %v1316
      %2976 = vst [vmem:[%s2891] ss:$4 sm:$0xff] %v1193
      %2977 = vst [vmem:[%s2893] ss:$4 sm:$0xff] %v1317
      %2978 = vst [vmem:[%s2895] ss:$4 sm:$0xff] %v1318
      %2979 = vst [vmem:[%s2897] ss:$4 sm:$0xff] %v1319
      %2980 = vst [vmem:[%s2899] ss:$4 sm:$0xff] %v1194
      %v2981 = vld.sshfl [vmem:[#allocation1] sm:$0xff pattern:$0x73625140]
      %v2982 = vld.sshfl [vmem:[#allocation1 + $0x20] sm:$0xff pattern:$0x73625140]
      %2983 = vst [vmem:[#allocation1] ss:$4 sm:$0xff] %v1321
      %2984 = vst [vmem:[%s2887] ss:$4 sm:$0xff] %v1322
      %2985 = vst [vmem:[%s2889] ss:$4 sm:$0xff] %v1195
      %2986 = vst [vmem:[%s2891] ss:$4 sm:$0xff] %v1323
      %2987 = vst [vmem:[%s2893] ss:$4 sm:$0xff] %v1324
      %2988 = vst [vmem:[%s2895] ss:$4 sm:$0xff] %v1325
      %2989 = vst [vmem:[%s2897] ss:$4 sm:$0xff] %v1196
      %2990 = vst [vmem:[%s2899] ss:$4 sm:$0xff] %v1326
      %v2991 = vld.sshfl [vmem:[#allocation1] sm:$0xff pattern:$0x73625140]
      %v2992 = vld.sshfl [vmem:[#allocation1 + $0x20] sm:$0xff pattern:$0x73625140]
      %2993 = vst [vmem:[#allocation1] ss:$4 sm:$0xff] %v1328
      %2994 = vst [vmem:[%s2887] ss:$4 sm:$0xff] %v1197
      %2995 = vst [vmem:[%s2889] ss:$4 sm:$0xff] %v1329
      %2996 = vst [vmem:[%s2891] ss:$4 sm:$0xff] %v1330
      %2997 = vst [vmem:[%s2893] ss:$4 sm:$0xff] %v1331
      %2998 = vst [vmem:[%s2895] ss:$4 sm:$0xff] %v1198
      %2999 = vst [vmem:[%s2897] ss:$4 sm:$0xff] %v1332
      %3000 = vst [vmem:[%s2899] ss:$4 sm:$0xff] %v1333
      %v3001 = vld.sshfl [vmem:[#allocation1] sm:$0xff pattern:$0x73625140]
      %v3002 = vld.sshfl [vmem:[#allocation1 + $0x20] sm:$0xff pattern:$0x73625140]
      %3003 = vst [vmem:[#allocation1] ss:$4 sm:$0xff] %v1199
      %3004 = vst [vmem:[%s2887] ss:$4 sm:$0xff] %v1335
      %3005 = vst [vmem:[%s2889] ss:$4 sm:$0xff] %v1336
      %3006 = vst [vmem:[%s2891] ss:$4 sm:$0xff] %v1337
      %3007 = vst [vmem:[%s2893] ss:$4 sm:$0xff] %v1200
      %3008 = vst [vmem:[%s2895] ss:$4 sm:$0xff] %v1338
      %3009 = vst [vmem:[%s2897] ss:$4 sm:$0xff] %v1339
      %3010 = vst [vmem:[%s2899] ss:$4 sm:$0xff] %v1340
      %v3011 = vld.sshfl [vmem:[#allocation1] sm:$0xff pattern:$0x73625140]
      %v3012 = vld.sshfl [vmem:[#allocation1 + $0x20] sm:$0xff pattern:$0x73625140]
      %3013 = vst [vmem:[#allocation1] ss:$4 sm:$0xff] %v1341
      %3014 = vst [vmem:[%s2887] ss:$4 sm:$0xff] %v1342
      %3015 = vst [vmem:[%s2889] ss:$4 sm:$0xff] %v1343
      %3016 = vst [vmem:[%s2891] ss:$4 sm:$0xff] %v1202
      %3017 = vst [vmem:[%s2893] ss:$4 sm:$0xff] %v1344
      %3018 = vst [vmem:[%s2895] ss:$4 sm:$0xff] %v1345
      %3019 = vst [vmem:[%s2897] ss:$4 sm:$0xff] %v1346
      %3020 = vst [vmem:[%s2899] ss:$4 sm:$0xff] %v1203
      %v3021 = vld.sshfl [vmem:[#allocation1] sm:$0xff pattern:$0x73625140]
      %v3022 = vld.sshfl [vmem:[#allocation1 + $0x20] sm:$0xff pattern:$0x73625140]
      %3023 = vst [vmem:[#allocation1] ss:$4 sm:$0xff] %v1348
      %3024 = vst [vmem:[%s2887] ss:$4 sm:$0xff] %v1349
      %3025 = vst [vmem:[%s2889] ss:$4 sm:$0xff] %v1204
      %3026 = vst [vmem:[%s2891] ss:$4 sm:$0xff] %v1350
      %3027 = vst [vmem:[%s2893] ss:$4 sm:$0xff] %v1351
      %3028 = vst [vmem:[%s2895] ss:$4 sm:$0xff] %v1352
      %3029 = vst [vmem:[%s2897] ss:$4 sm:$0xff] %v1205
      %3030 = vst [vmem:[%s2899] ss:$4 sm:$0xff] %v1353
      %v3031 = vld.sshfl [vmem:[#allocation1] sm:$0xff pattern:$0x73625140]
      %v3032 = vld.sshfl [vmem:[#allocation1 + $0x20] sm:$0xff pattern:$0x73625140]
      %3033 = vst [vmem:[#allocation1] ss:$4 sm:$0xff] %v1355
      %3034 = vst [vmem:[%s2887] ss:$4 sm:$0xff] %v1206
      %3035 = vst [vmem:[%s2889] ss:$4 sm:$0xff] %v1356
      %3036 = vst [vmem:[%s2891] ss:$4 sm:$0xff] %v1357
      %3037 = vst [vmem:[%s2893] ss:$4 sm:$0xff] %v1358
      %3038 = vst [vmem:[%s2895] ss:$4 sm:$0xff] %v1207
      %3039 = vst [vmem:[%s2897] ss:$4 sm:$0xff] %v1359
      %3040 = vst [vmem:[%s2899] ss:$4 sm:$0xff] %v1360
      %v3041 = vld.sshfl [vmem:[#allocation1] sm:$0xff pattern:$0x73625140]
      %v3042 = vld.sshfl [vmem:[#allocation1 + $0x20] sm:$0xff pattern:$0x73625140]
      %3043 = vst [vmem:[#allocation1] ss:$4 sm:$0xff] %v1208
      %3044 = vst [vmem:[%s2887] ss:$4 sm:$0xff] %v1362
      %3045 = vst [vmem:[%s2889] ss:$4 sm:$0xff] %v1363
      %3046 = vst [vmem:[%s2891] ss:$4 sm:$0xff] %v1364
      %3047 = vst [vmem:[%s2893] ss:$4 sm:$0xff] %v1209
      %3048 = vst [vmem:[%s2895] ss:$4 sm:$0xff] %v1365
      %3049 = vst [vmem:[%s2897] ss:$4 sm:$0xff] %v1366
      %3050 = vst [vmem:[%s2899] ss:$4 sm:$0xff] %v1367
      %v3051 = vld.sshfl [vmem:[#allocation1] sm:$0xff pattern:$0x73625140]
      %v3052 = vld.sshfl [vmem:[#allocation1 + $0x20] sm:$0xff pattern:$0x73625140]
      %v3085 = vpack.c.bf16 %v2902, %v2901
      %v3086 = vpack.c.bf16 %v2912, %v2911
      %v3087 = vpack.c.bf16 %v2922, %v2921
      %v3088 = vpack.c.bf16 %v2932, %v2931
      %v3089 = vpack.c.bf16 %v2942, %v2941
      %v3090 = vpack.c.bf16 %v2952, %v2951
      %v3091 = vpack.c.bf16 %v2962, %v2961
      %v3092 = vpack.c.bf16 %v2972, %v2971
      %v3093 = vpack.c.bf16 %v2982, %v2981
      %v3094 = vpack.c.bf16 %v2992, %v2991
      %v3095 = vpack.c.bf16 %v3002, %v3001
      %v3096 = vpack.c.bf16 %v3012, %v3011
      %v3097 = vpack.c.bf16 %v3022, %v3021
      %v3098 = vpack.c.bf16 %v3032, %v3031
      %v3099 = vpack.c.bf16 %v3042, %v3041
      %v3100 = vpack.c.bf16 %v3052, %v3051
      %s3101 = scalar_lea.vmem %s3, 12
      %v3102 = vld [vmem:[%s3101] sm:$0xf]
      %v3104 = vsel %vm2215, %v3085, 0
      %v3107 = vsel %vm2215, %v3086, 0
      %v3110 = vsel %vm2215, %v3087, 0
      %v3113 = vsel %vm2215, %v3088, 0
      %v3116 = vsel %vm2215, %v3089, 0
      %v3119 = vsel %vm2215, %v3090, 0
      %v3122 = vsel %vm2215, %v3091, 0
      %v3125 = vsel %vm2215, %v3092, 0
      %v3128 = vsel %vm2215, %v3093, 0
      %v3131 = vsel %vm2215, %v3094, 0
      %v3134 = vsel %vm2215, %v3095, 0
      %v3137 = vsel %vm2215, %v3096, 0
      %v3140 = vsel %vm2215, %v3097, 0
      %v3143 = vsel %vm2215, %v3098, 0
      %v3146 = vsel %vm2215, %v3099, 0
      %v3149 = vsel %vm2215, %v3100, 0
      %v3152 = vsel %vm2264, %v3102, 0
      %3154 = vmatpush.bf16.msra.mxu0 0
      %3155 = vmatpush.bf16.msra.mxu0 0
      %3156 = vmatpush.bf16.msra.mxu0 0
      %3157 = vmatpush.bf16.msra.mxu0 0
      %3158 = vmatpush.bf16.msra.mxu0 0
      %3159 = vmatpush.bf16.msra.mxu0 0
      %3160 = vmatpush.bf16.msra.mxu0 0
      %3161 = vmatpush.bf16.msra.mxu0 %v3152
      %3162 = vmatmul.bf16.gmra.mxu0 %v3104
      %v3163 = vpop.f32.mrf.mxu0
      %v3164 = vadd.f32 0.0, %v3163
      %v3165 = vpop.f32.mrf.mxu0
      %v3166 = vadd.f32 0.0, %v3165
      %3167 = vmatmul.bf16.gmra.mxu0 %v3107
      %v3168 = vpop.f32.mrf.mxu0
      %v3169 = vadd.f32 0.0, %v3168
      %v3170 = vpop.f32.mrf.mxu0
      %v3171 = vadd.f32 0.0, %v3170
      %3172 = vmatmul.bf16.gmra.mxu0 %v3110
      %v3173 = vpop.f32.mrf.mxu0
      %v3174 = vadd.f32 0.0, %v3173
      %v3175 = vpop.f32.mrf.mxu0
      %v3176 = vadd.f32 0.0, %v3175
      %3177 = vmatmul.bf16.gmra.mxu0 %v3113
      %v3178 = vpop.f32.mrf.mxu0
      %v3179 = vadd.f32 0.0, %v3178
      %v3180 = vpop.f32.mrf.mxu0
      %v3181 = vadd.f32 0.0, %v3180
      %3182 = vmatmul.bf16.gmra.mxu0 %v3116
      %v3183 = vpop.f32.mrf.mxu0
      %v3184 = vadd.f32 0.0, %v3183
      %v3185 = vpop.f32.mrf.mxu0
      %v3186 = vadd.f32 0.0, %v3185
      %3187 = vmatmul.bf16.gmra.mxu0 %v3119
      %v3188 = vpop.f32.mrf.mxu0
      %v3189 = vadd.f32 0.0, %v3188
      %v3190 = vpop.f32.mrf.mxu0
      %v3191 = vadd.f32 0.0, %v3190
      %3192 = vmatmul.bf16.gmra.mxu0 %v3122
      %v3193 = vpop.f32.mrf.mxu0
      %v3194 = vadd.f32 0.0, %v3193
      %v3195 = vpop.f32.mrf.mxu0
      %v3196 = vadd.f32 0.0, %v3195
      %3197 = vmatmul.bf16.gmra.mxu0 %v3125
      %v3198 = vpop.f32.mrf.mxu0
      %v3199 = vadd.f32 0.0, %v3198
      %v3200 = vpop.f32.mrf.mxu0
      %v3201 = vadd.f32 0.0, %v3200
      %3202 = vmatmul.bf16.gmra.mxu0 %v3128
      %v3203 = vpop.f32.mrf.mxu0
      %v3204 = vadd.f32 0.0, %v3203
      %v3205 = vpop.f32.mrf.mxu0
      %v3206 = vadd.f32 0.0, %v3205
      %3207 = vmatmul.bf16.gmra.mxu0 %v3131
      %v3208 = vpop.f32.mrf.mxu0
      %v3209 = vadd.f32 0.0, %v3208
      %v3210 = vpop.f32.mrf.mxu0
      %v3211 = vadd.f32 0.0, %v3210
      %3212 = vmatmul.bf16.gmra.mxu0 %v3134
      %v3213 = vpop.f32.mrf.mxu0
      %v3214 = vadd.f32 0.0, %v3213
      %v3215 = vpop.f32.mrf.mxu0
      %v3216 = vadd.f32 0.0, %v3215
      %3217 = vmatmul.bf16.gmra.mxu0 %v3137
      %v3218 = vpop.f32.mrf.mxu0
      %v3219 = vadd.f32 0.0, %v3218
      %v3220 = vpop.f32.mrf.mxu0
      %v3221 = vadd.f32 0.0, %v3220
      %3222 = vmatmul.bf16.gmra.mxu0 %v3140
      %v3223 = vpop.f32.mrf.mxu0
      %v3224 = vadd.f32 0.0, %v3223
      %v3225 = vpop.f32.mrf.mxu0
      %v3226 = vadd.f32 0.0, %v3225
      %3227 = vmatmul.bf16.gmra.mxu0 %v3143
      %v3228 = vpop.f32.mrf.mxu0
      %v3229 = vadd.f32 0.0, %v3228
      %v3230 = vpop.f32.mrf.mxu0
      %v3231 = vadd.f32 0.0, %v3230
      %3232 = vmatmul.bf16.gmra.mxu0 %v3146
      %v3233 = vpop.f32.mrf.mxu0
      %v3234 = vadd.f32 0.0, %v3233
      %v3235 = vpop.f32.mrf.mxu0
      %v3236 = vadd.f32 0.0, %v3235
      %3237 = vmatmul.bf16.gmra.mxu0 %v3149
      %v3238 = vpop.f32.mrf.mxu0
      %v3239 = vadd.f32 0.0, %v3238
      %v3240 = vpop.f32.mrf.mxu0
      %v3241 = vadd.f32 0.0, %v3240
      %3242 = vdwg.mxu0
      %v3243 = vadd.f32 %v2854, %v3164
      %v3244 = vadd.f32 %v2855, %v3166
      %v3245 = vadd.f32 %v2856, %v3169
      %v3246 = vadd.f32 %v2857, %v3171
      %v3247 = vadd.f32 %v2858, %v3174
      %v3248 = vadd.f32 %v2859, %v3176
      %v3249 = vadd.f32 %v2860, %v3179
      %v3250 = vadd.f32 %v2861, %v3181
      %v3251 = vadd.f32 %v2862, %v3184
      %v3252 = vadd.f32 %v2863, %v3186
      %v3253 = vadd.f32 %v2864, %v3189
      %v3254 = vadd.f32 %v2865, %v3191
      %v3255 = vadd.f32 %v2866, %v3194
      %v3256 = vadd.f32 %v2867, %v3196
      %v3257 = vadd.f32 %v2868, %v3199
      %v3258 = vadd.f32 %v2869, %v3201
      %v3259 = vadd.f32 %v2870, %v3204
      %v3260 = vadd.f32 %v2871, %v3206
      %v3261 = vadd.f32 %v2872, %v3209
      %v3262 = vadd.f32 %v2873, %v3211
      %v3263 = vadd.f32 %v2874, %v3214
      %v3264 = vadd.f32 %v2875, %v3216
      %v3265 = vadd.f32 %v2876, %v3219
      %v3266 = vadd.f32 %v2877, %v3221
      %v3267 = vadd.f32 %v2878, %v3224
      %v3268 = vadd.f32 %v2879, %v3226
      %v3269 = vadd.f32 %v2880, %v3229
      %v3270 = vadd.f32 %v2881, %v3231
      %v3271 = vadd.f32 %v2882, %v3234
      %v3272 = vadd.f32 %v2883, %v3236
      %v3273 = vadd.f32 %v2884, %v3239
      %v3274 = vadd.f32 %v2885, %v3241
      %v3275 = vrot.slane %v1208, 7
      %v3276 = vrot.slane %v3275, 2
      %v3277 = vrot.slane %v1362, 7
      %v3278 = vsel %vm1597, %v3276, %v3277
      %v3279 = vrot.slane %v3277, 2
      %v3280 = vrot.slane %v1363, 7
      %v3281 = vsel %vm1597, %v3279, %v3280
      %v3282 = vrot.slane %v3280, 2
      %v3283 = vrot.slane %v1364, 7
      %v3284 = vsel %vm1597, %v3282, %v3283
      %v3285 = vrot.slane %v3283, 2
      %v3286 = vrot.slane %v1209, 7
      %v3287 = vsel %vm1597, %v3285, %v3286
      %v3288 = vrot.slane %v3286, 2
      %v3289 = vrot.slane %v1365, 7
      %v3290 = vsel %vm1597, %v3288, %v3289
      %v3291 = vrot.slane %v3289, 2
      %v3292 = vrot.slane %v1366, 7
      %v3293 = vsel %vm1597, %v3291, %v3292
      %v3294 = vrot.slane %v3292, 2
      %v3295 = vrot.slane %v1367, 7
      %v3296 = vsel %vm1597, %v3294, %v3295
      %v3297 = vrot.slane %v3295, 2
      %v3298 = vrot.slane %v1210, 7
      %v3299 = vsel %vm1597, %v3297, %v3298
      %3300 = vst [vmem:[#allocation1] ss:$4 sm:$0xff] %v1626
      %s3301 = scalar_lea.vmem [#allocation1], 1
      %3302 = vst [vmem:[%s3301] ss:$4 sm:$0xff] %v1629
      %s3303 = scalar_lea.vmem [#allocation1], 2
      %3304 = vst [vmem:[%s3303] ss:$4 sm:$0xff] %v1632
      %s3305 = scalar_lea.vmem [#allocation1], 3
      %3306 = vst [vmem:[%s3305] ss:$4 sm:$0xff] %v1635
      %s3307 = scalar_lea.vmem [#allocation1], 32
      %3308 = vst [vmem:[%s3307] ss:$4 sm:$0xff] %v1638
      %s3309 = scalar_lea.vmem [#allocation1], 33
      %3310 = vst [vmem:[%s3309] ss:$4 sm:$0xff] %v1641
      %s3311 = scalar_lea.vmem [#allocation1], 34
      %3312 = vst [vmem:[%s3311] ss:$4 sm:$0xff] %v1644
      %s3313 = scalar_lea.vmem [#allocation1], 35
      %3314 = vst [vmem:[%s3313] ss:$4 sm:$0xff] %v1647
      %v3315 = vld.sshfl [vmem:[#allocation1] sm:$0xff pattern:$0x73625140]
      %v3316 = vld.sshfl [vmem:[#allocation1 + $0x20] sm:$0xff pattern:$0x73625140]
      %3317 = vst [vmem:[#allocation1] ss:$4 sm:$0xff] %v1651
      %3318 = vst [vmem:[%s3301] ss:$4 sm:$0xff] %v1654
      %3319 = vst [vmem:[%s3303] ss:$4 sm:$0xff] %v1657
      %3320 = vst [vmem:[%s3305] ss:$4 sm:$0xff] %v1660
      %3321 = vst [vmem:[%s3307] ss:$4 sm:$0xff] %v1663
      %3322 = vst [vmem:[%s3309] ss:$4 sm:$0xff] %v1666
      %3323 = vst [vmem:[%s3311] ss:$4 sm:$0xff] %v1669
      %3324 = vst [vmem:[%s3313] ss:$4 sm:$0xff] %v1672
      %v3325 = vld.sshfl [vmem:[#allocation1] sm:$0xff pattern:$0x73625140]
      %v3326 = vld.sshfl [vmem:[#allocation1 + $0x20] sm:$0xff pattern:$0x73625140]
      %3327 = vst [vmem:[#allocation1] ss:$4 sm:$0xff] %v1676
      %3328 = vst [vmem:[%s3301] ss:$4 sm:$0xff] %v1679
      %3329 = vst [vmem:[%s3303] ss:$4 sm:$0xff] %v1682
      %3330 = vst [vmem:[%s3305] ss:$4 sm:$0xff] %v1685
      %3331 = vst [vmem:[%s3307] ss:$4 sm:$0xff] %v1688
      %3332 = vst [vmem:[%s3309] ss:$4 sm:$0xff] %v1691
      %3333 = vst [vmem:[%s3311] ss:$4 sm:$0xff] %v1694
      %3334 = vst [vmem:[%s3313] ss:$4 sm:$0xff] %v1697
      %v3335 = vld.sshfl [vmem:[#allocation1] sm:$0xff pattern:$0x73625140]
      %v3336 = vld.sshfl [vmem:[#allocation1 + $0x20] sm:$0xff pattern:$0x73625140]
      %3337 = vst [vmem:[#allocation1] ss:$4 sm:$0xff] %v1701
      %3338 = vst [vmem:[%s3301] ss:$4 sm:$0xff] %v1704
      %3339 = vst [vmem:[%s3303] ss:$4 sm:$0xff] %v1707
      %3340 = vst [vmem:[%s3305] ss:$4 sm:$0xff] %v1710
      %3341 = vst [vmem:[%s3307] ss:$4 sm:$0xff] %v1713
      %3342 = vst [vmem:[%s3309] ss:$4 sm:$0xff] %v1716
      %3343 = vst [vmem:[%s3311] ss:$4 sm:$0xff] %v1719
      %3344 = vst [vmem:[%s3313] ss:$4 sm:$0xff] %v1722
      %v3345 = vld.sshfl [vmem:[#allocation1] sm:$0xff pattern:$0x73625140]
      %v3346 = vld.sshfl [vmem:[#allocation1 + $0x20] sm:$0xff pattern:$0x73625140]
      %3347 = vst [vmem:[#allocation1] ss:$4 sm:$0xff] %v1726
      %3348 = vst [vmem:[%s3301] ss:$4 sm:$0xff] %v1729
      %3349 = vst [vmem:[%s3303] ss:$4 sm:$0xff] %v1732
      %3350 = vst [vmem:[%s3305] ss:$4 sm:$0xff] %v1735
      %3351 = vst [vmem:[%s3307] ss:$4 sm:$0xff] %v1738
      %3352 = vst [vmem:[%s3309] ss:$4 sm:$0xff] %v1741
      %3353 = vst [vmem:[%s3311] ss:$4 sm:$0xff] %v1744
      %3354 = vst [vmem:[%s3313] ss:$4 sm:$0xff] %v1747
      %v3355 = vld.sshfl [vmem:[#allocation1] sm:$0xff pattern:$0x73625140]
      %v3356 = vld.sshfl [vmem:[#allocation1 + $0x20] sm:$0xff pattern:$0x73625140]
      %3357 = vst [vmem:[#allocation1] ss:$4 sm:$0xff] %v1751
      %3358 = vst [vmem:[%s3301] ss:$4 sm:$0xff] %v1754
      %3359 = vst [vmem:[%s3303] ss:$4 sm:$0xff] %v1757
      %3360 = vst [vmem:[%s3305] ss:$4 sm:$0xff] %v1760
      %3361 = vst [vmem:[%s3307] ss:$4 sm:$0xff] %v1763
      %3362 = vst [vmem:[%s3309] ss:$4 sm:$0xff] %v1766
      %3363 = vst [vmem:[%s3311] ss:$4 sm:$0xff] %v1769
      %3364 = vst [vmem:[%s3313] ss:$4 sm:$0xff] %v1772
      %v3365 = vld.sshfl [vmem:[#allocation1] sm:$0xff pattern:$0x73625140]
      %v3366 = vld.sshfl [vmem:[#allocation1 + $0x20] sm:$0xff pattern:$0x73625140]
      %3367 = vst [vmem:[#allocation1] ss:$4 sm:$0xff] %v1776
      %3368 = vst [vmem:[%s3301] ss:$4 sm:$0xff] %v1779
      %3369 = vst [vmem:[%s3303] ss:$4 sm:$0xff] %v1782
      %3370 = vst [vmem:[%s3305] ss:$4 sm:$0xff] %v1785
      %3371 = vst [vmem:[%s3307] ss:$4 sm:$0xff] %v1788
      %3372 = vst [vmem:[%s3309] ss:$4 sm:$0xff] %v1791
      %3373 = vst [vmem:[%s3311] ss:$4 sm:$0xff] %v1794
      %3374 = vst [vmem:[%s3313] ss:$4 sm:$0xff] %v1797
      %v3375 = vld.sshfl [vmem:[#allocation1] sm:$0xff pattern:$0x73625140]
      %v3376 = vld.sshfl [vmem:[#allocation1 + $0x20] sm:$0xff pattern:$0x73625140]
      %3377 = vst [vmem:[#allocation1] ss:$4 sm:$0xff] %v1801
      %3378 = vst [vmem:[%s3301] ss:$4 sm:$0xff] %v1804
      %3379 = vst [vmem:[%s3303] ss:$4 sm:$0xff] %v1807
      %3380 = vst [vmem:[%s3305] ss:$4 sm:$0xff] %v1810
      %3381 = vst [vmem:[%s3307] ss:$4 sm:$0xff] %v1813
      %3382 = vst [vmem:[%s3309] ss:$4 sm:$0xff] %v1816
      %3383 = vst [vmem:[%s3311] ss:$4 sm:$0xff] %v1819
      %3384 = vst [vmem:[%s3313] ss:$4 sm:$0xff] %v1822
      %v3385 = vld.sshfl [vmem:[#allocation1] sm:$0xff pattern:$0x73625140]
      %v3386 = vld.sshfl [vmem:[#allocation1 + $0x20] sm:$0xff pattern:$0x73625140]
      %3387 = vst [vmem:[#allocation1] ss:$4 sm:$0xff] %v1826
      %3388 = vst [vmem:[%s3301] ss:$4 sm:$0xff] %v1829
      %3389 = vst [vmem:[%s3303] ss:$4 sm:$0xff] %v1832
      %3390 = vst [vmem:[%s3305] ss:$4 sm:$0xff] %v1835
      %3391 = vst [vmem:[%s3307] ss:$4 sm:$0xff] %v1838
      %3392 = vst [vmem:[%s3309] ss:$4 sm:$0xff] %v1841
      %3393 = vst [vmem:[%s3311] ss:$4 sm:$0xff] %v1844
      %3394 = vst [vmem:[%s3313] ss:$4 sm:$0xff] %v1847
      %v3395 = vld.sshfl [vmem:[#allocation1] sm:$0xff pattern:$0x73625140]
      %v3396 = vld.sshfl [vmem:[#allocation1 + $0x20] sm:$0xff pattern:$0x73625140]
      %3397 = vst [vmem:[#allocation1] ss:$4 sm:$0xff] %v1851
      %3398 = vst [vmem:[%s3301] ss:$4 sm:$0xff] %v1854
      %3399 = vst [vmem:[%s3303] ss:$4 sm:$0xff] %v1857
      %3400 = vst [vmem:[%s3305] ss:$4 sm:$0xff] %v1860
      %3401 = vst [vmem:[%s3307] ss:$4 sm:$0xff] %v1863
      %3402 = vst [vmem:[%s3309] ss:$4 sm:$0xff] %v1866
      %3403 = vst [vmem:[%s3311] ss:$4 sm:$0xff] %v1869
      %3404 = vst [vmem:[%s3313] ss:$4 sm:$0xff] %v1872
      %v3405 = vld.sshfl [vmem:[#allocation1] sm:$0xff pattern:$0x73625140]
      %v3406 = vld.sshfl [vmem:[#allocation1 + $0x20] sm:$0xff pattern:$0x73625140]
      %3407 = vst [vmem:[#allocation1] ss:$4 sm:$0xff] %v1876
      %3408 = vst [vmem:[%s3301] ss:$4 sm:$0xff] %v1879
      %3409 = vst [vmem:[%s3303] ss:$4 sm:$0xff] %v1882
      %3410 = vst [vmem:[%s3305] ss:$4 sm:$0xff] %v1885
      %3411 = vst [vmem:[%s3307] ss:$4 sm:$0xff] %v1888
      %3412 = vst [vmem:[%s3309] ss:$4 sm:$0xff] %v1891
      %3413 = vst [vmem:[%s3311] ss:$4 sm:$0xff] %v1894
      %3414 = vst [vmem:[%s3313] ss:$4 sm:$0xff] %v1897
      %v3415 = vld.sshfl [vmem:[#allocation1] sm:$0xff pattern:$0x73625140]
      %v3416 = vld.sshfl [vmem:[#allocation1 + $0x20] sm:$0xff pattern:$0x73625140]
      %3417 = vst [vmem:[#allocation1] ss:$4 sm:$0xff] %v1901
      %3418 = vst [vmem:[%s3301] ss:$4 sm:$0xff] %v1904
      %3419 = vst [vmem:[%s3303] ss:$4 sm:$0xff] %v1907
      %3420 = vst [vmem:[%s3305] ss:$4 sm:$0xff] %v1910
      %3421 = vst [vmem:[%s3307] ss:$4 sm:$0xff] %v1913
      %3422 = vst [vmem:[%s3309] ss:$4 sm:$0xff] %v1916
      %3423 = vst [vmem:[%s3311] ss:$4 sm:$0xff] %v1919
      %3424 = vst [vmem:[%s3313] ss:$4 sm:$0xff] %v1922
      %v3425 = vld.sshfl [vmem:[#allocation1] sm:$0xff pattern:$0x73625140]
      %v3426 = vld.sshfl [vmem:[#allocation1 + $0x20] sm:$0xff pattern:$0x73625140]
      %3427 = vst [vmem:[#allocation1] ss:$4 sm:$0xff] %v1926
      %3428 = vst [vmem:[%s3301] ss:$4 sm:$0xff] %v1929
      %3429 = vst [vmem:[%s3303] ss:$4 sm:$0xff] %v1932
      %3430 = vst [vmem:[%s3305] ss:$4 sm:$0xff] %v1935
      %3431 = vst [vmem:[%s3307] ss:$4 sm:$0xff] %v1938
      %3432 = vst [vmem:[%s3309] ss:$4 sm:$0xff] %v1941
      %3433 = vst [vmem:[%s3311] ss:$4 sm:$0xff] %v1944
      %3434 = vst [vmem:[%s3313] ss:$4 sm:$0xff] %v1947
      %v3435 = vld.sshfl [vmem:[#allocation1] sm:$0xff pattern:$0x73625140]
      %v3436 = vld.sshfl [vmem:[#allocation1 + $0x20] sm:$0xff pattern:$0x73625140]
      %3437 = vst [vmem:[#allocation1] ss:$4 sm:$0xff] %v1951
      %3438 = vst [vmem:[%s3301] ss:$4 sm:$0xff] %v1954
      %3439 = vst [vmem:[%s3303] ss:$4 sm:$0xff] %v1957
      %3440 = vst [vmem:[%s3305] ss:$4 sm:$0xff] %v1960
      %3441 = vst [vmem:[%s3307] ss:$4 sm:$0xff] %v1963
      %3442 = vst [vmem:[%s3309] ss:$4 sm:$0xff] %v1966
      %3443 = vst [vmem:[%s3311] ss:$4 sm:$0xff] %v1969
      %3444 = vst [vmem:[%s3313] ss:$4 sm:$0xff] %v1972
      %v3445 = vld.sshfl [vmem:[#allocation1] sm:$0xff pattern:$0x73625140]
      %v3446 = vld.sshfl [vmem:[#allocation1 + $0x20] sm:$0xff pattern:$0x73625140]
      %3447 = vst [vmem:[#allocation1] ss:$4 sm:$0xff] %v1976
      %3448 = vst [vmem:[%s3301] ss:$4 sm:$0xff] %v1979
      %3449 = vst [vmem:[%s3303] ss:$4 sm:$0xff] %v1982
      %3450 = vst [vmem:[%s3305] ss:$4 sm:$0xff] %v1985
      %3451 = vst [vmem:[%s3307] ss:$4 sm:$0xff] %v1988
      %3452 = vst [vmem:[%s3309] ss:$4 sm:$0xff] %v1991
      %3453 = vst [vmem:[%s3311] ss:$4 sm:$0xff] %v1994
      %3454 = vst [vmem:[%s3313] ss:$4 sm:$0xff] %v1997
      %v3455 = vld.sshfl [vmem:[#allocation1] sm:$0xff pattern:$0x73625140]
      %v3456 = vld.sshfl [vmem:[#allocation1 + $0x20] sm:$0xff pattern:$0x73625140]
      %3457 = vst [vmem:[#allocation1] ss:$4 sm:$0xff] %v3278
      %3458 = vst [vmem:[%s3301] ss:$4 sm:$0xff] %v3281
      %3459 = vst [vmem:[%s3303] ss:$4 sm:$0xff] %v3284
      %3460 = vst [vmem:[%s3305] ss:$4 sm:$0xff] %v3287
      %3461 = vst [vmem:[%s3307] ss:$4 sm:$0xff] %v3290
      %3462 = vst [vmem:[%s3309] ss:$4 sm:$0xff] %v3293
      %3463 = vst [vmem:[%s3311] ss:$4 sm:$0xff] %v3296
      %3464 = vst [vmem:[%s3313] ss:$4 sm:$0xff] %v3299
      %v3465 = vld.sshfl [vmem:[#allocation1] sm:$0xff pattern:$0x73625140]
      %v3466 = vld.sshfl [vmem:[#allocation1 + $0x20] sm:$0xff pattern:$0x73625140]
      %v3499 = vpack.c.bf16 %v3316, %v3315
      %v3500 = vpack.c.bf16 %v3326, %v3325
      %v3501 = vpack.c.bf16 %v3336, %v3335
      %v3502 = vpack.c.bf16 %v3346, %v3345
      %v3503 = vpack.c.bf16 %v3356, %v3355
      %v3504 = vpack.c.bf16 %v3366, %v3365
      %v3505 = vpack.c.bf16 %v3376, %v3375
      %v3506 = vpack.c.bf16 %v3386, %v3385
      %v3507 = vpack.c.bf16 %v3396, %v3395
      %v3508 = vpack.c.bf16 %v3406, %v3405
      %v3509 = vpack.c.bf16 %v3416, %v3415
      %v3510 = vpack.c.bf16 %v3426, %v3425
      %v3511 = vpack.c.bf16 %v3436, %v3435
      %v3512 = vpack.c.bf16 %v3446, %v3445
      %v3513 = vpack.c.bf16 %v3456, %v3455
      %v3514 = vpack.c.bf16 %v3466, %v3465
      %s3515 = scalar_lea.vmem %s3, 16
      %v3516 = vld [vmem:[%s3515] sm:$0xf]
      %v3518 = vsel %vm2215, %v3499, 0
      %v3521 = vsel %vm2215, %v3500, 0
      %v3524 = vsel %vm2215, %v3501, 0
      %v3527 = vsel %vm2215, %v3502, 0
      %v3530 = vsel %vm2215, %v3503, 0
      %v3533 = vsel %vm2215, %v3504, 0
      %v3536 = vsel %vm2215, %v3505, 0
      %v3539 = vsel %vm2215, %v3506, 0
      %v3542 = vsel %vm2215, %v3507, 0
      %v3545 = vsel %vm2215, %v3508, 0
      %v3548 = vsel %vm2215, %v3509, 0
      %v3551 = vsel %vm2215, %v3510, 0
      %v3554 = vsel %vm2215, %v3511, 0
      %v3557 = vsel %vm2215, %v3512, 0
      %v3560 = vsel %vm2215, %v3513, 0
      %v3563 = vsel %vm2215, %v3514, 0
      %v3566 = vsel %vm2264, %v3516, 0
      %3568 = vmatpush.bf16.msra.mxu0 0
      %3569 = vmatpush.bf16.msra.mxu0 0
      %3570 = vmatpush.bf16.msra.mxu0 0
      %3571 = vmatpush.bf16.msra.mxu0 0
      %3572 = vmatpush.bf16.msra.mxu0 0
      %3573 = vmatpush.bf16.msra.mxu0 0
      %3574 = vmatpush.bf16.msra.mxu0 0
      %3575 = vmatpush.bf16.msra.mxu0 %v3566
      %3576 = vmatmul.bf16.gmra.mxu0 %v3518
      %v3577 = vpop.f32.mrf.mxu0
      %v3578 = vadd.f32 0.0, %v3577
      %v3579 = vpop.f32.mrf.mxu0
      %v3580 = vadd.f32 0.0, %v3579
      %3581 = vmatmul.bf16.gmra.mxu0 %v3521
      %v3582 = vpop.f32.mrf.mxu0
      %v3583 = vadd.f32 0.0, %v3582
      %v3584 = vpop.f32.mrf.mxu0
      %v3585 = vadd.f32 0.0, %v3584
      %3586 = vmatmul.bf16.gmra.mxu0 %v3524
      %v3587 = vpop.f32.mrf.mxu0
      %v3588 = vadd.f32 0.0, %v3587
      %v3589 = vpop.f32.mrf.mxu0
      %v3590 = vadd.f32 0.0, %v3589
      %3591 = vmatmul.bf16.gmra.mxu0 %v3527
      %v3592 = vpop.f32.mrf.mxu0
      %v3593 = vadd.f32 0.0, %v3592
      %v3594 = vpop.f32.mrf.mxu0
      %v3595 = vadd.f32 0.0, %v3594
      %3596 = vmatmul.bf16.gmra.mxu0 %v3530
      %v3597 = vpop.f32.mrf.mxu0
      %v3598 = vadd.f32 0.0, %v3597
      %v3599 = vpop.f32.mrf.mxu0
      %v3600 = vadd.f32 0.0, %v3599
      %3601 = vmatmul.bf16.gmra.mxu0 %v3533
      %v3602 = vpop.f32.mrf.mxu0
      %v3603 = vadd.f32 0.0, %v3602
      %v3604 = vpop.f32.mrf.mxu0
      %v3605 = vadd.f32 0.0, %v3604
      %3606 = vmatmul.bf16.gmra.mxu0 %v3536
      %v3607 = vpop.f32.mrf.mxu0
      %v3608 = vadd.f32 0.0, %v3607
      %v3609 = vpop.f32.mrf.mxu0
      %v3610 = vadd.f32 0.0, %v3609
      %3611 = vmatmul.bf16.gmra.mxu0 %v3539
      %v3612 = vpop.f32.mrf.mxu0
      %v3613 = vadd.f32 0.0, %v3612
      %v3614 = vpop.f32.mrf.mxu0
      %v3615 = vadd.f32 0.0, %v3614
      %3616 = vmatmul.bf16.gmra.mxu0 %v3542
      %v3617 = vpop.f32.mrf.mxu0
      %v3618 = vadd.f32 0.0, %v3617
      %v3619 = vpop.f32.mrf.mxu0
      %v3620 = vadd.f32 0.0, %v3619
      %3621 = vmatmul.bf16.gmra.mxu0 %v3545
      %v3622 = vpop.f32.mrf.mxu0
      %v3623 = vadd.f32 0.0, %v3622
      %v3624 = vpop.f32.mrf.mxu0
      %v3625 = vadd.f32 0.0, %v3624
      %3626 = vmatmul.bf16.gmra.mxu0 %v3548
      %v3627 = vpop.f32.mrf.mxu0
      %v3628 = vadd.f32 0.0, %v3627
      %v3629 = vpop.f32.mrf.mxu0
      %v3630 = vadd.f32 0.0, %v3629
      %3631 = vmatmul.bf16.gmra.mxu0 %v3551
      %v3632 = vpop.f32.mrf.mxu0
      %v3633 = vadd.f32 0.0, %v3632
      %v3634 = vpop.f32.mrf.mxu0
      %v3635 = vadd.f32 0.0, %v3634
      %3636 = vmatmul.bf16.gmra.mxu0 %v3554
      %v3637 = vpop.f32.mrf.mxu0
      %v3638 = vadd.f32 0.0, %v3637
      %v3639 = vpop.f32.mrf.mxu0
      %v3640 = vadd.f32 0.0, %v3639
      %3641 = vmatmul.bf16.gmra.mxu0 %v3557
      %v3642 = vpop.f32.mrf.mxu0
      %v3643 = vadd.f32 0.0, %v3642
      %v3644 = vpop.f32.mrf.mxu0
      %v3645 = vadd.f32 0.0, %v3644
      %3646 = vmatmul.bf16.gmra.mxu0 %v3560
      %v3647 = vpop.f32.mrf.mxu0
      %v3648 = vadd.f32 0.0, %v3647
      %v3649 = vpop.f32.mrf.mxu0
      %v3650 = vadd.f32 0.0, %v3649
      %3651 = vmatmul.bf16.gmra.mxu0 %v3563
      %v3652 = vpop.f32.mrf.mxu0
      %v3653 = vadd.f32 0.0, %v3652
      %v3654 = vpop.f32.mrf.mxu0
      %v3655 = vadd.f32 0.0, %v3654
      %3656 = vdwg.mxu0
      %v3657 = vadd.f32 %v3243, %v3578
      %v3658 = vadd.f32 %v3244, %v3580
      %v3659 = vadd.f32 %v3245, %v3583
      %v3660 = vadd.f32 %v3246, %v3585
      %v3661 = vadd.f32 %v3247, %v3588
      %v3662 = vadd.f32 %v3248, %v3590
      %v3663 = vadd.f32 %v3249, %v3593
      %v3664 = vadd.f32 %v3250, %v3595
      %v3665 = vadd.f32 %v3251, %v3598
      %v3666 = vadd.f32 %v3252, %v3600
      %v3667 = vadd.f32 %v3253, %v3603
      %v3668 = vadd.f32 %v3254, %v3605
      %v3669 = vadd.f32 %v3255, %v3608
      %v3670 = vadd.f32 %v3256, %v3610
      %v3671 = vadd.f32 %v3257, %v3613
      %v3672 = vadd.f32 %v3258, %v3615
      %v3673 = vadd.f32 %v3259, %v3618
      %v3674 = vadd.f32 %v3260, %v3620
      %v3675 = vadd.f32 %v3261, %v3623
      %v3676 = vadd.f32 %v3262, %v3625
      %v3677 = vadd.f32 %v3263, %v3628
      %v3678 = vadd.f32 %v3264, %v3630
      %v3679 = vadd.f32 %v3265, %v3633
      %v3680 = vadd.f32 %v3266, %v3635
      %v3681 = vadd.f32 %v3267, %v3638
      %v3682 = vadd.f32 %v3268, %v3640
      %v3683 = vadd.f32 %v3269, %v3643
      %v3684 = vadd.f32 %v3270, %v3645
      %v3685 = vadd.f32 %v3271, %v3648
      %v3686 = vadd.f32 %v3272, %v3650
      %v3687 = vadd.f32 %v3273, %v3653
      %v3688 = vadd.f32 %v3274, %v3655
      %3689 = vst [vmem:[#allocation1] ss:$4 sm:$0xff] %v1261
      %s3690 = scalar_lea.vmem [#allocation1], 1
      %3691 = vst [vmem:[%s3690] ss:$4 sm:$0xff] %v1262
      %s3692 = scalar_lea.vmem [#allocation1], 2
      %3693 = vst [vmem:[%s3692] ss:$4 sm:$0xff] %v1175
      %s3694 = scalar_lea.vmem [#allocation1], 3
      %3695 = vst [vmem:[%s3694] ss:$4 sm:$0xff] %v1263
      %s3696 = scalar_lea.vmem [#allocation1], 32
      %3697 = vst [vmem:[%s3696] ss:$4 sm:$0xff] %v1264
      %s3698 = scalar_lea.vmem [#allocation1], 33
      %3699 = vst [vmem:[%s3698] ss:$4 sm:$0xff] %v1265
      %s3700 = scalar_lea.vmem [#allocation1], 34
      %3701 = vst [vmem:[%s3700] ss:$4 sm:$0xff] %v1176
      %s3702 = scalar_lea.vmem [#allocation1], 35
      %3703 = vst [vmem:[%s3702] ss:$4 sm:$0xff] %v1266
      %v3704 = vld.sshfl [vmem:[#allocation1] sm:$0xff pattern:$0x73625140]
      %v3705 = vld.sshfl [vmem:[#allocation1 + $0x20] sm:$0xff pattern:$0x73625140]
      %3706 = vst [vmem:[#allocation1] ss:$4 sm:$0xff] %v1268
      %3707 = vst [vmem:[%s3690] ss:$4 sm:$0xff] %v1177
      %3708 = vst [vmem:[%s3692] ss:$4 sm:$0xff] %v1269
      %3709 = vst [vmem:[%s3694] ss:$4 sm:$0xff] %v1270
      %3710 = vst [vmem:[%s3696] ss:$4 sm:$0xff] %v1271
      %3711 = vst [vmem:[%s3698] ss:$4 sm:$0xff] %v1178
      %3712 = vst [vmem:[%s3700] ss:$4 sm:$0xff] %v1272
      %3713 = vst [vmem:[%s3702] ss:$4 sm:$0xff] %v1273
      %v3714 = vld.sshfl [vmem:[#allocation1] sm:$0xff pattern:$0x73625140]
      %v3715 = vld.sshfl [vmem:[#allocation1 + $0x20] sm:$0xff pattern:$0x73625140]
      %3716 = vst [vmem:[#allocation1] ss:$4 sm:$0xff] %v1179
      %3717 = vst [vmem:[%s3690] ss:$4 sm:$0xff] %v1275
      %3718 = vst [vmem:[%s3692] ss:$4 sm:$0xff] %v1276
      %3719 = vst [vmem:[%s3694] ss:$4 sm:$0xff] %v1277
      %3720 = vst [vmem:[%s3696] ss:$4 sm:$0xff] %v1180
      %3721 = vst [vmem:[%s3698] ss:$4 sm:$0xff] %v1278
      %3722 = vst [vmem:[%s3700] ss:$4 sm:$0xff] %v1279
      %3723 = vst [vmem:[%s3702] ss:$4 sm:$0xff] %v1280
      %v3724 = vld.sshfl [vmem:[#allocation1] sm:$0xff pattern:$0x73625140]
      %v3725 = vld.sshfl [vmem:[#allocation1 + $0x20] sm:$0xff pattern:$0x73625140]
      %3726 = vst [vmem:[#allocation1] ss:$4 sm:$0xff] %v1281
      %3727 = vst [vmem:[%s3690] ss:$4 sm:$0xff] %v1282
      %3728 = vst [vmem:[%s3692] ss:$4 sm:$0xff] %v1283
      %3729 = vst [vmem:[%s3694] ss:$4 sm:$0xff] %v1182
      %3730 = vst [vmem:[%s3696] ss:$4 sm:$0xff] %v1284
      %3731 = vst [vmem:[%s3698] ss:$4 sm:$0xff] %v1285
      %3732 = vst [vmem:[%s3700] ss:$4 sm:$0xff] %v1286
      %3733 = vst [vmem:[%s3702] ss:$4 sm:$0xff] %v1183
      %v3734 = vld.sshfl [vmem:[#allocation1] sm:$0xff pattern:$0x73625140]
      %v3735 = vld.sshfl [vmem:[#allocation1 + $0x20] sm:$0xff pattern:$0x73625140]
      %3736 = vst [vmem:[#allocation1] ss:$4 sm:$0xff] %v1288
      %3737 = vst [vmem:[%s3690] ss:$4 sm:$0xff] %v1289
      %3738 = vst [vmem:[%s3692] ss:$4 sm:$0xff] %v1184
      %3739 = vst [vmem:[%s3694] ss:$4 sm:$0xff] %v1290
      %3740 = vst [vmem:[%s3696] ss:$4 sm:$0xff] %v1291
      %3741 = vst [vmem:[%s3698] ss:$4 sm:$0xff] %v1292
      %3742 = vst [vmem:[%s3700] ss:$4 sm:$0xff] %v1185
      %3743 = vst [vmem:[%s3702] ss:$4 sm:$0xff] %v1293
      %v3744 = vld.sshfl [vmem:[#allocation1] sm:$0xff pattern:$0x73625140]
      %v3745 = vld.sshfl [vmem:[#allocation1 + $0x20] sm:$0xff pattern:$0x73625140]
      %3746 = vst [vmem:[#allocation1] ss:$4 sm:$0xff] %v1295
      %3747 = vst [vmem:[%s3690] ss:$4 sm:$0xff] %v1186
      %3748 = vst [vmem:[%s3692] ss:$4 sm:$0xff] %v1296
      %3749 = vst [vmem:[%s3694] ss:$4 sm:$0xff] %v1297
      %3750 = vst [vmem:[%s3696] ss:$4 sm:$0xff] %v1298
      %3751 = vst [vmem:[%s3698] ss:$4 sm:$0xff] %v1187
      %3752 = vst [vmem:[%s3700] ss:$4 sm:$0xff] %v1299
      %3753 = vst [vmem:[%s3702] ss:$4 sm:$0xff] %v1300
      %v3754 = vld.sshfl [vmem:[#allocation1] sm:$0xff pattern:$0x73625140]
      %v3755 = vld.sshfl [vmem:[#allocation1 + $0x20] sm:$0xff pattern:$0x73625140]
      %3756 = vst [vmem:[#allocation1] ss:$4 sm:$0xff] %v1188
      %3757 = vst [vmem:[%s3690] ss:$4 sm:$0xff] %v1302
      %3758 = vst [vmem:[%s3692] ss:$4 sm:$0xff] %v1303
      %3759 = vst [vmem:[%s3694] ss:$4 sm:$0xff] %v1304
      %3760 = vst [vmem:[%s3696] ss:$4 sm:$0xff] %v1189
      %3761 = vst [vmem:[%s3698] ss:$4 sm:$0xff] %v1305
      %3762 = vst [vmem:[%s3700] ss:$4 sm:$0xff] %v1306
      %3763 = vst [vmem:[%s3702] ss:$4 sm:$0xff] %v1307
      %v3764 = vld.sshfl [vmem:[#allocation1] sm:$0xff pattern:$0x73625140]
      %v3765 = vld.sshfl [vmem:[#allocation1 + $0x20] sm:$0xff pattern:$0x73625140]
      %3766 = vst [vmem:[#allocation1] ss:$4 sm:$0xff] %v1308
      %3767 = vst [vmem:[%s3690] ss:$4 sm:$0xff] %v1309
      %3768 = vst [vmem:[%s3692] ss:$4 sm:$0xff] %v1310
      %3769 = vst [vmem:[%s3694] ss:$4 sm:$0xff] %v1191
      %3770 = vst [vmem:[%s3696] ss:$4 sm:$0xff] %v1311
      %3771 = vst [vmem:[%s3698] ss:$4 sm:$0xff] %v1312
      %3772 = vst [vmem:[%s3700] ss:$4 sm:$0xff] %v1313
      %3773 = vst [vmem:[%s3702] ss:$4 sm:$0xff] %v1192
      %v3774 = vld.sshfl [vmem:[#allocation1] sm:$0xff pattern:$0x73625140]
      %v3775 = vld.sshfl [vmem:[#allocation1 + $0x20] sm:$0xff pattern:$0x73625140]
      %3776 = vst [vmem:[#allocation1] ss:$4 sm:$0xff] %v1315
      %3777 = vst [vmem:[%s3690] ss:$4 sm:$0xff] %v1316
      %3778 = vst [vmem:[%s3692] ss:$4 sm:$0xff] %v1193
      %3779 = vst [vmem:[%s3694] ss:$4 sm:$0xff] %v1317
      %3780 = vst [vmem:[%s3696] ss:$4 sm:$0xff] %v1318
      %3781 = vst [vmem:[%s3698] ss:$4 sm:$0xff] %v1319
      %3782 = vst [vmem:[%s3700] ss:$4 sm:$0xff] %v1194
      %3783 = vst [vmem:[%s3702] ss:$4 sm:$0xff] %v1320
      %v3784 = vld.sshfl [vmem:[#allocation1] sm:$0xff pattern:$0x73625140]
      %v3785 = vld.sshfl [vmem:[#allocation1 + $0x20] sm:$0xff pattern:$0x73625140]
      %3786 = vst [vmem:[#allocation1] ss:$4 sm:$0xff] %v1322
      %3787 = vst [vmem:[%s3690] ss:$4 sm:$0xff] %v1195
      %3788 = vst [vmem:[%s3692] ss:$4 sm:$0xff] %v1323
      %3789 = vst [vmem:[%s3694] ss:$4 sm:$0xff] %v1324
      %3790 = vst [vmem:[%s3696] ss:$4 sm:$0xff] %v1325
      %3791 = vst [vmem:[%s3698] ss:$4 sm:$0xff] %v1196
      %3792 = vst [vmem:[%s3700] ss:$4 sm:$0xff] %v1326
      %3793 = vst [vmem:[%s3702] ss:$4 sm:$0xff] %v1327
      %v3794 = vld.sshfl [vmem:[#allocation1] sm:$0xff pattern:$0x73625140]
      %v3795 = vld.sshfl [vmem:[#allocation1 + $0x20] sm:$0xff pattern:$0x73625140]
      %3796 = vst [vmem:[#allocation1] ss:$4 sm:$0xff] %v1197
      %3797 = vst [vmem:[%s3690] ss:$4 sm:$0xff] %v1329
      %3798 = vst [vmem:[%s3692] ss:$4 sm:$0xff] %v1330
      %3799 = vst [vmem:[%s3694] ss:$4 sm:$0xff] %v1331
      %3800 = vst [vmem:[%s3696] ss:$4 sm:$0xff] %v1198
      %3801 = vst [vmem:[%s3698] ss:$4 sm:$0xff] %v1332
      %3802 = vst [vmem:[%s3700] ss:$4 sm:$0xff] %v1333
      %3803 = vst [vmem:[%s3702] ss:$4 sm:$0xff] %v1334
      %v3804 = vld.sshfl [vmem:[#allocation1] sm:$0xff pattern:$0x73625140]
      %v3805 = vld.sshfl [vmem:[#allocation1 + $0x20] sm:$0xff pattern:$0x73625140]
      %3806 = vst [vmem:[#allocation1] ss:$4 sm:$0xff] %v1335
      %3807 = vst [vmem:[%s3690] ss:$4 sm:$0xff] %v1336
      %3808 = vst [vmem:[%s3692] ss:$4 sm:$0xff] %v1337
      %3809 = vst [vmem:[%s3694] ss:$4 sm:$0xff] %v1200
      %3810 = vst [vmem:[%s3696] ss:$4 sm:$0xff] %v1338
      %3811 = vst [vmem:[%s3698] ss:$4 sm:$0xff] %v1339
      %3812 = vst [vmem:[%s3700] ss:$4 sm:$0xff] %v1340
      %3813 = vst [vmem:[%s3702] ss:$4 sm:$0xff] %v1201
      %v3814 = vld.sshfl [vmem:[#allocation1] sm:$0xff pattern:$0x73625140]
      %v3815 = vld.sshfl [vmem:[#allocation1 + $0x20] sm:$0xff pattern:$0x73625140]
      %3816 = vst [vmem:[#allocation1] ss:$4 sm:$0xff] %v1342
      %3817 = vst [vmem:[%s3690] ss:$4 sm:$0xff] %v1343
      %3818 = vst [vmem:[%s3692] ss:$4 sm:$0xff] %v1202
      %3819 = vst [vmem:[%s3694] ss:$4 sm:$0xff] %v1344
      %3820 = vst [vmem:[%s3696] ss:$4 sm:$0xff] %v1345
      %3821 = vst [vmem:[%s3698] ss:$4 sm:$0xff] %v1346
      %3822 = vst [vmem:[%s3700] ss:$4 sm:$0xff] %v1203
      %3823 = vst [vmem:[%s3702] ss:$4 sm:$0xff] %v1347
      %v3824 = vld.sshfl [vmem:[#allocation1] sm:$0xff pattern:$0x73625140]
      %v3825 = vld.sshfl [vmem:[#allocation1 + $0x20] sm:$0xff pattern:$0x73625140]
      %3826 = vst [vmem:[#allocation1] ss:$4 sm:$0xff] %v1349
      %3827 = vst [vmem:[%s3690] ss:$4 sm:$0xff] %v1204
      %3828 = vst [vmem:[%s3692] ss:$4 sm:$0xff] %v1350
      %3829 = vst [vmem:[%s3694] ss:$4 sm:$0xff] %v1351
      %3830 = vst [vmem:[%s3696] ss:$4 sm:$0xff] %v1352
      %3831 = vst [vmem:[%s3698] ss:$4 sm:$0xff] %v1205
      %3832 = vst [vmem:[%s3700] ss:$4 sm:$0xff] %v1353
      %3833 = vst [vmem:[%s3702] ss:$4 sm:$0xff] %v1354
      %v3834 = vld.sshfl [vmem:[#allocation1] sm:$0xff pattern:$0x73625140]
      %v3835 = vld.sshfl [vmem:[#allocation1 + $0x20] sm:$0xff pattern:$0x73625140]
      %3836 = vst [vmem:[#allocation1] ss:$4 sm:$0xff] %v1206
      %3837 = vst [vmem:[%s3690] ss:$4 sm:$0xff] %v1356
      %3838 = vst [vmem:[%s3692] ss:$4 sm:$0xff] %v1357
      %3839 = vst [vmem:[%s3694] ss:$4 sm:$0xff] %v1358
      %3840 = vst [vmem:[%s3696] ss:$4 sm:$0xff] %v1207
      %3841 = vst [vmem:[%s3698] ss:$4 sm:$0xff] %v1359
      %3842 = vst [vmem:[%s3700] ss:$4 sm:$0xff] %v1360
      %3843 = vst [vmem:[%s3702] ss:$4 sm:$0xff] %v1361
      %v3844 = vld.sshfl [vmem:[#allocation1] sm:$0xff pattern:$0x73625140]
      %v3845 = vld.sshfl [vmem:[#allocation1 + $0x20] sm:$0xff pattern:$0x73625140]
      %3846 = vst [vmem:[#allocation1] ss:$4 sm:$0xff] %v1362
      %3847 = vst [vmem:[%s3690] ss:$4 sm:$0xff] %v1363
      %3848 = vst [vmem:[%s3692] ss:$4 sm:$0xff] %v1364
      %3849 = vst [vmem:[%s3694] ss:$4 sm:$0xff] %v1209
      %3850 = vst [vmem:[%s3696] ss:$4 sm:$0xff] %v1365
      %3851 = vst [vmem:[%s3698] ss:$4 sm:$0xff] %v1366
      %3852 = vst [vmem:[%s3700] ss:$4 sm:$0xff] %v1367
      %3853 = vst [vmem:[%s3702] ss:$4 sm:$0xff] %v1210
      %v3854 = vld.sshfl [vmem:[#allocation1] sm:$0xff pattern:$0x73625140]
      %v3855 = vld.sshfl [vmem:[#allocation1 + $0x20] sm:$0xff pattern:$0x73625140]
      %v3888 = vpack.c.bf16 %v3705, %v3704
      %v3889 = vpack.c.bf16 %v3715, %v3714
      %v3890 = vpack.c.bf16 %v3725, %v3724
      %v3891 = vpack.c.bf16 %v3735, %v3734
      %v3892 = vpack.c.bf16 %v3745, %v3744
      %v3893 = vpack.c.bf16 %v3755, %v3754
      %v3894 = vpack.c.bf16 %v3765, %v3764
      %v3895 = vpack.c.bf16 %v3775, %v3774
      %v3896 = vpack.c.bf16 %v3785, %v3784
      %v3897 = vpack.c.bf16 %v3795, %v3794
      %v3898 = vpack.c.bf16 %v3805, %v3804
      %v3899 = vpack.c.bf16 %v3815, %v3814
      %v3900 = vpack.c.bf16 %v3825, %v3824
      %v3901 = vpack.c.bf16 %v3835, %v3834
      %v3902 = vpack.c.bf16 %v3845, %v3844
      %v3903 = vpack.c.bf16 %v3855, %v3854
      %s3904 = scalar_lea.vmem %s3, 20
      %v3905 = vld [vmem:[%s3904] sm:$0xf]
      %v3907 = vsel %vm2215, %v3888, 0
      %v3910 = vsel %vm2215, %v3889, 0
      %v3913 = vsel %vm2215, %v3890, 0
      %v3916 = vsel %vm2215, %v3891, 0
      %v3919 = vsel %vm2215, %v3892, 0
      %v3922 = vsel %vm2215, %v3893, 0
      %v3925 = vsel %vm2215, %v3894, 0
      %v3928 = vsel %vm2215, %v3895, 0
      %v3931 = vsel %vm2215, %v3896, 0
      %v3934 = vsel %vm2215, %v3897, 0
      %v3937 = vsel %vm2215, %v3898, 0
      %v3940 = vsel %vm2215, %v3899, 0
      %v3943 = vsel %vm2215, %v3900, 0
      %v3946 = vsel %vm2215, %v3901, 0
      %v3949 = vsel %vm2215, %v3902, 0
      %v3952 = vsel %vm2215, %v3903, 0
      %v3955 = vsel %vm2264, %v3905, 0
      %3957 = vmatpush.bf16.msra.mxu0 0
      %3958 = vmatpush.bf16.msra.mxu0 0
      %3959 = vmatpush.bf16.msra.mxu0 0
      %3960 = vmatpush.bf16.msra.mxu0 0
      %3961 = vmatpush.bf16.msra.mxu0 0
      %3962 = vmatpush.bf16.msra.mxu0 0
      %3963 = vmatpush.bf16.msra.mxu0 0
      %3964 = vmatpush.bf16.msra.mxu0 %v3955
      %3965 = vmatmul.bf16.gmra.mxu0 %v3907
      %v3966 = vpop.f32.mrf.mxu0
      %v3967 = vadd.f32 0.0, %v3966
      %v3968 = vpop.f32.mrf.mxu0
      %v3969 = vadd.f32 0.0, %v3968
      %3970 = vmatmul.bf16.gmra.mxu0 %v3910
      %v3971 = vpop.f32.mrf.mxu0
      %v3972 = vadd.f32 0.0, %v3971
      %v3973 = vpop.f32.mrf.mxu0
      %v3974 = vadd.f32 0.0, %v3973
      %3975 = vmatmul.bf16.gmra.mxu0 %v3913
      %v3976 = vpop.f32.mrf.mxu0
      %v3977 = vadd.f32 0.0, %v3976
      %v3978 = vpop.f32.mrf.mxu0
      %v3979 = vadd.f32 0.0, %v3978
      %3980 = vmatmul.bf16.gmra.mxu0 %v3916
      %v3981 = vpop.f32.mrf.mxu0
      %v3982 = vadd.f32 0.0, %v3981
      %v3983 = vpop.f32.mrf.mxu0
      %v3984 = vadd.f32 0.0, %v3983
      %3985 = vmatmul.bf16.gmra.mxu0 %v3919
      %v3986 = vpop.f32.mrf.mxu0
      %v3987 = vadd.f32 0.0, %v3986
      %v3988 = vpop.f32.mrf.mxu0
      %v3989 = vadd.f32 0.0, %v3988
      %3990 = vmatmul.bf16.gmra.mxu0 %v3922
      %v3991 = vpop.f32.mrf.mxu0
      %v3992 = vadd.f32 0.0, %v3991
      %v3993 = vpop.f32.mrf.mxu0
      %v3994 = vadd.f32 0.0, %v3993
      %3995 = vmatmul.bf16.gmra.mxu0 %v3925
      %v3996 = vpop.f32.mrf.mxu0
      %v3997 = vadd.f32 0.0, %v3996
      %v3998 = vpop.f32.mrf.mxu0
      %v3999 = vadd.f32 0.0, %v3998
      %4000 = vmatmul.bf16.gmra.mxu0 %v3928
      %v4001 = vpop.f32.mrf.mxu0
      %v4002 = vadd.f32 0.0, %v4001
      %v4003 = vpop.f32.mrf.mxu0
      %v4004 = vadd.f32 0.0, %v4003
      %4005 = vmatmul.bf16.gmra.mxu0 %v3931
      %v4006 = vpop.f32.mrf.mxu0
      %v4007 = vadd.f32 0.0, %v4006
      %v4008 = vpop.f32.mrf.mxu0
      %v4009 = vadd.f32 0.0, %v4008
      %4010 = vmatmul.bf16.gmra.mxu0 %v3934
      %v4011 = vpop.f32.mrf.mxu0
      %v4012 = vadd.f32 0.0, %v4011
      %v4013 = vpop.f32.mrf.mxu0
      %v4014 = vadd.f32 0.0, %v4013
      %4015 = vmatmul.bf16.gmra.mxu0 %v3937
      %v4016 = vpop.f32.mrf.mxu0
      %v4017 = vadd.f32 0.0, %v4016
      %v4018 = vpop.f32.mrf.mxu0
      %v4019 = vadd.f32 0.0, %v4018
      %4020 = vmatmul.bf16.gmra.mxu0 %v3940
      %v4021 = vpop.f32.mrf.mxu0
      %v4022 = vadd.f32 0.0, %v4021
      %v4023 = vpop.f32.mrf.mxu0
      %v4024 = vadd.f32 0.0, %v4023
      %4025 = vmatmul.bf16.gmra.mxu0 %v3943
      %v4026 = vpop.f32.mrf.mxu0
      %v4027 = vadd.f32 0.0, %v4026
      %v4028 = vpop.f32.mrf.mxu0
      %v4029 = vadd.f32 0.0, %v4028
      %4030 = vmatmul.bf16.gmra.mxu0 %v3946
      %v4031 = vpop.f32.mrf.mxu0
      %v4032 = vadd.f32 0.0, %v4031
      %v4033 = vpop.f32.mrf.mxu0
      %v4034 = vadd.f32 0.0, %v4033
      %4035 = vmatmul.bf16.gmra.mxu0 %v3949
      %v4036 = vpop.f32.mrf.mxu0
      %v4037 = vadd.f32 0.0, %v4036
      %v4038 = vpop.f32.mrf.mxu0
      %v4039 = vadd.f32 0.0, %v4038
      %4040 = vmatmul.bf16.gmra.mxu0 %v3952
      %v4041 = vpop.f32.mrf.mxu0
      %v4042 = vadd.f32 0.0, %v4041
      %v4043 = vpop.f32.mrf.mxu0
      %v4044 = vadd.f32 0.0, %v4043
      %4045 = vdwg.mxu0
      %v4046 = vadd.f32 %v3657, %v3967
      %v4047 = vadd.f32 %v3658, %v3969
      %v4048 = vadd.f32 %v3659, %v3972
      %v4049 = vadd.f32 %v3660, %v3974
      %v4050 = vadd.f32 %v3661, %v3977
      %v4051 = vadd.f32 %v3662, %v3979
      %v4052 = vadd.f32 %v3663, %v3982
      %v4053 = vadd.f32 %v3664, %v3984
      %v4054 = vadd.f32 %v3665, %v3987
      %v4055 = vadd.f32 %v3666, %v3989
      %v4056 = vadd.f32 %v3667, %v3992
      %v4057 = vadd.f32 %v3668, %v3994
      %v4058 = vadd.f32 %v3669, %v3997
      %v4059 = vadd.f32 %v3670, %v3999
      %v4060 = vadd.f32 %v3671, %v4002
      %v4061 = vadd.f32 %v3672, %v4004
      %v4062 = vadd.f32 %v3673, %v4007
      %v4063 = vadd.f32 %v3674, %v4009
      %v4064 = vadd.f32 %v3675, %v4012
      %v4065 = vadd.f32 %v3676, %v4014
      %v4066 = vadd.f32 %v3677, %v4017
      %v4067 = vadd.f32 %v3678, %v4019
      %v4068 = vadd.f32 %v3679, %v4022
      %v4069 = vadd.f32 %v3680, %v4024
      %v4070 = vadd.f32 %v3681, %v4027
      %v4071 = vadd.f32 %v3682, %v4029
      %v4072 = vadd.f32 %v3683, %v4032
      %v4073 = vadd.f32 %v3684, %v4034
      %v4074 = vadd.f32 %v3685, %v4037
      %v4075 = vadd.f32 %v3686, %v4039
      %v4076 = vadd.f32 %v3687, %v4042
      %v4077 = vadd.f32 %v3688, %v4044
      %4078 = vst [vmem:[#allocation1] ss:$4 sm:$0xff] %v1267
      %s4079 = scalar_lea.vmem [#allocation1], 1
      %4080 = vst [vmem:[%s4079] ss:$4 sm:$0xff] %v1268
      %s4081 = scalar_lea.vmem [#allocation1], 2
      %4082 = vst [vmem:[%s4081] ss:$4 sm:$0xff] %v1177
      %s4083 = scalar_lea.vmem [#allocation1], 3
      %4084 = vst [vmem:[%s4083] ss:$4 sm:$0xff] %v1269
      %s4085 = scalar_lea.vmem [#allocation1], 32
      %4086 = vst [vmem:[%s4085] ss:$4 sm:$0xff] %v1270
      %s4087 = scalar_lea.vmem [#allocation1], 33
      %4088 = vst [vmem:[%s4087] ss:$4 sm:$0xff] %v1271
      %s4089 = scalar_lea.vmem [#allocation1], 34
      %4090 = vst [vmem:[%s4089] ss:$4 sm:$0xff] %v1178
      %s4091 = scalar_lea.vmem [#allocation1], 35
      %4092 = vst [vmem:[%s4091] ss:$4 sm:$0xff] %v1272
      %v4093 = vld.sshfl [vmem:[#allocation1] sm:$0xff pattern:$0x73625140]
      %v4094 = vld.sshfl [vmem:[#allocation1 + $0x20] sm:$0xff pattern:$0x73625140]
      %4095 = vst [vmem:[#allocation1] ss:$4 sm:$0xff] %v1274
      %4096 = vst [vmem:[%s4079] ss:$4 sm:$0xff] %v1179
      %4097 = vst [vmem:[%s4081] ss:$4 sm:$0xff] %v1275
      %4098 = vst [vmem:[%s4083] ss:$4 sm:$0xff] %v1276
      %4099 = vst [vmem:[%s4085] ss:$4 sm:$0xff] %v1277
      %4100 = vst [vmem:[%s4087] ss:$4 sm:$0xff] %v1180
      %4101 = vst [vmem:[%s4089] ss:$4 sm:$0xff] %v1278
      %4102 = vst [vmem:[%s4091] ss:$4 sm:$0xff] %v1279
      %v4103 = vld.sshfl [vmem:[#allocation1] sm:$0xff pattern:$0x73625140]
      %v4104 = vld.sshfl [vmem:[#allocation1 + $0x20] sm:$0xff pattern:$0x73625140]
      %4105 = vst [vmem:[#allocation1] ss:$4 sm:$0xff] %v1181
      %4106 = vst [vmem:[%s4079] ss:$4 sm:$0xff] %v1281
      %4107 = vst [vmem:[%s4081] ss:$4 sm:$0xff] %v1282
      %4108 = vst [vmem:[%s4083] ss:$4 sm:$0xff] %v1283
      %4109 = vst [vmem:[%s4085] ss:$4 sm:$0xff] %v1182
      %4110 = vst [vmem:[%s4087] ss:$4 sm:$0xff] %v1284
      %4111 = vst [vmem:[%s4089] ss:$4 sm:$0xff] %v1285
      %4112 = vst [vmem:[%s4091] ss:$4 sm:$0xff] %v1286
      %v4113 = vld.sshfl [vmem:[#allocation1] sm:$0xff pattern:$0x73625140]
      %v4114 = vld.sshfl [vmem:[#allocation1 + $0x20] sm:$0xff pattern:$0x73625140]
      %4115 = vst [vmem:[#allocation1] ss:$4 sm:$0xff] %v1287
      %4116 = vst [vmem:[%s4079] ss:$4 sm:$0xff] %v1288
      %4117 = vst [vmem:[%s4081] ss:$4 sm:$0xff] %v1289
      %4118 = vst [vmem:[%s4083] ss:$4 sm:$0xff] %v1184
      %4119 = vst [vmem:[%s4085] ss:$4 sm:$0xff] %v1290
      %4120 = vst [vmem:[%s4087] ss:$4 sm:$0xff] %v1291
      %4121 = vst [vmem:[%s4089] ss:$4 sm:$0xff] %v1292
      %4122 = vst [vmem:[%s4091] ss:$4 sm:$0xff] %v1185
      %v4123 = vld.sshfl [vmem:[#allocation1] sm:$0xff pattern:$0x73625140]
      %v4124 = vld.sshfl [vmem:[#allocation1 + $0x20] sm:$0xff pattern:$0x73625140]
      %4125 = vst [vmem:[#allocation1] ss:$4 sm:$0xff] %v1294
      %4126 = vst [vmem:[%s4079] ss:$4 sm:$0xff] %v1295
      %4127 = vst [vmem:[%s4081] ss:$4 sm:$0xff] %v1186
      %4128 = vst [vmem:[%s4083] ss:$4 sm:$0xff] %v1296
      %4129 = vst [vmem:[%s4085] ss:$4 sm:$0xff] %v1297
      %4130 = vst [vmem:[%s4087] ss:$4 sm:$0xff] %v1298
      %4131 = vst [vmem:[%s4089] ss:$4 sm:$0xff] %v1187
      %4132 = vst [vmem:[%s4091] ss:$4 sm:$0xff] %v1299
      %v4133 = vld.sshfl [vmem:[#allocation1] sm:$0xff pattern:$0x73625140]
      %v4134 = vld.sshfl [vmem:[#allocation1 + $0x20] sm:$0xff pattern:$0x73625140]
      %4135 = vst [vmem:[#allocation1] ss:$4 sm:$0xff] %v1301
      %4136 = vst [vmem:[%s4079] ss:$4 sm:$0xff] %v1188
      %4137 = vst [vmem:[%s4081] ss:$4 sm:$0xff] %v1302
      %4138 = vst [vmem:[%s4083] ss:$4 sm:$0xff] %v1303
      %4139 = vst [vmem:[%s4085] ss:$4 sm:$0xff] %v1304
      %4140 = vst [vmem:[%s4087] ss:$4 sm:$0xff] %v1189
      %4141 = vst [vmem:[%s4089] ss:$4 sm:$0xff] %v1305
      %4142 = vst [vmem:[%s4091] ss:$4 sm:$0xff] %v1306
      %v4143 = vld.sshfl [vmem:[#allocation1] sm:$0xff pattern:$0x73625140]
      %v4144 = vld.sshfl [vmem:[#allocation1 + $0x20] sm:$0xff pattern:$0x73625140]
      %4145 = vst [vmem:[#allocation1] ss:$4 sm:$0xff] %v1190
      %4146 = vst [vmem:[%s4079] ss:$4 sm:$0xff] %v1308
      %4147 = vst [vmem:[%s4081] ss:$4 sm:$0xff] %v1309
      %4148 = vst [vmem:[%s4083] ss:$4 sm:$0xff] %v1310
      %4149 = vst [vmem:[%s4085] ss:$4 sm:$0xff] %v1191
      %4150 = vst [vmem:[%s4087] ss:$4 sm:$0xff] %v1311
      %4151 = vst [vmem:[%s4089] ss:$4 sm:$0xff] %v1312
      %4152 = vst [vmem:[%s4091] ss:$4 sm:$0xff] %v1313
      %v4153 = vld.sshfl [vmem:[#allocation1] sm:$0xff pattern:$0x73625140]
      %v4154 = vld.sshfl [vmem:[#allocation1 + $0x20] sm:$0xff pattern:$0x73625140]
      %4155 = vst [vmem:[#allocation1] ss:$4 sm:$0xff] %v1314
      %4156 = vst [vmem:[%s4079] ss:$4 sm:$0xff] %v1315
      %4157 = vst [vmem:[%s4081] ss:$4 sm:$0xff] %v1316
      %4158 = vst [vmem:[%s4083] ss:$4 sm:$0xff] %v1193
      %4159 = vst [vmem:[%s4085] ss:$4 sm:$0xff] %v1317
      %4160 = vst [vmem:[%s4087] ss:$4 sm:$0xff] %v1318
      %4161 = vst [vmem:[%s4089] ss:$4 sm:$0xff] %v1319
      %4162 = vst [vmem:[%s4091] ss:$4 sm:$0xff] %v1194
      %v4163 = vld.sshfl [vmem:[#allocation1] sm:$0xff pattern:$0x73625140]
      %v4164 = vld.sshfl [vmem:[#allocation1 + $0x20] sm:$0xff pattern:$0x73625140]
      %4165 = vst [vmem:[#allocation1] ss:$4 sm:$0xff] %v1321
      %4166 = vst [vmem:[%s4079] ss:$4 sm:$0xff] %v1322
      %4167 = vst [vmem:[%s4081] ss:$4 sm:$0xff] %v1195
      %4168 = vst [vmem:[%s4083] ss:$4 sm:$0xff] %v1323
      %4169 = vst [vmem:[%s4085] ss:$4 sm:$0xff] %v1324
      %4170 = vst [vmem:[%s4087] ss:$4 sm:$0xff] %v1325
      %4171 = vst [vmem:[%s4089] ss:$4 sm:$0xff] %v1196
      %4172 = vst [vmem:[%s4091] ss:$4 sm:$0xff] %v1326
      %v4173 = vld.sshfl [vmem:[#allocation1] sm:$0xff pattern:$0x73625140]
      %v4174 = vld.sshfl [vmem:[#allocation1 + $0x20] sm:$0xff pattern:$0x73625140]
      %4175 = vst [vmem:[#allocation1] ss:$4 sm:$0xff] %v1328
      %4176 = vst [vmem:[%s4079] ss:$4 sm:$0xff] %v1197
      %4177 = vst [vmem:[%s4081] ss:$4 sm:$0xff] %v1329
      %4178 = vst [vmem:[%s4083] ss:$4 sm:$0xff] %v1330
      %4179 = vst [vmem:[%s4085] ss:$4 sm:$0xff] %v1331
      %4180 = vst [vmem:[%s4087] ss:$4 sm:$0xff] %v1198
      %4181 = vst [vmem:[%s4089] ss:$4 sm:$0xff] %v1332
      %4182 = vst [vmem:[%s4091] ss:$4 sm:$0xff] %v1333
      %v4183 = vld.sshfl [vmem:[#allocation1] sm:$0xff pattern:$0x73625140]
      %v4184 = vld.sshfl [vmem:[#allocation1 + $0x20] sm:$0xff pattern:$0x73625140]
      %4185 = vst [vmem:[#allocation1] ss:$4 sm:$0xff] %v1199
      %4186 = vst [vmem:[%s4079] ss:$4 sm:$0xff] %v1335
      %4187 = vst [vmem:[%s4081] ss:$4 sm:$0xff] %v1336
      %4188 = vst [vmem:[%s4083] ss:$4 sm:$0xff] %v1337
      %4189 = vst [vmem:[%s4085] ss:$4 sm:$0xff] %v1200
      %4190 = vst [vmem:[%s4087] ss:$4 sm:$0xff] %v1338
      %4191 = vst [vmem:[%s4089] ss:$4 sm:$0xff] %v1339
      %4192 = vst [vmem:[%s4091] ss:$4 sm:$0xff] %v1340
      %v4193 = vld.sshfl [vmem:[#allocation1] sm:$0xff pattern:$0x73625140]
      %v4194 = vld.sshfl [vmem:[#allocation1 + $0x20] sm:$0xff pattern:$0x73625140]
      %4195 = vst [vmem:[#allocation1] ss:$4 sm:$0xff] %v1341
      %4196 = vst [vmem:[%s4079] ss:$4 sm:$0xff] %v1342
      %4197 = vst [vmem:[%s4081] ss:$4 sm:$0xff] %v1343
      %4198 = vst [vmem:[%s4083] ss:$4 sm:$0xff] %v1202
      %4199 = vst [vmem:[%s4085] ss:$4 sm:$0xff] %v1344
      %4200 = vst [vmem:[%s4087] ss:$4 sm:$0xff] %v1345
      %4201 = vst [vmem:[%s4089] ss:$4 sm:$0xff] %v1346
      %4202 = vst [vmem:[%s4091] ss:$4 sm:$0xff] %v1203
      %v4203 = vld.sshfl [vmem:[#allocation1] sm:$0xff pattern:$0x73625140]
      %v4204 = vld.sshfl [vmem:[#allocation1 + $0x20] sm:$0xff pattern:$0x73625140]
      %4205 = vst [vmem:[#allocation1] ss:$4 sm:$0xff] %v1348
      %4206 = vst [vmem:[%s4079] ss:$4 sm:$0xff] %v1349
      %4207 = vst [vmem:[%s4081] ss:$4 sm:$0xff] %v1204
      %4208 = vst [vmem:[%s4083] ss:$4 sm:$0xff] %v1350
      %4209 = vst [vmem:[%s4085] ss:$4 sm:$0xff] %v1351
      %4210 = vst [vmem:[%s4087] ss:$4 sm:$0xff] %v1352
      %4211 = vst [vmem:[%s4089] ss:$4 sm:$0xff] %v1205
      %4212 = vst [vmem:[%s4091] ss:$4 sm:$0xff] %v1353
      %v4213 = vld.sshfl [vmem:[#allocation1] sm:$0xff pattern:$0x73625140]
      %v4214 = vld.sshfl [vmem:[#allocation1 + $0x20] sm:$0xff pattern:$0x73625140]
      %4215 = vst [vmem:[#allocation1] ss:$4 sm:$0xff] %v1355
      %4216 = vst [vmem:[%s4079] ss:$4 sm:$0xff] %v1206
      %4217 = vst [vmem:[%s4081] ss:$4 sm:$0xff] %v1356
      %4218 = vst [vmem:[%s4083] ss:$4 sm:$0xff] %v1357
      %4219 = vst [vmem:[%s4085] ss:$4 sm:$0xff] %v1358
      %4220 = vst [vmem:[%s4087] ss:$4 sm:$0xff] %v1207
      %4221 = vst [vmem:[%s4089] ss:$4 sm:$0xff] %v1359
      %4222 = vst [vmem:[%s4091] ss:$4 sm:$0xff] %v1360
      %v4223 = vld.sshfl [vmem:[#allocation1] sm:$0xff pattern:$0x73625140]
      %v4224 = vld.sshfl [vmem:[#allocation1 + $0x20] sm:$0xff pattern:$0x73625140]
      %4225 = vst [vmem:[#allocation1] ss:$4 sm:$0xff] %v1208
      %4226 = vst [vmem:[%s4079] ss:$4 sm:$0xff] %v1362
      %4227 = vst [vmem:[%s4081] ss:$4 sm:$0xff] %v1363
      %4228 = vst [vmem:[%s4083] ss:$4 sm:$0xff] %v1364
      %4229 = vst [vmem:[%s4085] ss:$4 sm:$0xff] %v1209
      %4230 = vst [vmem:[%s4087] ss:$4 sm:$0xff] %v1365
      %4231 = vst [vmem:[%s4089] ss:$4 sm:$0xff] %v1366
      %4232 = vst [vmem:[%s4091] ss:$4 sm:$0xff] %v1367
      %v4233 = vld.sshfl [vmem:[#allocation1] sm:$0xff pattern:$0x73625140]
      %v4234 = vld.sshfl [vmem:[#allocation1 + $0x20] sm:$0xff pattern:$0x73625140]
      %4235 = vst [vmem:[#allocation1] ss:$4 sm:$0xff] %v1368
      %4236 = vst [vmem:[%s4079] ss:$4 sm:$0xff] %v1369
      %4237 = vst [vmem:[%s4081] ss:$4 sm:$0xff] %v1370
      %4238 = vst [vmem:[%s4083] ss:$4 sm:$0xff] %v1211
      %4239 = vst [vmem:[%s4085] ss:$4 sm:$0xff] %v1371
      %4240 = vst [vmem:[%s4087] ss:$4 sm:$0xff] %v1372
      %4241 = vst [vmem:[%s4089] ss:$4 sm:$0xff] %v1373
      %4242 = vst [vmem:[%s4091] ss:$4 sm:$0xff] %v1212
      %v4243 = vld.sshfl [vmem:[#allocation1] sm:$0xff pattern:$0x73625140]
      %v4244 = vld.sshfl [vmem:[#allocation1 + $0x20] sm:$0xff pattern:$0x73625140]
      %v4277 = vpack.c.bf16 %v4094, %v4093
      %v4278 = vpack.c.bf16 %v4104, %v4103
      %v4279 = vpack.c.bf16 %v4114, %v4113
      %v4280 = vpack.c.bf16 %v4124, %v4123
      %v4281 = vpack.c.bf16 %v4134, %v4133
      %v4282 = vpack.c.bf16 %v4144, %v4143
      %v4283 = vpack.c.bf16 %v4154, %v4153
      %v4284 = vpack.c.bf16 %v4164, %v4163
      %v4285 = vpack.c.bf16 %v4174, %v4173
      %v4286 = vpack.c.bf16 %v4184, %v4183
      %v4287 = vpack.c.bf16 %v4194, %v4193
      %v4288 = vpack.c.bf16 %v4204, %v4203
      %v4289 = vpack.c.bf16 %v4214, %v4213
      %v4290 = vpack.c.bf16 %v4224, %v4223
      %v4291 = vpack.c.bf16 %v4234, %v4233
      %v4292 = vpack.c.bf16 %v4244, %v4243
      %s4293 = scalar_lea.vmem %s3, 24
      %v4294 = vld [vmem:[%s4293] sm:$0xf]
      %v4296 = vsel %vm2215, %v4277, 0
      %v4299 = vsel %vm2215, %v4278, 0
      %v4302 = vsel %vm2215, %v4279, 0
      %v4305 = vsel %vm2215, %v4280, 0
      %v4308 = vsel %vm2215, %v4281, 0
      %v4311 = vsel %vm2215, %v4282, 0
      %v4314 = vsel %vm2215, %v4283, 0
      %v4317 = vsel %vm2215, %v4284, 0
      %v4320 = vsel %vm2215, %v4285, 0
      %v4323 = vsel %vm2215, %v4286, 0
      %v4326 = vsel %vm2215, %v4287, 0
      %v4329 = vsel %vm2215, %v4288, 0
      %v4332 = vsel %vm2215, %v4289, 0
      %v4335 = vsel %vm2215, %v4290, 0
      %v4338 = vsel %vm2215, %v4291, 0
      %v4341 = vsel %vm2215, %v4292, 0
      %v4344 = vsel %vm2264, %v4294, 0
      %4346 = vmatpush.bf16.msra.mxu0 0
      %4347 = vmatpush.bf16.msra.mxu0 0
      %4348 = vmatpush.bf16.msra.mxu0 0
      %4349 = vmatpush.bf16.msra.mxu0 0
      %4350 = vmatpush.bf16.msra.mxu0 0
      %4351 = vmatpush.bf16.msra.mxu0 0
      %4352 = vmatpush.bf16.msra.mxu0 0
      %4353 = vmatpush.bf16.msra.mxu0 %v4344
      %4354 = vmatmul.bf16.gmra.mxu0 %v4296
      %v4355 = vpop.f32.mrf.mxu0
      %v4356 = vadd.f32 0.0, %v4355
      %v4357 = vpop.f32.mrf.mxu0
      %v4358 = vadd.f32 0.0, %v4357
      %4359 = vmatmul.bf16.gmra.mxu0 %v4299
      %v4360 = vpop.f32.mrf.mxu0
      %v4361 = vadd.f32 0.0, %v4360
      %v4362 = vpop.f32.mrf.mxu0
      %v4363 = vadd.f32 0.0, %v4362
      %4364 = vmatmul.bf16.gmra.mxu0 %v4302
      %v4365 = vpop.f32.mrf.mxu0
      %v4366 = vadd.f32 0.0, %v4365
      %v4367 = vpop.f32.mrf.mxu0
      %v4368 = vadd.f32 0.0, %v4367
      %4369 = vmatmul.bf16.gmra.mxu0 %v4305
      %v4370 = vpop.f32.mrf.mxu0
      %v4371 = vadd.f32 0.0, %v4370
      %v4372 = vpop.f32.mrf.mxu0
      %v4373 = vadd.f32 0.0, %v4372
      %4374 = vmatmul.bf16.gmra.mxu0 %v4308
      %v4375 = vpop.f32.mrf.mxu0
      %v4376 = vadd.f32 0.0, %v4375
      %v4377 = vpop.f32.mrf.mxu0
      %v4378 = vadd.f32 0.0, %v4377
      %4379 = vmatmul.bf16.gmra.mxu0 %v4311
      %v4380 = vpop.f32.mrf.mxu0
      %v4381 = vadd.f32 0.0, %v4380
      %v4382 = vpop.f32.mrf.mxu0
      %v4383 = vadd.f32 0.0, %v4382
      %4384 = vmatmul.bf16.gmra.mxu0 %v4314
      %v4385 = vpop.f32.mrf.mxu0
      %v4386 = vadd.f32 0.0, %v4385
      %v4387 = vpop.f32.mrf.mxu0
      %v4388 = vadd.f32 0.0, %v4387
      %4389 = vmatmul.bf16.gmra.mxu0 %v4317
      %v4390 = vpop.f32.mrf.mxu0
      %v4391 = vadd.f32 0.0, %v4390
      %v4392 = vpop.f32.mrf.mxu0
      %v4393 = vadd.f32 0.0, %v4392
      %4394 = vmatmul.bf16.gmra.mxu0 %v4320
      %v4395 = vpop.f32.mrf.mxu0
      %v4396 = vadd.f32 0.0, %v4395
      %v4397 = vpop.f32.mrf.mxu0
      %v4398 = vadd.f32 0.0, %v4397
      %4399 = vmatmul.bf16.gmra.mxu0 %v4323
      %v4400 = vpop.f32.mrf.mxu0
      %v4401 = vadd.f32 0.0, %v4400
      %v4402 = vpop.f32.mrf.mxu0
      %v4403 = vadd.f32 0.0, %v4402
      %4404 = vmatmul.bf16.gmra.mxu0 %v4326
      %v4405 = vpop.f32.mrf.mxu0
      %v4406 = vadd.f32 0.0, %v4405
      %v4407 = vpop.f32.mrf.mxu0
      %v4408 = vadd.f32 0.0, %v4407
      %4409 = vmatmul.bf16.gmra.mxu0 %v4329
      %v4410 = vpop.f32.mrf.mxu0
      %v4411 = vadd.f32 0.0, %v4410
      %v4412 = vpop.f32.mrf.mxu0
      %v4413 = vadd.f32 0.0, %v4412
      %4414 = vmatmul.bf16.gmra.mxu0 %v4332
      %v4415 = vpop.f32.mrf.mxu0
      %v4416 = vadd.f32 0.0, %v4415
      %v4417 = vpop.f32.mrf.mxu0
      %v4418 = vadd.f32 0.0, %v4417
      %4419 = vmatmul.bf16.gmra.mxu0 %v4335
      %v4420 = vpop.f32.mrf.mxu0
      %v4421 = vadd.f32 0.0, %v4420
      %v4422 = vpop.f32.mrf.mxu0
      %v4423 = vadd.f32 0.0, %v4422
      %4424 = vmatmul.bf16.gmra.mxu0 %v4338
      %v4425 = vpop.f32.mrf.mxu0
      %v4426 = vadd.f32 0.0, %v4425
      %v4427 = vpop.f32.mrf.mxu0
      %v4428 = vadd.f32 0.0, %v4427
      %4429 = vmatmul.bf16.gmra.mxu0 %v4341
      %v4430 = vpop.f32.mrf.mxu0
      %v4431 = vadd.f32 0.0, %v4430
      %v4432 = vpop.f32.mrf.mxu0
      %v4433 = vadd.f32 0.0, %v4432
      %4434 = vdwg.mxu0
      %v4435 = vadd.f32 %v4046, %v4356
      %v4436 = vadd.f32 %v4047, %v4358
      %v4437 = vadd.f32 %v4048, %v4361
      %v4438 = vadd.f32 %v4049, %v4363
      %v4439 = vadd.f32 %v4050, %v4366
      %v4440 = vadd.f32 %v4051, %v4368
      %v4441 = vadd.f32 %v4052, %v4371
      %v4442 = vadd.f32 %v4053, %v4373
      %v4443 = vadd.f32 %v4054, %v4376
      %v4444 = vadd.f32 %v4055, %v4378
      %v4445 = vadd.f32 %v4056, %v4381
      %v4446 = vadd.f32 %v4057, %v4383
      %v4447 = vadd.f32 %v4058, %v4386
      %v4448 = vadd.f32 %v4059, %v4388
      %v4449 = vadd.f32 %v4060, %v4391
      %v4450 = vadd.f32 %v4061, %v4393
      %v4451 = vadd.f32 %v4062, %v4396
      %v4452 = vadd.f32 %v4063, %v4398
      %v4453 = vadd.f32 %v4064, %v4401
      %v4454 = vadd.f32 %v4065, %v4403
      %v4455 = vadd.f32 %v4066, %v4406
      %v4456 = vadd.f32 %v4067, %v4408
      %v4457 = vadd.f32 %v4068, %v4411
      %v4458 = vadd.f32 %v4069, %v4413
      %v4459 = vadd.f32 %v4070, %v4416
      %v4460 = vadd.f32 %v4071, %v4418
      %v4461 = vadd.f32 %v4072, %v4421
      %v4462 = vadd.f32 %v4073, %v4423
      %v4463 = vadd.f32 %v4074, %v4426
      %v4464 = vadd.f32 %v4075, %v4428
      %v4465 = vadd.f32 %v4076, %v4431
      %v4466 = vadd.f32 %v4077, %v4433
      %v4467 = vrot.slane %v1368, 7
      %v4468 = vrot.slane %v4467, 2
      %v4469 = vrot.slane %v1369, 7
      %v4470 = vsel %vm1597, %v4468, %v4469
      %v4471 = vrot.slane %v4469, 2
      %v4472 = vrot.slane %v1370, 7
      %v4473 = vsel %vm1597, %v4471, %v4472
      %v4474 = vrot.slane %v4472, 2
      %v4475 = vrot.slane %v1211, 7
      %v4476 = vsel %vm1597, %v4474, %v4475
      %v4477 = vrot.slane %v4475, 2
      %v4478 = vrot.slane %v1371, 7
      %v4479 = vsel %vm1597, %v4477, %v4478
      %v4480 = vrot.slane %v4478, 2
      %v4481 = vrot.slane %v1372, 7
      %v4482 = vsel %vm1597, %v4480, %v4481
      %v4483 = vrot.slane %v4481, 2
      %v4484 = vrot.slane %v1373, 7
      %v4485 = vsel %vm1597, %v4483, %v4484
      %v4486 = vrot.slane %v4484, 2
      %v4487 = vrot.slane %v1212, 7
      %v4488 = vsel %vm1597, %v4486, %v4487
      %v4489 = vrot.slane %v4487, 2
      %v4490 = vrot.slane %v1374, 7
      %v4491 = vsel %vm1597, %v4489, %v4490
      %4492 = vst [vmem:[#allocation1] ss:$4 sm:$0xff] %v1651
      %s4493 = scalar_lea.vmem [#allocation1], 1
      %4494 = vst [vmem:[%s4493] ss:$4 sm:$0xff] %v1654
      %s4495 = scalar_lea.vmem [#allocation1], 2
      %4496 = vst [vmem:[%s4495] ss:$4 sm:$0xff] %v1657
      %s4497 = scalar_lea.vmem [#allocation1], 3
      %4498 = vst [vmem:[%s4497] ss:$4 sm:$0xff] %v1660
      %s4499 = scalar_lea.vmem [#allocation1], 32
      %4500 = vst [vmem:[%s4499] ss:$4 sm:$0xff] %v1663
      %s4501 = scalar_lea.vmem [#allocation1], 33
      %4502 = vst [vmem:[%s4501] ss:$4 sm:$0xff] %v1666
      %s4503 = scalar_lea.vmem [#allocation1], 34
      %4504 = vst [vmem:[%s4503] ss:$4 sm:$0xff] %v1669
      %s4505 = scalar_lea.vmem [#allocation1], 35
      %4506 = vst [vmem:[%s4505] ss:$4 sm:$0xff] %v1672
      %v4507 = vld.sshfl [vmem:[#allocation1] sm:$0xff pattern:$0x73625140]
      %v4508 = vld.sshfl [vmem:[#allocation1 + $0x20] sm:$0xff pattern:$0x73625140]
      %4509 = vst [vmem:[#allocation1] ss:$4 sm:$0xff] %v1676
      %4510 = vst [vmem:[%s4493] ss:$4 sm:$0xff] %v1679
      %4511 = vst [vmem:[%s4495] ss:$4 sm:$0xff] %v1682
      %4512 = vst [vmem:[%s4497] ss:$4 sm:$0xff] %v1685
      %4513 = vst [vmem:[%s4499] ss:$4 sm:$0xff] %v1688
      %4514 = vst [vmem:[%s4501] ss:$4 sm:$0xff] %v1691
      %4515 = vst [vmem:[%s4503] ss:$4 sm:$0xff] %v1694
      %4516 = vst [vmem:[%s4505] ss:$4 sm:$0xff] %v1697
      %v4517 = vld.sshfl [vmem:[#allocation1] sm:$0xff pattern:$0x73625140]
      %v4518 = vld.sshfl [vmem:[#allocation1 + $0x20] sm:$0xff pattern:$0x73625140]
      %4519 = vst [vmem:[#allocation1] ss:$4 sm:$0xff] %v1701
      %4520 = vst [vmem:[%s4493] ss:$4 sm:$0xff] %v1704
      %4521 = vst [vmem:[%s4495] ss:$4 sm:$0xff] %v1707
      %4522 = vst [vmem:[%s4497] ss:$4 sm:$0xff] %v1710
      %4523 = vst [vmem:[%s4499] ss:$4 sm:$0xff] %v1713
      %4524 = vst [vmem:[%s4501] ss:$4 sm:$0xff] %v1716
      %4525 = vst [vmem:[%s4503] ss:$4 sm:$0xff] %v1719
      %4526 = vst [vmem:[%s4505] ss:$4 sm:$0xff] %v1722
      %v4527 = vld.sshfl [vmem:[#allocation1] sm:$0xff pattern:$0x73625140]
      %v4528 = vld.sshfl [vmem:[#allocation1 + $0x20] sm:$0xff pattern:$0x73625140]
      %4529 = vst [vmem:[#allocation1] ss:$4 sm:$0xff] %v1726
      %4530 = vst [vmem:[%s4493] ss:$4 sm:$0xff] %v1729
      %4531 = vst [vmem:[%s4495] ss:$4 sm:$0xff] %v1732
      %4532 = vst [vmem:[%s4497] ss:$4 sm:$0xff] %v1735
      %4533 = vst [vmem:[%s4499] ss:$4 sm:$0xff] %v1738
      %4534 = vst [vmem:[%s4501] ss:$4 sm:$0xff] %v1741
      %4535 = vst [vmem:[%s4503] ss:$4 sm:$0xff] %v1744
      %4536 = vst [vmem:[%s4505] ss:$4 sm:$0xff] %v1747
      %v4537 = vld.sshfl [vmem:[#allocation1] sm:$0xff pattern:$0x73625140]
      %v4538 = vld.sshfl [vmem:[#allocation1 + $0x20] sm:$0xff pattern:$0x73625140]
      %4539 = vst [vmem:[#allocation1] ss:$4 sm:$0xff] %v1751
      %4540 = vst [vmem:[%s4493] ss:$4 sm:$0xff] %v1754
      %4541 = vst [vmem:[%s4495] ss:$4 sm:$0xff] %v1757
      %4542 = vst [vmem:[%s4497] ss:$4 sm:$0xff] %v1760
      %4543 = vst [vmem:[%s4499] ss:$4 sm:$0xff] %v1763
      %4544 = vst [vmem:[%s4501] ss:$4 sm:$0xff] %v1766
      %4545 = vst [vmem:[%s4503] ss:$4 sm:$0xff] %v1769
      %4546 = vst [vmem:[%s4505] ss:$4 sm:$0xff] %v1772
      %v4547 = vld.sshfl [vmem:[#allocation1] sm:$0xff pattern:$0x73625140]
      %v4548 = vld.sshfl [vmem:[#allocation1 + $0x20] sm:$0xff pattern:$0x73625140]
      %4549 = vst [vmem:[#allocation1] ss:$4 sm:$0xff] %v1776
      %4550 = vst [vmem:[%s4493] ss:$4 sm:$0xff] %v1779
      %4551 = vst [vmem:[%s4495] ss:$4 sm:$0xff] %v1782
      %4552 = vst [vmem:[%s4497] ss:$4 sm:$0xff] %v1785
      %4553 = vst [vmem:[%s4499] ss:$4 sm:$0xff] %v1788
      %4554 = vst [vmem:[%s4501] ss:$4 sm:$0xff] %v1791
      %4555 = vst [vmem:[%s4503] ss:$4 sm:$0xff] %v1794
      %4556 = vst [vmem:[%s4505] ss:$4 sm:$0xff] %v1797
      %v4557 = vld.sshfl [vmem:[#allocation1] sm:$0xff pattern:$0x73625140]
      %v4558 = vld.sshfl [vmem:[#allocation1 + $0x20] sm:$0xff pattern:$0x73625140]
      %4559 = vst [vmem:[#allocation1] ss:$4 sm:$0xff] %v1801
      %4560 = vst [vmem:[%s4493] ss:$4 sm:$0xff] %v1804
      %4561 = vst [vmem:[%s4495] ss:$4 sm:$0xff] %v1807
      %4562 = vst [vmem:[%s4497] ss:$4 sm:$0xff] %v1810
      %4563 = vst [vmem:[%s4499] ss:$4 sm:$0xff] %v1813
      %4564 = vst [vmem:[%s4501] ss:$4 sm:$0xff] %v1816
      %4565 = vst [vmem:[%s4503] ss:$4 sm:$0xff] %v1819
      %4566 = vst [vmem:[%s4505] ss:$4 sm:$0xff] %v1822
      %v4567 = vld.sshfl [vmem:[#allocation1] sm:$0xff pattern:$0x73625140]
      %v4568 = vld.sshfl [vmem:[#allocation1 + $0x20] sm:$0xff pattern:$0x73625140]
      %4569 = vst [vmem:[#allocation1] ss:$4 sm:$0xff] %v1826
      %4570 = vst [vmem:[%s4493] ss:$4 sm:$0xff] %v1829
      %4571 = vst [vmem:[%s4495] ss:$4 sm:$0xff] %v1832
      %4572 = vst [vmem:[%s4497] ss:$4 sm:$0xff] %v1835
      %4573 = vst [vmem:[%s4499] ss:$4 sm:$0xff] %v1838
      %4574 = vst [vmem:[%s4501] ss:$4 sm:$0xff] %v1841
      %4575 = vst [vmem:[%s4503] ss:$4 sm:$0xff] %v1844
      %4576 = vst [vmem:[%s4505] ss:$4 sm:$0xff] %v1847
      %v4577 = vld.sshfl [vmem:[#allocation1] sm:$0xff pattern:$0x73625140]
      %v4578 = vld.sshfl [vmem:[#allocation1 + $0x20] sm:$0xff pattern:$0x73625140]
      %4579 = vst [vmem:[#allocation1] ss:$4 sm:$0xff] %v1851
      %4580 = vst [vmem:[%s4493] ss:$4 sm:$0xff] %v1854
      %4581 = vst [vmem:[%s4495] ss:$4 sm:$0xff] %v1857
      %4582 = vst [vmem:[%s4497] ss:$4 sm:$0xff] %v1860
      %4583 = vst [vmem:[%s4499] ss:$4 sm:$0xff] %v1863
      %4584 = vst [vmem:[%s4501] ss:$4 sm:$0xff] %v1866
      %4585 = vst [vmem:[%s4503] ss:$4 sm:$0xff] %v1869
      %4586 = vst [vmem:[%s4505] ss:$4 sm:$0xff] %v1872
      %v4587 = vld.sshfl [vmem:[#allocation1] sm:$0xff pattern:$0x73625140]
      %v4588 = vld.sshfl [vmem:[#allocation1 + $0x20] sm:$0xff pattern:$0x73625140]
      %4589 = vst [vmem:[#allocation1] ss:$4 sm:$0xff] %v1876
      %4590 = vst [vmem:[%s4493] ss:$4 sm:$0xff] %v1879
      %4591 = vst [vmem:[%s4495] ss:$4 sm:$0xff] %v1882
      %4592 = vst [vmem:[%s4497] ss:$4 sm:$0xff] %v1885
      %4593 = vst [vmem:[%s4499] ss:$4 sm:$0xff] %v1888
      %4594 = vst [vmem:[%s4501] ss:$4 sm:$0xff] %v1891
      %4595 = vst [vmem:[%s4503] ss:$4 sm:$0xff] %v1894
      %4596 = vst [vmem:[%s4505] ss:$4 sm:$0xff] %v1897
      %v4597 = vld.sshfl [vmem:[#allocation1] sm:$0xff pattern:$0x73625140]
      %v4598 = vld.sshfl [vmem:[#allocation1 + $0x20] sm:$0xff pattern:$0x73625140]
      %4599 = vst [vmem:[#allocation1] ss:$4 sm:$0xff] %v1901
      %4600 = vst [vmem:[%s4493] ss:$4 sm:$0xff] %v1904
      %4601 = vst [vmem:[%s4495] ss:$4 sm:$0xff] %v1907
      %4602 = vst [vmem:[%s4497] ss:$4 sm:$0xff] %v1910
      %4603 = vst [vmem:[%s4499] ss:$4 sm:$0xff] %v1913
      %4604 = vst [vmem:[%s4501] ss:$4 sm:$0xff] %v1916
      %4605 = vst [vmem:[%s4503] ss:$4 sm:$0xff] %v1919
      %4606 = vst [vmem:[%s4505] ss:$4 sm:$0xff] %v1922
      %v4607 = vld.sshfl [vmem:[#allocation1] sm:$0xff pattern:$0x73625140]
      %v4608 = vld.sshfl [vmem:[#allocation1 + $0x20] sm:$0xff pattern:$0x73625140]
      %4609 = vst [vmem:[#allocation1] ss:$4 sm:$0xff] %v1926
      %4610 = vst [vmem:[%s4493] ss:$4 sm:$0xff] %v1929
      %4611 = vst [vmem:[%s4495] ss:$4 sm:$0xff] %v1932
      %4612 = vst [vmem:[%s4497] ss:$4 sm:$0xff] %v1935
      %4613 = vst [vmem:[%s4499] ss:$4 sm:$0xff] %v1938
      %4614 = vst [vmem:[%s4501] ss:$4 sm:$0xff] %v1941
      %4615 = vst [vmem:[%s4503] ss:$4 sm:$0xff] %v1944
      %4616 = vst [vmem:[%s4505] ss:$4 sm:$0xff] %v1947
      %v4617 = vld.sshfl [vmem:[#allocation1] sm:$0xff pattern:$0x73625140]
      %v4618 = vld.sshfl [vmem:[#allocation1 + $0x20] sm:$0xff pattern:$0x73625140]
      %4619 = vst [vmem:[#allocation1] ss:$4 sm:$0xff] %v1951
      %4620 = vst [vmem:[%s4493] ss:$4 sm:$0xff] %v1954
      %4621 = vst [vmem:[%s4495] ss:$4 sm:$0xff] %v1957
      %4622 = vst [vmem:[%s4497] ss:$4 sm:$0xff] %v1960
      %4623 = vst [vmem:[%s4499] ss:$4 sm:$0xff] %v1963
      %4624 = vst [vmem:[%s4501] ss:$4 sm:$0xff] %v1966
      %4625 = vst [vmem:[%s4503] ss:$4 sm:$0xff] %v1969
      %4626 = vst [vmem:[%s4505] ss:$4 sm:$0xff] %v1972
      %v4627 = vld.sshfl [vmem:[#allocation1] sm:$0xff pattern:$0x73625140]
      %v4628 = vld.sshfl [vmem:[#allocation1 + $0x20] sm:$0xff pattern:$0x73625140]
      %4629 = vst [vmem:[#allocation1] ss:$4 sm:$0xff] %v1976
      %4630 = vst [vmem:[%s4493] ss:$4 sm:$0xff] %v1979
      %4631 = vst [vmem:[%s4495] ss:$4 sm:$0xff] %v1982
      %4632 = vst [vmem:[%s4497] ss:$4 sm:$0xff] %v1985
      %4633 = vst [vmem:[%s4499] ss:$4 sm:$0xff] %v1988
      %4634 = vst [vmem:[%s4501] ss:$4 sm:$0xff] %v1991
      %4635 = vst [vmem:[%s4503] ss:$4 sm:$0xff] %v1994
      %4636 = vst [vmem:[%s4505] ss:$4 sm:$0xff] %v1997
      %v4637 = vld.sshfl [vmem:[#allocation1] sm:$0xff pattern:$0x73625140]
      %v4638 = vld.sshfl [vmem:[#allocation1 + $0x20] sm:$0xff pattern:$0x73625140]
      %4639 = vst [vmem:[#allocation1] ss:$4 sm:$0xff] %v3278
      %4640 = vst [vmem:[%s4493] ss:$4 sm:$0xff] %v3281
      %4641 = vst [vmem:[%s4495] ss:$4 sm:$0xff] %v3284
      %4642 = vst [vmem:[%s4497] ss:$4 sm:$0xff] %v3287
      %4643 = vst [vmem:[%s4499] ss:$4 sm:$0xff] %v3290
      %4644 = vst [vmem:[%s4501] ss:$4 sm:$0xff] %v3293
      %4645 = vst [vmem:[%s4503] ss:$4 sm:$0xff] %v3296
      %4646 = vst [vmem:[%s4505] ss:$4 sm:$0xff] %v3299
      %v4647 = vld.sshfl [vmem:[#allocation1] sm:$0xff pattern:$0x73625140]
      %v4648 = vld.sshfl [vmem:[#allocation1 + $0x20] sm:$0xff pattern:$0x73625140]
      %4649 = vst [vmem:[#allocation1] ss:$4 sm:$0xff] %v4470
      %4650 = vst [vmem:[%s4493] ss:$4 sm:$0xff] %v4473
      %4651 = vst [vmem:[%s4495] ss:$4 sm:$0xff] %v4476
      %4652 = vst [vmem:[%s4497] ss:$4 sm:$0xff] %v4479
      %4653 = vst [vmem:[%s4499] ss:$4 sm:$0xff] %v4482
      %4654 = vst [vmem:[%s4501] ss:$4 sm:$0xff] %v4485
      %4655 = vst [vmem:[%s4503] ss:$4 sm:$0xff] %v4488
      %4656 = vst [vmem:[%s4505] ss:$4 sm:$0xff] %v4491
      %v4657 = vld.sshfl [vmem:[#allocation1] sm:$0xff pattern:$0x73625140]
      %v4658 = vld.sshfl [vmem:[#allocation1 + $0x20] sm:$0xff pattern:$0x73625140]
      %v4691 = vpack.c.bf16 %v4508, %v4507
      %v4692 = vpack.c.bf16 %v4518, %v4517
      %v4693 = vpack.c.bf16 %v4528, %v4527
      %v4694 = vpack.c.bf16 %v4538, %v4537
      %v4695 = vpack.c.bf16 %v4548, %v4547
      %v4696 = vpack.c.bf16 %v4558, %v4557
      %v4697 = vpack.c.bf16 %v4568, %v4567
      %v4698 = vpack.c.bf16 %v4578, %v4577
      %v4699 = vpack.c.bf16 %v4588, %v4587
      %v4700 = vpack.c.bf16 %v4598, %v4597
      %v4701 = vpack.c.bf16 %v4608, %v4607
      %v4702 = vpack.c.bf16 %v4618, %v4617
      %v4703 = vpack.c.bf16 %v4628, %v4627
      %v4704 = vpack.c.bf16 %v4638, %v4637
      %v4705 = vpack.c.bf16 %v4648, %v4647
      %v4706 = vpack.c.bf16 %v4658, %v4657
      %s4707 = scalar_lea.vmem %s3, 28
      %v4708 = vld [vmem:[%s4707] sm:$0xf]
      %v4710 = vsel %vm2215, %v4691, 0
      %v4713 = vsel %vm2215, %v4692, 0
      %v4716 = vsel %vm2215, %v4693, 0
      %v4719 = vsel %vm2215, %v4694, 0
      %v4722 = vsel %vm2215, %v4695, 0
      %v4725 = vsel %vm2215, %v4696, 0
      %v4728 = vsel %vm2215, %v4697, 0
      %v4731 = vsel %vm2215, %v4698, 0
      %v4734 = vsel %vm2215, %v4699, 0
      %v4737 = vsel %vm2215, %v4700, 0
      %v4740 = vsel %vm2215, %v4701, 0
      %v4743 = vsel %vm2215, %v4702, 0
      %v4746 = vsel %vm2215, %v4703, 0
      %v4749 = vsel %vm2215, %v4704, 0
      %v4752 = vsel %vm2215, %v4705, 0
      %v4755 = vsel %vm2215, %v4706, 0
      %v4758 = vsel %vm2264, %v4708, 0
      %4760 = vmatpush.bf16.msra.mxu0 0
      %4761 = vmatpush.bf16.msra.mxu0 0
      %4762 = vmatpush.bf16.msra.mxu0 0
      %4763 = vmatpush.bf16.msra.mxu0 0
      %4764 = vmatpush.bf16.msra.mxu0 0
      %4765 = vmatpush.bf16.msra.mxu0 0
      %4766 = vmatpush.bf16.msra.mxu0 0
      %4767 = vmatpush.bf16.msra.mxu0 %v4758
      %4768 = vmatmul.bf16.gmra.mxu0 %v4710
      %v4769 = vpop.f32.mrf.mxu0
      %v4770 = vadd.f32 0.0, %v4769
      %v4771 = vpop.f32.mrf.mxu0
      %v4772 = vadd.f32 0.0, %v4771
      %4773 = vmatmul.bf16.gmra.mxu0 %v4713
      %v4774 = vpop.f32.mrf.mxu0
      %v4775 = vadd.f32 0.0, %v4774
      %v4776 = vpop.f32.mrf.mxu0
      %v4777 = vadd.f32 0.0, %v4776
      %4778 = vmatmul.bf16.gmra.mxu0 %v4716
      %v4779 = vpop.f32.mrf.mxu0
      %v4780 = vadd.f32 0.0, %v4779
      %v4781 = vpop.f32.mrf.mxu0
      %v4782 = vadd.f32 0.0, %v4781
      %4783 = vmatmul.bf16.gmra.mxu0 %v4719
      %v4784 = vpop.f32.mrf.mxu0
      %v4785 = vadd.f32 0.0, %v4784
      %v4786 = vpop.f32.mrf.mxu0
      %v4787 = vadd.f32 0.0, %v4786
      %4788 = vmatmul.bf16.gmra.mxu0 %v4722
      %v4789 = vpop.f32.mrf.mxu0
      %v4790 = vadd.f32 0.0, %v4789
      %v4791 = vpop.f32.mrf.mxu0
      %v4792 = vadd.f32 0.0, %v4791
      %4793 = vmatmul.bf16.gmra.mxu0 %v4725
      %v4794 = vpop.f32.mrf.mxu0
      %v4795 = vadd.f32 0.0, %v4794
      %v4796 = vpop.f32.mrf.mxu0
      %v4797 = vadd.f32 0.0, %v4796
      %4798 = vmatmul.bf16.gmra.mxu0 %v4728
      %v4799 = vpop.f32.mrf.mxu0
      %v4800 = vadd.f32 0.0, %v4799
      %v4801 = vpop.f32.mrf.mxu0
      %v4802 = vadd.f32 0.0, %v4801
      %4803 = vmatmul.bf16.gmra.mxu0 %v4731
      %v4804 = vpop.f32.mrf.mxu0
      %v4805 = vadd.f32 0.0, %v4804
      %v4806 = vpop.f32.mrf.mxu0
      %v4807 = vadd.f32 0.0, %v4806
      %4808 = vmatmul.bf16.gmra.mxu0 %v4734
      %v4809 = vpop.f32.mrf.mxu0
      %v4810 = vadd.f32 0.0, %v4809
      %v4811 = vpop.f32.mrf.mxu0
      %v4812 = vadd.f32 0.0, %v4811
      %4813 = vmatmul.bf16.gmra.mxu0 %v4737
      %v4814 = vpop.f32.mrf.mxu0
      %v4815 = vadd.f32 0.0, %v4814
      %v4816 = vpop.f32.mrf.mxu0
      %v4817 = vadd.f32 0.0, %v4816
      %4818 = vmatmul.bf16.gmra.mxu0 %v4740
      %v4819 = vpop.f32.mrf.mxu0
      %v4820 = vadd.f32 0.0, %v4819
      %v4821 = vpop.f32.mrf.mxu0
      %v4822 = vadd.f32 0.0, %v4821
      %4823 = vmatmul.bf16.gmra.mxu0 %v4743
      %v4824 = vpop.f32.mrf.mxu0
      %v4825 = vadd.f32 0.0, %v4824
      %v4826 = vpop.f32.mrf.mxu0
      %v4827 = vadd.f32 0.0, %v4826
      %4828 = vmatmul.bf16.gmra.mxu0 %v4746
      %v4829 = vpop.f32.mrf.mxu0
      %v4830 = vadd.f32 0.0, %v4829
      %v4831 = vpop.f32.mrf.mxu0
      %v4832 = vadd.f32 0.0, %v4831
      %4833 = vmatmul.bf16.gmra.mxu0 %v4749
      %v4834 = vpop.f32.mrf.mxu0
      %v4835 = vadd.f32 0.0, %v4834
      %v4836 = vpop.f32.mrf.mxu0
      %v4837 = vadd.f32 0.0, %v4836
      %4838 = vmatmul.bf16.gmra.mxu0 %v4752
      %v4839 = vpop.f32.mrf.mxu0
      %v4840 = vadd.f32 0.0, %v4839
      %v4841 = vpop.f32.mrf.mxu0
      %v4842 = vadd.f32 0.0, %v4841
      %4843 = vmatmul.bf16.gmra.mxu0 %v4755
      %v4844 = vpop.f32.mrf.mxu0
      %v4845 = vadd.f32 0.0, %v4844
      %v4846 = vpop.f32.mrf.mxu0
      %v4847 = vadd.f32 0.0, %v4846
      %4848 = vdwg.mxu0
      %v4849 = vadd.f32 %v4435, %v4770
      %v4850 = vadd.f32 %v4436, %v4772
      %v4851 = vadd.f32 %v4437, %v4775
      %v4852 = vadd.f32 %v4438, %v4777
      %v4853 = vadd.f32 %v4439, %v4780
      %v4854 = vadd.f32 %v4440, %v4782
      %v4855 = vadd.f32 %v4441, %v4785
      %v4856 = vadd.f32 %v4442, %v4787
      %v4857 = vadd.f32 %v4443, %v4790
      %v4858 = vadd.f32 %v4444, %v4792
      %v4859 = vadd.f32 %v4445, %v4795
      %v4860 = vadd.f32 %v4446, %v4797
      %v4861 = vadd.f32 %v4447, %v4800
      %v4862 = vadd.f32 %v4448, %v4802
      %v4863 = vadd.f32 %v4449, %v4805
      %v4864 = vadd.f32 %v4450, %v4807
      %v4865 = vadd.f32 %v4451, %v4810
      %v4866 = vadd.f32 %v4452, %v4812
      %v4867 = vadd.f32 %v4453, %v4815
      %v4868 = vadd.f32 %v4454, %v4817
      %v4869 = vadd.f32 %v4455, %v4820
      %v4870 = vadd.f32 %v4456, %v4822
      %v4871 = vadd.f32 %v4457, %v4825
      %v4872 = vadd.f32 %v4458, %v4827
      %v4873 = vadd.f32 %v4459, %v4830
      %v4874 = vadd.f32 %v4460, %v4832
      %v4875 = vadd.f32 %v4461, %v4835
      %v4876 = vadd.f32 %v4462, %v4837
      %v4877 = vadd.f32 %v4463, %v4840
      %v4878 = vadd.f32 %v4464, %v4842
      %v4879 = vadd.f32 %v4465, %v4845
      %v4880 = vadd.f32 %v4466, %v4847
      %4881 = vst [vmem:[#allocation1] ss:$4 sm:$0xff] %v1268
      %s4882 = scalar_lea.vmem [#allocation1], 1
      %4883 = vst [vmem:[%s4882] ss:$4 sm:$0xff] %v1177
      %s4884 = scalar_lea.vmem [#allocation1], 2
      %4885 = vst [vmem:[%s4884] ss:$4 sm:$0xff] %v1269
      %s4886 = scalar_lea.vmem [#allocation1], 3
      %4887 = vst [vmem:[%s4886] ss:$4 sm:$0xff] %v1270
      %s4888 = scalar_lea.vmem [#allocation1], 32
      %4889 = vst [vmem:[%s4888] ss:$4 sm:$0xff] %v1271
      %s4890 = scalar_lea.vmem [#allocation1], 33
      %4891 = vst [vmem:[%s4890] ss:$4 sm:$0xff] %v1178
      %s4892 = scalar_lea.vmem [#allocation1], 34
      %4893 = vst [vmem:[%s4892] ss:$4 sm:$0xff] %v1272
      %s4894 = scalar_lea.vmem [#allocation1], 35
      %4895 = vst [vmem:[%s4894] ss:$4 sm:$0xff] %v1273
      %v4896 = vld.sshfl [vmem:[#allocation1] sm:$0xff pattern:$0x73625140]
      %v4897 = vld.sshfl [vmem:[#allocation1 + $0x20] sm:$0xff pattern:$0x73625140]
      %4898 = vst [vmem:[#allocation1] ss:$4 sm:$0xff] %v1179
      %4899 = vst [vmem:[%s4882] ss:$4 sm:$0xff] %v1275
      %4900 = vst [vmem:[%s4884] ss:$4 sm:$0xff] %v1276
      %4901 = vst [vmem:[%s4886] ss:$4 sm:$0xff] %v1277
      %4902 = vst [vmem:[%s4888] ss:$4 sm:$0xff] %v1180
      %4903 = vst [vmem:[%s4890] ss:$4 sm:$0xff] %v1278
      %4904 = vst [vmem:[%s4892] ss:$4 sm:$0xff] %v1279
      %4905 = vst [vmem:[%s4894] ss:$4 sm:$0xff] %v1280
      %v4906 = vld.sshfl [vmem:[#allocation1] sm:$0xff pattern:$0x73625140]
      %v4907 = vld.sshfl [vmem:[#allocation1 + $0x20] sm:$0xff pattern:$0x73625140]
      %4908 = vst [vmem:[#allocation1] ss:$4 sm:$0xff] %v1281
      %4909 = vst [vmem:[%s4882] ss:$4 sm:$0xff] %v1282
      %4910 = vst [vmem:[%s4884] ss:$4 sm:$0xff] %v1283
      %4911 = vst [vmem:[%s4886] ss:$4 sm:$0xff] %v1182
      %4912 = vst [vmem:[%s4888] ss:$4 sm:$0xff] %v1284
      %4913 = vst [vmem:[%s4890] ss:$4 sm:$0xff] %v1285
      %4914 = vst [vmem:[%s4892] ss:$4 sm:$0xff] %v1286
      %4915 = vst [vmem:[%s4894] ss:$4 sm:$0xff] %v1183
      %v4916 = vld.sshfl [vmem:[#allocation1] sm:$0xff pattern:$0x73625140]
      %v4917 = vld.sshfl [vmem:[#allocation1 + $0x20] sm:$0xff pattern:$0x73625140]
      %4918 = vst [vmem:[#allocation1] ss:$4 sm:$0xff] %v1288
      %4919 = vst [vmem:[%s4882] ss:$4 sm:$0xff] %v1289
      %4920 = vst [vmem:[%s4884] ss:$4 sm:$0xff] %v1184
      %4921 = vst [vmem:[%s4886] ss:$4 sm:$0xff] %v1290
      %4922 = vst [vmem:[%s4888] ss:$4 sm:$0xff] %v1291
      %4923 = vst [vmem:[%s4890] ss:$4 sm:$0xff] %v1292
      %4924 = vst [vmem:[%s4892] ss:$4 sm:$0xff] %v1185
      %4925 = vst [vmem:[%s4894] ss:$4 sm:$0xff] %v1293
      %v4926 = vld.sshfl [vmem:[#allocation1] sm:$0xff pattern:$0x73625140]
      %v4927 = vld.sshfl [vmem:[#allocation1 + $0x20] sm:$0xff pattern:$0x73625140]
      %4928 = vst [vmem:[#allocation1] ss:$4 sm:$0xff] %v1295
      %4929 = vst [vmem:[%s4882] ss:$4 sm:$0xff] %v1186
      %4930 = vst [vmem:[%s4884] ss:$4 sm:$0xff] %v1296
      %4931 = vst [vmem:[%s4886] ss:$4 sm:$0xff] %v1297
      %4932 = vst [vmem:[%s4888] ss:$4 sm:$0xff] %v1298
      %4933 = vst [vmem:[%s4890] ss:$4 sm:$0xff] %v1187
      %4934 = vst [vmem:[%s4892] ss:$4 sm:$0xff] %v1299
      %4935 = vst [vmem:[%s4894] ss:$4 sm:$0xff] %v1300
      %v4936 = vld.sshfl [vmem:[#allocation1] sm:$0xff pattern:$0x73625140]
      %v4937 = vld.sshfl [vmem:[#allocation1 + $0x20] sm:$0xff pattern:$0x73625140]
      %4938 = vst [vmem:[#allocation1] ss:$4 sm:$0xff] %v1188
      %4939 = vst [vmem:[%s4882] ss:$4 sm:$0xff] %v1302
      %4940 = vst [vmem:[%s4884] ss:$4 sm:$0xff] %v1303
      %4941 = vst [vmem:[%s4886] ss:$4 sm:$0xff] %v1304
      %4942 = vst [vmem:[%s4888] ss:$4 sm:$0xff] %v1189
      %4943 = vst [vmem:[%s4890] ss:$4 sm:$0xff] %v1305
      %4944 = vst [vmem:[%s4892] ss:$4 sm:$0xff] %v1306
      %4945 = vst [vmem:[%s4894] ss:$4 sm:$0xff] %v1307
      %v4946 = vld.sshfl [vmem:[#allocation1] sm:$0xff pattern:$0x73625140]
      %v4947 = vld.sshfl [vmem:[#allocation1 + $0x20] sm:$0xff pattern:$0x73625140]
      %4948 = vst [vmem:[#allocation1] ss:$4 sm:$0xff] %v1308
      %4949 = vst [vmem:[%s4882] ss:$4 sm:$0xff] %v1309
      %4950 = vst [vmem:[%s4884] ss:$4 sm:$0xff] %v1310
      %4951 = vst [vmem:[%s4886] ss:$4 sm:$0xff] %v1191
      %4952 = vst [vmem:[%s4888] ss:$4 sm:$0xff] %v1311
      %4953 = vst [vmem:[%s4890] ss:$4 sm:$0xff] %v1312
      %4954 = vst [vmem:[%s4892] ss:$4 sm:$0xff] %v1313
      %4955 = vst [vmem:[%s4894] ss:$4 sm:$0xff] %v1192
      %v4956 = vld.sshfl [vmem:[#allocation1] sm:$0xff pattern:$0x73625140]
      %v4957 = vld.sshfl [vmem:[#allocation1 + $0x20] sm:$0xff pattern:$0x73625140]
      %4958 = vst [vmem:[#allocation1] ss:$4 sm:$0xff] %v1315
      %4959 = vst [vmem:[%s4882] ss:$4 sm:$0xff] %v1316
      %4960 = vst [vmem:[%s4884] ss:$4 sm:$0xff] %v1193
      %4961 = vst [vmem:[%s4886] ss:$4 sm:$0xff] %v1317
      %4962 = vst [vmem:[%s4888] ss:$4 sm:$0xff] %v1318
      %4963 = vst [vmem:[%s4890] ss:$4 sm:$0xff] %v1319
      %4964 = vst [vmem:[%s4892] ss:$4 sm:$0xff] %v1194
      %4965 = vst [vmem:[%s4894] ss:$4 sm:$0xff] %v1320
      %v4966 = vld.sshfl [vmem:[#allocation1] sm:$0xff pattern:$0x73625140]
      %v4967 = vld.sshfl [vmem:[#allocation1 + $0x20] sm:$0xff pattern:$0x73625140]
      %4968 = vst [vmem:[#allocation1] ss:$4 sm:$0xff] %v1322
      %4969 = vst [vmem:[%s4882] ss:$4 sm:$0xff] %v1195
      %4970 = vst [vmem:[%s4884] ss:$4 sm:$0xff] %v1323
      %4971 = vst [vmem:[%s4886] ss:$4 sm:$0xff] %v1324
      %4972 = vst [vmem:[%s4888] ss:$4 sm:$0xff] %v1325
      %4973 = vst [vmem:[%s4890] ss:$4 sm:$0xff] %v1196
      %4974 = vst [vmem:[%s4892] ss:$4 sm:$0xff] %v1326
      %4975 = vst [vmem:[%s4894] ss:$4 sm:$0xff] %v1327
      %v4976 = vld.sshfl [vmem:[#allocation1] sm:$0xff pattern:$0x73625140]
      %v4977 = vld.sshfl [vmem:[#allocation1 + $0x20] sm:$0xff pattern:$0x73625140]
      %4978 = vst [vmem:[#allocation1] ss:$4 sm:$0xff] %v1197
      %4979 = vst [vmem:[%s4882] ss:$4 sm:$0xff] %v1329
      %4980 = vst [vmem:[%s4884] ss:$4 sm:$0xff] %v1330
      %4981 = vst [vmem:[%s4886] ss:$4 sm:$0xff] %v1331
      %4982 = vst [vmem:[%s4888] ss:$4 sm:$0xff] %v1198
      %4983 = vst [vmem:[%s4890] ss:$4 sm:$0xff] %v1332
      %4984 = vst [vmem:[%s4892] ss:$4 sm:$0xff] %v1333
      %4985 = vst [vmem:[%s4894] ss:$4 sm:$0xff] %v1334
      %v4986 = vld.sshfl [vmem:[#allocation1] sm:$0xff pattern:$0x73625140]
      %v4987 = vld.sshfl [vmem:[#allocation1 + $0x20] sm:$0xff pattern:$0x73625140]
      %4988 = vst [vmem:[#allocation1] ss:$4 sm:$0xff] %v1335
      %4989 = vst [vmem:[%s4882] ss:$4 sm:$0xff] %v1336
      %4990 = vst [vmem:[%s4884] ss:$4 sm:$0xff] %v1337
      %4991 = vst [vmem:[%s4886] ss:$4 sm:$0xff] %v1200
      %4992 = vst [vmem:[%s4888] ss:$4 sm:$0xff] %v1338
      %4993 = vst [vmem:[%s4890] ss:$4 sm:$0xff] %v1339
      %4994 = vst [vmem:[%s4892] ss:$4 sm:$0xff] %v1340
      %4995 = vst [vmem:[%s4894] ss:$4 sm:$0xff] %v1201
      %v4996 = vld.sshfl [vmem:[#allocation1] sm:$0xff pattern:$0x73625140]
      %v4997 = vld.sshfl [vmem:[#allocation1 + $0x20] sm:$0xff pattern:$0x73625140]
      %4998 = vst [vmem:[#allocation1] ss:$4 sm:$0xff] %v1342
      %4999 = vst [vmem:[%s4882] ss:$4 sm:$0xff] %v1343
      %5000 = vst [vmem:[%s4884] ss:$4 sm:$0xff] %v1202
      %5001 = vst [vmem:[%s4886] ss:$4 sm:$0xff] %v1344
      %5002 = vst [vmem:[%s4888] ss:$4 sm:$0xff] %v1345
      %5003 = vst [vmem:[%s4890] ss:$4 sm:$0xff] %v1346
      %5004 = vst [vmem:[%s4892] ss:$4 sm:$0xff] %v1203
      %5005 = vst [vmem:[%s4894] ss:$4 sm:$0xff] %v1347
      %v5006 = vld.sshfl [vmem:[#allocation1] sm:$0xff pattern:$0x73625140]
      %v5007 = vld.sshfl [vmem:[#allocation1 + $0x20] sm:$0xff pattern:$0x73625140]
      %5008 = vst [vmem:[#allocation1] ss:$4 sm:$0xff] %v1349
      %5009 = vst [vmem:[%s4882] ss:$4 sm:$0xff] %v1204
      %5010 = vst [vmem:[%s4884] ss:$4 sm:$0xff] %v1350
      %5011 = vst [vmem:[%s4886] ss:$4 sm:$0xff] %v1351
      %5012 = vst [vmem:[%s4888] ss:$4 sm:$0xff] %v1352
      %5013 = vst [vmem:[%s4890] ss:$4 sm:$0xff] %v1205
      %5014 = vst [vmem:[%s4892] ss:$4 sm:$0xff] %v1353
      %5015 = vst [vmem:[%s4894] ss:$4 sm:$0xff] %v1354
      %v5016 = vld.sshfl [vmem:[#allocation1] sm:$0xff pattern:$0x73625140]
      %v5017 = vld.sshfl [vmem:[#allocation1 + $0x20] sm:$0xff pattern:$0x73625140]
      %5018 = vst [vmem:[#allocation1] ss:$4 sm:$0xff] %v1206
      %5019 = vst [vmem:[%s4882] ss:$4 sm:$0xff] %v1356
      %5020 = vst [vmem:[%s4884] ss:$4 sm:$0xff] %v1357
      %5021 = vst [vmem:[%s4886] ss:$4 sm:$0xff] %v1358
      %5022 = vst [vmem:[%s4888] ss:$4 sm:$0xff] %v1207
      %5023 = vst [vmem:[%s4890] ss:$4 sm:$0xff] %v1359
      %5024 = vst [vmem:[%s4892] ss:$4 sm:$0xff] %v1360
      %5025 = vst [vmem:[%s4894] ss:$4 sm:$0xff] %v1361
      %v5026 = vld.sshfl [vmem:[#allocation1] sm:$0xff pattern:$0x73625140]
      %v5027 = vld.sshfl [vmem:[#allocation1 + $0x20] sm:$0xff pattern:$0x73625140]
      %5028 = vst [vmem:[#allocation1] ss:$4 sm:$0xff] %v1362
      %5029 = vst [vmem:[%s4882] ss:$4 sm:$0xff] %v1363
      %5030 = vst [vmem:[%s4884] ss:$4 sm:$0xff] %v1364
      %5031 = vst [vmem:[%s4886] ss:$4 sm:$0xff] %v1209
      %5032 = vst [vmem:[%s4888] ss:$4 sm:$0xff] %v1365
      %5033 = vst [vmem:[%s4890] ss:$4 sm:$0xff] %v1366
      %5034 = vst [vmem:[%s4892] ss:$4 sm:$0xff] %v1367
      %5035 = vst [vmem:[%s4894] ss:$4 sm:$0xff] %v1210
      %v5036 = vld.sshfl [vmem:[#allocation1] sm:$0xff pattern:$0x73625140]
      %v5037 = vld.sshfl [vmem:[#allocation1 + $0x20] sm:$0xff pattern:$0x73625140]
      %5038 = vst [vmem:[#allocation1] ss:$4 sm:$0xff] %v1369
      %5039 = vst [vmem:[%s4882] ss:$4 sm:$0xff] %v1370
      %5040 = vst [vmem:[%s4884] ss:$4 sm:$0xff] %v1211
      %5041 = vst [vmem:[%s4886] ss:$4 sm:$0xff] %v1371
      %5042 = vst [vmem:[%s4888] ss:$4 sm:$0xff] %v1372
      %5043 = vst [vmem:[%s4890] ss:$4 sm:$0xff] %v1373
      %5044 = vst [vmem:[%s4892] ss:$4 sm:$0xff] %v1212
      %5045 = vst [vmem:[%s4894] ss:$4 sm:$0xff] %v1374
      %v5046 = vld.sshfl [vmem:[#allocation1] sm:$0xff pattern:$0x73625140]
      %v5047 = vld.sshfl [vmem:[#allocation1 + $0x20] sm:$0xff pattern:$0x73625140]
      %v5080 = vpack.c.bf16 %v4897, %v4896
      %v5081 = vpack.c.bf16 %v4907, %v4906
      %v5082 = vpack.c.bf16 %v4917, %v4916
      %v5083 = vpack.c.bf16 %v4927, %v4926
      %v5084 = vpack.c.bf16 %v4937, %v4936
      %v5085 = vpack.c.bf16 %v4947, %v4946
      %v5086 = vpack.c.bf16 %v4957, %v4956
      %v5087 = vpack.c.bf16 %v4967, %v4966
      %v5088 = vpack.c.bf16 %v4977, %v4976
      %v5089 = vpack.c.bf16 %v4987, %v4986
      %v5090 = vpack.c.bf16 %v4997, %v4996
      %v5091 = vpack.c.bf16 %v5007, %v5006
      %v5092 = vpack.c.bf16 %v5017, %v5016
      %v5093 = vpack.c.bf16 %v5027, %v5026
      %v5094 = vpack.c.bf16 %v5037, %v5036
      %v5095 = vpack.c.bf16 %v5047, %v5046
      %s5096 = scalar_lea.vmem %s3, 32
      %v5097 = vld [vmem:[%s5096] sm:$0xf]
      %v5099 = vsel %vm2215, %v5080, 0
      %v5102 = vsel %vm2215, %v5081, 0
      %v5105 = vsel %vm2215, %v5082, 0
      %v5108 = vsel %vm2215, %v5083, 0
      %v5111 = vsel %vm2215, %v5084, 0
      %v5114 = vsel %vm2215, %v5085, 0
      %v5117 = vsel %vm2215, %v5086, 0
      %v5120 = vsel %vm2215, %v5087, 0
      %v5123 = vsel %vm2215, %v5088, 0
      %v5126 = vsel %vm2215, %v5089, 0
      %v5129 = vsel %vm2215, %v5090, 0
      %v5132 = vsel %vm2215, %v5091, 0
      %v5135 = vsel %vm2215, %v5092, 0
      %v5138 = vsel %vm2215, %v5093, 0
      %v5141 = vsel %vm2215, %v5094, 0
      %v5144 = vsel %vm2215, %v5095, 0
      %v5147 = vsel %vm2264, %v5097, 0
      %5149 = vmatpush.bf16.msra.mxu0 0
      %5150 = vmatpush.bf16.msra.mxu0 0
      %5151 = vmatpush.bf16.msra.mxu0 0
      %5152 = vmatpush.bf16.msra.mxu0 0
      %5153 = vmatpush.bf16.msra.mxu0 0
      %5154 = vmatpush.bf16.msra.mxu0 0
      %5155 = vmatpush.bf16.msra.mxu0 0
      %5156 = vmatpush.bf16.msra.mxu0 %v5147
      %5157 = vmatmul.bf16.gmra.mxu0 %v5099
      %v5158 = vpop.f32.mrf.mxu0
      %v5159 = vadd.f32 0.0, %v5158
      %v5160 = vpop.f32.mrf.mxu0
      %v5161 = vadd.f32 0.0, %v5160
      %5162 = vmatmul.bf16.gmra.mxu0 %v5102
      %v5163 = vpop.f32.mrf.mxu0
      %v5164 = vadd.f32 0.0, %v5163
      %v5165 = vpop.f32.mrf.mxu0
      %v5166 = vadd.f32 0.0, %v5165
      %5167 = vmatmul.bf16.gmra.mxu0 %v5105
      %v5168 = vpop.f32.mrf.mxu0
      %v5169 = vadd.f32 0.0, %v5168
      %v5170 = vpop.f32.mrf.mxu0
      %v5171 = vadd.f32 0.0, %v5170
      %5172 = vmatmul.bf16.gmra.mxu0 %v5108
      %v5173 = vpop.f32.mrf.mxu0
      %v5174 = vadd.f32 0.0, %v5173
      %v5175 = vpop.f32.mrf.mxu0
      %v5176 = vadd.f32 0.0, %v5175
      %5177 = vmatmul.bf16.gmra.mxu0 %v5111
      %v5178 = vpop.f32.mrf.mxu0
      %v5179 = vadd.f32 0.0, %v5178
      %v5180 = vpop.f32.mrf.mxu0
      %v5181 = vadd.f32 0.0, %v5180
      %5182 = vmatmul.bf16.gmra.mxu0 %v5114
      %v5183 = vpop.f32.mrf.mxu0
      %v5184 = vadd.f32 0.0, %v5183
      %v5185 = vpop.f32.mrf.mxu0
      %v5186 = vadd.f32 0.0, %v5185
      %5187 = vmatmul.bf16.gmra.mxu0 %v5117
      %v5188 = vpop.f32.mrf.mxu0
      %v5189 = vadd.f32 0.0, %v5188
      %v5190 = vpop.f32.mrf.mxu0
      %v5191 = vadd.f32 0.0, %v5190
      %5192 = vmatmul.bf16.gmra.mxu0 %v5120
      %v5193 = vpop.f32.mrf.mxu0
      %v5194 = vadd.f32 0.0, %v5193
      %v5195 = vpop.f32.mrf.mxu0
      %v5196 = vadd.f32 0.0, %v5195
      %5197 = vmatmul.bf16.gmra.mxu0 %v5123
      %v5198 = vpop.f32.mrf.mxu0
      %v5199 = vadd.f32 0.0, %v5198
      %v5200 = vpop.f32.mrf.mxu0
      %v5201 = vadd.f32 0.0, %v5200
      %5202 = vmatmul.bf16.gmra.mxu0 %v5126
      %v5203 = vpop.f32.mrf.mxu0
      %v5204 = vadd.f32 0.0, %v5203
      %v5205 = vpop.f32.mrf.mxu0
      %v5206 = vadd.f32 0.0, %v5205
      %5207 = vmatmul.bf16.gmra.mxu0 %v5129
      %v5208 = vpop.f32.mrf.mxu0
      %v5209 = vadd.f32 0.0, %v5208
      %v5210 = vpop.f32.mrf.mxu0
      %v5211 = vadd.f32 0.0, %v5210
      %5212 = vmatmul.bf16.gmra.mxu0 %v5132
      %v5213 = vpop.f32.mrf.mxu0
      %v5214 = vadd.f32 0.0, %v5213
      %v5215 = vpop.f32.mrf.mxu0
      %v5216 = vadd.f32 0.0, %v5215
      %5217 = vmatmul.bf16.gmra.mxu0 %v5135
      %v5218 = vpop.f32.mrf.mxu0
      %v5219 = vadd.f32 0.0, %v5218
      %v5220 = vpop.f32.mrf.mxu0
      %v5221 = vadd.f32 0.0, %v5220
      %5222 = vmatmul.bf16.gmra.mxu0 %v5138
      %v5223 = vpop.f32.mrf.mxu0
      %v5224 = vadd.f32 0.0, %v5223
      %v5225 = vpop.f32.mrf.mxu0
      %v5226 = vadd.f32 0.0, %v5225
      %5227 = vmatmul.bf16.gmra.mxu0 %v5141
      %v5228 = vpop.f32.mrf.mxu0
      %v5229 = vadd.f32 0.0, %v5228
      %v5230 = vpop.f32.mrf.mxu0
      %v5231 = vadd.f32 0.0, %v5230
      %5232 = vmatmul.bf16.gmra.mxu0 %v5144
      %v5233 = vpop.f32.mrf.mxu0
      %v5234 = vadd.f32 0.0, %v5233
      %v5235 = vpop.f32.mrf.mxu0
      %v5236 = vadd.f32 0.0, %v5235
      %5237 = vdwg.mxu0
      %v5238 = vadd.f32 %v4849, %v5159
      %v5239 = vadd.f32 %v4850, %v5161
      %v5240 = vadd.f32 %v4851, %v5164
      %v5241 = vadd.f32 %v4852, %v5166
      %v5242 = vadd.f32 %v4853, %v5169
      %v5243 = vadd.f32 %v4854, %v5171
      %v5244 = vadd.f32 %v4855, %v5174
      %v5245 = vadd.f32 %v4856, %v5176
      %v5246 = vadd.f32 %v4857, %v5179
      %v5247 = vadd.f32 %v4858, %v5181
      %v5248 = vadd.f32 %v4859, %v5184
      %v5249 = vadd.f32 %v4860, %v5186
      %v5250 = vadd.f32 %v4861, %v5189
      %v5251 = vadd.f32 %v4862, %v5191
      %v5252 = vadd.f32 %v4863, %v5194
      %v5253 = vadd.f32 %v4864, %v5196
      %v5254 = vadd.f32 %v4865, %v5199
      %v5255 = vadd.f32 %v4866, %v5201
      %v5256 = vadd.f32 %v4867, %v5204
      %v5257 = vadd.f32 %v4868, %v5206
      %v5258 = vadd.f32 %v4869, %v5209
      %v5259 = vadd.f32 %v4870, %v5211
      %v5260 = vadd.f32 %v4871, %v5214
      %v5261 = vadd.f32 %v4872, %v5216
      %v5262 = vadd.f32 %v4873, %v5219
      %v5263 = vadd.f32 %v4874, %v5221
      %v5264 = vadd.f32 %v4875, %v5224
      %v5265 = vadd.f32 %v4876, %v5226
      %v5266 = vadd.f32 %v4877, %v5229
      %v5267 = vadd.f32 %v4878, %v5231
      %v5268 = vadd.f32 %v4879, %v5234
      %v5269 = vadd.f32 %v4880, %v5236
      %v5270 = vld [vmem:[%s8] sm:$0x1]
      %v5272 = vperm.slane %v5270, 0
      %v5274 = vmul.f32 %v5238, %v5272
      %v5275 = vmul.f32 %v5239, %v5272
      %v5276 = vmul.f32 %v5240, %v5272
      %v5277 = vmul.f32 %v5241, %v5272
      %v5278 = vmul.f32 %v5242, %v5272
      %v5279 = vmul.f32 %v5243, %v5272
      %v5280 = vmul.f32 %v5244, %v5272
      %v5281 = vmul.f32 %v5245, %v5272
      %v5282 = vmul.f32 %v5246, %v5272
      %v5283 = vmul.f32 %v5247, %v5272
      %v5284 = vmul.f32 %v5248, %v5272
      %v5285 = vmul.f32 %v5249, %v5272
      %v5286 = vmul.f32 %v5250, %v5272
      %v5287 = vmul.f32 %v5251, %v5272
      %v5288 = vmul.f32 %v5252, %v5272
      %v5289 = vmul.f32 %v5253, %v5272
      %v5290 = vmul.f32 %v5254, %v5272
      %v5291 = vmul.f32 %v5255, %v5272
      %v5292 = vmul.f32 %v5256, %v5272
      %v5293 = vmul.f32 %v5257, %v5272
      %v5294 = vmul.f32 %v5258, %v5272
      %v5295 = vmul.f32 %v5259, %v5272
      %v5296 = vmul.f32 %v5260, %v5272
      %v5297 = vmul.f32 %v5261, %v5272
      %v5298 = vmul.f32 %v5262, %v5272
      %v5299 = vmul.f32 %v5263, %v5272
      %v5300 = vmul.f32 %v5264, %v5272
      %v5301 = vmul.f32 %v5265, %v5272
      %v5302 = vmul.f32 %v5266, %v5272
      %v5303 = vmul.f32 %v5267, %v5272
      %v5304 = vmul.f32 %v5268, %v5272
      %v5305 = vmul.f32 %v5269, %v5272
      %v5306 = vld [vmem:[%s9] sm:$0x1]
      %v5308 = vperm.slane %v5306, 0
      %v5310 = vadd.f32 %v5274, %v5308
      %v5311 = vadd.f32 %v5275, %v5308
      %v5312 = vadd.f32 %v5276, %v5308
      %v5313 = vadd.f32 %v5277, %v5308
      %v5314 = vadd.f32 %v5278, %v5308
      %v5315 = vadd.f32 %v5279, %v5308
      %v5316 = vadd.f32 %v5280, %v5308
      %v5317 = vadd.f32 %v5281, %v5308
      %v5318 = vadd.f32 %v5282, %v5308
      %v5319 = vadd.f32 %v5283, %v5308
      %v5320 = vadd.f32 %v5284, %v5308
      %v5321 = vadd.f32 %v5285, %v5308
      %v5322 = vadd.f32 %v5286, %v5308
      %v5323 = vadd.f32 %v5287, %v5308
      %v5324 = vadd.f32 %v5288, %v5308
      %v5325 = vadd.f32 %v5289, %v5308
      %v5326 = vadd.f32 %v5290, %v5308
      %v5327 = vadd.f32 %v5291, %v5308
      %v5328 = vadd.f32 %v5292, %v5308
      %v5329 = vadd.f32 %v5293, %v5308
      %v5330 = vadd.f32 %v5294, %v5308
      %v5331 = vadd.f32 %v5295, %v5308
      %v5332 = vadd.f32 %v5296, %v5308
      %v5333 = vadd.f32 %v5297, %v5308
      %v5334 = vadd.f32 %v5298, %v5308
      %v5335 = vadd.f32 %v5299, %v5308
      %v5336 = vadd.f32 %v5300, %v5308
      %v5337 = vadd.f32 %v5301, %v5308
      %v5338 = vadd.f32 %v5302, %v5308
      %v5339 = vadd.f32 %v5303, %v5308
      %v5340 = vadd.f32 %v5304, %v5308
      %v5341 = vadd.f32 %v5305, %v5308
      %v5342 = vmax.f32 %v5310, 0.0
      %v5343 = vmax.f32 %v5311, 0.0
      %v5344 = vmax.f32 %v5312, 0.0
      %v5345 = vmax.f32 %v5313, 0.0
      %v5346 = vmax.f32 %v5314, 0.0
      %v5347 = vmax.f32 %v5315, 0.0
      %v5348 = vmax.f32 %v5316, 0.0
      %v5349 = vmax.f32 %v5317, 0.0
      %v5350 = vmax.f32 %v5318, 0.0
      %v5351 = vmax.f32 %v5319, 0.0
      %v5352 = vmax.f32 %v5320, 0.0
      %v5353 = vmax.f32 %v5321, 0.0
      %v5354 = vmax.f32 %v5322, 0.0
      %v5355 = vmax.f32 %v5323, 0.0
      %v5356 = vmax.f32 %v5324, 0.0
      %v5357 = vmax.f32 %v5325, 0.0
      %v5358 = vmax.f32 %v5326, 0.0
      %v5359 = vmax.f32 %v5327, 0.0
      %v5360 = vmax.f32 %v5328, 0.0
      %v5361 = vmax.f32 %v5329, 0.0
      %v5362 = vmax.f32 %v5330, 0.0
      %v5363 = vmax.f32 %v5331, 0.0
      %v5364 = vmax.f32 %v5332, 0.0
      %v5365 = vmax.f32 %v5333, 0.0
      %v5366 = vmax.f32 %v5334, 0.0
      %v5367 = vmax.f32 %v5335, 0.0
      %v5368 = vmax.f32 %v5336, 0.0
      %v5369 = vmax.f32 %v5337, 0.0
      %v5370 = vmax.f32 %v5338, 0.0
      %v5371 = vmax.f32 %v5339, 0.0
      %v5372 = vmax.f32 %v5340, 0.0
      %v5373 = vmax.f32 %v5341, 0.0
      %v5374 = vpack.c.bf16 %v5343, %v5342
      %v5375 = vpack.c.bf16 %v5345, %v5344
      %v5376 = vpack.c.bf16 %v5347, %v5346
      %v5377 = vpack.c.bf16 %v5349, %v5348
      %v5378 = vpack.c.bf16 %v5351, %v5350
      %v5379 = vpack.c.bf16 %v5353, %v5352
      %v5380 = vpack.c.bf16 %v5355, %v5354
      %v5381 = vpack.c.bf16 %v5357, %v5356
      %v5382 = vpack.c.bf16 %v5359, %v5358
      %v5383 = vpack.c.bf16 %v5361, %v5360
      %v5384 = vpack.c.bf16 %v5363, %v5362
      %v5385 = vpack.c.bf16 %v5365, %v5364
      %v5386 = vpack.c.bf16 %v5367, %v5366
      %v5387 = vpack.c.bf16 %v5369, %v5368
      %v5388 = vpack.c.bf16 %v5371, %v5370
      %v5389 = vpack.c.bf16 %v5373, %v5372
      %v5390 = vld [vmem:[%s4] sm:$0xf]
      %v5392 = vsel %vm2215, %v5374, 0
      %v5395 = vsel %vm2215, %v5375, 0
      %v5398 = vsel %vm2215, %v5376, 0
      %v5401 = vsel %vm2215, %v5377, 0
      %v5404 = vsel %vm2215, %v5378, 0
      %v5407 = vsel %vm2215, %v5379, 0
      %v5410 = vsel %vm2215, %v5380, 0
      %v5413 = vsel %vm2215, %v5381, 0
      %v5416 = vsel %vm2215, %v5382, 0
      %v5419 = vsel %vm2215, %v5383, 0
      %v5422 = vsel %vm2215, %v5384, 0
      %v5425 = vsel %vm2215, %v5385, 0
      %v5428 = vsel %vm2215, %v5386, 0
      %v5431 = vsel %vm2215, %v5387, 0
      %v5434 = vsel %vm2215, %v5388, 0
      %v5437 = vsel %vm2215, %v5389, 0
      %v5440 = vsel %vm2264, %v5390, 0
      %5442 = vmatpush.bf16.msra.mxu0 0
      %5443 = vmatpush.bf16.msra.mxu0 0
      %5444 = vmatpush.bf16.msra.mxu0 0
      %5445 = vmatpush.bf16.msra.mxu0 0
      %5446 = vmatpush.bf16.msra.mxu0 0
      %5447 = vmatpush.bf16.msra.mxu0 0
      %5448 = vmatpush.bf16.msra.mxu0 0
      %5449 = vmatpush.bf16.msra.mxu0 %v5440
      %5450 = vmatmul.bf16.gmra.mxu0 %v5392
      %v5451 = vpop.f32.mrf.mxu0
      %v5452 = vadd.f32 0.0, %v5451
      %v5453 = vpop.f32.mrf.mxu0
      %v5454 = vadd.f32 0.0, %v5453
      %5455 = vmatmul.bf16.gmra.mxu0 %v5395
      %v5456 = vpop.f32.mrf.mxu0
      %v5457 = vadd.f32 0.0, %v5456
      %v5458 = vpop.f32.mrf.mxu0
      %v5459 = vadd.f32 0.0, %v5458
      %5460 = vmatmul.bf16.gmra.mxu0 %v5398
      %v5461 = vpop.f32.mrf.mxu0
      %v5462 = vadd.f32 0.0, %v5461
      %v5463 = vpop.f32.mrf.mxu0
      %v5464 = vadd.f32 0.0, %v5463
      %5465 = vmatmul.bf16.gmra.mxu0 %v5401
      %v5466 = vpop.f32.mrf.mxu0
      %v5467 = vadd.f32 0.0, %v5466
      %v5468 = vpop.f32.mrf.mxu0
      %v5469 = vadd.f32 0.0, %v5468
      %5470 = vmatmul.bf16.gmra.mxu0 %v5404
      %v5471 = vpop.f32.mrf.mxu0
      %v5472 = vadd.f32 0.0, %v5471
      %v5473 = vpop.f32.mrf.mxu0
      %v5474 = vadd.f32 0.0, %v5473
      %5475 = vmatmul.bf16.gmra.mxu0 %v5407
      %v5476 = vpop.f32.mrf.mxu0
      %v5477 = vadd.f32 0.0, %v5476
      %v5478 = vpop.f32.mrf.mxu0
      %v5479 = vadd.f32 0.0, %v5478
      %5480 = vmatmul.bf16.gmra.mxu0 %v5410
      %v5481 = vpop.f32.mrf.mxu0
      %v5482 = vadd.f32 0.0, %v5481
      %v5483 = vpop.f32.mrf.mxu0
      %v5484 = vadd.f32 0.0, %v5483
      %5485 = vmatmul.bf16.gmra.mxu0 %v5413
      %v5486 = vpop.f32.mrf.mxu0
      %v5487 = vadd.f32 0.0, %v5486
      %v5488 = vpop.f32.mrf.mxu0
      %v5489 = vadd.f32 0.0, %v5488
      %5490 = vmatmul.bf16.gmra.mxu0 %v5416
      %v5491 = vpop.f32.mrf.mxu0
      %v5492 = vadd.f32 0.0, %v5491
      %v5493 = vpop.f32.mrf.mxu0
      %v5494 = vadd.f32 0.0, %v5493
      %5495 = vmatmul.bf16.gmra.mxu0 %v5419
      %v5496 = vpop.f32.mrf.mxu0
      %v5497 = vadd.f32 0.0, %v5496
      %v5498 = vpop.f32.mrf.mxu0
      %v5499 = vadd.f32 0.0, %v5498
      %5500 = vmatmul.bf16.gmra.mxu0 %v5422
      %v5501 = vpop.f32.mrf.mxu0
      %v5502 = vadd.f32 0.0, %v5501
      %v5503 = vpop.f32.mrf.mxu0
      %v5504 = vadd.f32 0.0, %v5503
      %5505 = vmatmul.bf16.gmra.mxu0 %v5425
      %v5506 = vpop.f32.mrf.mxu0
      %v5507 = vadd.f32 0.0, %v5506
      %v5508 = vpop.f32.mrf.mxu0
      %v5509 = vadd.f32 0.0, %v5508
      %5510 = vmatmul.bf16.gmra.mxu0 %v5428
      %v5511 = vpop.f32.mrf.mxu0
      %v5512 = vadd.f32 0.0, %v5511
      %v5513 = vpop.f32.mrf.mxu0
      %v5514 = vadd.f32 0.0, %v5513
      %5515 = vmatmul.bf16.gmra.mxu0 %v5431
      %v5516 = vpop.f32.mrf.mxu0
      %v5517 = vadd.f32 0.0, %v5516
      %v5518 = vpop.f32.mrf.mxu0
      %v5519 = vadd.f32 0.0, %v5518
      %5520 = vmatmul.bf16.gmra.mxu0 %v5434
      %v5521 = vpop.f32.mrf.mxu0
      %v5522 = vadd.f32 0.0, %v5521
      %v5523 = vpop.f32.mrf.mxu0
      %v5524 = vadd.f32 0.0, %v5523
      %5525 = vmatmul.bf16.gmra.mxu0 %v5437
      %v5526 = vpop.f32.mrf.mxu0
      %v5527 = vadd.f32 0.0, %v5526
      %v5528 = vpop.f32.mrf.mxu0
      %v5529 = vadd.f32 0.0, %v5528
      %5530 = vdwg.mxu0
      %v5531 = vld [vmem:[%s10] sm:$0x1]
      %v5533 = vperm.slane %v5531, 0
      %v5535 = vmul.f32 %v5452, %v5533
      %v5536 = vmul.f32 %v5454, %v5533
      %v5537 = vmul.f32 %v5457, %v5533
      %v5538 = vmul.f32 %v5459, %v5533
      %v5539 = vmul.f32 %v5462, %v5533
      %v5540 = vmul.f32 %v5464, %v5533
      %v5541 = vmul.f32 %v5467, %v5533
      %v5542 = vmul.f32 %v5469, %v5533
      %v5543 = vmul.f32 %v5472, %v5533
      %v5544 = vmul.f32 %v5474, %v5533
      %v5545 = vmul.f32 %v5477, %v5533
      %v5546 = vmul.f32 %v5479, %v5533
      %v5547 = vmul.f32 %v5482, %v5533
      %v5548 = vmul.f32 %v5484, %v5533
      %v5549 = vmul.f32 %v5487, %v5533
      %v5550 = vmul.f32 %v5489, %v5533
      %v5551 = vmul.f32 %v5492, %v5533
      %v5552 = vmul.f32 %v5494, %v5533
      %v5553 = vmul.f32 %v5497, %v5533
      %v5554 = vmul.f32 %v5499, %v5533
      %v5555 = vmul.f32 %v5502, %v5533
      %v5556 = vmul.f32 %v5504, %v5533
      %v5557 = vmul.f32 %v5507, %v5533
      %v5558 = vmul.f32 %v5509, %v5533
      %v5559 = vmul.f32 %v5512, %v5533
      %v5560 = vmul.f32 %v5514, %v5533
      %v5561 = vmul.f32 %v5517, %v5533
      %v5562 = vmul.f32 %v5519, %v5533
      %v5563 = vmul.f32 %v5522, %v5533
      %v5564 = vmul.f32 %v5524, %v5533
      %v5565 = vmul.f32 %v5527, %v5533
      %v5566 = vmul.f32 %v5529, %v5533
      %v5567 = vld [vmem:[%s11] sm:$0x1]
      %v5569 = vperm.slane %v5567, 0
      %v5571 = vadd.f32 %v5535, %v5569
      %v5572 = vadd.f32 %v5536, %v5569
      %v5573 = vadd.f32 %v5537, %v5569
      %v5574 = vadd.f32 %v5538, %v5569
      %v5575 = vadd.f32 %v5539, %v5569
      %v5576 = vadd.f32 %v5540, %v5569
      %v5577 = vadd.f32 %v5541, %v5569
      %v5578 = vadd.f32 %v5542, %v5569
      %v5579 = vadd.f32 %v5543, %v5569
      %v5580 = vadd.f32 %v5544, %v5569
      %v5581 = vadd.f32 %v5545, %v5569
      %v5582 = vadd.f32 %v5546, %v5569
      %v5583 = vadd.f32 %v5547, %v5569
      %v5584 = vadd.f32 %v5548, %v5569
      %v5585 = vadd.f32 %v5549, %v5569
      %v5586 = vadd.f32 %v5550, %v5569
      %v5587 = vadd.f32 %v5551, %v5569
      %v5588 = vadd.f32 %v5552, %v5569
      %v5589 = vadd.f32 %v5553, %v5569
      %v5590 = vadd.f32 %v5554, %v5569
      %v5591 = vadd.f32 %v5555, %v5569
      %v5592 = vadd.f32 %v5556, %v5569
      %v5593 = vadd.f32 %v5557, %v5569
      %v5594 = vadd.f32 %v5558, %v5569
      %v5595 = vadd.f32 %v5559, %v5569
      %v5596 = vadd.f32 %v5560, %v5569
      %v5597 = vadd.f32 %v5561, %v5569
      %v5598 = vadd.f32 %v5562, %v5569
      %v5599 = vadd.f32 %v5563, %v5569
      %v5600 = vadd.f32 %v5564, %v5569
      %v5601 = vadd.f32 %v5565, %v5569
      %v5602 = vadd.f32 %v5566, %v5569
      %v5603 = vld [vmem:[%s5] sm:$0x3]
      %v5605 = vsel %vm678, %v5603, 0
      %5607 = vmatpush.bf16.msra.mxu0 0
      %5608 = vmatpush.bf16.msra.mxu0 0
      %5609 = vmatpush.bf16.msra.mxu0 0
      %5610 = vmatpush.bf16.msra.mxu0 0
      %5611 = vmatpush.bf16.msra.mxu0 0
      %5612 = vmatpush.bf16.msra.mxu0 0
      %5613 = vmatpush.bf16.msra.mxu0 0
      %5614 = vmatpush.bf16.msra.mxu0 %v5605
      %5615 = vmatmul.bf16.gmra.mxu0 %v616
      %v5616 = vpop.f32.mrf.mxu0
      %v5617 = vpop.f32.mrf.mxu0
      %5618 = vmatmul.bf16.gmra.mxu0 %v619
      %v5619 = vpop.f32.mrf.mxu0
      %v5620 = vadd.f32 0.0, %v5619
      %v5621 = vpop.f32.mrf.mxu0
      %v5622 = vadd.f32 0.0, %v5621
      %5623 = vmatmul.bf16.gmra.mxu0 %v622
      %v5624 = vpop.f32.mrf.mxu0
      %v5625 = vadd.f32 0.0, %v5624
      %v5626 = vpop.f32.mrf.mxu0
      %v5627 = vadd.f32 0.0, %v5626
      %5628 = vmatmul.bf16.gmra.mxu0 %v625
      %v5629 = vpop.f32.mrf.mxu0
      %v5630 = vadd.f32 0.0, %v5629
      %v5631 = vpop.f32.mrf.mxu0
      %v5632 = vadd.f32 0.0, %v5631
      %5633 = vmatmul.bf16.gmra.mxu0 %v628
      %v5634 = vpop.f32.mrf.mxu0
      %v5635 = vadd.f32 0.0, %v5634
      %v5636 = vpop.f32.mrf.mxu0
      %v5637 = vadd.f32 0.0, %v5636
      %5638 = vmatmul.bf16.gmra.mxu0 %v631
      %v5639 = vpop.f32.mrf.mxu0
      %v5640 = vadd.f32 0.0, %v5639
      %v5641 = vpop.f32.mrf.mxu0
      %v5642 = vadd.f32 0.0, %v5641
      %5643 = vmatmul.bf16.gmra.mxu0 %v634
      %v5644 = vpop.f32.mrf.mxu0
      %v5645 = vadd.f32 0.0, %v5644
      %v5646 = vpop.f32.mrf.mxu0
      %v5647 = vadd.f32 0.0, %v5646
      %5648 = vmatmul.bf16.gmra.mxu0 %v637
      %v5649 = vpop.f32.mrf.mxu0
      %v5650 = vadd.f32 0.0, %v5649
      %v5651 = vpop.f32.mrf.mxu0
      %v5652 = vadd.f32 0.0, %v5651
      %5653 = vmatmul.bf16.gmra.mxu0 %v640
      %v5654 = vpop.f32.mrf.mxu0
      %v5655 = vadd.f32 0.0, %v5654
      %v5656 = vpop.f32.mrf.mxu0
      %v5657 = vadd.f32 0.0, %v5656
      %5658 = vmatmul.bf16.gmra.mxu0 %v643
      %v5659 = vpop.f32.mrf.mxu0
      %v5660 = vadd.f32 0.0, %v5659
      %v5661 = vpop.f32.mrf.mxu0
      %v5662 = vadd.f32 0.0, %v5661
      %5663 = vmatmul.bf16.gmra.mxu0 %v646
      %v5664 = vpop.f32.mrf.mxu0
      %v5665 = vadd.f32 0.0, %v5664
      %v5666 = vpop.f32.mrf.mxu0
      %v5667 = vadd.f32 0.0, %v5666
      %5668 = vmatmul.bf16.gmra.mxu0 %v649
      %v5669 = vpop.f32.mrf.mxu0
      %v5670 = vadd.f32 0.0, %v5669
      %v5671 = vpop.f32.mrf.mxu0
      %v5672 = vadd.f32 0.0, %v5671
      %5673 = vmatmul.bf16.gmra.mxu0 %v652
      %v5674 = vpop.f32.mrf.mxu0
      %v5675 = vadd.f32 0.0, %v5674
      %v5676 = vpop.f32.mrf.mxu0
      %v5677 = vadd.f32 0.0, %v5676
      %5678 = vmatmul.bf16.gmra.mxu0 %v655
      %v5679 = vpop.f32.mrf.mxu0
      %v5680 = vadd.f32 0.0, %v5679
      %v5681 = vpop.f32.mrf.mxu0
      %v5682 = vadd.f32 0.0, %v5681
      %5683 = vmatmul.bf16.gmra.mxu0 %v658
      %v5684 = vpop.f32.mrf.mxu0
      %v5685 = vadd.f32 0.0, %v5684
      %v5686 = vpop.f32.mrf.mxu0
      %v5687 = vadd.f32 0.0, %v5686
      %5688 = vmatmul.bf16.gmra.mxu0 %v661
      %v5689 = vpop.f32.mrf.mxu0
      %v5690 = vadd.f32 0.0, %v5689
      %v5691 = vpop.f32.mrf.mxu0
      %v5692 = vadd.f32 0.0, %v5691
      %5693 = vmatmul.bf16.gmra.mxu0 %v664
      %v5694 = vpop.f32.mrf.mxu0
      %v5695 = vadd.f32 0.0, %v5694
      %v5696 = vpop.f32.mrf.mxu0
      %v5697 = vadd.f32 0.0, %v5696
      %5698 = vmatmul.bf16.gmra.mxu0 %v667
      %v5699 = vpop.f32.mrf.mxu0
      %v5700 = vadd.f32 0.0, %v5699
      %v5701 = vpop.f32.mrf.mxu0
      %v5702 = vadd.f32 0.0, %v5701
      %5703 = vmatmul.bf16.gmra.mxu0 %v670
      %v5704 = vpop.f32.mrf.mxu0
      %v5705 = vadd.f32 0.0, %v5704
      %v5706 = vpop.f32.mrf.mxu0
      %v5707 = vadd.f32 0.0, %v5706
      %5708 = vmatmul.bf16.gmra.mxu0 %v673
      %v5709 = vpop.f32.mrf.mxu0
      %v5710 = vadd.f32 0.0, %v5709
      %v5711 = vpop.f32.mrf.mxu0
      %5712 = vmatmul.bf16.gmra.mxu0 %v676
      %v5713 = vpop.f32.mrf.mxu0
      %v5714 = vpop.f32.mrf.mxu0
      %5715 = vdwg.mxu0
      %v5716 = vld [vmem:[%s12] sm:$0x1]
      %v5718 = vperm.slane %v5716, 0
      %v5720 = vmul.f32 %v5620, %v5718
      %v5721 = vmul.f32 %v5622, %v5718
      %v5722 = vmul.f32 %v5625, %v5718
      %v5723 = vmul.f32 %v5627, %v5718
      %v5724 = vmul.f32 %v5630, %v5718
      %v5725 = vmul.f32 %v5632, %v5718
      %v5726 = vmul.f32 %v5635, %v5718
      %v5727 = vmul.f32 %v5637, %v5718
      %v5728 = vmul.f32 %v5640, %v5718
      %v5729 = vmul.f32 %v5642, %v5718
      %v5730 = vmul.f32 %v5645, %v5718
      %v5731 = vmul.f32 %v5647, %v5718
      %v5732 = vmul.f32 %v5650, %v5718
      %v5733 = vmul.f32 %v5652, %v5718
      %v5734 = vmul.f32 %v5655, %v5718
      %v5735 = vmul.f32 %v5657, %v5718
      %v5736 = vmul.f32 %v5660, %v5718
      %v5737 = vmul.f32 %v5662, %v5718
      %v5738 = vmul.f32 %v5665, %v5718
      %v5739 = vmul.f32 %v5667, %v5718
      %v5740 = vmul.f32 %v5670, %v5718
      %v5741 = vmul.f32 %v5672, %v5718
      %v5742 = vmul.f32 %v5675, %v5718
      %v5743 = vmul.f32 %v5677, %v5718
      %v5744 = vmul.f32 %v5680, %v5718
      %v5745 = vmul.f32 %v5682, %v5718
      %v5746 = vmul.f32 %v5685, %v5718
      %v5747 = vmul.f32 %v5687, %v5718
      %v5748 = vmul.f32 %v5690, %v5718
      %v5749 = vmul.f32 %v5692, %v5718
      %v5750 = vmul.f32 %v5695, %v5718
      %v5751 = vmul.f32 %v5697, %v5718
      %v5752 = vmul.f32 %v5700, %v5718
      %v5753 = vmul.f32 %v5702, %v5718
      %v5754 = vmul.f32 %v5705, %v5718
      %v5755 = vmul.f32 %v5707, %v5718
      %v5756 = vmul.f32 %v5710, %v5718
      %v5757 = vld [vmem:[%s13] sm:$0x1]
      %v5759 = vperm.slane %v5757, 0
      %v5761 = vadd.f32 %v5720, %v5759
      %v5762 = vadd.f32 %v5721, %v5759
      %v5763 = vadd.f32 %v5722, %v5759
      %v5764 = vadd.f32 %v5723, %v5759
      %v5765 = vadd.f32 %v5724, %v5759
      %v5766 = vadd.f32 %v5725, %v5759
      %v5767 = vadd.f32 %v5726, %v5759
      %v5768 = vadd.f32 %v5727, %v5759
      %v5769 = vadd.f32 %v5728, %v5759
      %v5770 = vadd.f32 %v5729, %v5759
      %v5771 = vadd.f32 %v5730, %v5759
      %v5772 = vadd.f32 %v5731, %v5759
      %v5773 = vadd.f32 %v5732, %v5759
      %v5774 = vadd.f32 %v5733, %v5759
      %v5775 = vadd.f32 %v5734, %v5759
      %v5776 = vadd.f32 %v5735, %v5759
      %v5777 = vadd.f32 %v5736, %v5759
      %v5778 = vadd.f32 %v5737, %v5759
      %v5779 = vadd.f32 %v5738, %v5759
      %v5780 = vadd.f32 %v5739, %v5759
      %v5781 = vadd.f32 %v5740, %v5759
      %v5782 = vadd.f32 %v5741, %v5759
      %v5783 = vadd.f32 %v5742, %v5759
      %v5784 = vadd.f32 %v5743, %v5759
      %v5785 = vadd.f32 %v5744, %v5759
      %v5786 = vadd.f32 %v5745, %v5759
      %v5787 = vadd.f32 %v5746, %v5759
      %v5788 = vadd.f32 %v5747, %v5759
      %v5789 = vadd.f32 %v5748, %v5759
      %v5790 = vadd.f32 %v5749, %v5759
      %v5791 = vadd.f32 %v5750, %v5759
      %v5792 = vadd.f32 %v5751, %v5759
      %v5793 = vadd.f32 %v5752, %v5759
      %v5794 = vadd.f32 %v5753, %v5759
      %v5795 = vadd.f32 %v5754, %v5759
      %v5796 = vadd.f32 %v5755, %v5759
      %v5797 = vadd.f32 %v5756, %v5759
      %v5835 = vrot.slane %v5761, 2
      %v5836 = vrot.slane %v5761, 4
      %v5837 = vrot.slane %v5761, 6
      %v5838 = vrot.slane %v5762, 2
      %v5839 = vrot.slane %v5762, 4
      %v5840 = vrot.slane %v5762, 6
      %v5841 = vrot.slane %v5763, 2
      %v5842 = vrot.slane %v5763, 4
      %v5843 = vrot.slane %v5763, 6
      %v5844 = vrot.slane %v5764, 2
      %v5845 = vrot.slane %v5764, 4
      %v5846 = vrot.slane %v5764, 6
      %v5847 = vrot.slane %v5765, 2
      %v5848 = vrot.slane %v5765, 4
      %v5849 = vrot.slane %v5765, 6
      %v5850 = vrot.slane %v5766, 2
      %v5851 = vrot.slane %v5766, 4
      %v5852 = vrot.slane %v5766, 6
      %v5853 = vrot.slane %v5767, 2
      %v5854 = vrot.slane %v5767, 4
      %v5855 = vrot.slane %v5767, 6
      %v5856 = vrot.slane %v5768, 2
      %v5857 = vrot.slane %v5768, 4
      %v5858 = vrot.slane %v5768, 6
      %v5859 = vrot.slane %v5769, 2
      %v5860 = vrot.slane %v5769, 4
      %v5861 = vrot.slane %v5769, 6
      %v5862 = vrot.slane %v5770, 2
      %v5863 = vrot.slane %v5770, 4
      %v5864 = vrot.slane %v5770, 6
      %v5865 = vrot.slane %v5771, 2
      %v5866 = vrot.slane %v5771, 4
      %v5867 = vrot.slane %v5771, 6
      %v5868 = vrot.slane %v5772, 2
      %v5869 = vrot.slane %v5772, 4
      %v5870 = vrot.slane %v5772, 6
      %v5871 = vrot.slane %v5773, 2
      %v5872 = vrot.slane %v5773, 4
      %v5873 = vrot.slane %v5773, 6
      %v5874 = vrot.slane %v5774, 2
      %v5875 = vrot.slane %v5774, 4
      %v5876 = vrot.slane %v5774, 6
      %v5877 = vrot.slane %v5775, 2
      %v5878 = vrot.slane %v5775, 4
      %v5879 = vrot.slane %v5775, 6
      %v5880 = vrot.slane %v5776, 2
      %v5881 = vrot.slane %v5776, 4
      %v5882 = vrot.slane %v5776, 6
      %v5883 = vrot.slane %v5777, 2
      %v5884 = vrot.slane %v5777, 4
      %v5885 = vrot.slane %v5777, 6
      %v5886 = vrot.slane %v5778, 2
      %v5887 = vrot.slane %v5778, 4
      %v5888 = vrot.slane %v5778, 6
      %v5889 = vrot.slane %v5779, 2
      %v5890 = vrot.slane %v5779, 4
      %v5891 = vrot.slane %v5779, 6
      %v5892 = vrot.slane %v5780, 2
      %v5893 = vrot.slane %v5780, 4
      %v5894 = vrot.slane %v5780, 6
      %v5895 = vrot.slane %v5781, 2
      %v5896 = vrot.slane %v5781, 4
      %v5897 = vrot.slane %v5781, 6
      %v5898 = vrot.slane %v5782, 2
      %v5899 = vrot.slane %v5782, 4
      %v5900 = vrot.slane %v5782, 6
      %v5901 = vrot.slane %v5783, 2
      %v5902 = vrot.slane %v5783, 4
      %v5903 = vrot.slane %v5783, 6
      %v5904 = vrot.slane %v5784, 2
      %v5905 = vrot.slane %v5784, 4
      %v5906 = vrot.slane %v5784, 6
      %v5907 = vrot.slane %v5785, 2
      %v5908 = vrot.slane %v5785, 4
      %v5909 = vrot.slane %v5785, 6
      %v5910 = vrot.slane %v5786, 2
      %v5911 = vrot.slane %v5786, 4
      %v5912 = vrot.slane %v5786, 6
      %v5913 = vrot.slane %v5787, 2
      %v5914 = vrot.slane %v5787, 4
      %v5915 = vrot.slane %v5787, 6
      %v5916 = vrot.slane %v5788, 2
      %v5917 = vrot.slane %v5788, 4
      %v5918 = vrot.slane %v5788, 6
      %v5919 = vrot.slane %v5789, 2
      %v5920 = vrot.slane %v5789, 4
      %v5921 = vrot.slane %v5789, 6
      %v5922 = vrot.slane %v5790, 2
      %v5923 = vrot.slane %v5790, 4
      %v5924 = vrot.slane %v5790, 6
      %v5925 = vrot.slane %v5791, 2
      %v5926 = vrot.slane %v5791, 4
      %v5927 = vrot.slane %v5791, 6
      %v5928 = vrot.slane %v5792, 2
      %v5929 = vrot.slane %v5792, 4
      %v5930 = vrot.slane %v5792, 6
      %v5931 = vrot.slane %v5793, 2
      %v5932 = vrot.slane %v5793, 4
      %v5933 = vrot.slane %v5793, 6
      %v5934 = vrot.slane %v5794, 2
      %v5935 = vrot.slane %v5794, 4
      %v5936 = vrot.slane %v5794, 6
      %v5937 = vrot.slane %v5795, 2
      %v5938 = vrot.slane %v5795, 4
      %v5939 = vrot.slane %v5795, 6
      %v5940 = vrot.slane %v5796, 2
      %v5941 = vrot.slane %v5796, 4
      %v5942 = vrot.slane %v5796, 6
      %v5943 = vrot.slane %v5835, 7
      %v5944 = vrot.slane %v5943, 2
      %v5945 = vrot.slane %v5836, 7
      %v5946 = vsel %vm1597, %v5944, %v5945
      %v5947 = vrot.slane %v5945, 2
      %v5948 = vrot.slane %v5837, 7
      %v5949 = vsel %vm1597, %v5947, %v5948
      %v5950 = vrot.slane %v5948, 2
      %v5951 = vrot.slane %v5762, 7
      %v5952 = vsel %vm1597, %v5950, %v5951
      %v5953 = vrot.slane %v5951, 2
      %v5954 = vrot.slane %v5838, 7
      %v5955 = vsel %vm1597, %v5953, %v5954
      %v5956 = vrot.slane %v5954, 2
      %v5957 = vrot.slane %v5839, 7
      %v5958 = vsel %vm1597, %v5956, %v5957
      %v5959 = vrot.slane %v5957, 2
      %v5960 = vrot.slane %v5840, 7
      %v5961 = vsel %vm1597, %v5959, %v5960
      %v5962 = vrot.slane %v5960, 2
      %v5963 = vrot.slane %v5763, 7
      %v5964 = vsel %vm1597, %v5962, %v5963
      %v5965 = vrot.slane %v5963, 2
      %v5966 = vrot.slane %v5841, 7
      %v5967 = vsel %vm1597, %v5965, %v5966
      %v5968 = vrot.slane %v5842, 7
      %v5969 = vrot.slane %v5968, 2
      %v5970 = vrot.slane %v5843, 7
      %v5971 = vsel %vm1597, %v5969, %v5970
      %v5972 = vrot.slane %v5970, 2
      %v5973 = vrot.slane %v5764, 7
      %v5974 = vsel %vm1597, %v5972, %v5973
      %v5975 = vrot.slane %v5973, 2
      %v5976 = vrot.slane %v5844, 7
      %v5977 = vsel %vm1597, %v5975, %v5976
      %v5978 = vrot.slane %v5976, 2
      %v5979 = vrot.slane %v5845, 7
      %v5980 = vsel %vm1597, %v5978, %v5979
      %v5981 = vrot.slane %v5979, 2
      %v5982 = vrot.slane %v5846, 7
      %v5983 = vsel %vm1597, %v5981, %v5982
      %v5984 = vrot.slane %v5982, 2
      %v5985 = vrot.slane %v5765, 7
      %v5986 = vsel %vm1597, %v5984, %v5985
      %v5987 = vrot.slane %v5985, 2
      %v5988 = vrot.slane %v5847, 7
      %v5989 = vsel %vm1597, %v5987, %v5988
      %v5990 = vrot.slane %v5988, 2
      %v5991 = vrot.slane %v5848, 7
      %v5992 = vsel %vm1597, %v5990, %v5991
      %v5993 = vrot.slane %v5849, 7
      %v5994 = vrot.slane %v5993, 2
      %v5995 = vrot.slane %v5766, 7
      %v5996 = vsel %vm1597, %v5994, %v5995
      %v5997 = vrot.slane %v5995, 2
      %v5998 = vrot.slane %v5850, 7
      %v5999 = vsel %vm1597, %v5997, %v5998
      %v6000 = vrot.slane %v5998, 2
      %v6001 = vrot.slane %v5851, 7
      %v6002 = vsel %vm1597, %v6000, %v6001
      %v6003 = vrot.slane %v6001, 2
      %v6004 = vrot.slane %v5852, 7
      %v6005 = vsel %vm1597, %v6003, %v6004
      %v6006 = vrot.slane %v6004, 2
      %v6007 = vrot.slane %v5767, 7
      %v6008 = vsel %vm1597, %v6006, %v6007
      %v6009 = vrot.slane %v6007, 2
      %v6010 = vrot.slane %v5853, 7
      %v6011 = vsel %vm1597, %v6009, %v6010
      %v6012 = vrot.slane %v6010, 2
      %v6013 = vrot.slane %v5854, 7
      %v6014 = vsel %vm1597, %v6012, %v6013
      %v6015 = vrot.slane %v6013, 2
      %v6016 = vrot.slane %v5855, 7
      %v6017 = vsel %vm1597, %v6015, %v6016
      %v6018 = vrot.slane %v5768, 7
      %v6019 = vrot.slane %v6018, 2
      %v6020 = vrot.slane %v5856, 7
      %v6021 = vsel %vm1597, %v6019, %v6020
      %v6022 = vrot.slane %v6020, 2
      %v6023 = vrot.slane %v5857, 7
      %v6024 = vsel %vm1597, %v6022, %v6023
      %v6025 = vrot.slane %v6023, 2
      %v6026 = vrot.slane %v5858, 7
      %v6027 = vsel %vm1597, %v6025, %v6026
      %v6028 = vrot.slane %v6026, 2
      %v6029 = vrot.slane %v5769, 7
      %v6030 = vsel %vm1597, %v6028, %v6029
      %v6031 = vrot.slane %v6029, 2
      %v6032 = vrot.slane %v5859, 7
      %v6033 = vsel %vm1597, %v6031, %v6032
      %v6034 = vrot.slane %v6032, 2
      %v6035 = vrot.slane %v5860, 7
      %v6036 = vsel %vm1597, %v6034, %v6035
      %v6037 = vrot.slane %v6035, 2
      %v6038 = vrot.slane %v5861, 7
      %v6039 = vsel %vm1597, %v6037, %v6038
      %v6040 = vrot.slane %v6038, 2
      %v6041 = vrot.slane %v5770, 7
      %v6042 = vsel %vm1597, %v6040, %v6041
      %v6043 = vrot.slane %v5862, 7
      %v6044 = vrot.slane %v6043, 2
      %v6045 = vrot.slane %v5863, 7
      %v6046 = vsel %vm1597, %v6044, %v6045
      %v6047 = vrot.slane %v6045, 2
      %v6048 = vrot.slane %v5864, 7
      %v6049 = vsel %vm1597, %v6047, %v6048
      %v6050 = vrot.slane %v6048, 2
      %v6051 = vrot.slane %v5771, 7
      %v6052 = vsel %vm1597, %v6050, %v6051
      %v6053 = vrot.slane %v6051, 2
      %v6054 = vrot.slane %v5865, 7
      %v6055 = vsel %vm1597, %v6053, %v6054
      %v6056 = vrot.slane %v6054, 2
      %v6057 = vrot.slane %v5866, 7
      %v6058 = vsel %vm1597, %v6056, %v6057
      %v6059 = vrot.slane %v6057, 2
      %v6060 = vrot.slane %v5867, 7
      %v6061 = vsel %vm1597, %v6059, %v6060
      %v6062 = vrot.slane %v6060, 2
      %v6063 = vrot.slane %v5772, 7
      %v6064 = vsel %vm1597, %v6062, %v6063
      %v6065 = vrot.slane %v6063, 2
      %v6066 = vrot.slane %v5868, 7
      %v6067 = vsel %vm1597, %v6065, %v6066
      %v6068 = vrot.slane %v5869, 7
      %v6069 = vrot.slane %v6068, 2
      %v6070 = vrot.slane %v5870, 7
      %v6071 = vsel %vm1597, %v6069, %v6070
      %v6072 = vrot.slane %v6070, 2
      %v6073 = vrot.slane %v5773, 7
      %v6074 = vsel %vm1597, %v6072, %v6073
      %v6075 = vrot.slane %v6073, 2
      %v6076 = vrot.slane %v5871, 7
      %v6077 = vsel %vm1597, %v6075, %v6076
      %v6078 = vrot.slane %v6076, 2
      %v6079 = vrot.slane %v5872, 7
      %v6080 = vsel %vm1597, %v6078, %v6079
      %v6081 = vrot.slane %v6079, 2
      %v6082 = vrot.slane %v5873, 7
      %v6083 = vsel %vm1597, %v6081, %v6082
      %v6084 = vrot.slane %v6082, 2
      %v6085 = vrot.slane %v5774, 7
      %v6086 = vsel %vm1597, %v6084, %v6085
      %v6087 = vrot.slane %v6085, 2
      %v6088 = vrot.slane %v5874, 7
      %v6089 = vsel %vm1597, %v6087, %v6088
      %v6090 = vrot.slane %v6088, 2
      %v6091 = vrot.slane %v5875, 7
      %v6092 = vsel %vm1597, %v6090, %v6091
      %v6093 = vrot.slane %v5876, 7
      %v6094 = vrot.slane %v6093, 2
      %v6095 = vrot.slane %v5775, 7
      %v6096 = vsel %vm1597, %v6094, %v6095
      %v6097 = vrot.slane %v6095, 2
      %v6098 = vrot.slane %v5877, 7
      %v6099 = vsel %vm1597, %v6097, %v6098
      %v6100 = vrot.slane %v6098, 2
      %v6101 = vrot.slane %v5878, 7
      %v6102 = vsel %vm1597, %v6100, %v6101
      %v6103 = vrot.slane %v6101, 2
      %v6104 = vrot.slane %v5879, 7
      %v6105 = vsel %vm1597, %v6103, %v6104
      %v6106 = vrot.slane %v6104, 2
      %v6107 = vrot.slane %v5776, 7
      %v6108 = vsel %vm1597, %v6106, %v6107
      %v6109 = vrot.slane %v6107, 2
      %v6110 = vrot.slane %v5880, 7
      %v6111 = vsel %vm1597, %v6109, %v6110
      %v6112 = vrot.slane %v6110, 2
      %v6113 = vrot.slane %v5881, 7
      %v6114 = vsel %vm1597, %v6112, %v6113
      %v6115 = vrot.slane %v6113, 2
      %v6116 = vrot.slane %v5882, 7
      %v6117 = vsel %vm1597, %v6115, %v6116
      %v6118 = vrot.slane %v5777, 7
      %v6119 = vrot.slane %v6118, 2
      %v6120 = vrot.slane %v5883, 7
      %v6121 = vsel %vm1597, %v6119, %v6120
      %v6122 = vrot.slane %v6120, 2
      %v6123 = vrot.slane %v5884, 7
      %v6124 = vsel %vm1597, %v6122, %v6123
      %v6125 = vrot.slane %v6123, 2
      %v6126 = vrot.slane %v5885, 7
      %v6127 = vsel %vm1597, %v6125, %v6126
      %v6128 = vrot.slane %v6126, 2
      %v6129 = vrot.slane %v5778, 7
      %v6130 = vsel %vm1597, %v6128, %v6129
      %v6131 = vrot.slane %v6129, 2
      %v6132 = vrot.slane %v5886, 7
      %v6133 = vsel %vm1597, %v6131, %v6132
      %v6134 = vrot.slane %v6132, 2
      %v6135 = vrot.slane %v5887, 7
      %v6136 = vsel %vm1597, %v6134, %v6135
      %v6137 = vrot.slane %v6135, 2
      %v6138 = vrot.slane %v5888, 7
      %v6139 = vsel %vm1597, %v6137, %v6138
      %v6140 = vrot.slane %v6138, 2
      %v6141 = vrot.slane %v5779, 7
      %v6142 = vsel %vm1597, %v6140, %v6141
      %v6143 = vrot.slane %v5889, 7
      %v6144 = vrot.slane %v6143, 2
      %v6145 = vrot.slane %v5890, 7
      %v6146 = vsel %vm1597, %v6144, %v6145
      %v6147 = vrot.slane %v6145, 2
      %v6148 = vrot.slane %v5891, 7
      %v6149 = vsel %vm1597, %v6147, %v6148
      %v6150 = vrot.slane %v6148, 2
      %v6151 = vrot.slane %v5780, 7
      %v6152 = vsel %vm1597, %v6150, %v6151
      %v6153 = vrot.slane %v6151, 2
      %v6154 = vrot.slane %v5892, 7
      %v6155 = vsel %vm1597, %v6153, %v6154
      %v6156 = vrot.slane %v6154, 2
      %v6157 = vrot.slane %v5893, 7
      %v6158 = vsel %vm1597, %v6156, %v6157
      %v6159 = vrot.slane %v6157, 2
      %v6160 = vrot.slane %v5894, 7
      %v6161 = vsel %vm1597, %v6159, %v6160
      %v6162 = vrot.slane %v6160, 2
      %v6163 = vrot.slane %v5781, 7
      %v6164 = vsel %vm1597, %v6162, %v6163
      %v6165 = vrot.slane %v6163, 2
      %v6166 = vrot.slane %v5895, 7
      %v6167 = vsel %vm1597, %v6165, %v6166
      %v6168 = vrot.slane %v5896, 7
      %v6169 = vrot.slane %v6168, 2
      %v6170 = vrot.slane %v5897, 7
      %v6171 = vsel %vm1597, %v6169, %v6170
      %v6172 = vrot.slane %v6170, 2
      %v6173 = vrot.slane %v5782, 7
      %v6174 = vsel %vm1597, %v6172, %v6173
      %v6175 = vrot.slane %v6173, 2
      %v6176 = vrot.slane %v5898, 7
      %v6177 = vsel %vm1597, %v6175, %v6176
      %v6178 = vrot.slane %v6176, 2
      %v6179 = vrot.slane %v5899, 7
      %v6180 = vsel %vm1597, %v6178, %v6179
      %v6181 = vrot.slane %v6179, 2
      %v6182 = vrot.slane %v5900, 7
      %v6183 = vsel %vm1597, %v6181, %v6182
      %v6184 = vrot.slane %v6182, 2
      %v6185 = vrot.slane %v5783, 7
      %v6186 = vsel %vm1597, %v6184, %v6185
      %v6187 = vrot.slane %v6185, 2
      %v6188 = vrot.slane %v5901, 7
      %v6189 = vsel %vm1597, %v6187, %v6188
      %v6190 = vrot.slane %v6188, 2
      %v6191 = vrot.slane %v5902, 7
      %v6192 = vsel %vm1597, %v6190, %v6191
      %v6193 = vrot.slane %v5903, 7
      %v6194 = vrot.slane %v6193, 2
      %v6195 = vrot.slane %v5784, 7
      %v6196 = vsel %vm1597, %v6194, %v6195
      %v6197 = vrot.slane %v6195, 2
      %v6198 = vrot.slane %v5904, 7
      %v6199 = vsel %vm1597, %v6197, %v6198
      %v6200 = vrot.slane %v6198, 2
      %v6201 = vrot.slane %v5905, 7
      %v6202 = vsel %vm1597, %v6200, %v6201
      %v6203 = vrot.slane %v6201, 2
      %v6204 = vrot.slane %v5906, 7
      %v6205 = vsel %vm1597, %v6203, %v6204
      %v6206 = vrot.slane %v6204, 2
      %v6207 = vrot.slane %v5785, 7
      %v6208 = vsel %vm1597, %v6206, %v6207
      %v6209 = vrot.slane %v6207, 2
      %v6210 = vrot.slane %v5907, 7
      %v6211 = vsel %vm1597, %v6209, %v6210
      %v6212 = vrot.slane %v6210, 2
      %v6213 = vrot.slane %v5908, 7
      %v6214 = vsel %vm1597, %v6212, %v6213
      %v6215 = vrot.slane %v6213, 2
      %v6216 = vrot.slane %v5909, 7
      %v6217 = vsel %vm1597, %v6215, %v6216
      %v6218 = vrot.slane %v5786, 7
      %v6219 = vrot.slane %v6218, 2
      %v6220 = vrot.slane %v5910, 7
      %v6221 = vsel %vm1597, %v6219, %v6220
      %v6222 = vrot.slane %v6220, 2
      %v6223 = vrot.slane %v5911, 7
      %v6224 = vsel %vm1597, %v6222, %v6223
      %v6225 = vrot.slane %v6223, 2
      %v6226 = vrot.slane %v5912, 7
      %v6227 = vsel %vm1597, %v6225, %v6226
      %v6228 = vrot.slane %v6226, 2
      %v6229 = vrot.slane %v5787, 7
      %v6230 = vsel %vm1597, %v6228, %v6229
      %v6231 = vrot.slane %v6229, 2
      %v6232 = vrot.slane %v5913, 7
      %v6233 = vsel %vm1597, %v6231, %v6232
      %v6234 = vrot.slane %v6232, 2
      %v6235 = vrot.slane %v5914, 7
      %v6236 = vsel %vm1597, %v6234, %v6235
      %v6237 = vrot.slane %v6235, 2
      %v6238 = vrot.slane %v5915, 7
      %v6239 = vsel %vm1597, %v6237, %v6238
      %v6240 = vrot.slane %v6238, 2
      %v6241 = vrot.slane %v5788, 7
      %v6242 = vsel %vm1597, %v6240, %v6241
      %v6243 = vrot.slane %v5916, 7
      %v6244 = vrot.slane %v6243, 2
      %v6245 = vrot.slane %v5917, 7
      %v6246 = vsel %vm1597, %v6244, %v6245
      %v6247 = vrot.slane %v6245, 2
      %v6248 = vrot.slane %v5918, 7
      %v6249 = vsel %vm1597, %v6247, %v6248
      %v6250 = vrot.slane %v6248, 2
      %v6251 = vrot.slane %v5789, 7
      %v6252 = vsel %vm1597, %v6250, %v6251
      %v6253 = vrot.slane %v6251, 2
      %v6254 = vrot.slane %v5919, 7
      %v6255 = vsel %vm1597, %v6253, %v6254
      %v6256 = vrot.slane %v6254, 2
      %v6257 = vrot.slane %v5920, 7
      %v6258 = vsel %vm1597, %v6256, %v6257
      %v6259 = vrot.slane %v6257, 2
      %v6260 = vrot.slane %v5921, 7
      %v6261 = vsel %vm1597, %v6259, %v6260
      %v6262 = vrot.slane %v6260, 2
      %v6263 = vrot.slane %v5790, 7
      %v6264 = vsel %vm1597, %v6262, %v6263
      %v6265 = vrot.slane %v6263, 2
      %v6266 = vrot.slane %v5922, 7
      %v6267 = vsel %vm1597, %v6265, %v6266
      %v6268 = vrot.slane %v5923, 7
      %v6269 = vrot.slane %v6268, 2
      %v6270 = vrot.slane %v5924, 7
      %v6271 = vsel %vm1597, %v6269, %v6270
      %v6272 = vrot.slane %v6270, 2
      %v6273 = vrot.slane %v5791, 7
      %v6274 = vsel %vm1597, %v6272, %v6273
      %v6275 = vrot.slane %v6273, 2
      %v6276 = vrot.slane %v5925, 7
      %v6277 = vsel %vm1597, %v6275, %v6276
      %v6278 = vrot.slane %v6276, 2
      %v6279 = vrot.slane %v5926, 7
      %v6280 = vsel %vm1597, %v6278, %v6279
      %v6281 = vrot.slane %v6279, 2
      %v6282 = vrot.slane %v5927, 7
      %v6283 = vsel %vm1597, %v6281, %v6282
      %v6284 = vrot.slane %v6282, 2
      %v6285 = vrot.slane %v5792, 7
      %v6286 = vsel %vm1597, %v6284, %v6285
      %v6287 = vrot.slane %v6285, 2
      %v6288 = vrot.slane %v5928, 7
      %v6289 = vsel %vm1597, %v6287, %v6288
      %v6290 = vrot.slane %v6288, 2
      %v6291 = vrot.slane %v5929, 7
      %v6292 = vsel %vm1597, %v6290, %v6291
      %v6293 = vrot.slane %v5930, 7
      %v6294 = vrot.slane %v6293, 2
      %v6295 = vrot.slane %v5793, 7
      %v6296 = vsel %vm1597, %v6294, %v6295
      %v6297 = vrot.slane %v6295, 2
      %v6298 = vrot.slane %v5931, 7
      %v6299 = vsel %vm1597, %v6297, %v6298
      %v6300 = vrot.slane %v6298, 2
      %v6301 = vrot.slane %v5932, 7
      %v6302 = vsel %vm1597, %v6300, %v6301
      %v6303 = vrot.slane %v6301, 2
      %v6304 = vrot.slane %v5933, 7
      %v6305 = vsel %vm1597, %v6303, %v6304
      %v6306 = vrot.slane %v6304, 2
      %v6307 = vrot.slane %v5794, 7
      %v6308 = vsel %vm1597, %v6306, %v6307
      %v6309 = vrot.slane %v6307, 2
      %v6310 = vrot.slane %v5934, 7
      %v6311 = vsel %vm1597, %v6309, %v6310
      %v6312 = vrot.slane %v6310, 2
      %v6313 = vrot.slane %v5935, 7
      %v6314 = vsel %vm1597, %v6312, %v6313
      %v6315 = vrot.slane %v6313, 2
      %v6316 = vrot.slane %v5936, 7
      %v6317 = vsel %vm1597, %v6315, %v6316
      %v6318 = vrot.slane %v5795, 7
      %v6319 = vrot.slane %v6318, 2
      %v6320 = vrot.slane %v5937, 7
      %v6321 = vsel %vm1597, %v6319, %v6320
      %v6322 = vrot.slane %v6320, 2
      %v6323 = vrot.slane %v5938, 7
      %v6324 = vsel %vm1597, %v6322, %v6323
      %v6325 = vrot.slane %v6323, 2
      %v6326 = vrot.slane %v5939, 7
      %v6327 = vsel %vm1597, %v6325, %v6326
      %v6328 = vrot.slane %v6326, 2
      %v6329 = vrot.slane %v5796, 7
      %v6330 = vsel %vm1597, %v6328, %v6329
      %v6331 = vrot.slane %v6329, 2
      %v6332 = vrot.slane %v5940, 7
      %v6333 = vsel %vm1597, %v6331, %v6332
      %v6334 = vrot.slane %v6332, 2
      %v6335 = vrot.slane %v5941, 7
      %v6336 = vsel %vm1597, %v6334, %v6335
      %v6337 = vrot.slane %v6335, 2
      %v6338 = vrot.slane %v5942, 7
      %v6339 = vsel %vm1597, %v6337, %v6338
      %v6340 = vrot.slane %v6338, 2
      %v6341 = vrot.slane %v5797, 7
      %v6342 = vsel %vm1597, %v6340, %v6341
      %6343 = vst [vmem:[#allocation1] ss:$4 sm:$0xff] %v5946
      %s6344 = scalar_lea.vmem [#allocation1], 1
      %6345 = vst [vmem:[%s6344] ss:$4 sm:$0xff] %v5949
      %s6346 = scalar_lea.vmem [#allocation1], 2
      %6347 = vst [vmem:[%s6346] ss:$4 sm:$0xff] %v5952
      %s6348 = scalar_lea.vmem [#allocation1], 3
      %6349 = vst [vmem:[%s6348] ss:$4 sm:$0xff] %v5955
      %s6350 = scalar_lea.vmem [#allocation1], 32
      %6351 = vst [vmem:[%s6350] ss:$4 sm:$0xff] %v5958
      %s6352 = scalar_lea.vmem [#allocation1], 33
      %6353 = vst [vmem:[%s6352] ss:$4 sm:$0xff] %v5961
      %s6354 = scalar_lea.vmem [#allocation1], 34
      %6355 = vst [vmem:[%s6354] ss:$4 sm:$0xff] %v5964
      %s6356 = scalar_lea.vmem [#allocation1], 35
      %6357 = vst [vmem:[%s6356] ss:$4 sm:$0xff] %v5967
      %v6358 = vld.sshfl [vmem:[#allocation1] sm:$0xff pattern:$0x73625140]
      %v6359 = vld.sshfl [vmem:[#allocation1 + $0x20] sm:$0xff pattern:$0x73625140]
      %6360 = vst [vmem:[#allocation1] ss:$4 sm:$0xff] %v5971
      %6361 = vst [vmem:[%s6344] ss:$4 sm:$0xff] %v5974
      %6362 = vst [vmem:[%s6346] ss:$4 sm:$0xff] %v5977
      %6363 = vst [vmem:[%s6348] ss:$4 sm:$0xff] %v5980
      %6364 = vst [vmem:[%s6350] ss:$4 sm:$0xff] %v5983
      %6365 = vst [vmem:[%s6352] ss:$4 sm:$0xff] %v5986
      %6366 = vst [vmem:[%s6354] ss:$4 sm:$0xff] %v5989
      %6367 = vst [vmem:[%s6356] ss:$4 sm:$0xff] %v5992
      %v6368 = vld.sshfl [vmem:[#allocation1] sm:$0xff pattern:$0x73625140]
      %v6369 = vld.sshfl [vmem:[#allocation1 + $0x20] sm:$0xff pattern:$0x73625140]
      %6370 = vst [vmem:[#allocation1] ss:$4 sm:$0xff] %v5996
      %6371 = vst [vmem:[%s6344] ss:$4 sm:$0xff] %v5999
      %6372 = vst [vmem:[%s6346] ss:$4 sm:$0xff] %v6002
      %6373 = vst [vmem:[%s6348] ss:$4 sm:$0xff] %v6005
      %6374 = vst [vmem:[%s6350] ss:$4 sm:$0xff] %v6008
      %6375 = vst [vmem:[%s6352] ss:$4 sm:$0xff] %v6011
      %6376 = vst [vmem:[%s6354] ss:$4 sm:$0xff] %v6014
      %6377 = vst [vmem:[%s6356] ss:$4 sm:$0xff] %v6017
      %v6378 = vld.sshfl [vmem:[#allocation1] sm:$0xff pattern:$0x73625140]
      %v6379 = vld.sshfl [vmem:[#allocation1 + $0x20] sm:$0xff pattern:$0x73625140]
      %6380 = vst [vmem:[#allocation1] ss:$4 sm:$0xff] %v6021
      %6381 = vst [vmem:[%s6344] ss:$4 sm:$0xff] %v6024
      %6382 = vst [vmem:[%s6346] ss:$4 sm:$0xff] %v6027
      %6383 = vst [vmem:[%s6348] ss:$4 sm:$0xff] %v6030
      %6384 = vst [vmem:[%s6350] ss:$4 sm:$0xff] %v6033
      %6385 = vst [vmem:[%s6352] ss:$4 sm:$0xff] %v6036
      %6386 = vst [vmem:[%s6354] ss:$4 sm:$0xff] %v6039
      %6387 = vst [vmem:[%s6356] ss:$4 sm:$0xff] %v6042
      %v6388 = vld.sshfl [vmem:[#allocation1] sm:$0xff pattern:$0x73625140]
      %v6389 = vld.sshfl [vmem:[#allocation1 + $0x20] sm:$0xff pattern:$0x73625140]
      %6390 = vst [vmem:[#allocation1] ss:$4 sm:$0xff] %v6046
      %6391 = vst [vmem:[%s6344] ss:$4 sm:$0xff] %v6049
      %6392 = vst [vmem:[%s6346] ss:$4 sm:$0xff] %v6052
      %6393 = vst [vmem:[%s6348] ss:$4 sm:$0xff] %v6055
      %6394 = vst [vmem:[%s6350] ss:$4 sm:$0xff] %v6058
      %6395 = vst [vmem:[%s6352] ss:$4 sm:$0xff] %v6061
      %6396 = vst [vmem:[%s6354] ss:$4 sm:$0xff] %v6064
      %6397 = vst [vmem:[%s6356] ss:$4 sm:$0xff] %v6067
      %v6398 = vld.sshfl [vmem:[#allocation1] sm:$0xff pattern:$0x73625140]
      %v6399 = vld.sshfl [vmem:[#allocation1 + $0x20] sm:$0xff pattern:$0x73625140]
      %6400 = vst [vmem:[#allocation1] ss:$4 sm:$0xff] %v6071
      %6401 = vst [vmem:[%s6344] ss:$4 sm:$0xff] %v6074
      %6402 = vst [vmem:[%s6346] ss:$4 sm:$0xff] %v6077
      %6403 = vst [vmem:[%s6348] ss:$4 sm:$0xff] %v6080
      %6404 = vst [vmem:[%s6350] ss:$4 sm:$0xff] %v6083
      %6405 = vst [vmem:[%s6352] ss:$4 sm:$0xff] %v6086
      %6406 = vst [vmem:[%s6354] ss:$4 sm:$0xff] %v6089
      %6407 = vst [vmem:[%s6356] ss:$4 sm:$0xff] %v6092
      %v6408 = vld.sshfl [vmem:[#allocation1] sm:$0xff pattern:$0x73625140]
      %v6409 = vld.sshfl [vmem:[#allocation1 + $0x20] sm:$0xff pattern:$0x73625140]
      %6410 = vst [vmem:[#allocation1] ss:$4 sm:$0xff] %v6096
      %6411 = vst [vmem:[%s6344] ss:$4 sm:$0xff] %v6099
      %6412 = vst [vmem:[%s6346] ss:$4 sm:$0xff] %v6102
      %6413 = vst [vmem:[%s6348] ss:$4 sm:$0xff] %v6105
      %6414 = vst [vmem:[%s6350] ss:$4 sm:$0xff] %v6108
      %6415 = vst [vmem:[%s6352] ss:$4 sm:$0xff] %v6111
      %6416 = vst [vmem:[%s6354] ss:$4 sm:$0xff] %v6114
      %6417 = vst [vmem:[%s6356] ss:$4 sm:$0xff] %v6117
      %v6418 = vld.sshfl [vmem:[#allocation1] sm:$0xff pattern:$0x73625140]
      %v6419 = vld.sshfl [vmem:[#allocation1 + $0x20] sm:$0xff pattern:$0x73625140]
      %6420 = vst [vmem:[#allocation1] ss:$4 sm:$0xff] %v6121
      %6421 = vst [vmem:[%s6344] ss:$4 sm:$0xff] %v6124
      %6422 = vst [vmem:[%s6346] ss:$4 sm:$0xff] %v6127
      %6423 = vst [vmem:[%s6348] ss:$4 sm:$0xff] %v6130
      %6424 = vst [vmem:[%s6350] ss:$4 sm:$0xff] %v6133
      %6425 = vst [vmem:[%s6352] ss:$4 sm:$0xff] %v6136
      %6426 = vst [vmem:[%s6354] ss:$4 sm:$0xff] %v6139
      %6427 = vst [vmem:[%s6356] ss:$4 sm:$0xff] %v6142
      %v6428 = vld.sshfl [vmem:[#allocation1] sm:$0xff pattern:$0x73625140]
      %v6429 = vld.sshfl [vmem:[#allocation1 + $0x20] sm:$0xff pattern:$0x73625140]
      %6430 = vst [vmem:[#allocation1] ss:$4 sm:$0xff] %v6146
      %6431 = vst [vmem:[%s6344] ss:$4 sm:$0xff] %v6149
      %6432 = vst [vmem:[%s6346] ss:$4 sm:$0xff] %v6152
      %6433 = vst [vmem:[%s6348] ss:$4 sm:$0xff] %v6155
      %6434 = vst [vmem:[%s6350] ss:$4 sm:$0xff] %v6158
      %6435 = vst [vmem:[%s6352] ss:$4 sm:$0xff] %v6161
      %6436 = vst [vmem:[%s6354] ss:$4 sm:$0xff] %v6164
      %6437 = vst [vmem:[%s6356] ss:$4 sm:$0xff] %v6167
      %v6438 = vld.sshfl [vmem:[#allocation1] sm:$0xff pattern:$0x73625140]
      %v6439 = vld.sshfl [vmem:[#allocation1 + $0x20] sm:$0xff pattern:$0x73625140]
      %6440 = vst [vmem:[#allocation1] ss:$4 sm:$0xff] %v6171
      %6441 = vst [vmem:[%s6344] ss:$4 sm:$0xff] %v6174
      %6442 = vst [vmem:[%s6346] ss:$4 sm:$0xff] %v6177
      %6443 = vst [vmem:[%s6348] ss:$4 sm:$0xff] %v6180
      %6444 = vst [vmem:[%s6350] ss:$4 sm:$0xff] %v6183
      %6445 = vst [vmem:[%s6352] ss:$4 sm:$0xff] %v6186
      %6446 = vst [vmem:[%s6354] ss:$4 sm:$0xff] %v6189
      %6447 = vst [vmem:[%s6356] ss:$4 sm:$0xff] %v6192
      %v6448 = vld.sshfl [vmem:[#allocation1] sm:$0xff pattern:$0x73625140]
      %v6449 = vld.sshfl [vmem:[#allocation1 + $0x20] sm:$0xff pattern:$0x73625140]
      %6450 = vst [vmem:[#allocation1] ss:$4 sm:$0xff] %v6196
      %6451 = vst [vmem:[%s6344] ss:$4 sm:$0xff] %v6199
      %6452 = vst [vmem:[%s6346] ss:$4 sm:$0xff] %v6202
      %6453 = vst [vmem:[%s6348] ss:$4 sm:$0xff] %v6205
      %6454 = vst [vmem:[%s6350] ss:$4 sm:$0xff] %v6208
      %6455 = vst [vmem:[%s6352] ss:$4 sm:$0xff] %v6211
      %6456 = vst [vmem:[%s6354] ss:$4 sm:$0xff] %v6214
      %6457 = vst [vmem:[%s6356] ss:$4 sm:$0xff] %v6217
      %v6458 = vld.sshfl [vmem:[#allocation1] sm:$0xff pattern:$0x73625140]
      %v6459 = vld.sshfl [vmem:[#allocation1 + $0x20] sm:$0xff pattern:$0x73625140]
      %6460 = vst [vmem:[#allocation1] ss:$4 sm:$0xff] %v6221
      %6461 = vst [vmem:[%s6344] ss:$4 sm:$0xff] %v6224
      %6462 = vst [vmem:[%s6346] ss:$4 sm:$0xff] %v6227
      %6463 = vst [vmem:[%s6348] ss:$4 sm:$0xff] %v6230
      %6464 = vst [vmem:[%s6350] ss:$4 sm:$0xff] %v6233
      %6465 = vst [vmem:[%s6352] ss:$4 sm:$0xff] %v6236
      %6466 = vst [vmem:[%s6354] ss:$4 sm:$0xff] %v6239
      %6467 = vst [vmem:[%s6356] ss:$4 sm:$0xff] %v6242
      %v6468 = vld.sshfl [vmem:[#allocation1] sm:$0xff pattern:$0x73625140]
      %v6469 = vld.sshfl [vmem:[#allocation1 + $0x20] sm:$0xff pattern:$0x73625140]
      %6470 = vst [vmem:[#allocation1] ss:$4 sm:$0xff] %v6246
      %6471 = vst [vmem:[%s6344] ss:$4 sm:$0xff] %v6249
      %6472 = vst [vmem:[%s6346] ss:$4 sm:$0xff] %v6252
      %6473 = vst [vmem:[%s6348] ss:$4 sm:$0xff] %v6255
      %6474 = vst [vmem:[%s6350] ss:$4 sm:$0xff] %v6258
      %6475 = vst [vmem:[%s6352] ss:$4 sm:$0xff] %v6261
      %6476 = vst [vmem:[%s6354] ss:$4 sm:$0xff] %v6264
      %6477 = vst [vmem:[%s6356] ss:$4 sm:$0xff] %v6267
      %v6478 = vld.sshfl [vmem:[#allocation1] sm:$0xff pattern:$0x73625140]
      %v6479 = vld.sshfl [vmem:[#allocation1 + $0x20] sm:$0xff pattern:$0x73625140]
      %6480 = vst [vmem:[#allocation1] ss:$4 sm:$0xff] %v6271
      %6481 = vst [vmem:[%s6344] ss:$4 sm:$0xff] %v6274
      %6482 = vst [vmem:[%s6346] ss:$4 sm:$0xff] %v6277
      %6483 = vst [vmem:[%s6348] ss:$4 sm:$0xff] %v6280
      %6484 = vst [vmem:[%s6350] ss:$4 sm:$0xff] %v6283
      %6485 = vst [vmem:[%s6352] ss:$4 sm:$0xff] %v6286
      %6486 = vst [vmem:[%s6354] ss:$4 sm:$0xff] %v6289
      %6487 = vst [vmem:[%s6356] ss:$4 sm:$0xff] %v6292
      %v6488 = vld.sshfl [vmem:[#allocation1] sm:$0xff pattern:$0x73625140]
      %v6489 = vld.sshfl [vmem:[#allocation1 + $0x20] sm:$0xff pattern:$0x73625140]
      %6490 = vst [vmem:[#allocation1] ss:$4 sm:$0xff] %v6296
      %6491 = vst [vmem:[%s6344] ss:$4 sm:$0xff] %v6299
      %6492 = vst [vmem:[%s6346] ss:$4 sm:$0xff] %v6302
      %6493 = vst [vmem:[%s6348] ss:$4 sm:$0xff] %v6305
      %6494 = vst [vmem:[%s6350] ss:$4 sm:$0xff] %v6308
      %6495 = vst [vmem:[%s6352] ss:$4 sm:$0xff] %v6311
      %6496 = vst [vmem:[%s6354] ss:$4 sm:$0xff] %v6314
      %6497 = vst [vmem:[%s6356] ss:$4 sm:$0xff] %v6317
      %v6498 = vld.sshfl [vmem:[#allocation1] sm:$0xff pattern:$0x73625140]
      %v6499 = vld.sshfl [vmem:[#allocation1 + $0x20] sm:$0xff pattern:$0x73625140]
      %6500 = vst [vmem:[#allocation1] ss:$4 sm:$0xff] %v6321
      %6501 = vst [vmem:[%s6344] ss:$4 sm:$0xff] %v6324
      %6502 = vst [vmem:[%s6346] ss:$4 sm:$0xff] %v6327
      %6503 = vst [vmem:[%s6348] ss:$4 sm:$0xff] %v6330
      %6504 = vst [vmem:[%s6350] ss:$4 sm:$0xff] %v6333
      %6505 = vst [vmem:[%s6352] ss:$4 sm:$0xff] %v6336
      %6506 = vst [vmem:[%s6354] ss:$4 sm:$0xff] %v6339
      %6507 = vst [vmem:[%s6356] ss:$4 sm:$0xff] %v6342
      %v6508 = vld.sshfl [vmem:[#allocation1] sm:$0xff pattern:$0x73625140]
      %v6509 = vld.sshfl [vmem:[#allocation1 + $0x20] sm:$0xff pattern:$0x73625140]
      %v6542 = vadd.f32 %v5571, %v6358
      %v6543 = vadd.f32 %v5572, %v6359
      %v6544 = vadd.f32 %v5573, %v6368
      %v6545 = vadd.f32 %v5574, %v6369
      %v6546 = vadd.f32 %v5575, %v6378
      %v6547 = vadd.f32 %v5576, %v6379
      %v6548 = vadd.f32 %v5577, %v6388
      %v6549 = vadd.f32 %v5578, %v6389
      %v6550 = vadd.f32 %v5579, %v6398
      %v6551 = vadd.f32 %v5580, %v6399
      %v6552 = vadd.f32 %v5581, %v6408
      %v6553 = vadd.f32 %v5582, %v6409
      %v6554 = vadd.f32 %v5583, %v6418
      %v6555 = vadd.f32 %v5584, %v6419
      %v6556 = vadd.f32 %v5585, %v6428
      %v6557 = vadd.f32 %v5586, %v6429
      %v6558 = vadd.f32 %v5587, %v6438
      %v6559 = vadd.f32 %v5588, %v6439
      %v6560 = vadd.f32 %v5589, %v6448
      %v6561 = vadd.f32 %v5590, %v6449
      %v6562 = vadd.f32 %v5591, %v6458
      %v6563 = vadd.f32 %v5592, %v6459
      %v6564 = vadd.f32 %v5593, %v6468
      %v6565 = vadd.f32 %v5594, %v6469
      %v6566 = vadd.f32 %v5595, %v6478
      %v6567 = vadd.f32 %v5596, %v6479
      %v6568 = vadd.f32 %v5597, %v6488
      %v6569 = vadd.f32 %v5598, %v6489
      %v6570 = vadd.f32 %v5599, %v6498
      %v6571 = vadd.f32 %v5600, %v6499
      %v6572 = vadd.f32 %v5601, %v6508
      %v6573 = vadd.f32 %v5602, %v6509
      %v6574 = vmax.f32 %v6542, 0.0
      %v6575 = vmax.f32 %v6543, 0.0
      %v6576 = vmax.f32 %v6544, 0.0
      %v6577 = vmax.f32 %v6545, 0.0
      %v6578 = vmax.f32 %v6546, 0.0
      %v6579 = vmax.f32 %v6547, 0.0
      %v6580 = vmax.f32 %v6548, 0.0
      %v6581 = vmax.f32 %v6549, 0.0
      %v6582 = vmax.f32 %v6550, 0.0
      %v6583 = vmax.f32 %v6551, 0.0
      %v6584 = vmax.f32 %v6552, 0.0
      %v6585 = vmax.f32 %v6553, 0.0
      %v6586 = vmax.f32 %v6554, 0.0
      %v6587 = vmax.f32 %v6555, 0.0
      %v6588 = vmax.f32 %v6556, 0.0
      %v6589 = vmax.f32 %v6557, 0.0
      %v6590 = vmax.f32 %v6558, 0.0
      %v6591 = vmax.f32 %v6559, 0.0
      %v6592 = vmax.f32 %v6560, 0.0
      %v6593 = vmax.f32 %v6561, 0.0
      %v6594 = vmax.f32 %v6562, 0.0
      %v6595 = vmax.f32 %v6563, 0.0
      %v6596 = vmax.f32 %v6564, 0.0
      %v6597 = vmax.f32 %v6565, 0.0
      %v6598 = vmax.f32 %v6566, 0.0
      %v6599 = vmax.f32 %v6567, 0.0
      %v6600 = vmax.f32 %v6568, 0.0
      %v6601 = vmax.f32 %v6569, 0.0
      %v6602 = vmax.f32 %v6570, 0.0
      %v6603 = vmax.f32 %v6571, 0.0
      %v6604 = vmax.f32 %v6572, 0.0
      %v6605 = vmax.f32 %v6573, 0.0
      %vm6606 = vcmask 261120
      %6607 = vst.msk [vmem:[%s467] sm:$0xff] %vm6606, %v6574
      %6608 = vst.msk [vmem:[%s467 + $0x8] sm:$0xff] %vm6606, %v6575
      %6609 = vst.msk [vmem:[%s467 + $0x10] sm:$0xff] %vm6606, %v6576
      %6610 = vst.msk [vmem:[%s467 + $0x18] sm:$0xff] %vm6606, %v6577
      %6611 = vst.msk [vmem:[%s467 + $0x20] sm:$0xff] %vm6606, %v6578
      %6612 = vst.msk [vmem:[%s467 + $0x28] sm:$0xff] %vm6606, %v6579
      %6613 = vst.msk [vmem:[%s467 + $0x30] sm:$0xff] %vm6606, %v6580
      %6614 = vst.msk [vmem:[%s467 + $0x38] sm:$0xff] %vm6606, %v6581
      %6615 = vst.msk [vmem:[%s467 + $0x40] sm:$0xff] %vm6606, %v6582
      %6616 = vst.msk [vmem:[%s467 + $0x48] sm:$0xff] %vm6606, %v6583
      %6617 = vst.msk [vmem:[%s467 + $0x50] sm:$0xff] %vm6606, %v6584
      %6618 = vst.msk [vmem:[%s467 + $0x58] sm:$0xff] %vm6606, %v6585
      %6619 = vst.msk [vmem:[%s467 + $0x60] sm:$0xff] %vm6606, %v6586
      %6620 = vst.msk [vmem:[%s467 + $0x68] sm:$0xff] %vm6606, %v6587
      %6621 = vst.msk [vmem:[%s467 + $0x70] sm:$0xff] %vm6606, %v6588
      %6622 = vst.msk [vmem:[%s467 + $0x78] sm:$0xff] %vm6606, %v6589
      %6623 = vst.msk [vmem:[%s467 + $0x80] sm:$0xff] %vm6606, %v6590
      %6624 = vst.msk [vmem:[%s467 + $0x88] sm:$0xff] %vm6606, %v6591
      %6625 = vst.msk [vmem:[%s467 + $0x90] sm:$0xff] %vm6606, %v6592
      %6626 = vst.msk [vmem:[%s467 + $0x98] sm:$0xff] %vm6606, %v6593
      %6627 = vst.msk [vmem:[%s467 + $0xa0] sm:$0xff] %vm6606, %v6594
      %6628 = vst.msk [vmem:[%s467 + $0xa8] sm:$0xff] %vm6606, %v6595
      %6629 = vst.msk [vmem:[%s467 + $0xb0] sm:$0xff] %vm6606, %v6596
      %6630 = vst.msk [vmem:[%s467 + $0xb8] sm:$0xff] %vm6606, %v6597
      %6631 = vst.msk [vmem:[%s467 + $0xc0] sm:$0xff] %vm6606, %v6598
      %6632 = vst.msk [vmem:[%s467 + $0xc8] sm:$0xff] %vm6606, %v6599
      %6633 = vst.msk [vmem:[%s467 + $0xd0] sm:$0xff] %vm6606, %v6600
      %6634 = vst.msk [vmem:[%s467 + $0xd8] sm:$0xff] %vm6606, %v6601
      %6635 = vst.msk [vmem:[%s467 + $0xe0] sm:$0xff] %vm6606, %v6602
      %6636 = vst.msk [vmem:[%s467 + $0xe8] sm:$0xff] %vm6606, %v6603
      %6637 = vst.msk [vmem:[%s467 + $0xf0] sm:$0xff] %vm6606, %v6604
      %6638 = vst.msk [vmem:[%s467 + $0xf8] sm:$0xff] %vm6606, %v6605
      %p6639 = scmp.lt.s32.totalorder %s25, 1
      %s6640 = scalar_select %p6639, %s25, 1
      %s6641 = smul.addr %s6640, 32
      %s6642 = smul.addr %s6641, 8
      %s6643 = scalar_lea.vmem %s14, %s6642
      // Predicated region
      $region77: #{tpu_custom_call.1} parent=75 // pred_check
        %p6644 = pneg %p342
      $region78: #{tpu_custom_call.1} parent=75 // pred_check_branch
        %6646 = sbr.rel (%p6644) target = $region80
      $region79: #{tpu_custom_call.1} parent=75 // pred_region
        _
      $region80: #{tpu_custom_call.1} parent=75 // pred_fallthru
        _
    $region76: #{tpu_custom_call.1} parent=5 // pred_fallthru
      _
    %p6647 = scmp.le.s32.totalorder 2, %s20
    // Predicated region
    $region81: #{tpu_custom_call.1} parent=5 // pred_check
      %p6648 = pneg %p6647
    $region82: #{tpu_custom_call.1} parent=5 // pred_check_branch
      %6650 = sbr.rel (%p6648) target = $region84
    $region83: #{tpu_custom_call.1} parent=5 // pred_region
      %s6651 = ssub.s32 %s20, 2
      // Predicated region
      $region85: #{tpu_custom_call.1} parent=83 // pred_check
        %p6652 = pneg %p348
      $region86: #{tpu_custom_call.1} parent=83 // pred_check_branch
        %6654 = sbr.rel (%p6652) target = $region88
      $region87: #{tpu_custom_call.1} parent=83 // pred_region
        %p6655 = scmp.lt.s32.totalorder %s26, 1
        %s6656 = scalar_select %p6655, %s26, 1
        %s6657 = smul.addr %s6656, 32
        %s6658 = smul.addr %s6657, 8
        %s6659 = scalar_lea.vmem %s14, %s6658
      $region88: #{tpu_custom_call.1} parent=83 // pred_fallthru
        _
    $region84: #{tpu_custom_call.1} parent=5 // pred_fallthru
      _
  $region6: #{tpu_custom_call.1} parent=0 // loop_footer
    %s24 = sadd.s32 1, %s20
  $region7: #{tpu_custom_call.1} parent=0 // loop_footer_branch
    %19 = sbr.rel target = $region3
  $region8: #{tpu_custom_call.1} parent=0 // loop_exit
    _

</llo_original>
